<compile_context>
chip_gen: v6e
topology: v6e:2x2x1
jax: 0.10.0
libtpu: 0.0.40
codegen_flags: <defaults>
</compile_context>

<pallas_src>
import functools

import jax
import jax.numpy as jnp
from jax.experimental import pallas as pl
from jax.experimental.pallas import tpu as pltpu

_FEAT_ALIGN = 256       # feature-vector padding granularity == GEMM tile size
_GEMM_TILE = 256


def _round_up(x, m):
    return ((x + m - 1) // m) * m


def _pick_vmem_limit():
    """Per-generation scoped-VMEM budget (128-MiB-VMEM parts get more headroom)."""
    try:
        kind = jax.devices()[0].device_kind.lower()
    except Exception:
        return 32 * 1024 * 1024
    if ("v4" in kind) or ("v5" in kind) or ("v6" in kind):
        return 64 * 1024 * 1024
    return 32 * 1024 * 1024   # v7x (64 MiB/TC) and unknown parts: conservative


_VMEM_LIMIT = _pick_vmem_limit()


# ----------------------------------------------------------------------------
# Kernel 1: fused 3x3 conv + bias + ReLU [+ BN affine] [+ 2x2 max-pool]
#           (one grid step == one batch image)
# ----------------------------------------------------------------------------
def _conv_stage_kernel(*refs, Wp, L, pool, apply_bn):
    """Per grid step (one image):

    x_ref:  (Tp, Cin)   zero-padded image flattened on the padded grid,
            Tp = (H+2)*(W+2); flat row r = i*Wp + j for padded coords (i, j).
    w_ref:  (3, 3, Cin, Cout) HWIO weight.
    b_ref / scale_ref / shift_ref: (1, Cout).
    pool=False: o_ref (Tp, Cout) flat conv output (valid rows h*Wp + w, h<H, w<W).
    pool=True : o_ref (Ho, Wo, Cout) pooled output; ys_ref (L, Cout) VMEM scratch.

    Output flat row r needs input rows r + kh*Wp + kw, so every tap is a
    contiguous 2-D slice -> 9 accumulated MXU GEMMs (no im2col).  For pooled
    stages the activation stays in VMEM and the 2x2/stride-2 pool is done with
    stride-2 sublane loads, so the full conv output never touches HBM.
    """
    if apply_bn:
        x_ref, w_ref, b_ref, scale_ref, shift_ref = refs[:5]
        rest = refs[5:]
    else:
        x_ref, w_ref, b_ref = refs[:3]
        scale_ref = shift_ref = None
        rest = refs[3:]
    if pool:
        o_ref, ys_ref = rest
    else:
        (o_ref,) = rest

    cout = w_ref.shape[-1]
    acc = jnp.zeros((L, cout), jnp.float32)
    for kh in range(3):
        for kw in range(3):
            off = kh * Wp + kw
            acc = acc + jnp.dot(x_ref[off:off + L, :], w_ref[kh, kw],
                                preferred_element_type=jnp.float32)

    y = jnp.maximum(acc + b_ref[...], 0.0)          # conv bias + ReLU
    if apply_bn:                                    # folded eval-mode BatchNorm
        y = y * scale_ref[...] + shift_ref[...]     # (Conv -> ReLU -> BN order)

    if not pool:
        o_ref[0:L, :] = y.astype(o_ref.dtype)
        o_ref[L:, :] = jnp.zeros((o_ref.shape[0] - L, cout), o_ref.dtype)
        return

    ys_ref[...] = y                                 # stays in VMEM
    Ho, Wo = o_ref.shape[0], o_ref.shape[1]
    for ho in range(Ho):                            # static unroll, static slices
        q = 2 * ho * Wp
        p00 = ys_ref[pl.ds(q,          Wo, stride=2), :]   # row 2ho  , even w
        p01 = ys_ref[pl.ds(q + 1,      Wo, stride=2), :]   # row 2ho  , odd  w
        p10 = ys_ref[pl.ds(q + Wp,     Wo, stride=2), :]   # row 2ho+1, even w
        p11 = ys_ref[pl.ds(q + Wp + 1, Wo, stride=2), :]   # row 2ho+1, odd  w
        o_ref[ho] = jnp.maximum(jnp.maximum(p00, p01),
                                jnp.maximum(p10, p11)).astype(o_ref.dtype)


def conv_stage(x_nhwc, w_hwio, bias, *, pool, scale=None, shift=None):
    """3x3 conv (stride 1, pad 1) + bias + ReLU [+ BN affine] [+ 2x2 max-pool]."""
    B, H, W, Cin = x_nhwc.shape
    Cout = w_hwio.shape[-1]
    Hp, Wp = H + 2, W + 2
    Tp = Hp * Wp
    L = Tp - 2 * Wp - 2          # covers every valid output row for every tap
    apply_bn = scale is not None

    # jnp.pad + contiguous reshape: the only XLA-side copy (~1.3x activation).
    xflat = jnp.pad(x_nhwc, ((0, 0), (1, 1), (1, 1), (0, 0))).reshape(B, Tp, Cin)

    inputs = [xflat, w_hwio, bias.reshape(1, Cout)]
    in_specs = [
        pl.BlockSpec((None, Tp, Cin), lambda b: (b, 0, 0)),
        pl.BlockSpec((3, 3, Cin, Cout), lambda b: (0, 0, 0, 0)),
        pl.BlockSpec((1, Cout), lambda b: (0, 0)),
    ]
    if apply_bn:
        inputs += [scale.reshape(1, Cout), shift.reshape(1, Cout)]
        in_specs += [pl.BlockSpec((1, Cout), lambda b: (0, 0)),
                     pl.BlockSpec((1, Cout), lambda b: (0, 0))]

    if pool:
        Ho, Wo = H // 2, W // 2
        out_shape = jax.ShapeDtypeStruct((B, Ho, Wo, Cout), jnp.float32)
        out_spec = pl.BlockSpec((None, Ho, Wo, Cout), lambda b: (b, 0, 0, 0))
        scratch = [pltpu.VMEM((L, Cout), jnp.float32)]
    else:
        out_shape = jax.ShapeDtypeStruct((B, Tp, Cout), jnp.float32)
        out_spec = pl.BlockSpec((None, Tp, Cout), lambda b: (b, 0, 0))
        scratch = []

    kernel = functools.partial(_conv_stage_kernel, Wp=Wp, L=L,
                               pool=pool, apply_bn=apply_bn)
    return pl.pallas_call(
        kernel,
        out_shape=out_shape,
        grid_spec=pltpu.PrefetchScalarGridSpec(
            num_scalar_prefetch=0,
            grid=(B,),
            in_specs=in_specs,
            out_specs=out_spec,
            scratch_shapes=scratch),
        compiler_params=pltpu.CompilerParams(
            dimension_semantics=("parallel",),      # image-parallel (v7x megacore)
            vmem_limit_bytes=_VMEM_LIMIT),
    )(*inputs)


# ----------------------------------------------------------------------------
# Kernel 2: fused attention Linear + ReLU + sigmoid gate   (tiled GEMM)
#   o = sigmoid(weight * relu(x1 @ Wa + ba)) * x1
# ----------------------------------------------------------------------------
def _attn_gate_kernel(x_ref, w_ref, b_ref, wt_ref, xg_ref, o_ref, acc_ref):
    k = pl.program_id(1)

    @pl.when(k == 0)
    def _():
        acc_ref[...] = jnp.zeros_like(acc_ref)

    # bf16 operands, f32 accumulation on the MXU.
    acc_ref[...] += jnp.dot(x_ref[...].astype(w_ref.dtype), w_ref[...],
                            preferred_element_type=jnp.float32)

    @pl.when(k == pl.num_programs(1) - 1)
    def _():
        a = jnp.maximum(acc_ref[...] + b_ref[...], 0.0)     # ReLU(attention(x1))
        gate = 1.0 / (1.0 + jnp.exp(-(wt_ref[...] * a)))    # sigmoid (EUP)
        o_ref[...] = (gate * xg_ref[...]).astype(o_ref.dtype)


def attention_gate_fused(x1p, attn_w_p, attn_b_p, weight_p,
                         *, tn=_GEMM_TILE, tk=_GEMM_TILE):
    Bm, Kp = x1p.shape
    Np = attn_w_p.shape[1]
    grid = (Np // tn, Kp // tk)                     # (N tiles, K reduction)
    # NOTE: if profiling shows exposed weight DMA between k-steps, add
    # pipeline_mode=pl.Buffered(3) on the weight BlockSpec.
    return pl.pallas_call(
        _attn_gate_kernel,
        out_shape=jax.ShapeDtypeStruct((Bm, Np), jnp.float32),
        grid_spec=pltpu.PrefetchScalarGridSpec(
            num_scalar_prefetch=0,
            grid=grid,
            in_specs=[
                pl.BlockSpec((Bm, tk), lambda j, k: (0, k)),   # x1 (reduction operand)
                pl.BlockSpec((tk, tn), lambda j, k: (k, j)),   # attention weight (bf16)
                pl.BlockSpec((1, tn), lambda j, k: (0, j)),    # attention bias
                pl.BlockSpec((1, tn), lambda j, k: (0, j)),    # self.weight
                pl.BlockSpec((Bm, tn), lambda j, k: (0, j)),   # x1 (gate operand)
            ],
            out_specs=pl.BlockSpec((Bm, tn), lambda j, k: (0, j)),
            scratch_shapes=[pltpu.VMEM((Bm, tn), jnp.float32)],
        ),
        compiler_params=pltpu.CompilerParams(
            dimension_semantics=("parallel", "arbitrary"),
            vmem_limit_bytes=_VMEM_LIMIT),
        cost_estimate=pl.CostEstimate(
            flops=2 * Bm * Kp * Np,
            transcendentals=Bm * Np,
            bytes_accessed=attn_w_p.dtype.itemsize * Kp * Np
                           + 4 * (Bm * Kp + 3 * Bm * Np + 2 * Np)),
    )(x1p, attn_w_p, attn_b_p.reshape(1, Np), weight_p.reshape(1, Np), x1p)


# ----------------------------------------------------------------------------
# Kernel 3: fused fc head: relu(x @ W1 + b1) [dropout eval] @ W2 + b2
#           (single 256-wide hidden tile -> one reduction grid axis)
# ----------------------------------------------------------------------------
def _fc_head_kernel(x_ref, w1_ref, b1_ref, w2_ref, b2_ref, o_ref, acc_ref):
    k = pl.program_id(0)

    @pl.when(k == 0)
    def _():
        acc_ref[...] = jnp.zeros_like(acc_ref)

    acc_ref[...] += jnp.dot(x_ref[...].astype(w1_ref.dtype), w1_ref[...],
                            preferred_element_type=jnp.float32)

    @pl.when(k == pl.num_programs(0) - 1)
    def _():
        h = jnp.maximum(acc_ref[...] + b1_ref[...], 0.0)    # fc1 + ReLU
        # TODO(synk): nn.Dropout applied in eval mode (identity); no RNG dropout path.
        o_ref[...] = (jnp.dot(h, w2_ref[...], preferred_element_type=jnp.float32)
                      + b2_ref[...]).astype(o_ref.dtype)


def fc_head(x1p, w1_p, b1, w2, b2, *, tk=_GEMM_TILE):
    Bm, Kp = x1p.shape
    H1 = w1_p.shape[1]
    Ncls = w2.shape[1]
    return pl.pallas_call(
        _fc_head_kernel,
        out_shape=jax.ShapeDtypeStruct((Bm, Ncls), jnp.float32),
        grid_spec=pltpu.PrefetchScalarGridSpec(
            num_scalar_prefetch=0,
            grid=(Kp // tk,),
            in_specs=[
                pl.BlockSpec((Bm, tk), lambda k: (0, k)),    # gated features
                pl.BlockSpec((tk, H1), lambda k: (k, 0)),    # fc1 weight (bf16)
                pl.BlockSpec((1, H1), lambda k: (0, 0)),     # fc1 bias
                pl.BlockSpec((H1, Ncls), lambda k: (0, 0)),  # fc2 weight
                pl.BlockSpec((1, Ncls), lambda k: (0, 0)),   # fc2 bias
            ],
            out_specs=pl.BlockSpec((Bm, Ncls), lambda k: (0, 0)),
            scratch_shapes=[pltpu.VMEM((Bm, H1), jnp.float32)],
        ),
        compiler_params=pltpu.CompilerParams(
            dimension_semantics=("arbitrary",),
            vmem_limit_bytes=_VMEM_LIMIT),
    )(x1p, w1_p, b1.reshape(1, H1), w2, b2.reshape(1, Ncls))


# ----------------------------------------------------------------------------
# Parameters (deterministic, synthetic; mirrors the PyTorch module's shapes)
# ----------------------------------------------------------------------------
def init_params(key, image_size, image_depth, num_classes):
    s = image_size // 2 ** 3
    fvs = s * s * 70
    ks = jax.random.split(key, 8)

    def xavier(k, shape, fan_in, fan_out):
        bound = jnp.sqrt(6.0 / (fan_in + fan_out))
        return jax.random.uniform(k, shape, jnp.float32, -bound, bound)

    def conv_w(k, cin, cout):
        return xavier(k, (3, 3, cin, cout), 9 * cin, 9 * cout)

    return {
        "conv1_w": conv_w(ks[0], image_depth, 128), "conv1_b": jnp.full((128,), 0.01, jnp.float32),
        "conv2_w": conv_w(ks[1], 128, 128), "conv2_b": jnp.full((128,), 0.01, jnp.float32),
        "conv3_w": conv_w(ks[2], 128, 128), "conv3_b": jnp.full((128,), 0.01, jnp.float32),
        "conv4_w": conv_w(ks[3], 128, 70), "conv4_b": jnp.full((70,), 0.01, jnp.float32),
        "bn_gamma": jnp.ones((128,), jnp.float32), "bn_beta": jnp.zeros((128,), jnp.float32),
        "bn_mean": jnp.zeros((128,), jnp.float32), "bn_var": jnp.ones((128,), jnp.float32),
        # attention Linear(fvs, fvs) stored as (in, out)
        "attn_w": xavier(ks[4], (fvs, fvs), fvs, fvs),
        "attn_b": jnp.full((fvs,), 0.01, jnp.float32),
        # self.weight = randn(1, fvs) * 0.05
        "weight": jax.random.normal(ks[5], (1, fvs), jnp.float32) * 0.05,
        "fc1_w": xavier(ks[6], (fvs, 256), fvs, 256),
        "fc1_b": jnp.full((256,), 0.01, jnp.float32),
        "fc2_w": xavier(ks[7], (256, num_classes), 256, num_classes),
        "fc2_b": jnp.full((num_classes,), 0.01, jnp.float32),
    }


def prepare_params(params, image_size):
    """One-time (outside the forward jit) weight padding / dtype prep."""
    s = image_size // 2 ** 3
    fvs = s * s * 70
    fvs_p = _round_up(fvs, _FEAT_ALIGN)
    pad_f = fvs_p - fvs

    # TODO(synk): training-mode BatchNorm (batch statistics) not implemented;
    # eval-mode running stats folded into a per-channel affine applied AFTER
    # ReLU (matching the module's Conv -> ReLU -> BatchNorm -> MaxPool order).
    bn_scale = params["bn_gamma"] / jnp.sqrt(params["bn_var"] + 1e-5)
    bn_shift = params["bn_beta"] - params["bn_mean"] * bn_scale

    return {
        "conv1_w": params["conv1_w"], "conv1_b": params["conv1_b"],
        "conv2_w": params["conv2_w"], "conv2_b": params["conv2_b"],
        "conv3_w": params["conv3_w"], "conv3_b": params["conv3_b"],
        # conv4: Cout 70 -> 128 zero-pad so MXU output is lane-dense (padded ch == 0).
        "conv4_w": jnp.pad(params["conv4_w"], ((0, 0), (0, 0), (0, 0), (0, 128 - 70))),
        "conv4_b": jnp.pad(params["conv4_b"], ((0, 128 - 70),)),
        "bn_scale": bn_scale, "bn_shift": bn_shift,
        # attention / fc1: zero-pad feature dim to a 256 multiple once, stream
        # as bf16 (f32 accumulation in-kernel) on the HBM-bound GEMMs.
        "attn_w": jnp.pad(params["attn_w"], ((0, pad_f), (0, pad_f))).astype(jnp.bfloat16),
        "attn_b": jnp.pad(params["attn_b"], ((0, pad_f),)),
        "weight": jnp.pad(params["weight"], ((0, 0), (0, pad_f))),
        "fc1_w": jnp.pad(params["fc1_w"], ((0, pad_f), (0, 0))).astype(jnp.bfloat16),
        "fc1_b": params["fc1_b"],
        "fc2_w": params["fc2_w"], "fc2_b": params["fc2_b"],
    }


# ----------------------------------------------------------------------------
# Forward pass (matches AttentionCNN.forward; eval mode)
# ----------------------------------------------------------------------------
def attention_cnn_forward(x_nchw, params, image_size):
    s = image_size // 2 ** 3
    fvs = s * s * 70
    fvs_p = _round_up(fvs, _FEAT_ALIGN)
    pad_f = fvs_p - fvs

    x = jnp.transpose(x_nchw, (0, 2, 3, 1))                     # NCHW -> NHWC

    # conv1 + ReLU + BN + pool ; conv2/3 + ReLU + pool ; conv4 + ReLU
    x = conv_stage(x, params["conv1_w"], params["conv1_b"], pool=True,
                   scale=params["bn_scale"], shift=params["bn_shift"])
    x = conv_stage(x, params["conv2_w"], params["conv2_b"], pool=True)
    x = conv_stage(x, params["conv3_w"], params["conv3_b"], pool=True)
    y4 = conv_stage(x, params["conv4_w"], params["conv4_b"], pool=False)

    # conv4 flat output -> valid region -> PyTorch channel-major layout.
    B = y4.shape[0]
    Hp4 = s + 2
    x_valid = y4.reshape(B, Hp4, Hp4, 128)[:, :s, :s, :70]
    x_feat = jnp.transpose(x_valid, (0, 3, 1, 2))               # == PyTorch `x`
    x1 = x_feat.reshape(B, fvs)                                 # torch.flatten(x, 1)

    # Lane-dense feature vector (weights were padded once in prepare_params).
    x1p = jnp.pad(x1, ((0, 0), (0, pad_f)))

    # Fused: sigmoid(weight * relu(attention(x1))) * x1
    gated_p = attention_gate_fused(x1p, params["attn_w"], params["attn_b"],
                                   params["weight"])
    reshaped_filters = gated_p[:, :fvs].reshape(B, 70, s, s)

    # Fused fc1 + ReLU + (eval-mode dropout) + fc2
    output = fc_head(gated_p, params["fc1_w"], params["fc1_b"],
                     params["fc2_w"], params["fc2_b"])

    return reshaped_filters, x_feat, output


if __name__ == "__main__":
    IMAGE_SIZE = 16
    IMAGE_DEPTH = 4
    NUM_CLASSES = 10
    BATCH = 2

    key = jax.random.PRNGKey(0)
    k_in, k_par = jax.random.split(key)
    x = jax.random.normal(k_in, (BATCH, IMAGE_DEPTH, IMAGE_SIZE, IMAGE_SIZE), jnp.float32)
    raw_params = init_params(k_par, IMAGE_SIZE, IMAGE_DEPTH, NUM_CLASSES)
    params = prepare_params(raw_params, IMAGE_SIZE)   # one-time padding / bf16 cast

    fwd = jax.jit(functools.partial(attention_cnn_forward, image_size=IMAGE_SIZE))
    reshaped_filters, feat, logits = fwd(x, params)
    jax.block_until_ready((reshaped_filters, feat, logits))

    s = IMAGE_SIZE // 8
    assert reshaped_filters.shape == (BATCH, 70, s, s)
    assert feat.shape == (BATCH, 70, s, s)
    assert logits.shape == (BATCH, NUM_CLASSES)
    print("KERNEL_OK")
</pallas_src>

<mosaic_0001>
module attributes {stable_mosaic.version = 11 : i64} {
  func.func @_conv_stage_kernel(%arg0: i32, %arg1: memref<1x324x4xf32, #tpu.memory_space<vmem>>, %arg2: memref<3x3x4x128xf32, #tpu.memory_space<vmem>>, %arg3: memref<1x128xf32, #tpu.memory_space<vmem>>, %arg4: memref<1x128xf32, #tpu.memory_space<vmem>>, %arg5: memref<1x128xf32, #tpu.memory_space<vmem>>, %arg6: memref<1x8x8x128xf32, #tpu.memory_space<vmem>>, %arg7: memref<286x128xf32, #tpu.memory_space<vmem>>) attributes {dimension_semantics = [#tpu.dimension_semantics<parallel>], iteration_bounds = array<i64: 2>, scalar_prefetch = 0 : i64, scratch_operands = 1 : i64, tpu.core_type = #tpu.core_type<tc>, window_params = [{transform_indices = @transform_0, window_bounds = array<i64: 1, 324, 4>}, {pipeline_mode = #tpu.pipeline_mode<synchronous>, transform_indices = @transform_1, window_bounds = array<i64: 3, 3, 4, 128>}, {pipeline_mode = #tpu.pipeline_mode<synchronous>, transform_indices = @transform_2, window_bounds = array<i64: 1, 128>}, {pipeline_mode = #tpu.pipeline_mode<synchronous>, transform_indices = @transform_3, window_bounds = array<i64: 1, 128>}, {pipeline_mode = #tpu.pipeline_mode<synchronous>, transform_indices = @transform_4, window_bounds = array<i64: 1, 128>}, {transform_indices = @transform_5, window_bounds = array<i64: 1, 8, 8, 128>}]} {
    %cst = arith.constant 0.000000e+00 : f32
    %0 = vector.broadcast %cst : f32 to vector<286x128xf32>
    %c0 = arith.constant 0 : index
    %c0_0 = arith.constant 0 : index
    %c0_1 = arith.constant 0 : index
    %1 = vector.load %arg1[%c0, %c0_0, %c0_1] : memref<1x324x4xf32, #tpu.memory_space<vmem>>, vector<1x286x4xf32>
    %2 = vector.shape_cast %1 : vector<1x286x4xf32> to vector<286x4xf32>
    %c0_2 = arith.constant 0 : index
    %c0_3 = arith.constant 0 : index
    %c0_4 = arith.constant 0 : index
    %c0_5 = arith.constant 0 : index
    %3 = vector.load %arg2[%c0_2, %c0_3, %c0_4, %c0_5] : memref<3x3x4x128xf32, #tpu.memory_space<vmem>>, vector<1x1x4x128xf32>
    %4 = vector.shape_cast %3 : vector<1x1x4x128xf32> to vector<4x128xf32>
    %cst_6 = arith.constant dense<0.000000e+00> : vector<286x128xf32>
    %5 = tpu.matmul %2, %4, %cst_6 {dimension_numbers = #tpu.dot_dimension_numbers<[1], [0], [0], [1], [0, 0, 1, 1], [], []>} : vector<286x4xf32>, vector<4x128xf32>, vector<286x128xf32> -> vector<286x128xf32>
    %6 = arith.addf %0, %5 : vector<286x128xf32>
    %c0_7 = arith.constant 0 : index
    %c1 = arith.constant 1 : index
    %c0_8 = arith.constant 0 : index
    %7 = vector.load %arg1[%c0_7, %c1, %c0_8] : memref<1x324x4xf32, #tpu.memory_space<vmem>>, vector<1x286x4xf32>
    %8 = vector.shape_cast %7 : vector<1x286x4xf32> to vector<286x4xf32>
    %c0_9 = arith.constant 0 : index
    %c1_10 = arith.constant 1 : index
    %c0_11 = arith.constant 0 : index
    %c0_12 = arith.constant 0 : index
    %9 = vector.load %arg2[%c0_9, %c1_10, %c0_11, %c0_12] : memref<3x3x4x128xf32, #tpu.memory_space<vmem>>, vector<1x1x4x128xf32>
    %10 = vector.shape_cast %9 : vector<1x1x4x128xf32> to vector<4x128xf32>
    %cst_13 = arith.constant dense<0.000000e+00> : vector<286x128xf32>
    %11 = tpu.matmul %8, %10, %cst_13 {dimension_numbers = #tpu.dot_dimension_numbers<[1], [0], [0], [1], [0, 0, 1, 1], [], []>} : vector<286x4xf32>, vector<4x128xf32>, vector<286x128xf32> -> vector<286x128xf32>
    %12 = arith.addf %6, %11 : vector<286x128xf32>
    %c0_14 = arith.constant 0 : index
    %c2 = arith.constant 2 : index
    %c0_15 = arith.constant 0 : index
    %13 = vector.load %arg1[%c0_14, %c2, %c0_15] : memref<1x324x4xf32, #tpu.memory_space<vmem>>, vector<1x286x4xf32>
    %14 = vector.shape_cast %13 : vector<1x286x4xf32> to vector<286x4xf32>
    %c0_16 = arith.constant 0 : index
    %c2_17 = arith.constant 2 : index
    %c0_18 = arith.constant 0 : index
    %c0_19 = arith.constant 0 : index
    %15 = vector.load %arg2[%c0_16, %c2_17, %c0_18, %c0_19] : memref<3x3x4x128xf32, #tpu.memory_space<vmem>>, vector<1x1x4x128xf32>
    %16 = vector.shape_cast %15 : vector<1x1x4x128xf32> to vector<4x128xf32>
    %cst_20 = arith.constant dense<0.000000e+00> : vector<286x128xf32>
    %17 = tpu.matmul %14, %16, %cst_20 {dimension_numbers = #tpu.dot_dimension_numbers<[1], [0], [0], [1], [0, 0, 1, 1], [], []>} : vector<286x4xf32>, vector<4x128xf32>, vector<286x128xf32> -> vector<286x128xf32>
    %18 = arith.addf %12, %17 : vector<286x128xf32>
    %c0_21 = arith.constant 0 : index
    %c18 = arith.constant 18 : index
    %c0_22 = arith.constant 0 : index
    %19 = vector.load %arg1[%c0_21, %c18, %c0_22] : memref<1x324x4xf32, #tpu.memory_space<vmem>>, vector<1x286x4xf32>
    %20 = vector.shape_cast %19 : vector<1x286x4xf32> to vector<286x4xf32>
    %c1_23 = arith.constant 1 : index
    %c0_24 = arith.constant 0 : index
    %c0_25 = arith.constant 0 : index
    %c0_26 = arith.constant 0 : index
    %21 = vector.load %arg2[%c1_23, %c0_24, %c0_25, %c0_26] : memref<3x3x4x128xf32, #tpu.memory_space<vmem>>, vector<1x1x4x128xf32>
    %22 = vector.shape_cast %21 : vector<1x1x4x128xf32> to vector<4x128xf32>
    %cst_27 = arith.constant dense<0.000000e+00> : vector<286x128xf32>
    %23 = tpu.matmul %20, %22, %cst_27 {dimension_numbers = #tpu.dot_dimension_numbers<[1], [0], [0], [1], [0, 0, 1, 1], [], []>} : vector<286x4xf32>, vector<4x128xf32>, vector<286x128xf32> -> vector<286x128xf32>
    %24 = arith.addf %18, %23 : vector<286x128xf32>
    %c0_28 = arith.constant 0 : index
    %c19 = arith.constant 19 : index
    %c0_29 = arith.constant 0 : index
    %25 = vector.load %arg1[%c0_28, %c19, %c0_29] : memref<1x324x4xf32, #tpu.memory_space<vmem>>, vector<1x286x4xf32>
    %26 = vector.shape_cast %25 : vector<1x286x4xf32> to vector<286x4xf32>
    %c1_30 = arith.constant 1 : index
    %c1_31 = arith.constant 1 : index
    %c0_32 = arith.constant 0 : index
    %c0_33 = arith.constant 0 : index
    %27 = vector.load %arg2[%c1_30, %c1_31, %c0_32, %c0_33] : memref<3x3x4x128xf32, #tpu.memory_space<vmem>>, vector<1x1x4x128xf32>
    %28 = vector.shape_cast %27 : vector<1x1x4x128xf32> to vector<4x128xf32>
    %cst_34 = arith.constant dense<0.000000e+00> : vector<286x128xf32>
    %29 = tpu.matmul %26, %28, %cst_34 {dimension_numbers = #tpu.dot_dimension_numbers<[1], [0], [0], [1], [0, 0, 1, 1], [], []>} : vector<286x4xf32>, vector<4x128xf32>, vector<286x128xf32> -> vector<286x128xf32>
    %30 = arith.addf %24, %29 : vector<286x128xf32>
    %c0_35 = arith.constant 0 : index
    %c20 = arith.constant 20 : index
    %c0_36 = arith.constant 0 : index
    %31 = vector.load %arg1[%c0_35, %c20, %c0_36] : memref<1x324x4xf32, #tpu.memory_space<vmem>>, vector<1x286x4xf32>
    %32 = vector.shape_cast %31 : vector<1x286x4xf32> to vector<286x4xf32>
    %c1_37 = arith.constant 1 : index
    %c2_38 = arith.constant 2 : index
    %c0_39 = arith.constant 0 : index
    %c0_40 = arith.constant 0 : index
    %33 = vector.load %arg2[%c1_37, %c2_38, %c0_39, %c0_40] : memref<3x3x4x128xf32, #tpu.memory_space<vmem>>, vector<1x1x4x128xf32>
    %34 = vector.shape_cast %33 : vector<1x1x4x128xf32> to vector<4x128xf32>
    %cst_41 = arith.constant dense<0.000000e+00> : vector<286x128xf32>
    %35 = tpu.matmul %32, %34, %cst_41 {dimension_numbers = #tpu.dot_dimension_numbers<[1], [0], [0], [1], [0, 0, 1, 1], [], []>} : vector<286x4xf32>, vector<4x128xf32>, vector<286x128xf32> -> vector<286x128xf32>
    %36 = arith.addf %30, %35 : vector<286x128xf32>
    %c0_42 = arith.constant 0 : index
    %c36 = arith.constant 36 : index
    %c0_43 = arith.constant 0 : index
    %37 = vector.load %arg1[%c0_42, %c36, %c0_43] : memref<1x324x4xf32, #tpu.memory_space<vmem>>, vector<1x286x4xf32>
    %38 = vector.shape_cast %37 : vector<1x286x4xf32> to vector<286x4xf32>
    %c2_44 = arith.constant 2 : index
    %c0_45 = arith.constant 0 : index
    %c0_46 = arith.constant 0 : index
    %c0_47 = arith.constant 0 : index
    %39 = vector.load %arg2[%c2_44, %c0_45, %c0_46, %c0_47] : memref<3x3x4x128xf32, #tpu.memory_space<vmem>>, vector<1x1x4x128xf32>
    %40 = vector.shape_cast %39 : vector<1x1x4x128xf32> to vector<4x128xf32>
    %cst_48 = arith.constant dense<0.000000e+00> : vector<286x128xf32>
    %41 = tpu.matmul %38, %40, %cst_48 {dimension_numbers = #tpu.dot_dimension_numbers<[1], [0], [0], [1], [0, 0, 1, 1], [], []>} : vector<286x4xf32>, vector<4x128xf32>, vector<286x128xf32> -> vector<286x128xf32>
    %42 = arith.addf %36, %41 : vector<286x128xf32>
    %c0_49 = arith.constant 0 : index
    %c37 = arith.constant 37 : index
    %c0_50 = arith.constant 0 : index
    %43 = vector.load %arg1[%c0_49, %c37, %c0_50] : memref<1x324x4xf32, #tpu.memory_space<vmem>>, vector<1x286x4xf32>
    %44 = vector.shape_cast %43 : vector<1x286x4xf32> to vector<286x4xf32>
    %c2_51 = arith.constant 2 : index
    %c1_52 = arith.constant 1 : index
    %c0_53 = arith.constant 0 : index
    %c0_54 = arith.constant 0 : index
    %45 = vector.load %arg2[%c2_51, %c1_52, %c0_53, %c0_54] : memref<3x3x4x128xf32, #tpu.memory_space<vmem>>, vector<1x1x4x128xf32>
    %46 = vector.shape_cast %45 : vector<1x1x4x128xf32> to vector<4x128xf32>
    %cst_55 = arith.constant dense<0.000000e+00> : vector<286x128xf32>
    %47 = tpu.matmul %44, %46, %cst_55 {dimension_numbers = #tpu.dot_dimension_numbers<[1], [0], [0], [1], [0, 0, 1, 1], [], []>} : vector<286x4xf32>, vector<4x128xf32>, vector<286x128xf32> -> vector<286x128xf32>
    %48 = arith.addf %42, %47 : vector<286x128xf32>
    %c0_56 = arith.constant 0 : index
    %c38 = arith.constant 38 : index
    %c0_57 = arith.constant 0 : index
    %49 = vector.load %arg1[%c0_56, %c38, %c0_57] : memref<1x324x4xf32, #tpu.memory_space<vmem>>, vector<1x286x4xf32>
    %50 = vector.shape_cast %49 : vector<1x286x4xf32> to vector<286x4xf32>
    %c2_58 = arith.constant 2 : index
    %c2_59 = arith.constant 2 : index
    %c0_60 = arith.constant 0 : index
    %c0_61 = arith.constant 0 : index
    %51 = vector.load %arg2[%c2_58, %c2_59, %c0_60, %c0_61] : memref<3x3x4x128xf32, #tpu.memory_space<vmem>>, vector<1x1x4x128xf32>
    %52 = vector.shape_cast %51 : vector<1x1x4x128xf32> to vector<4x128xf32>
    %cst_62 = arith.constant dense<0.000000e+00> : vector<286x128xf32>
    %53 = tpu.matmul %50, %52, %cst_62 {dimension_numbers = #tpu.dot_dimension_numbers<[1], [0], [0], [1], [0, 0, 1, 1], [], []>} : vector<286x4xf32>, vector<4x128xf32>, vector<286x128xf32> -> vector<286x128xf32>
    %54 = arith.addf %48, %53 : vector<286x128xf32>
    %c0_63 = arith.constant 0 : index
    %c0_64 = arith.constant 0 : index
    %55 = vector.load %arg3[%c0_63, %c0_64] : memref<1x128xf32, #tpu.memory_space<vmem>>, vector<1x128xf32>
    %56 = vector.broadcast %55 : vector<1x128xf32> to vector<286x128xf32>
    %57 = arith.addf %54, %56 : vector<286x128xf32>
    %cst_65 = arith.constant 0.000000e+00 : f32
    %58 = vector.broadcast %cst_65 : f32 to vector<286x128xf32>
    %59 = arith.maximumf %57, %58 : vector<286x128xf32>
    %c0_66 = arith.constant 0 : index
    %c0_67 = arith.constant 0 : index
    %60 = vector.load %arg4[%c0_66, %c0_67] : memref<1x128xf32, #tpu.memory_space<vmem>>, vector<1x128xf32>
    %61 = vector.broadcast %60 : vector<1x128xf32> to vector<286x128xf32>
    %62 = arith.mulf %59, %61 : vector<286x128xf32>
    %c0_68 = arith.constant 0 : index
    %c0_69 = arith.constant 0 : index
    %63 = vector.load %arg5[%c0_68, %c0_69] : memref<1x128xf32, #tpu.memory_space<vmem>>, vector<1x128xf32>
    %64 = vector.broadcast %63 : vector<1x128xf32> to vector<286x128xf32>
    %65 = arith.addf %62, %64 : vector<286x128xf32>
    %c0_70 = arith.constant 0 : index
    %c0_71 = arith.constant 0 : index
    %66 = vector.load %arg7[%c0_70, %c0_71] : memref<286x128xf32, #tpu.memory_space<vmem>>, vector<286x128xf32>
    tpu.vector_store %arg7[%c0_70, %c0_71], %65 {strides = array<i32>} : memref<286x128xf32, #tpu.memory_space<vmem>>, vector<286x128xf32>,
    %c0_72 = arith.constant 0 : index
    %c0_73 = arith.constant 0 : index
    %67 = tpu.strided_load %arg7[%c0_72, %c0_73] {strides = array<i32: 2, 1>} : memref<286x128xf32, #tpu.memory_space<vmem>>, vector<8x128xf32>
    %c1_74 = arith.constant 1 : index
    %c0_75 = arith.constant 0 : index
    %68 = tpu.strided_load %arg7[%c1_74, %c0_75] {strides = array<i32: 2, 1>} : memref<286x128xf32, #tpu.memory_space<vmem>>, vector<8x128xf32>
    %c18_76 = arith.constant 18 : index
    %c0_77 = arith.constant 0 : index
    %69 = tpu.strided_load %arg7[%c18_76, %c0_77] {strides = array<i32: 2, 1>} : memref<286x128xf32, #tpu.memory_space<vmem>>, vector<8x128xf32>
    %c19_78 = arith.constant 19 : index
    %c0_79 = arith.constant 0 : index
    %70 = tpu.strided_load %arg7[%c19_78, %c0_79] {strides = array<i32: 2, 1>} : memref<286x128xf32, #tpu.memory_space<vmem>>, vector<8x128xf32>
    %71 = arith.maximumf %67, %68 : vector<8x128xf32>
    %72 = arith.maximumf %69, %70 : vector<8x128xf32>
    %73 = arith.maximumf %71, %72 : vector<8x128xf32>
    %c0_80 = arith.constant 0 : index
    %c0_81 = arith.constant 0 : index
    %c0_82 = arith.constant 0 : index
    %c0_83 = arith.constant 0 : index
    %74 = vector.load %arg6[%c0_80, %c0_81, %c0_82, %c0_83] : memref<1x8x8x128xf32, #tpu.memory_space<vmem>>, vector<1x1x8x128xf32>
    %75 = vector.shape_cast %74 : vector<1x1x8x128xf32> to vector<8x128xf32>
    %76 = vector.shape_cast %73 : vector<8x128xf32> to vector<1x1x8x128xf32>
    tpu.vector_store %arg6[%c0_80, %c0_81, %c0_82, %c0_83], %76 {strides = array<i32>} : memref<1x8x8x128xf32, #tpu.memory_space<vmem>>, vector<1x1x8x128xf32>,
    %c36_84 = arith.constant 36 : index
    %c0_85 = arith.constant 0 : index
    %77 = tpu.strided_load %arg7[%c36_84, %c0_85] {strides = array<i32: 2, 1>} : memref<286x128xf32, #tpu.memory_space<vmem>>, vector<8x128xf32>
    %c37_86 = arith.constant 37 : index
    %c0_87 = arith.constant 0 : index
    %78 = tpu.strided_load %arg7[%c37_86, %c0_87] {strides = array<i32: 2, 1>} : memref<286x128xf32, #tpu.memory_space<vmem>>, vector<8x128xf32>
    %c54 = arith.constant 54 : index
    %c0_88 = arith.constant 0 : index
    %79 = tpu.strided_load %arg7[%c54, %c0_88] {strides = array<i32: 2, 1>} : memref<286x128xf32, #tpu.memory_space<vmem>>, vector<8x128xf32>
    %c55 = arith.constant 55 : index
    %c0_89 = arith.constant 0 : index
    %80 = tpu.strided_load %arg7[%c55, %c0_89] {strides = array<i32: 2, 1>} : memref<286x128xf32, #tpu.memory_space<vmem>>, vector<8x128xf32>
    %81 = arith.maximumf %77, %78 : vector<8x128xf32>
    %82 = arith.maximumf %79, %80 : vector<8x128xf32>
    %83 = arith.maximumf %81, %82 : vector<8x128xf32>
    %c0_90 = arith.constant 0 : index
    %c1_91 = arith.constant 1 : index
    %c0_92 = arith.constant 0 : index
    %c0_93 = arith.constant 0 : index
    %84 = vector.load %arg6[%c0_90, %c1_91, %c0_92, %c0_93] : memref<1x8x8x128xf32, #tpu.memory_space<vmem>>, vector<1x1x8x128xf32>
    %85 = vector.shape_cast %84 : vector<1x1x8x128xf32> to vector<8x128xf32>
    %86 = vector.shape_cast %83 : vector<8x128xf32> to vector<1x1x8x128xf32>
    tpu.vector_store %arg6[%c0_90, %c1_91, %c0_92, %c0_93], %86 {strides = array<i32>} : memref<1x8x8x128xf32, #tpu.memory_space<vmem>>, vector<1x1x8x128xf32>,
    %c72 = arith.constant 72 : index
    %c0_94 = arith.constant 0 : index
    %87 = tpu.strided_load %arg7[%c72, %c0_94] {strides = array<i32: 2, 1>} : memref<286x128xf32, #tpu.memory_space<vmem>>, vector<8x128xf32>
    %c73 = arith.constant 73 : index
    %c0_95 = arith.constant 0 : index
    %88 = tpu.strided_load %arg7[%c73, %c0_95] {strides = array<i32: 2, 1>} : memref<286x128xf32, #tpu.memory_space<vmem>>, vector<8x128xf32>
    %c90 = arith.constant 90 : index
    %c0_96 = arith.constant 0 : index
    %89 = tpu.strided_load %arg7[%c90, %c0_96] {strides = array<i32: 2, 1>} : memref<286x128xf32, #tpu.memory_space<vmem>>, vector<8x128xf32>
    %c91 = arith.constant 91 : index
    %c0_97 = arith.constant 0 : index
    %90 = tpu.strided_load %arg7[%c91, %c0_97] {strides = array<i32: 2, 1>} : memref<286x128xf32, #tpu.memory_space<vmem>>, vector<8x128xf32>
    %91 = arith.maximumf %87, %88 : vector<8x128xf32>
    %92 = arith.maximumf %89, %90 : vector<8x128xf32>
    %93 = arith.maximumf %91, %92 : vector<8x128xf32>
    %c0_98 = arith.constant 0 : index
    %c2_99 = arith.constant 2 : index
    %c0_100 = arith.constant 0 : index
    %c0_101 = arith.constant 0 : index
    %94 = vector.load %arg6[%c0_98, %c2_99, %c0_100, %c0_101] : memref<1x8x8x128xf32, #tpu.memory_space<vmem>>, vector<1x1x8x128xf32>
    %95 = vector.shape_cast %94 : vector<1x1x8x128xf32> to vector<8x128xf32>
    %96 = vector.shape_cast %93 : vector<8x128xf32> to vector<1x1x8x128xf32>
    tpu.vector_store %arg6[%c0_98, %c2_99, %c0_100, %c0_101], %96 {strides = array<i32>} : memref<1x8x8x128xf32, #tpu.memory_space<vmem>>, vector<1x1x8x128xf32>,
    %c108 = arith.constant 108 : index
    %c0_102 = arith.constant 0 : index
    %97 = tpu.strided_load %arg7[%c108, %c0_102] {strides = array<i32: 2, 1>} : memref<286x128xf32, #tpu.memory_space<vmem>>, vector<8x128xf32>
    %c109 = arith.constant 109 : index
    %c0_103 = arith.constant 0 : index
    %98 = tpu.strided_load %arg7[%c109, %c0_103] {strides = array<i32: 2, 1>} : memref<286x128xf32, #tpu.memory_space<vmem>>, vector<8x128xf32>
    %c126 = arith.constant 126 : index
    %c0_104 = arith.constant 0 : index
    %99 = tpu.strided_load %arg7[%c126, %c0_104] {strides = array<i32: 2, 1>} : memref<286x128xf32, #tpu.memory_space<vmem>>, vector<8x128xf32>
    %c127 = arith.constant 127 : index
    %c0_105 = arith.constant 0 : index
    %100 = tpu.strided_load %arg7[%c127, %c0_105] {strides = array<i32: 2, 1>} : memref<286x128xf32, #tpu.memory_space<vmem>>, vector<8x128xf32>
    %101 = arith.maximumf %97, %98 : vector<8x128xf32>
    %102 = arith.maximumf %99, %100 : vector<8x128xf32>
    %103 = arith.maximumf %101, %102 : vector<8x128xf32>
    %c0_106 = arith.constant 0 : index
    %c3 = arith.constant 3 : index
    %c0_107 = arith.constant 0 : index
    %c0_108 = arith.constant 0 : index
    %104 = vector.load %arg6[%c0_106, %c3, %c0_107, %c0_108] : memref<1x8x8x128xf32, #tpu.memory_space<vmem>>, vector<1x1x8x128xf32>
    %105 = vector.shape_cast %104 : vector<1x1x8x128xf32> to vector<8x128xf32>
    %106 = vector.shape_cast %103 : vector<8x128xf32> to vector<1x1x8x128xf32>
    tpu.vector_store %arg6[%c0_106, %c3, %c0_107, %c0_108], %106 {strides = array<i32>} : memref<1x8x8x128xf32, #tpu.memory_space<vmem>>, vector<1x1x8x128xf32>,
    %c144 = arith.constant 144 : index
    %c0_109 = arith.constant 0 : index
    %107 = tpu.strided_load %arg7[%c144, %c0_109] {strides = array<i32: 2, 1>} : memref<286x128xf32, #tpu.memory_space<vmem>>, vector<8x128xf32>
    %c145 = arith.constant 145 : index
    %c0_110 = arith.constant 0 : index
    %108 = tpu.strided_load %arg7[%c145, %c0_110] {strides = array<i32: 2, 1>} : memref<286x128xf32, #tpu.memory_space<vmem>>, vector<8x128xf32>
    %c162 = arith.constant 162 : index
    %c0_111 = arith.constant 0 : index
    %109 = tpu.strided_load %arg7[%c162, %c0_111] {strides = array<i32: 2, 1>} : memref<286x128xf32, #tpu.memory_space<vmem>>, vector<8x128xf32>
    %c163 = arith.constant 163 : index
    %c0_112 = arith.constant 0 : index
    %110 = tpu.strided_load %arg7[%c163, %c0_112] {strides = array<i32: 2, 1>} : memref<286x128xf32, #tpu.memory_space<vmem>>, vector<8x128xf32>
    %111 = arith.maximumf %107, %108 : vector<8x128xf32>
    %112 = arith.maximumf %109, %110 : vector<8x128xf32>
    %113 = arith.maximumf %111, %112 : vector<8x128xf32>
    %c0_113 = arith.constant 0 : index
    %c4 = arith.constant 4 : index
    %c0_114 = arith.constant 0 : index
    %c0_115 = arith.constant 0 : index
    %114 = vector.load %arg6[%c0_113, %c4, %c0_114, %c0_115] : memref<1x8x8x128xf32, #tpu.memory_space<vmem>>, vector<1x1x8x128xf32>
    %115 = vector.shape_cast %114 : vector<1x1x8x128xf32> to vector<8x128xf32>
    %116 = vector.shape_cast %113 : vector<8x128xf32> to vector<1x1x8x128xf32>
    tpu.vector_store %arg6[%c0_113, %c4, %c0_114, %c0_115], %116 {strides = array<i32>} : memref<1x8x8x128xf32, #tpu.memory_space<vmem>>, vector<1x1x8x128xf32>,
    %c180 = arith.constant 180 : index
    %c0_116 = arith.constant 0 : index
    %117 = tpu.strided_load %arg7[%c180, %c0_116] {strides = array<i32: 2, 1>} : memref<286x128xf32, #tpu.memory_space<vmem>>, vector<8x128xf32>
    %c181 = arith.constant 181 : index
    %c0_117 = arith.constant 0 : index
    %118 = tpu.strided_load %arg7[%c181, %c0_117] {strides = array<i32: 2, 1>} : memref<286x128xf32, #tpu.memory_space<vmem>>, vector<8x128xf32>
    %c198 = arith.constant 198 : index
    %c0_118 = arith.constant 0 : index
    %119 = tpu.strided_load %arg7[%c198, %c0_118] {strides = array<i32: 2, 1>} : memref<286x128xf32, #tpu.memory_space<vmem>>, vector<8x128xf32>
    %c199 = arith.constant 199 : index
    %c0_119 = arith.constant 0 : index
    %120 = tpu.strided_load %arg7[%c199, %c0_119] {strides = array<i32: 2, 1>} : memref<286x128xf32, #tpu.memory_space<vmem>>, vector<8x128xf32>
    %121 = arith.maximumf %117, %118 : vector<8x128xf32>
    %122 = arith.maximumf %119, %120 : vector<8x128xf32>
    %123 = arith.maximumf %121, %122 : vector<8x128xf32>
    %c0_120 = arith.constant 0 : index
    %c5 = arith.constant 5 : index
    %c0_121 = arith.constant 0 : index
    %c0_122 = arith.constant 0 : index
    %124 = vector.load %arg6[%c0_120, %c5, %c0_121, %c0_122] : memref<1x8x8x128xf32, #tpu.memory_space<vmem>>, vector<1x1x8x128xf32>
    %125 = vector.shape_cast %124 : vector<1x1x8x128xf32> to vector<8x128xf32>
    %126 = vector.shape_cast %123 : vector<8x128xf32> to vector<1x1x8x128xf32>
    tpu.vector_store %arg6[%c0_120, %c5, %c0_121, %c0_122], %126 {strides = array<i32>} : memref<1x8x8x128xf32, #tpu.memory_space<vmem>>, vector<1x1x8x128xf32>,
    %c216 = arith.constant 216 : index
    %c0_123 = arith.constant 0 : index
    %127 = tpu.strided_load %arg7[%c216, %c0_123] {strides = array<i32: 2, 1>} : memref<286x128xf32, #tpu.memory_space<vmem>>, vector<8x128xf32>
    %c217 = arith.constant 217 : index
    %c0_124 = arith.constant 0 : index
    %128 = tpu.strided_load %arg7[%c217, %c0_124] {strides = array<i32: 2, 1>} : memref<286x128xf32, #tpu.memory_space<vmem>>, vector<8x128xf32>
    %c234 = arith.constant 234 : index
    %c0_125 = arith.constant 0 : index
    %129 = tpu.strided_load %arg7[%c234, %c0_125] {strides = array<i32: 2, 1>} : memref<286x128xf32, #tpu.memory_space<vmem>>, vector<8x128xf32>
    %c235 = arith.constant 235 : index
    %c0_126 = arith.constant 0 : index
    %130 = tpu.strided_load %arg7[%c235, %c0_126] {strides = array<i32: 2, 1>} : memref<286x128xf32, #tpu.memory_space<vmem>>, vector<8x128xf32>
    %131 = arith.maximumf %127, %128 : vector<8x128xf32>
    %132 = arith.maximumf %129, %130 : vector<8x128xf32>
    %133 = arith.maximumf %131, %132 : vector<8x128xf32>
    %c0_127 = arith.constant 0 : index
    %c6 = arith.constant 6 : index
    %c0_128 = arith.constant 0 : index
    %c0_129 = arith.constant 0 : index
    %134 = vector.load %arg6[%c0_127, %c6, %c0_128, %c0_129] : memref<1x8x8x128xf32, #tpu.memory_space<vmem>>, vector<1x1x8x128xf32>
    %135 = vector.shape_cast %134 : vector<1x1x8x128xf32> to vector<8x128xf32>
    %136 = vector.shape_cast %133 : vector<8x128xf32> to vector<1x1x8x128xf32>
    tpu.vector_store %arg6[%c0_127, %c6, %c0_128, %c0_129], %136 {strides = array<i32>} : memref<1x8x8x128xf32, #tpu.memory_space<vmem>>, vector<1x1x8x128xf32>,
    %c252 = arith.constant 252 : index
    %c0_130 = arith.constant 0 : index
    %137 = tpu.strided_load %arg7[%c252, %c0_130] {strides = array<i32: 2, 1>} : memref<286x128xf32, #tpu.memory_space<vmem>>, vector<8x128xf32>
    %c253 = arith.constant 253 : index
    %c0_131 = arith.constant 0 : index
    %138 = tpu.strided_load %arg7[%c253, %c0_131] {strides = array<i32: 2, 1>} : memref<286x128xf32, #tpu.memory_space<vmem>>, vector<8x128xf32>
    %c270 = arith.constant 270 : index
    %c0_132 = arith.constant 0 : index
    %139 = tpu.strided_load %arg7[%c270, %c0_132] {strides = array<i32: 2, 1>} : memref<286x128xf32, #tpu.memory_space<vmem>>, vector<8x128xf32>
    %c271 = arith.constant 271 : index
    %c0_133 = arith.constant 0 : index
    %140 = tpu.strided_load %arg7[%c271, %c0_133] {strides = array<i32: 2, 1>} : memref<286x128xf32, #tpu.memory_space<vmem>>, vector<8x128xf32>
    %141 = arith.maximumf %137, %138 : vector<8x128xf32>
    %142 = arith.maximumf %139, %140 : vector<8x128xf32>
    %143 = arith.maximumf %141, %142 : vector<8x128xf32>
    %c0_134 = arith.constant 0 : index
    %c7 = arith.constant 7 : index
    %c0_135 = arith.constant 0 : index
    %c0_136 = arith.constant 0 : index
    %144 = vector.load %arg6[%c0_134, %c7, %c0_135, %c0_136] : memref<1x8x8x128xf32, #tpu.memory_space<vmem>>, vector<1x1x8x128xf32>
    %145 = vector.shape_cast %144 : vector<1x1x8x128xf32> to vector<8x128xf32>
    %146 = vector.shape_cast %143 : vector<8x128xf32> to vector<1x1x8x128xf32>
    tpu.vector_store %arg6[%c0_134, %c7, %c0_135, %c0_136], %146 {strides = array<i32>} : memref<1x8x8x128xf32, #tpu.memory_space<vmem>>, vector<1x1x8x128xf32>,
    return
  }
  func.func @transform_0(%arg0: i32) -> (i32, i32, i32) {
    %c0_i32 = arith.constant 0 : i32
    %c0_i32_0 = arith.constant 0 : i32
    %c0_i32_1 = arith.constant 0 : i32
    return %arg0, %c0_i32, %c0_i32_0 : i32, i32, i32
  }
  func.func @transform_1(%arg0: i32) -> (i32, i32, i32, i32) {
    %c0_i32 = arith.constant 0 : i32
    %c0_i32_0 = arith.constant 0 : i32
    %c0_i32_1 = arith.constant 0 : i32
    %c0_i32_2 = arith.constant 0 : i32
    %c0_i32_3 = arith.constant 0 : i32
    return %c0_i32, %c0_i32_0, %c0_i32_1, %c0_i32_2 : i32, i32, i32, i32
  }
  func.func @transform_2(%arg0: i32) -> (i32, i32) {
    %c0_i32 = arith.constant 0 : i32
    %c0_i32_0 = arith.constant 0 : i32
    %c0_i32_1 = arith.constant 0 : i32
    return %c0_i32, %c0_i32_0 : i32, i32
  }
  func.func @transform_3(%arg0: i32) -> (i32, i32) {
    %c0_i32 = arith.constant 0 : i32
    %c0_i32_0 = arith.constant 0 : i32
    %c0_i32_1 = arith.constant 0 : i32
    return %c0_i32, %c0_i32_0 : i32, i32
  }
  func.func @transform_4(%arg0: i32) -> (i32, i32) {
    %c0_i32 = arith.constant 0 : i32
    %c0_i32_0 = arith.constant 0 : i32
    %c0_i32_1 = arith.constant 0 : i32
    return %c0_i32, %c0_i32_0 : i32, i32
  }
  func.func @transform_5(%arg0: i32) -> (i32, i32, i32, i32) {
    %c0_i32 = arith.constant 0 : i32
    %c0_i32_0 = arith.constant 0 : i32
    %c0_i32_1 = arith.constant 0 : i32
    %c0_i32_2 = arith.constant 0 : i32
    return %arg0, %c0_i32, %c0_i32_0, %c0_i32_1 : i32, i32, i32, i32
  }
}

module attributes {stable_mosaic.version = 11 : i64} {
  func.func @_conv_stage_kernel(%arg0: i32, %arg1: memref<1x36x128xf32, #tpu.memory_space<vmem>>, %arg2: memref<3x3x128x128xf32, #tpu.memory_space<vmem>>, %arg3: memref<1x128xf32, #tpu.memory_space<vmem>>, %arg4: memref<1x2x2x128xf32, #tpu.memory_space<vmem>>, %arg5: memref<22x128xf32, #tpu.memory_space<vmem>>) attributes {dimension_semantics = [#tpu.dimension_semantics<parallel>], iteration_bounds = array<i64: 2>, scalar_prefetch = 0 : i64, scratch_operands = 1 : i64, tpu.core_type = #tpu.core_type<tc>, window_params = [{transform_indices = @transform_0, window_bounds = array<i64: 1, 36, 128>}, {pipeline_mode = #tpu.pipeline_mode<synchronous>, transform_indices = @transform_1, window_bounds = array<i64: 3, 3, 128, 128>}, {pipeline_mode = #tpu.pipeline_mode<synchronous>, transform_indices = @transform_2, window_bounds = array<i64: 1, 128>}, {transform_indices = @transform_3, window_bounds = array<i64: 1, 2, 2, 128>}]} {
    %cst = arith.constant 0.000000e+00 : f32
    %0 = vector.broadcast %cst : f32 to vector<22x128xf32>
    %c0 = arith.constant 0 : index
    %c0_0 = arith.constant 0 : index
    %c0_1 = arith.constant 0 : index
    %1 = vector.load %arg1[%c0, %c0_0, %c0_1] : memref<1x36x128xf32, #tpu.memory_space<vmem>>, vector<1x22x128xf32>
    %2 = vector.shape_cast %1 : vector<1x22x128xf32> to vector<22x128xf32>
    %c0_2 = arith.constant 0 : index
    %c0_3 = arith.constant 0 : index
    %c0_4 = arith.constant 0 : index
    %c0_5 = arith.constant 0 : index
    %3 = vector.load %arg2[%c0_2, %c0_3, %c0_4, %c0_5] : memref<3x3x128x128xf32, #tpu.memory_space<vmem>>, vector<1x1x128x128xf32>
    %4 = vector.shape_cast %3 : vector<1x1x128x128xf32> to vector<128x128xf32>
    %cst_6 = arith.constant dense<0.000000e+00> : vector<22x128xf32>
    %5 = tpu.matmul %2, %4, %cst_6 {dimension_numbers = #tpu.dot_dimension_numbers<[1], [0], [0], [1], [0, 0, 1, 1], [], []>} : vector<22x128xf32>, vector<128x128xf32>, vector<22x128xf32> -> vector<22x128xf32>
    %6 = arith.addf %0, %5 : vector<22x128xf32>
    %c0_7 = arith.constant 0 : index
    %c1 = arith.constant 1 : index
    %c0_8 = arith.constant 0 : index
    %7 = vector.load %arg1[%c0_7, %c1, %c0_8] : memref<1x36x128xf32, #tpu.memory_space<vmem>>, vector<1x22x128xf32>
    %8 = vector.shape_cast %7 : vector<1x22x128xf32> to vector<22x128xf32>
    %c0_9 = arith.constant 0 : index
    %c1_10 = arith.constant 1 : index
    %c0_11 = arith.constant 0 : index
    %c0_12 = arith.constant 0 : index
    %9 = vector.load %arg2[%c0_9, %c1_10, %c0_11, %c0_12] : memref<3x3x128x128xf32, #tpu.memory_space<vmem>>, vector<1x1x128x128xf32>
    %10 = vector.shape_cast %9 : vector<1x1x128x128xf32> to vector<128x128xf32>
    %cst_13 = arith.constant dense<0.000000e+00> : vector<22x128xf32>
    %11 = tpu.matmul %8, %10, %cst_13 {dimension_numbers = #tpu.dot_dimension_numbers<[1], [0], [0], [1], [0, 0, 1, 1], [], []>} : vector<22x128xf32>, vector<128x128xf32>, vector<22x128xf32> -> vector<22x128xf32>
    %12 = arith.addf %6, %11 : vector<22x128xf32>
    %c0_14 = arith.constant 0 : index
    %c2 = arith.constant 2 : index
    %c0_15 = arith.constant 0 : index
    %13 = vector.load %arg1[%c0_14, %c2, %c0_15] : memref<1x36x128xf32, #tpu.memory_space<vmem>>, vector<1x22x128xf32>
    %14 = vector.shape_cast %13 : vector<1x22x128xf32> to vector<22x128xf32>
    %c0_16 = arith.constant 0 : index
    %c2_17 = arith.constant 2 : index
    %c0_18 = arith.constant 0 : index
    %c0_19 = arith.constant 0 : index
    %15 = vector.load %arg2[%c0_16, %c2_17, %c0_18, %c0_19] : memref<3x3x128x128xf32, #tpu.memory_space<vmem>>, vector<1x1x128x128xf32>
    %16 = vector.shape_cast %15 : vector<1x1x128x128xf32> to vector<128x128xf32>
    %cst_20 = arith.constant dense<0.000000e+00> : vector<22x128xf32>
    %17 = tpu.matmul %14, %16, %cst_20 {dimension_numbers = #tpu.dot_dimension_numbers<[1], [0], [0], [1], [0, 0, 1, 1], [], []>} : vector<22x128xf32>, vector<128x128xf32>, vector<22x128xf32> -> vector<22x128xf32>
    %18 = arith.addf %12, %17 : vector<22x128xf32>
    %c0_21 = arith.constant 0 : index
    %c6 = arith.constant 6 : index
    %c0_22 = arith.constant 0 : index
    %19 = vector.load %arg1[%c0_21, %c6, %c0_22] : memref<1x36x128xf32, #tpu.memory_space<vmem>>, vector<1x22x128xf32>
    %20 = vector.shape_cast %19 : vector<1x22x128xf32> to vector<22x128xf32>
    %c1_23 = arith.constant 1 : index
    %c0_24 = arith.constant 0 : index
    %c0_25 = arith.constant 0 : index
    %c0_26 = arith.constant 0 : index
    %21 = vector.load %arg2[%c1_23, %c0_24, %c0_25, %c0_26] : memref<3x3x128x128xf32, #tpu.memory_space<vmem>>, vector<1x1x128x128xf32>
    %22 = vector.shape_cast %21 : vector<1x1x128x128xf32> to vector<128x128xf32>
    %cst_27 = arith.constant dense<0.000000e+00> : vector<22x128xf32>
    %23 = tpu.matmul %20, %22, %cst_27 {dimension_numbers = #tpu.dot_dimension_numbers<[1], [0], [0], [1], [0, 0, 1, 1], [], []>} : vector<22x128xf32>, vector<128x128xf32>, vector<22x128xf32> -> vector<22x128xf32>
    %24 = arith.addf %18, %23 : vector<22x128xf32>
    %c0_28 = arith.constant 0 : index
    %c7 = arith.constant 7 : index
    %c0_29 = arith.constant 0 : index
    %25 = vector.load %arg1[%c0_28, %c7, %c0_29] : memref<1x36x128xf32, #tpu.memory_space<vmem>>, vector<1x22x128xf32>
    %26 = vector.shape_cast %25 : vector<1x22x128xf32> to vector<22x128xf32>
    %c1_30 = arith.constant 1 : index
    %c1_31 = arith.constant 1 : index
    %c0_32 = arith.constant 0 : index
    %c0_33 = arith.constant 0 : index
    %27 = vector.load %arg2[%c1_30, %c1_31, %c0_32, %c0_33] : memref<3x3x128x128xf32, #tpu.memory_space<vmem>>, vector<1x1x128x128xf32>
    %28 = vector.shape_cast %27 : vector<1x1x128x128xf32> to vector<128x128xf32>
    %cst_34 = arith.constant dense<0.000000e+00> : vector<22x128xf32>
    %29 = tpu.matmul %26, %28, %cst_34 {dimension_numbers = #tpu.dot_dimension_numbers<[1], [0], [0], [1], [0, 0, 1, 1], [], []>} : vector<22x128xf32>, vector<128x128xf32>, vector<22x128xf32> -> vector<22x128xf32>
    %30 = arith.addf %24, %29 : vector<22x128xf32>
    %c0_35 = arith.constant 0 : index
    %c8 = arith.constant 8 : index
    %c0_36 = arith.constant 0 : index
    %31 = vector.load %arg1[%c0_35, %c8, %c0_36] : memref<1x36x128xf32, #tpu.memory_space<vmem>>, vector<1x22x128xf32>
    %32 = vector.shape_cast %31 : vector<1x22x128xf32> to vector<22x128xf32>
    %c1_37 = arith.constant 1 : index
    %c2_38 = arith.constant 2 : index
    %c0_39 = arith.constant 0 : index
    %c0_40 = arith.constant 0 : index
    %33 = vector.load %arg2[%c1_37, %c2_38, %c0_39, %c0_40] : memref<3x3x128x128xf32, #tpu.memory_space<vmem>>, vector<1x1x128x128xf32>
    %34 = vector.shape_cast %33 : vector<1x1x128x128xf32> to vector<128x128xf32>
    %cst_41 = arith.constant dense<0.000000e+00> : vector<22x128xf32>
    %35 = tpu.matmul %32, %34, %cst_41 {dimension_numbers = #tpu.dot_dimension_numbers<[1], [0], [0], [1], [0, 0, 1, 1], [], []>} : vector<22x128xf32>, vector<128x128xf32>, vector<22x128xf32> -> vector<22x128xf32>
    %36 = arith.addf %30, %35 : vector<22x128xf32>
    %c0_42 = arith.constant 0 : index
    %c12 = arith.constant 12 : index
    %c0_43 = arith.constant 0 : index
    %37 = vector.load %arg1[%c0_42, %c12, %c0_43] : memref<1x36x128xf32, #tpu.memory_space<vmem>>, vector<1x22x128xf32>
    %38 = vector.shape_cast %37 : vector<1x22x128xf32> to vector<22x128xf32>
    %c2_44 = arith.constant 2 : index
    %c0_45 = arith.constant 0 : index
    %c0_46 = arith.constant 0 : index
    %c0_47 = arith.constant 0 : index
    %39 = vector.load %arg2[%c2_44, %c0_45, %c0_46, %c0_47] : memref<3x3x128x128xf32, #tpu.memory_space<vmem>>, vector<1x1x128x128xf32>
    %40 = vector.shape_cast %39 : vector<1x1x128x128xf32> to vector<128x128xf32>
    %cst_48 = arith.constant dense<0.000000e+00> : vector<22x128xf32>
    %41 = tpu.matmul %38, %40, %cst_48 {dimension_numbers = #tpu.dot_dimension_numbers<[1], [0], [0], [1], [0, 0, 1, 1], [], []>} : vector<22x128xf32>, vector<128x128xf32>, vector<22x128xf32> -> vector<22x128xf32>
    %42 = arith.addf %36, %41 : vector<22x128xf32>
    %c0_49 = arith.constant 0 : index
    %c13 = arith.constant 13 : index
    %c0_50 = arith.constant 0 : index
    %43 = vector.load %arg1[%c0_49, %c13, %c0_50] : memref<1x36x128xf32, #tpu.memory_space<vmem>>, vector<1x22x128xf32>
    %44 = vector.shape_cast %43 : vector<1x22x128xf32> to vector<22x128xf32>
    %c2_51 = arith.constant 2 : index
    %c1_52 = arith.constant 1 : index
    %c0_53 = arith.constant 0 : index
    %c0_54 = arith.constant 0 : index
    %45 = vector.load %arg2[%c2_51, %c1_52, %c0_53, %c0_54] : memref<3x3x128x128xf32, #tpu.memory_space<vmem>>, vector<1x1x128x128xf32>
    %46 = vector.shape_cast %45 : vector<1x1x128x128xf32> to vector<128x128xf32>
    %cst_55 = arith.constant dense<0.000000e+00> : vector<22x128xf32>
    %47 = tpu.matmul %44, %46, %cst_55 {dimension_numbers = #tpu.dot_dimension_numbers<[1], [0], [0], [1], [0, 0, 1, 1], [], []>} : vector<22x128xf32>, vector<128x128xf32>, vector<22x128xf32> -> vector<22x128xf32>
    %48 = arith.addf %42, %47 : vector<22x128xf32>
    %c0_56 = arith.constant 0 : index
    %c14 = arith.constant 14 : index
    %c0_57 = arith.constant 0 : index
    %49 = vector.load %arg1[%c0_56, %c14, %c0_57] : memref<1x36x128xf32, #tpu.memory_space<vmem>>, vector<1x22x128xf32>
    %50 = vector.shape_cast %49 : vector<1x22x128xf32> to vector<22x128xf32>
    %c2_58 = arith.constant 2 : index
    %c2_59 = arith.constant 2 : index
    %c0_60 = arith.constant 0 : index
    %c0_61 = arith.constant 0 : index
    %51 = vector.load %arg2[%c2_58, %c2_59, %c0_60, %c0_61] : memref<3x3x128x128xf32, #tpu.memory_space<vmem>>, vector<1x1x128x128xf32>
    %52 = vector.shape_cast %51 : vector<1x1x128x128xf32> to vector<128x128xf32>
    %cst_62 = arith.constant dense<0.000000e+00> : vector<22x128xf32>
    %53 = tpu.matmul %50, %52, %cst_62 {dimension_numbers = #tpu.dot_dimension_numbers<[1], [0], [0], [1], [0, 0, 1, 1], [], []>} : vector<22x128xf32>, vector<128x128xf32>, vector<22x128xf32> -> vector<22x128xf32>
    %54 = arith.addf %48, %53 : vector<22x128xf32>
    %c0_63 = arith.constant 0 : index
    %c0_64 = arith.constant 0 : index
    %55 = vector.load %arg3[%c0_63, %c0_64] : memref<1x128xf32, #tpu.memory_space<vmem>>, vector<1x128xf32>
    %56 = vector.broadcast %55 : vector<1x128xf32> to vector<22x128xf32>
    %57 = arith.addf %54, %56 : vector<22x128xf32>
    %cst_65 = arith.constant 0.000000e+00 : f32
    %58 = vector.broadcast %cst_65 : f32 to vector<22x128xf32>
    %59 = arith.maximumf %57, %58 : vector<22x128xf32>
    %c0_66 = arith.constant 0 : index
    %c0_67 = arith.constant 0 : index
    %60 = vector.load %arg5[%c0_66, %c0_67] : memref<22x128xf32, #tpu.memory_space<vmem>>, vector<22x128xf32>
    tpu.vector_store %arg5[%c0_66, %c0_67], %59 {strides = array<i32>} : memref<22x128xf32, #tpu.memory_space<vmem>>, vector<22x128xf32>,
    %c0_68 = arith.constant 0 : index
    %c0_69 = arith.constant 0 : index
    %61 = tpu.strided_load %arg5[%c0_68, %c0_69] {strides = array<i32: 2, 1>} : memref<22x128xf32, #tpu.memory_space<vmem>>, vector<2x128xf32>
    %c1_70 = arith.constant 1 : index
    %c0_71 = arith.constant 0 : index
    %62 = tpu.strided_load %arg5[%c1_70, %c0_71] {strides = array<i32: 2, 1>} : memref<22x128xf32, #tpu.memory_space<vmem>>, vector<2x128xf32>
    %c6_72 = arith.constant 6 : index
    %c0_73 = arith.constant 0 : index
    %63 = tpu.strided_load %arg5[%c6_72, %c0_73] {strides = array<i32: 2, 1>} : memref<22x128xf32, #tpu.memory_space<vmem>>, vector<2x128xf32>
    %c7_74 = arith.constant 7 : index
    %c0_75 = arith.constant 0 : index
    %64 = tpu.strided_load %arg5[%c7_74, %c0_75] {strides = array<i32: 2, 1>} : memref<22x128xf32, #tpu.memory_space<vmem>>, vector<2x128xf32>
    %65 = arith.maximumf %61, %62 : vector<2x128xf32>
    %66 = arith.maximumf %63, %64 : vector<2x128xf32>
    %67 = arith.maximumf %65, %66 : vector<2x128xf32>
    %c0_76 = arith.constant 0 : index
    %c0_77 = arith.constant 0 : index
    %c0_78 = arith.constant 0 : index
    %c0_79 = arith.constant 0 : index
    %68 = vector.load %arg4[%c0_76, %c0_77, %c0_78, %c0_79] : memref<1x2x2x128xf32, #tpu.memory_space<vmem>>, vector<1x1x2x128xf32>
    %69 = vector.shape_cast %68 : vector<1x1x2x128xf32> to vector<2x128xf32>
    %70 = vector.shape_cast %67 : vector<2x128xf32> to vector<1x1x2x128xf32>
    tpu.vector_store %arg4[%c0_76, %c0_77, %c0_78, %c0_79], %70 {strides = array<i32>} : memref<1x2x2x128xf32, #tpu.memory_space<vmem>>, vector<1x1x2x128xf32>,
    %c12_80 = arith.constant 12 : index
    %c0_81 = arith.constant 0 : index
    %71 = tpu.strided_load %arg5[%c12_80, %c0_81] {strides = array<i32: 2, 1>} : memref<22x128xf32, #tpu.memory_space<vmem>>, vector<2x128xf32>
    %c13_82 = arith.constant 13 : index
    %c0_83 = arith.constant 0 : index
    %72 = tpu.strided_load %arg5[%c13_82, %c0_83] {strides = array<i32: 2, 1>} : memref<22x128xf32, #tpu.memory_space<vmem>>, vector<2x128xf32>
    %c18 = arith.constant 18 : index
    %c0_84 = arith.constant 0 : index
    %73 = tpu.strided_load %arg5[%c18, %c0_84] {strides = array<i32: 2, 1>} : memref<22x128xf32, #tpu.memory_space<vmem>>, vector<2x128xf32>
    %c19 = arith.constant 19 : index
    %c0_85 = arith.constant 0 : index
    %74 = tpu.strided_load %arg5[%c19, %c0_85] {strides = array<i32: 2, 1>} : memref<22x128xf32, #tpu.memory_space<vmem>>, vector<2x128xf32>
    %75 = arith.maximumf %71, %72 : vector<2x128xf32>
    %76 = arith.maximumf %73, %74 : vector<2x128xf32>
    %77 = arith.maximumf %75, %76 : vector<2x128xf32>
    %c0_86 = arith.constant 0 : index
    %c1_87 = arith.constant 1 : index
    %c0_88 = arith.constant 0 : index
    %c0_89 = arith.constant 0 : index
    %78 = vector.load %arg4[%c0_86, %c1_87, %c0_88, %c0_89] : memref<1x2x2x128xf32, #tpu.memory_space<vmem>>, vector<1x1x2x128xf32>
    %79 = vector.shape_cast %78 : vector<1x1x2x128xf32> to vector<2x128xf32>
    %80 = vector.shape_cast %77 : vector<2x128xf32> to vector<1x1x2x128xf32>
    tpu.vector_store %arg4[%c0_86, %c1_87, %c0_88, %c0_89], %80 {strides = array<i32>} : memref<1x2x2x128xf32, #tpu.memory_space<vmem>>, vector<1x1x2x128xf32>,
    return
  }
  func.func @transform_0(%arg0: i32) -> (i32, i32, i32) {
    %c0_i32 = arith.constant 0 : i32
    %c0_i32_0 = arith.constant 0 : i32
    %c0_i32_1 = arith.constant 0 : i32
    return %arg0, %c0_i32, %c0_i32_0 : i32, i32, i32
  }
  func.func @transform_1(%arg0: i32) -> (i32, i32, i32, i32) {
    %c0_i32 = arith.constant 0 : i32
    %c0_i32_0 = arith.constant 0 : i32
    %c0_i32_1 = arith.constant 0 : i32
    %c0_i32_2 = arith.constant 0 : i32
    %c0_i32_3 = arith.constant 0 : i32
    return %c0_i32, %c0_i32_0, %c0_i32_1, %c0_i32_2 : i32, i32, i32, i32
  }
  func.func @transform_2(%arg0: i32) -> (i32, i32) {
    %c0_i32 = arith.constant 0 : i32
    %c0_i32_0 = arith.constant 0 : i32
    %c0_i32_1 = arith.constant 0 : i32
    return %c0_i32, %c0_i32_0 : i32, i32
  }
  func.func @transform_3(%arg0: i32) -> (i32, i32, i32, i32) {
    %c0_i32 = arith.constant 0 : i32
    %c0_i32_0 = arith.constant 0 : i32
    %c0_i32_1 = arith.constant 0 : i32
    %c0_i32_2 = arith.constant 0 : i32
    return %arg0, %c0_i32, %c0_i32_0, %c0_i32_1 : i32, i32, i32, i32
  }
}

module attributes {stable_mosaic.version = 11 : i64} {
  func.func @_conv_stage_kernel(%arg0: i32, %arg1: memref<1x16x128xf32, #tpu.memory_space<vmem>>, %arg2: memref<3x3x128x128xf32, #tpu.memory_space<vmem>>, %arg3: memref<1x128xf32, #tpu.memory_space<vmem>>, %arg4: memref<1x16x128xf32, #tpu.memory_space<vmem>>) attributes {dimension_semantics = [#tpu.dimension_semantics<parallel>], iteration_bounds = array<i64: 2>, scalar_prefetch = 0 : i64, scratch_operands = 0 : i64, tpu.core_type = #tpu.core_type<tc>, window_params = [{transform_indices = @transform_0, window_bounds = array<i64: 1, 16, 128>}, {pipeline_mode = #tpu.pipeline_mode<synchronous>, transform_indices = @transform_1, window_bounds = array<i64: 3, 3, 128, 128>}, {pipeline_mode = #tpu.pipeline_mode<synchronous>, transform_indices = @transform_2, window_bounds = array<i64: 1, 128>}, {transform_indices = @transform_3, window_bounds = array<i64: 1, 16, 128>}]} {
    %cst = arith.constant 0.000000e+00 : f32
    %0 = vector.broadcast %cst : f32 to vector<6x128xf32>
    %c0 = arith.constant 0 : index
    %c0_0 = arith.constant 0 : index
    %c0_1 = arith.constant 0 : index
    %1 = vector.load %arg1[%c0, %c0_0, %c0_1] : memref<1x16x128xf32, #tpu.memory_space<vmem>>, vector<1x6x128xf32>
    %2 = vector.shape_cast %1 : vector<1x6x128xf32> to vector<6x128xf32>
    %c0_2 = arith.constant 0 : index
    %c0_3 = arith.constant 0 : index
    %c0_4 = arith.constant 0 : index
    %c0_5 = arith.constant 0 : index
    %3 = vector.load %arg2[%c0_2, %c0_3, %c0_4, %c0_5] : memref<3x3x128x128xf32, #tpu.memory_space<vmem>>, vector<1x1x128x128xf32>
    %4 = vector.shape_cast %3 : vector<1x1x128x128xf32> to vector<128x128xf32>
    %cst_6 = arith.constant dense<0.000000e+00> : vector<6x128xf32>
    %5 = tpu.matmul %2, %4, %cst_6 {dimension_numbers = #tpu.dot_dimension_numbers<[1], [0], [0], [1], [0, 0, 1, 1], [], []>} : vector<6x128xf32>, vector<128x128xf32>, vector<6x128xf32> -> vector<6x128xf32>
    %6 = arith.addf %0, %5 : vector<6x128xf32>
    %c0_7 = arith.constant 0 : index
    %c1 = arith.constant 1 : index
    %c0_8 = arith.constant 0 : index
    %7 = vector.load %arg1[%c0_7, %c1, %c0_8] : memref<1x16x128xf32, #tpu.memory_space<vmem>>, vector<1x6x128xf32>
    %8 = vector.shape_cast %7 : vector<1x6x128xf32> to vector<6x128xf32>
    %c0_9 = arith.constant 0 : index
    %c1_10 = arith.constant 1 : index
    %c0_11 = arith.constant 0 : index
    %c0_12 = arith.constant 0 : index
    %9 = vector.load %arg2[%c0_9, %c1_10, %c0_11, %c0_12] : memref<3x3x128x128xf32, #tpu.memory_space<vmem>>, vector<1x1x128x128xf32>
    %10 = vector.shape_cast %9 : vector<1x1x128x128xf32> to vector<128x128xf32>
    %cst_13 = arith.constant dense<0.000000e+00> : vector<6x128xf32>
    %11 = tpu.matmul %8, %10, %cst_13 {dimension_numbers = #tpu.dot_dimension_numbers<[1], [0], [0], [1], [0, 0, 1, 1], [], []>} : vector<6x128xf32>, vector<128x128xf32>, vector<6x128xf32> -> vector<6x128xf32>
    %12 = arith.addf %6, %11 : vector<6x128xf32>
    %c0_14 = arith.constant 0 : index
    %c2 = arith.constant 2 : index
    %c0_15 = arith.constant 0 : index
    %13 = vector.load %arg1[%c0_14, %c2, %c0_15] : memref<1x16x128xf32, #tpu.memory_space<vmem>>, vector<1x6x128xf32>
    %14 = vector.shape_cast %13 : vector<1x6x128xf32> to vector<6x128xf32>
    %c0_16 = arith.constant 0 : index
    %c2_17 = arith.constant 2 : index
    %c0_18 = arith.constant 0 : index
    %c0_19 = arith.constant 0 : index
    %15 = vector.load %arg2[%c0_16, %c2_17, %c0_18, %c0_19] : memref<3x3x128x128xf32, #tpu.memory_space<vmem>>, vector<1x1x128x128xf32>
    %16 = vector.shape_cast %15 : vector<1x1x128x128xf32> to vector<128x128xf32>
    %cst_20 = arith.constant dense<0.000000e+00> : vector<6x128xf32>
    %17 = tpu.matmul %14, %16, %cst_20 {dimension_numbers = #tpu.dot_dimension_numbers<[1], [0], [0], [1], [0, 0, 1, 1], [], []>} : vector<6x128xf32>, vector<128x128xf32>, vector<6x128xf32> -> vector<6x128xf32>
    %18 = arith.addf %12, %17 : vector<6x128xf32>
    %c0_21 = arith.constant 0 : index
    %c4 = arith.constant 4 : index
    %c0_22 = arith.constant 0 : index
    %19 = vector.load %arg1[%c0_21, %c4, %c0_22] : memref<1x16x128xf32, #tpu.memory_space<vmem>>, vector<1x6x128xf32>
    %20 = vector.shape_cast %19 : vector<1x6x128xf32> to vector<6x128xf32>
    %c1_23 = arith.constant 1 : index
    %c0_24 = arith.constant 0 : index
    %c0_25 = arith.constant 0 : index
    %c0_26 = arith.constant 0 : index
    %21 = vector.load %arg2[%c1_23, %c0_24, %c0_25, %c0_26] : memref<3x3x128x128xf32, #tpu.memory_space<vmem>>, vector<1x1x128x128xf32>
    %22 = vector.shape_cast %21 : vector<1x1x128x128xf32> to vector<128x128xf32>
    %cst_27 = arith.constant dense<0.000000e+00> : vector<6x128xf32>
    %23 = tpu.matmul %20, %22, %cst_27 {dimension_numbers = #tpu.dot_dimension_numbers<[1], [0], [0], [1], [0, 0, 1, 1], [], []>} : vector<6x128xf32>, vector<128x128xf32>, vector<6x128xf32> -> vector<6x128xf32>
    %24 = arith.addf %18, %23 : vector<6x128xf32>
    %c0_28 = arith.constant 0 : index
    %c5 = arith.constant 5 : index
    %c0_29 = arith.constant 0 : index
    %25 = vector.load %arg1[%c0_28, %c5, %c0_29] : memref<1x16x128xf32, #tpu.memory_space<vmem>>, vector<1x6x128xf32>
    %26 = vector.shape_cast %25 : vector<1x6x128xf32> to vector<6x128xf32>
    %c1_30 = arith.constant 1 : index
    %c1_31 = arith.constant 1 : index
    %c0_32 = arith.constant 0 : index
    %c0_33 = arith.constant 0 : index
    %27 = vector.load %arg2[%c1_30, %c1_31, %c0_32, %c0_33] : memref<3x3x128x128xf32, #tpu.memory_space<vmem>>, vector<1x1x128x128xf32>
    %28 = vector.shape_cast %27 : vector<1x1x128x128xf32> to vector<128x128xf32>
    %cst_34 = arith.constant dense<0.000000e+00> : vector<6x128xf32>
    %29 = tpu.matmul %26, %28, %cst_34 {dimension_numbers = #tpu.dot_dimension_numbers<[1], [0], [0], [1], [0, 0, 1, 1], [], []>} : vector<6x128xf32>, vector<128x128xf32>, vector<6x128xf32> -> vector<6x128xf32>
    %30 = arith.addf %24, %29 : vector<6x128xf32>
    %c0_35 = arith.constant 0 : index
    %c6 = arith.constant 6 : index
    %c0_36 = arith.constant 0 : index
    %31 = vector.load %arg1[%c0_35, %c6, %c0_36] : memref<1x16x128xf32, #tpu.memory_space<vmem>>, vector<1x6x128xf32>
    %32 = vector.shape_cast %31 : vector<1x6x128xf32> to vector<6x128xf32>
    %c1_37 = arith.constant 1 : index
    %c2_38 = arith.constant 2 : index
    %c0_39 = arith.constant 0 : index
    %c0_40 = arith.constant 0 : index
    %33 = vector.load %arg2[%c1_37, %c2_38, %c0_39, %c0_40] : memref<3x3x128x128xf32, #tpu.memory_space<vmem>>, vector<1x1x128x128xf32>
    %34 = vector.shape_cast %33 : vector<1x1x128x128xf32> to vector<128x128xf32>
    %cst_41 = arith.constant dense<0.000000e+00> : vector<6x128xf32>
    %35 = tpu.matmul %32, %34, %cst_41 {dimension_numbers = #tpu.dot_dimension_numbers<[1], [0], [0], [1], [0, 0, 1, 1], [], []>} : vector<6x128xf32>, vector<128x128xf32>, vector<6x128xf32> -> vector<6x128xf32>
    %36 = arith.addf %30, %35 : vector<6x128xf32>
    %c0_42 = arith.constant 0 : index
    %c8 = arith.constant 8 : index
    %c0_43 = arith.constant 0 : index
    %37 = vector.load %arg1[%c0_42, %c8, %c0_43] : memref<1x16x128xf32, #tpu.memory_space<vmem>>, vector<1x6x128xf32>
    %38 = vector.shape_cast %37 : vector<1x6x128xf32> to vector<6x128xf32>
    %c2_44 = arith.constant 2 : index
    %c0_45 = arith.constant 0 : index
    %c0_46 = arith.constant 0 : index
    %c0_47 = arith.constant 0 : index
    %39 = vector.load %arg2[%c2_44, %c0_45, %c0_46, %c0_47] : memref<3x3x128x128xf32, #tpu.memory_space<vmem>>, vector<1x1x128x128xf32>
    %40 = vector.shape_cast %39 : vector<1x1x128x128xf32> to vector<128x128xf32>
    %cst_48 = arith.constant dense<0.000000e+00> : vector<6x128xf32>
    %41 = tpu.matmul %38, %40, %cst_48 {dimension_numbers = #tpu.dot_dimension_numbers<[1], [0], [0], [1], [0, 0, 1, 1], [], []>} : vector<6x128xf32>, vector<128x128xf32>, vector<6x128xf32> -> vector<6x128xf32>
    %42 = arith.addf %36, %41 : vector<6x128xf32>
    %c0_49 = arith.constant 0 : index
    %c9 = arith.constant 9 : index
    %c0_50 = arith.constant 0 : index
    %43 = vector.load %arg1[%c0_49, %c9, %c0_50] : memref<1x16x128xf32, #tpu.memory_space<vmem>>, vector<1x6x128xf32>
    %44 = vector.shape_cast %43 : vector<1x6x128xf32> to vector<6x128xf32>
    %c2_51 = arith.constant 2 : index
    %c1_52 = arith.constant 1 : index
    %c0_53 = arith.constant 0 : index
    %c0_54 = arith.constant 0 : index
    %45 = vector.load %arg2[%c2_51, %c1_52, %c0_53, %c0_54] : memref<3x3x128x128xf32, #tpu.memory_space<vmem>>, vector<1x1x128x128xf32>
    %46 = vector.shape_cast %45 : vector<1x1x128x128xf32> to vector<128x128xf32>
    %cst_55 = arith.constant dense<0.000000e+00> : vector<6x128xf32>
    %47 = tpu.matmul %44, %46, %cst_55 {dimension_numbers = #tpu.dot_dimension_numbers<[1], [0], [0], [1], [0, 0, 1, 1], [], []>} : vector<6x128xf32>, vector<128x128xf32>, vector<6x128xf32> -> vector<6x128xf32>
    %48 = arith.addf %42, %47 : vector<6x128xf32>
    %c0_56 = arith.constant 0 : index
    %c10 = arith.constant 10 : index
    %c0_57 = arith.constant 0 : index
    %49 = vector.load %arg1[%c0_56, %c10, %c0_57] : memref<1x16x128xf32, #tpu.memory_space<vmem>>, vector<1x6x128xf32>
    %50 = vector.shape_cast %49 : vector<1x6x128xf32> to vector<6x128xf32>
    %c2_58 = arith.constant 2 : index
    %c2_59 = arith.constant 2 : index
    %c0_60 = arith.constant 0 : index
    %c0_61 = arith.constant 0 : index
    %51 = vector.load %arg2[%c2_58, %c2_59, %c0_60, %c0_61] : memref<3x3x128x128xf32, #tpu.memory_space<vmem>>, vector<1x1x128x128xf32>
    %52 = vector.shape_cast %51 : vector<1x1x128x128xf32> to vector<128x128xf32>
    %cst_62 = arith.constant dense<0.000000e+00> : vector<6x128xf32>
    %53 = tpu.matmul %50, %52, %cst_62 {dimension_numbers = #tpu.dot_dimension_numbers<[1], [0], [0], [1], [0, 0, 1, 1], [], []>} : vector<6x128xf32>, vector<128x128xf32>, vector<6x128xf32> -> vector<6x128xf32>
    %54 = arith.addf %48, %53 : vector<6x128xf32>
    %c0_63 = arith.constant 0 : index
    %c0_64 = arith.constant 0 : index
    %55 = vector.load %arg3[%c0_63, %c0_64] : memref<1x128xf32, #tpu.memory_space<vmem>>, vector<1x128xf32>
    %56 = vector.broadcast %55 : vector<1x128xf32> to vector<6x128xf32>
    %57 = arith.addf %54, %56 : vector<6x128xf32>
    %cst_65 = arith.constant 0.000000e+00 : f32
    %58 = vector.broadcast %cst_65 : f32 to vector<6x128xf32>
    %59 = arith.maximumf %57, %58 : vector<6x128xf32>
    %c0_66 = arith.constant 0 : index
    %c0_67 = arith.constant 0 : index
    %c0_68 = arith.constant 0 : index
    %60 = vector.load %arg4[%c0_66, %c0_67, %c0_68] : memref<1x16x128xf32, #tpu.memory_space<vmem>>, vector<1x6x128xf32>
    %61 = vector.shape_cast %60 : vector<1x6x128xf32> to vector<6x128xf32>
    %62 = vector.shape_cast %59 : vector<6x128xf32> to vector<1x6x128xf32>
    tpu.vector_store %arg4[%c0_66, %c0_67, %c0_68], %62 {strides = array<i32>} : memref<1x16x128xf32, #tpu.memory_space<vmem>>, vector<1x6x128xf32>,
    %cst_69 = arith.constant 0.000000e+00 : f32
    %63 = vector.broadcast %cst_69 : f32 to vector<10x128xf32>
    %c0_70 = arith.constant 0 : index
    %c6_71 = arith.constant 6 : index
    %c0_72 = arith.constant 0 : index
    %64 = vector.load %arg4[%c0_70, %c6_71, %c0_72] : memref<1x16x128xf32, #tpu.memory_space<vmem>>, vector<1x10x128xf32>
    %65 = vector.shape_cast %64 : vector<1x10x128xf32> to vector<10x128xf32>
    %66 = vector.shape_cast %63 : vector<10x128xf32> to vector<1x10x128xf32>
    tpu.vector_store %arg4[%c0_70, %c6_71, %c0_72], %66 {strides = array<i32>} : memref<1x16x128xf32, #tpu.memory_space<vmem>>, vector<1x10x128xf32>,
    return
  }
  func.func @transform_0(%arg0: i32) -> (i32, i32, i32) {
    %c0_i32 = arith.constant 0 : i32
    %c0_i32_0 = arith.constant 0 : i32
    %c0_i32_1 = arith.constant 0 : i32
    return %arg0, %c0_i32, %c0_i32_0 : i32, i32, i32
  }
  func.func @transform_1(%arg0: i32) -> (i32, i32, i32, i32) {
    %c0_i32 = arith.constant 0 : i32
    %c0_i32_0 = arith.constant 0 : i32
    %c0_i32_1 = arith.constant 0 : i32
    %c0_i32_2 = arith.constant 0 : i32
    %c0_i32_3 = arith.constant 0 : i32
    return %c0_i32, %c0_i32_0, %c0_i32_1, %c0_i32_2 : i32, i32, i32, i32
  }
  func.func @transform_2(%arg0: i32) -> (i32, i32) {
    %c0_i32 = arith.constant 0 : i32
    %c0_i32_0 = arith.constant 0 : i32
    %c0_i32_1 = arith.constant 0 : i32
    return %c0_i32, %c0_i32_0 : i32, i32
  }
  func.func @transform_3(%arg0: i32) -> (i32, i32, i32) {
    %c0_i32 = arith.constant 0 : i32
    %c0_i32_0 = arith.constant 0 : i32
    %c0_i32_1 = arith.constant 0 : i32
    return %arg0, %c0_i32, %c0_i32_0 : i32, i32, i32
  }
}

module attributes {stable_mosaic.version = 11 : i64} {
  func.func @_conv_stage_kernel(%arg0: i32, %arg1: memref<1x100x128xf32, #tpu.memory_space<vmem>>, %arg2: memref<3x3x128x128xf32, #tpu.memory_space<vmem>>, %arg3: memref<1x128xf32, #tpu.memory_space<vmem>>, %arg4: memref<1x4x4x128xf32, #tpu.memory_space<vmem>>, %arg5: memref<78x128xf32, #tpu.memory_space<vmem>>) attributes {dimension_semantics = [#tpu.dimension_semantics<parallel>], iteration_bounds = array<i64: 2>, scalar_prefetch = 0 : i64, scratch_operands = 1 : i64, tpu.core_type = #tpu.core_type<tc>, window_params = [{transform_indices = @transform_0, window_bounds = array<i64: 1, 100, 128>}, {pipeline_mode = #tpu.pipeline_mode<synchronous>, transform_indices = @transform_1, window_bounds = array<i64: 3, 3, 128, 128>}, {pipeline_mode = #tpu.pipeline_mode<synchronous>, transform_indices = @transform_2, window_bounds = array<i64: 1, 128>}, {transform_indices = @transform_3, window_bounds = array<i64: 1, 4, 4, 128>}]} {
    %cst = arith.constant 0.000000e+00 : f32
    %0 = vector.broadcast %cst : f32 to vector<78x128xf32>
    %c0 = arith.constant 0 : index
    %c0_0 = arith.constant 0 : index
    %c0_1 = arith.constant 0 : index
    %1 = vector.load %arg1[%c0, %c0_0, %c0_1] : memref<1x100x128xf32, #tpu.memory_space<vmem>>, vector<1x78x128xf32>
    %2 = vector.shape_cast %1 : vector<1x78x128xf32> to vector<78x128xf32>
    %c0_2 = arith.constant 0 : index
    %c0_3 = arith.constant 0 : index
    %c0_4 = arith.constant 0 : index
    %c0_5 = arith.constant 0 : index
    %3 = vector.load %arg2[%c0_2, %c0_3, %c0_4, %c0_5] : memref<3x3x128x128xf32, #tpu.memory_space<vmem>>, vector<1x1x128x128xf32>
    %4 = vector.shape_cast %3 : vector<1x1x128x128xf32> to vector<128x128xf32>
    %cst_6 = arith.constant dense<0.000000e+00> : vector<78x128xf32>
    %5 = tpu.matmul %2, %4, %cst_6 {dimension_numbers = #tpu.dot_dimension_numbers<[1], [0], [0], [1], [0, 0, 1, 1], [], []>} : vector<78x128xf32>, vector<128x128xf32>, vector<78x128xf32> -> vector<78x128xf32>
    %6 = arith.addf %0, %5 : vector<78x128xf32>
    %c0_7 = arith.constant 0 : index
    %c1 = arith.constant 1 : index
    %c0_8 = arith.constant 0 : index
    %7 = vector.load %arg1[%c0_7, %c1, %c0_8] : memref<1x100x128xf32, #tpu.memory_space<vmem>>, vector<1x78x128xf32>
    %8 = vector.shape_cast %7 : vector<1x78x128xf32> to vector<78x128xf32>
    %c0_9 = arith.constant 0 : index
    %c1_10 = arith.constant 1 : index
    %c0_11 = arith.constant 0 : index
    %c0_12 = arith.constant 0 : index
    %9 = vector.load %arg2[%c0_9, %c1_10, %c0_11, %c0_12] : memref<3x3x128x128xf32, #tpu.memory_space<vmem>>, vector<1x1x128x128xf32>
    %10 = vector.shape_cast %9 : vector<1x1x128x128xf32> to vector<128x128xf32>
    %cst_13 = arith.constant dense<0.000000e+00> : vector<78x128xf32>
    %11 = tpu.matmul %8, %10, %cst_13 {dimension_numbers = #tpu.dot_dimension_numbers<[1], [0], [0], [1], [0, 0, 1, 1], [], []>} : vector<78x128xf32>, vector<128x128xf32>, vector<78x128xf32> -> vector<78x128xf32>
    %12 = arith.addf %6, %11 : vector<78x128xf32>
    %c0_14 = arith.constant 0 : index
    %c2 = arith.constant 2 : index
    %c0_15 = arith.constant 0 : index
    %13 = vector.load %arg1[%c0_14, %c2, %c0_15] : memref<1x100x128xf32, #tpu.memory_space<vmem>>, vector<1x78x128xf32>
    %14 = vector.shape_cast %13 : vector<1x78x128xf32> to vector<78x128xf32>
    %c0_16 = arith.constant 0 : index
    %c2_17 = arith.constant 2 : index
    %c0_18 = arith.constant 0 : index
    %c0_19 = arith.constant 0 : index
    %15 = vector.load %arg2[%c0_16, %c2_17, %c0_18, %c0_19] : memref<3x3x128x128xf32, #tpu.memory_space<vmem>>, vector<1x1x128x128xf32>
    %16 = vector.shape_cast %15 : vector<1x1x128x128xf32> to vector<128x128xf32>
    %cst_20 = arith.constant dense<0.000000e+00> : vector<78x128xf32>
    %17 = tpu.matmul %14, %16, %cst_20 {dimension_numbers = #tpu.dot_dimension_numbers<[1], [0], [0], [1], [0, 0, 1, 1], [], []>} : vector<78x128xf32>, vector<128x128xf32>, vector<78x128xf32> -> vector<78x128xf32>
    %18 = arith.addf %12, %17 : vector<78x128xf32>
    %c0_21 = arith.constant 0 : index
    %c10 = arith.constant 10 : index
    %c0_22 = arith.constant 0 : index
    %19 = vector.load %arg1[%c0_21, %c10, %c0_22] : memref<1x100x128xf32, #tpu.memory_space<vmem>>, vector<1x78x128xf32>
    %20 = vector.shape_cast %19 : vector<1x78x128xf32> to vector<78x128xf32>
    %c1_23 = arith.constant 1 : index
    %c0_24 = arith.constant 0 : index
    %c0_25 = arith.constant 0 : index
    %c0_26 = arith.constant 0 : index
    %21 = vector.load %arg2[%c1_23, %c0_24, %c0_25, %c0_26] : memref<3x3x128x128xf32, #tpu.memory_space<vmem>>, vector<1x1x128x128xf32>
    %22 = vector.shape_cast %21 : vector<1x1x128x128xf32> to vector<128x128xf32>
    %cst_27 = arith.constant dense<0.000000e+00> : vector<78x128xf32>
    %23 = tpu.matmul %20, %22, %cst_27 {dimension_numbers = #tpu.dot_dimension_numbers<[1], [0], [0], [1], [0, 0, 1, 1], [], []>} : vector<78x128xf32>, vector<128x128xf32>, vector<78x128xf32> -> vector<78x128xf32>
    %24 = arith.addf %18, %23 : vector<78x128xf32>
    %c0_28 = arith.constant 0 : index
    %c11 = arith.constant 11 : index
    %c0_29 = arith.constant 0 : index
    %25 = vector.load %arg1[%c0_28, %c11, %c0_29] : memref<1x100x128xf32, #tpu.memory_space<vmem>>, vector<1x78x128xf32>
    %26 = vector.shape_cast %25 : vector<1x78x128xf32> to vector<78x128xf32>
    %c1_30 = arith.constant 1 : index
    %c1_31 = arith.constant 1 : index
    %c0_32 = arith.constant 0 : index
    %c0_33 = arith.constant 0 : index
    %27 = vector.load %arg2[%c1_30, %c1_31, %c0_32, %c0_33] : memref<3x3x128x128xf32, #tpu.memory_space<vmem>>, vector<1x1x128x128xf32>
    %28 = vector.shape_cast %27 : vector<1x1x128x128xf32> to vector<128x128xf32>
    %cst_34 = arith.constant dense<0.000000e+00> : vector<78x128xf32>
    %29 = tpu.matmul %26, %28, %cst_34 {dimension_numbers = #tpu.dot_dimension_numbers<[1], [0], [0], [1], [0, 0, 1, 1], [], []>} : vector<78x128xf32>, vector<128x128xf32>, vector<78x128xf32> -> vector<78x128xf32>
    %30 = arith.addf %24, %29 : vector<78x128xf32>
    %c0_35 = arith.constant 0 : index
    %c12 = arith.constant 12 : index
    %c0_36 = arith.constant 0 : index
    %31 = vector.load %arg1[%c0_35, %c12, %c0_36] : memref<1x100x128xf32, #tpu.memory_space<vmem>>, vector<1x78x128xf32>
    %32 = vector.shape_cast %31 : vector<1x78x128xf32> to vector<78x128xf32>
    %c1_37 = arith.constant 1 : index
    %c2_38 = arith.constant 2 : index
    %c0_39 = arith.constant 0 : index
    %c0_40 = arith.constant 0 : index
    %33 = vector.load %arg2[%c1_37, %c2_38, %c0_39, %c0_40] : memref<3x3x128x128xf32, #tpu.memory_space<vmem>>, vector<1x1x128x128xf32>
    %34 = vector.shape_cast %33 : vector<1x1x128x128xf32> to vector<128x128xf32>
    %cst_41 = arith.constant dense<0.000000e+00> : vector<78x128xf32>
    %35 = tpu.matmul %32, %34, %cst_41 {dimension_numbers = #tpu.dot_dimension_numbers<[1], [0], [0], [1], [0, 0, 1, 1], [], []>} : vector<78x128xf32>, vector<128x128xf32>, vector<78x128xf32> -> vector<78x128xf32>
    %36 = arith.addf %30, %35 : vector<78x128xf32>
    %c0_42 = arith.constant 0 : index
    %c20 = arith.constant 20 : index
    %c0_43 = arith.constant 0 : index
    %37 = vector.load %arg1[%c0_42, %c20, %c0_43] : memref<1x100x128xf32, #tpu.memory_space<vmem>>, vector<1x78x128xf32>
    %38 = vector.shape_cast %37 : vector<1x78x128xf32> to vector<78x128xf32>
    %c2_44 = arith.constant 2 : index
    %c0_45 = arith.constant 0 : index
    %c0_46 = arith.constant 0 : index
    %c0_47 = arith.constant 0 : index
    %39 = vector.load %arg2[%c2_44, %c0_45, %c0_46, %c0_47] : memref<3x3x128x128xf32, #tpu.memory_space<vmem>>, vector<1x1x128x128xf32>
    %40 = vector.shape_cast %39 : vector<1x1x128x128xf32> to vector<128x128xf32>
    %cst_48 = arith.constant dense<0.000000e+00> : vector<78x128xf32>
    %41 = tpu.matmul %38, %40, %cst_48 {dimension_numbers = #tpu.dot_dimension_numbers<[1], [0], [0], [1], [0, 0, 1, 1], [], []>} : vector<78x128xf32>, vector<128x128xf32>, vector<78x128xf32> -> vector<78x128xf32>
    %42 = arith.addf %36, %41 : vector<78x128xf32>
    %c0_49 = arith.constant 0 : index
    %c21 = arith.constant 21 : index
    %c0_50 = arith.constant 0 : index
    %43 = vector.load %arg1[%c0_49, %c21, %c0_50] : memref<1x100x128xf32, #tpu.memory_space<vmem>>, vector<1x78x128xf32>
    %44 = vector.shape_cast %43 : vector<1x78x128xf32> to vector<78x128xf32>
    %c2_51 = arith.constant 2 : index
    %c1_52 = arith.constant 1 : index
    %c0_53 = arith.constant 0 : index
    %c0_54 = arith.constant 0 : index
    %45 = vector.load %arg2[%c2_51, %c1_52, %c0_53, %c0_54] : memref<3x3x128x128xf32, #tpu.memory_space<vmem>>, vector<1x1x128x128xf32>
    %46 = vector.shape_cast %45 : vector<1x1x128x128xf32> to vector<128x128xf32>
    %cst_55 = arith.constant dense<0.000000e+00> : vector<78x128xf32>
    %47 = tpu.matmul %44, %46, %cst_55 {dimension_numbers = #tpu.dot_dimension_numbers<[1], [0], [0], [1], [0, 0, 1, 1], [], []>} : vector<78x128xf32>, vector<128x128xf32>, vector<78x128xf32> -> vector<78x128xf32>
    %48 = arith.addf %42, %47 : vector<78x128xf32>
    %c0_56 = arith.constant 0 : index
    %c22 = arith.constant 22 : index
    %c0_57 = arith.constant 0 : index
    %49 = vector.load %arg1[%c0_56, %c22, %c0_57] : memref<1x100x128xf32, #tpu.memory_space<vmem>>, vector<1x78x128xf32>
    %50 = vector.shape_cast %49 : vector<1x78x128xf32> to vector<78x128xf32>
    %c2_58 = arith.constant 2 : index
    %c2_59 = arith.constant 2 : index
    %c0_60 = arith.constant 0 : index
    %c0_61 = arith.constant 0 : index
    %51 = vector.load %arg2[%c2_58, %c2_59, %c0_60, %c0_61] : memref<3x3x128x128xf32, #tpu.memory_space<vmem>>, vector<1x1x128x128xf32>
    %52 = vector.shape_cast %51 : vector<1x1x128x128xf32> to vector<128x128xf32>
    %cst_62 = arith.constant dense<0.000000e+00> : vector<78x128xf32>
    %53 = tpu.matmul %50, %52, %cst_62 {dimension_numbers = #tpu.dot_dimension_numbers<[1], [0], [0], [1], [0, 0, 1, 1], [], []>} : vector<78x128xf32>, vector<128x128xf32>, vector<78x128xf32> -> vector<78x128xf32>
    %54 = arith.addf %48, %53 : vector<78x128xf32>
    %c0_63 = arith.constant 0 : index
    %c0_64 = arith.constant 0 : index
    %55 = vector.load %arg3[%c0_63, %c0_64] : memref<1x128xf32, #tpu.memory_space<vmem>>, vector<1x128xf32>
    %56 = vector.broadcast %55 : vector<1x128xf32> to vector<78x128xf32>
    %57 = arith.addf %54, %56 : vector<78x128xf32>
    %cst_65 = arith.constant 0.000000e+00 : f32
    %58 = vector.broadcast %cst_65 : f32 to vector<78x128xf32>
    %59 = arith.maximumf %57, %58 : vector<78x128xf32>
    %c0_66 = arith.constant 0 : index
    %c0_67 = arith.constant 0 : index
    %60 = vector.load %arg5[%c0_66, %c0_67] : memref<78x128xf32, #tpu.memory_space<vmem>>, vector<78x128xf32>
    tpu.vector_store %arg5[%c0_66, %c0_67], %59 {strides = array<i32>} : memref<78x128xf32, #tpu.memory_space<vmem>>, vector<78x128xf32>,
    %c0_68 = arith.constant 0 : index
    %c0_69 = arith.constant 0 : index
    %61 = tpu.strided_load %arg5[%c0_68, %c0_69] {strides = array<i32: 2, 1>} : memref<78x128xf32, #tpu.memory_space<vmem>>, vector<4x128xf32>
    %c1_70 = arith.constant 1 : index
    %c0_71 = arith.constant 0 : index
    %62 = tpu.strided_load %arg5[%c1_70, %c0_71] {strides = array<i32: 2, 1>} : memref<78x128xf32, #tpu.memory_space<vmem>>, vector<4x128xf32>
    %c10_72 = arith.constant 10 : index
    %c0_73 = arith.constant 0 : index
    %63 = tpu.strided_load %arg5[%c10_72, %c0_73] {strides = array<i32: 2, 1>} : memref<78x128xf32, #tpu.memory_space<vmem>>, vector<4x128xf32>
    %c11_74 = arith.constant 11 : index
    %c0_75 = arith.constant 0 : index
    %64 = tpu.strided_load %arg5[%c11_74, %c0_75] {strides = array<i32: 2, 1>} : memref<78x128xf32, #tpu.memory_space<vmem>>, vector<4x128xf32>
    %65 = arith.maximumf %61, %62 : vector<4x128xf32>
    %66 = arith.maximumf %63, %64 : vector<4x128xf32>
    %67 = arith.maximumf %65, %66 : vector<4x128xf32>
    %c0_76 = arith.constant 0 : index
    %c0_77 = arith.constant 0 : index
    %c0_78 = arith.constant 0 : index
    %c0_79 = arith.constant 0 : index
    %68 = vector.load %arg4[%c0_76, %c0_77, %c0_78, %c0_79] : memref<1x4x4x128xf32, #tpu.memory_space<vmem>>, vector<1x1x4x128xf32>
    %69 = vector.shape_cast %68 : vector<1x1x4x128xf32> to vector<4x128xf32>
    %70 = vector.shape_cast %67 : vector<4x128xf32> to vector<1x1x4x128xf32>
    tpu.vector_store %arg4[%c0_76, %c0_77, %c0_78, %c0_79], %70 {strides = array<i32>} : memref<1x4x4x128xf32, #tpu.memory_space<vmem>>, vector<1x1x4x128xf32>,
    %c20_80 = arith.constant 20 : index
    %c0_81 = arith.constant 0 : index
    %71 = tpu.strided_load %arg5[%c20_80, %c0_81] {strides = array<i32: 2, 1>} : memref<78x128xf32, #tpu.memory_space<vmem>>, vector<4x128xf32>
    %c21_82 = arith.constant 21 : index
    %c0_83 = arith.constant 0 : index
    %72 = tpu.strided_load %arg5[%c21_82, %c0_83] {strides = array<i32: 2, 1>} : memref<78x128xf32, #tpu.memory_space<vmem>>, vector<4x128xf32>
    %c30 = arith.constant 30 : index
    %c0_84 = arith.constant 0 : index
    %73 = tpu.strided_load %arg5[%c30, %c0_84] {strides = array<i32: 2, 1>} : memref<78x128xf32, #tpu.memory_space<vmem>>, vector<4x128xf32>
    %c31 = arith.constant 31 : index
    %c0_85 = arith.constant 0 : index
    %74 = tpu.strided_load %arg5[%c31, %c0_85] {strides = array<i32: 2, 1>} : memref<78x128xf32, #tpu.memory_space<vmem>>, vector<4x128xf32>
    %75 = arith.maximumf %71, %72 : vector<4x128xf32>
    %76 = arith.maximumf %73, %74 : vector<4x128xf32>
    %77 = arith.maximumf %75, %76 : vector<4x128xf32>
    %c0_86 = arith.constant 0 : index
    %c1_87 = arith.constant 1 : index
    %c0_88 = arith.constant 0 : index
    %c0_89 = arith.constant 0 : index
    %78 = vector.load %arg4[%c0_86, %c1_87, %c0_88, %c0_89] : memref<1x4x4x128xf32, #tpu.memory_space<vmem>>, vector<1x1x4x128xf32>
    %79 = vector.shape_cast %78 : vector<1x1x4x128xf32> to vector<4x128xf32>
    %80 = vector.shape_cast %77 : vector<4x128xf32> to vector<1x1x4x128xf32>
    tpu.vector_store %arg4[%c0_86, %c1_87, %c0_88, %c0_89], %80 {strides = array<i32>} : memref<1x4x4x128xf32, #tpu.memory_space<vmem>>, vector<1x1x4x128xf32>,
    %c40 = arith.constant 40 : index
    %c0_90 = arith.constant 0 : index
    %81 = tpu.strided_load %arg5[%c40, %c0_90] {strides = array<i32: 2, 1>} : memref<78x128xf32, #tpu.memory_space<vmem>>, vector<4x128xf32>
    %c41 = arith.constant 41 : index
    %c0_91 = arith.constant 0 : index
    %82 = tpu.strided_load %arg5[%c41, %c0_91] {strides = array<i32: 2, 1>} : memref<78x128xf32, #tpu.memory_space<vmem>>, vector<4x128xf32>
    %c50 = arith.constant 50 : index
    %c0_92 = arith.constant 0 : index
    %83 = tpu.strided_load %arg5[%c50, %c0_92] {strides = array<i32: 2, 1>} : memref<78x128xf32, #tpu.memory_space<vmem>>, vector<4x128xf32>
    %c51 = arith.constant 51 : index
    %c0_93 = arith.constant 0 : index
    %84 = tpu.strided_load %arg5[%c51, %c0_93] {strides = array<i32: 2, 1>} : memref<78x128xf32, #tpu.memory_space<vmem>>, vector<4x128xf32>
    %85 = arith.maximumf %81, %82 : vector<4x128xf32>
    %86 = arith.maximumf %83, %84 : vector<4x128xf32>
    %87 = arith.maximumf %85, %86 : vector<4x128xf32>
    %c0_94 = arith.constant 0 : index
    %c2_95 = arith.constant 2 : index
    %c0_96 = arith.constant 0 : index
    %c0_97 = arith.constant 0 : index
    %88 = vector.load %arg4[%c0_94, %c2_95, %c0_96, %c0_97] : memref<1x4x4x128xf32, #tpu.memory_space<vmem>>, vector<1x1x4x128xf32>
    %89 = vector.shape_cast %88 : vector<1x1x4x128xf32> to vector<4x128xf32>
    %90 = vector.shape_cast %87 : vector<4x128xf32> to vector<1x1x4x128xf32>
    tpu.vector_store %arg4[%c0_94, %c2_95, %c0_96, %c0_97], %90 {strides = array<i32>} : memref<1x4x4x128xf32, #tpu.memory_space<vmem>>, vector<1x1x4x128xf32>,
    %c60 = arith.constant 60 : index
    %c0_98 = arith.constant 0 : index
    %91 = tpu.strided_load %arg5[%c60, %c0_98] {strides = array<i32: 2, 1>} : memref<78x128xf32, #tpu.memory_space<vmem>>, vector<4x128xf32>
    %c61 = arith.constant 61 : index
    %c0_99 = arith.constant 0 : index
    %92 = tpu.strided_load %arg5[%c61, %c0_99] {strides = array<i32: 2, 1>} : memref<78x128xf32, #tpu.memory_space<vmem>>, vector<4x128xf32>
    %c70 = arith.constant 70 : index
    %c0_100 = arith.constant 0 : index
    %93 = tpu.strided_load %arg5[%c70, %c0_100] {strides = array<i32: 2, 1>} : memref<78x128xf32, #tpu.memory_space<vmem>>, vector<4x128xf32>
    %c71 = arith.constant 71 : index
    %c0_101 = arith.constant 0 : index
    %94 = tpu.strided_load %arg5[%c71, %c0_101] {strides = array<i32: 2, 1>} : memref<78x128xf32, #tpu.memory_space<vmem>>, vector<4x128xf32>
    %95 = arith.maximumf %91, %92 : vector<4x128xf32>
    %96 = arith.maximumf %93, %94 : vector<4x128xf32>
    %97 = arith.maximumf %95, %96 : vector<4x128xf32>
    %c0_102 = arith.constant 0 : index
    %c3 = arith.constant 3 : index
    %c0_103 = arith.constant 0 : index
    %c0_104 = arith.constant 0 : index
    %98 = vector.load %arg4[%c0_102, %c3, %c0_103, %c0_104] : memref<1x4x4x128xf32, #tpu.memory_space<vmem>>, vector<1x1x4x128xf32>
    %99 = vector.shape_cast %98 : vector<1x1x4x128xf32> to vector<4x128xf32>
    %100 = vector.shape_cast %97 : vector<4x128xf32> to vector<1x1x4x128xf32>
    tpu.vector_store %arg4[%c0_102, %c3, %c0_103, %c0_104], %100 {strides = array<i32>} : memref<1x4x4x128xf32, #tpu.memory_space<vmem>>, vector<1x1x4x128xf32>,
    return
  }
  func.func @transform_0(%arg0: i32) -> (i32, i32, i32) {
    %c0_i32 = arith.constant 0 : i32
    %c0_i32_0 = arith.constant 0 : i32
    %c0_i32_1 = arith.constant 0 : i32
    return %arg0, %c0_i32, %c0_i32_0 : i32, i32, i32
  }
  func.func @transform_1(%arg0: i32) -> (i32, i32, i32, i32) {
    %c0_i32 = arith.constant 0 : i32
    %c0_i32_0 = arith.constant 0 : i32
    %c0_i32_1 = arith.constant 0 : i32
    %c0_i32_2 = arith.constant 0 : i32
    %c0_i32_3 = arith.constant 0 : i32
    return %c0_i32, %c0_i32_0, %c0_i32_1, %c0_i32_2 : i32, i32, i32, i32
  }
  func.func @transform_2(%arg0: i32) -> (i32, i32) {
    %c0_i32 = arith.constant 0 : i32
    %c0_i32_0 = arith.constant 0 : i32
    %c0_i32_1 = arith.constant 0 : i32
    return %c0_i32, %c0_i32_0 : i32, i32
  }
  func.func @transform_3(%arg0: i32) -> (i32, i32, i32, i32) {
    %c0_i32 = arith.constant 0 : i32
    %c0_i32_0 = arith.constant 0 : i32
    %c0_i32_1 = arith.constant 0 : i32
    %c0_i32_2 = arith.constant 0 : i32
    return %arg0, %c0_i32, %c0_i32_0, %c0_i32_1 : i32, i32, i32, i32
  }
}

module attributes {stable_mosaic.version = 11 : i64} {
  func.func @_attn_gate_kernel(%arg0: i32, %arg1: i32, %arg2: memref<2x256xf32, #tpu.memory_space<vmem>>, %arg3: memref<256x256xbf16, #tpu.memory_space<vmem>>, %arg4: memref<1x256xf32, #tpu.memory_space<vmem>>, %arg5: memref<1x256xf32, #tpu.memory_space<vmem>>, %arg6: memref<2x256xf32, #tpu.memory_space<vmem>>, %arg7: memref<2x256xf32, #tpu.memory_space<vmem>>, %arg8: memref<2x256xf32, #tpu.memory_space<vmem>>) attributes {dimension_semantics = [#tpu.dimension_semantics<parallel>, #tpu.dimension_semantics<arbitrary>], iteration_bounds = array<i64: 2, 2>, scalar_prefetch = 0 : i64, scratch_operands = 1 : i64, tpu.core_type = #tpu.core_type<tc>, window_params = [{transform_indices = @transform_0, window_bounds = array<i64: 2, 256>}, {transform_indices = @transform_1, window_bounds = array<i64: 256, 256>}, {transform_indices = @transform_2, window_bounds = array<i64: 1, 256>}, {transform_indices = @transform_3, window_bounds = array<i64: 1, 256>}, {transform_indices = @transform_4, window_bounds = array<i64: 2, 256>}, {transform_indices = @transform_5, window_bounds = array<i64: 2, 256>}]} {
    %c0_i32 = arith.constant 0 : i32
    %0 = arith.cmpi eq, %arg1, %c0_i32 : i32
    %1 = arith.extui %0 : i1 to i32
    %c0_i32_0 = arith.constant 0 : i32
    %2 = arith.cmpi ne, %1, %c0_i32_0 : i32
    scf.if %2 {
      %cst_9 = arith.constant 0.000000e+00 : f32
      %13 = vector.broadcast %cst_9 : f32 to vector<2x256xf32>
      %c0_10 = arith.constant 0 : index
      %c0_11 = arith.constant 0 : index
      %14 = vector.load %arg8[%c0_10, %c0_11] : memref<2x256xf32, #tpu.memory_space<vmem>>, vector<2x256xf32>
      tpu.vector_store %arg8[%c0_10, %c0_11], %13 {strides = array<i32>} : memref<2x256xf32, #tpu.memory_space<vmem>>, vector<2x256xf32>,
    } else {
    }
    %c0 = arith.constant 0 : index
    %c0_1 = arith.constant 0 : index
    %3 = vector.load %arg8[%c0, %c0_1] : memref<2x256xf32, #tpu.memory_space<vmem>>, vector<2x256xf32>
    %c0_2 = arith.constant 0 : index
    %c0_3 = arith.constant 0 : index
    %4 = vector.load %arg2[%c0_2, %c0_3] : memref<2x256xf32, #tpu.memory_space<vmem>>, vector<2x256xf32>
    %5 = arith.truncf %4 : vector<2x256xf32> to vector<2x256xbf16>
    %c0_4 = arith.constant 0 : index
    %c0_5 = arith.constant 0 : index
    %6 = vector.load %arg3[%c0_4, %c0_5] : memref<256x256xbf16, #tpu.memory_space<vmem>>, vector<256x256xbf16>
    %cst = arith.constant dense<0.000000e+00> : vector<2x256xf32>
    %7 = tpu.matmul %5, %6, %cst {dimension_numbers = #tpu.dot_dimension_numbers<[1], [0], [0], [1], [0, 0, 1, 1], [], []>} : vector<2x256xbf16>, vector<256x256xbf16>, vector<2x256xf32> -> vector<2x256xf32>
    %8 = arith.addf %3, %7 : vector<2x256xf32>
    %c0_6 = arith.constant 0 : index
    %c0_7 = arith.constant 0 : index
    %9 = vector.load %arg8[%c0_6, %c0_7] : memref<2x256xf32, #tpu.memory_space<vmem>>, vector<2x256xf32>
    tpu.vector_store %arg8[%c0_6, %c0_7], %8 {strides = array<i32>} : memref<2x256xf32, #tpu.memory_space<vmem>>, vector<2x256xf32>,
    %c1_i32 = arith.constant 1 : i32
    %10 = arith.cmpi eq, %arg1, %c1_i32 : i32
    %11 = arith.extui %10 : i1 to i32
    %c0_i32_8 = arith.constant 0 : i32
    %12 = arith.cmpi ne, %11, %c0_i32_8 : i32
    scf.if %12 {
      %c0_9 = arith.constant 0 : index
      %c0_10 = arith.constant 0 : index
      %13 = vector.load %arg8[%c0_9, %c0_10] : memref<2x256xf32, #tpu.memory_space<vmem>>, vector<2x256xf32>
      %c0_11 = arith.constant 0 : index
      %c0_12 = arith.constant 0 : index
      %14 = vector.load %arg4[%c0_11, %c0_12] : memref<1x256xf32, #tpu.memory_space<vmem>>, vector<1x256xf32>
      %15 = vector.broadcast %14 : vector<1x256xf32> to vector<2x256xf32>
      %16 = arith.addf %13, %15 : vector<2x256xf32>
      %cst_13 = arith.constant 0.000000e+00 : f32
      %17 = vector.broadcast %cst_13 : f32 to vector<2x256xf32>
      %18 = arith.maximumf %16, %17 : vector<2x256xf32>
      %c0_14 = arith.constant 0 : index
      %c0_15 = arith.constant 0 : index
      %19 = vector.load %arg5[%c0_14, %c0_15] : memref<1x256xf32, #tpu.memory_space<vmem>>, vector<1x256xf32>
      %20 = vector.broadcast %19 : vector<1x256xf32> to vector<2x256xf32>
      %21 = arith.mulf %20, %18 : vector<2x256xf32>
      %cst_16 = arith.constant 0.000000e+00 : f32
      %22 = vector.broadcast %cst_16 : f32 to vector<2x256xf32>
      %23 = arith.subf %22, %21 : vector<2x256xf32>
      %24 = math.exp %23 : vector<2x256xf32>
      %cst_17 = arith.constant 1.000000e+00 : f32
      %25 = vector.broadcast %cst_17 : f32 to vector<2x256xf32>
      %26 = arith.addf %25, %24 : vector<2x256xf32>
      %cst_18 = arith.constant 1.000000e+00 : f32
      %27 = vector.broadcast %cst_18 : f32 to vector<2x256xf32>
      %28 = arith.divf %27, %26 : vector<2x256xf32>
      %c0_19 = arith.constant 0 : index
      %c0_20 = arith.constant 0 : index
      %29 = vector.load %arg6[%c0_19, %c0_20] : memref<2x256xf32, #tpu.memory_space<vmem>>, vector<2x256xf32>
      %30 = arith.mulf %28, %29 : vector<2x256xf32>
      %c0_21 = arith.constant 0 : index
      %c0_22 = arith.constant 0 : index
      %31 = vector.load %arg7[%c0_21, %c0_22] : memref<2x256xf32, #tpu.memory_space<vmem>>, vector<2x256xf32>
      tpu.vector_store %arg7[%c0_21, %c0_22], %30 {strides = array<i32>} : memref<2x256xf32, #tpu.memory_space<vmem>>, vector<2x256xf32>,
    } else {
    }
    return
  }
  func.func @transform_0(%arg0: i32, %arg1: i32) -> (i32, i32) {
    %c0_i32 = arith.constant 0 : i32
    %c0_i32_0 = arith.constant 0 : i32
    return %c0_i32, %arg1 : i32, i32
  }
  func.func @transform_1(%arg0: i32, %arg1: i32) -> (i32, i32) {
    %c0_i32 = arith.constant 0 : i32
    return %arg1, %arg0 : i32, i32
  }
  func.func @transform_2(%arg0: i32, %arg1: i32) -> (i32, i32) {
    %c0_i32 = arith.constant 0 : i32
    %c0_i32_0 = arith.constant 0 : i32
    return %c0_i32, %arg0 : i32, i32
  }
  func.func @transform_3(%arg0: i32, %arg1: i32) -> (i32, i32) {
    %c0_i32 = arith.constant 0 : i32
    %c0_i32_0 = arith.constant 0 : i32
    return %c0_i32, %arg0 : i32, i32
  }
  func.func @transform_4(%arg0: i32, %arg1: i32) -> (i32, i32) {
    %c0_i32 = arith.constant 0 : i32
    %c0_i32_0 = arith.constant 0 : i32
    return %c0_i32, %arg0 : i32, i32
  }
  func.func @transform_5(%arg0: i32, %arg1: i32) -> (i32, i32) {
    %c0_i32 = arith.constant 0 : i32
    %c0_i32_0 = arith.constant 0 : i32
    return %c0_i32, %arg0 : i32, i32
  }
}

module attributes {stable_mosaic.version = 11 : i64} {
  func.func @_fc_head_kernel(%arg0: i32, %arg1: memref<2x256xf32, #tpu.memory_space<vmem>>, %arg2: memref<256x256xbf16, #tpu.memory_space<vmem>>, %arg3: memref<1x256xf32, #tpu.memory_space<vmem>>, %arg4: memref<256x10xf32, #tpu.memory_space<vmem>>, %arg5: memref<1x10xf32, #tpu.memory_space<vmem>>, %arg6: memref<2x10xf32, #tpu.memory_space<vmem>>, %arg7: memref<2x256xf32, #tpu.memory_space<vmem>>) attributes {dimension_semantics = [#tpu.dimension_semantics<arbitrary>], iteration_bounds = array<i64: 2>, scalar_prefetch = 0 : i64, scratch_operands = 1 : i64, tpu.core_type = #tpu.core_type<tc>, window_params = [{transform_indices = @transform_0, window_bounds = array<i64: 2, 256>}, {transform_indices = @transform_1, window_bounds = array<i64: 256, 256>}, {pipeline_mode = #tpu.pipeline_mode<synchronous>, transform_indices = @transform_2, window_bounds = array<i64: 1, 256>}, {pipeline_mode = #tpu.pipeline_mode<synchronous>, transform_indices = @transform_3, window_bounds = array<i64: 256, 10>}, {pipeline_mode = #tpu.pipeline_mode<synchronous>, transform_indices = @transform_4, window_bounds = array<i64: 1, 10>}, {pipeline_mode = #tpu.pipeline_mode<synchronous>, transform_indices = @transform_5, window_bounds = array<i64: 2, 10>}]} {
    %c0_i32 = arith.constant 0 : i32
    %0 = arith.cmpi eq, %arg0, %c0_i32 : i32
    %1 = arith.extui %0 : i1 to i32
    %c0_i32_0 = arith.constant 0 : i32
    %2 = arith.cmpi ne, %1, %c0_i32_0 : i32
    scf.if %2 {
      %cst_9 = arith.constant 0.000000e+00 : f32
      %13 = vector.broadcast %cst_9 : f32 to vector<2x256xf32>
      %c0_10 = arith.constant 0 : index
      %c0_11 = arith.constant 0 : index
      %14 = vector.load %arg7[%c0_10, %c0_11] : memref<2x256xf32, #tpu.memory_space<vmem>>, vector<2x256xf32>
      tpu.vector_store %arg7[%c0_10, %c0_11], %13 {strides = array<i32>} : memref<2x256xf32, #tpu.memory_space<vmem>>, vector<2x256xf32>,
    } else {
    }
    %c0 = arith.constant 0 : index
    %c0_1 = arith.constant 0 : index
    %3 = vector.load %arg7[%c0, %c0_1] : memref<2x256xf32, #tpu.memory_space<vmem>>, vector<2x256xf32>
    %c0_2 = arith.constant 0 : index
    %c0_3 = arith.constant 0 : index
    %4 = vector.load %arg1[%c0_2, %c0_3] : memref<2x256xf32, #tpu.memory_space<vmem>>, vector<2x256xf32>
    %5 = arith.truncf %4 : vector<2x256xf32> to vector<2x256xbf16>
    %c0_4 = arith.constant 0 : index
    %c0_5 = arith.constant 0 : index
    %6 = vector.load %arg2[%c0_4, %c0_5] : memref<256x256xbf16, #tpu.memory_space<vmem>>, vector<256x256xbf16>
    %cst = arith.constant dense<0.000000e+00> : vector<2x256xf32>
    %7 = tpu.matmul %5, %6, %cst {dimension_numbers = #tpu.dot_dimension_numbers<[1], [0], [0], [1], [0, 0, 1, 1], [], []>} : vector<2x256xbf16>, vector<256x256xbf16>, vector<2x256xf32> -> vector<2x256xf32>
    %8 = arith.addf %3, %7 : vector<2x256xf32>
    %c0_6 = arith.constant 0 : index
    %c0_7 = arith.constant 0 : index
    %9 = vector.load %arg7[%c0_6, %c0_7] : memref<2x256xf32, #tpu.memory_space<vmem>>, vector<2x256xf32>
    tpu.vector_store %arg7[%c0_6, %c0_7], %8 {strides = array<i32>} : memref<2x256xf32, #tpu.memory_space<vmem>>, vector<2x256xf32>,
    %c1_i32 = arith.constant 1 : i32
    %10 = arith.cmpi eq, %arg0, %c1_i32 : i32
    %11 = arith.extui %10 : i1 to i32
    %c0_i32_8 = arith.constant 0 : i32
    %12 = arith.cmpi ne, %11, %c0_i32_8 : i32
    scf.if %12 {
      %c0_9 = arith.constant 0 : index
      %c0_10 = arith.constant 0 : index
      %13 = vector.load %arg7[%c0_9, %c0_10] : memref<2x256xf32, #tpu.memory_space<vmem>>, vector<2x256xf32>
      %c0_11 = arith.constant 0 : index
      %c0_12 = arith.constant 0 : index
      %14 = vector.load %arg3[%c0_11, %c0_12] : memref<1x256xf32, #tpu.memory_space<vmem>>, vector<1x256xf32>
      %15 = vector.broadcast %14 : vector<1x256xf32> to vector<2x256xf32>
      %16 = arith.addf %13, %15 : vector<2x256xf32>
      %cst_13 = arith.constant 0.000000e+00 : f32
      %17 = vector.broadcast %cst_13 : f32 to vector<2x256xf32>
      %18 = arith.maximumf %16, %17 : vector<2x256xf32>
      %c0_14 = arith.constant 0 : index
      %c0_15 = arith.constant 0 : index
      %19 = vector.load %arg4[%c0_14, %c0_15] : memref<256x10xf32, #tpu.memory_space<vmem>>, vector<256x10xf32>
      %cst_16 = arith.constant dense<0.000000e+00> : vector<2x10xf32>
      %20 = tpu.matmul %18, %19, %cst_16 {dimension_numbers = #tpu.dot_dimension_numbers<[1], [0], [0], [1], [0, 0, 1, 1], [], []>} : vector<2x256xf32>, vector<256x10xf32>, vector<2x10xf32> -> vector<2x10xf32>
      %c0_17 = arith.constant 0 : index
      %c0_18 = arith.constant 0 : index
      %21 = vector.load %arg5[%c0_17, %c0_18] : memref<1x10xf32, #tpu.memory_space<vmem>>, vector<1x10xf32>
      %22 = vector.broadcast %21 : vector<1x10xf32> to vector<2x10xf32>
      %23 = arith.addf %20, %22 : vector<2x10xf32>
      %c0_19 = arith.constant 0 : index
      %c0_20 = arith.constant 0 : index
      %24 = vector.load %arg6[%c0_19, %c0_20] : memref<2x10xf32, #tpu.memory_space<vmem>>, vector<2x10xf32>
      tpu.vector_store %arg6[%c0_19, %c0_20], %23 {strides = array<i32>} : memref<2x10xf32, #tpu.memory_space<vmem>>, vector<2x10xf32>,
    } else {
    }
    return
  }
  func.func @transform_0(%arg0: i32) -> (i32, i32) {
    %c0_i32 = arith.constant 0 : i32
    %c0_i32_0 = arith.constant 0 : i32
    return %c0_i32, %arg0 : i32, i32
  }
  func.func @transform_1(%arg0: i32) -> (i32, i32) {
    %c0_i32 = arith.constant 0 : i32
    %c0_i32_0 = arith.constant 0 : i32
    return %arg0, %c0_i32 : i32, i32
  }
  func.func @transform_2(%arg0: i32) -> (i32, i32) {
    %c0_i32 = arith.constant 0 : i32
    %c0_i32_0 = arith.constant 0 : i32
    %c0_i32_1 = arith.constant 0 : i32
    return %c0_i32, %c0_i32_0 : i32, i32
  }
  func.func @transform_3(%arg0: i32) -> (i32, i32) {
    %c0_i32 = arith.constant 0 : i32
    %c0_i32_0 = arith.constant 0 : i32
    %c0_i32_1 = arith.constant 0 : i32
    return %c0_i32, %c0_i32_0 : i32, i32
  }
  func.func @transform_4(%arg0: i32) -> (i32, i32) {
    %c0_i32 = arith.constant 0 : i32
    %c0_i32_0 = arith.constant 0 : i32
    %c0_i32_1 = arith.constant 0 : i32
    return %c0_i32, %c0_i32_0 : i32, i32
  }
  func.func @transform_5(%arg0: i32) -> (i32, i32) {
    %c0_i32 = arith.constant 0 : i32
    %c0_i32_0 = arith.constant 0 : i32
    %c0_i32_1 = arith.constant 0 : i32
    return %c0_i32, %c0_i32_0 : i32, i32
  }
}

</mosaic_0001>

<llo_original>
// kernel: attention_cnn_forward.8
$region0: #{attention_cnn_forward.8}
  #allocation0 [shape = 'u32[]', space=smem, size = 0x4, offset = 0x4, fixed_abs, tag = 'smem constant byte address 0x4 - core index']
  #allocation1 [shape = 'u32[144,128]{1,0:T(1,128)}', space=vmem, size = 0x12000, scoped, tag = 'internal scratch']
  #allocation2 [shape = 'f32[22,128]{1,0:T(8,128)}', space=vmem, size = 0x3000, scoped, tag = 'scratch operand']
  %s0 = inlined_call_operand.vmem [shape: f32[2,36,128], index: 0, kind: input, shape index: {}]
  %s1 = inlined_call_operand.vmem [shape: f32[3,3,128,128], index: 1, kind: input, shape index: {}]
  %s2 = inlined_call_operand.vmem [shape: f32[1,128], index: 2, kind: input, shape index: {}]
  %s3 = inlined_call_operand.vmem [shape: f32[2,2,2,128], index: 3, kind: output, shape index: {}]
  %s4 = sld [smem:[#allocation0]]
  $region45: #{attention_cnn_forward.8} parent=0
    _
  %s6 = ssub.s32 1, %s4
  %s7 = scalar_select 0, %s6, %s4
  loop: start=0, step=1, limit=4
  $region2: #{attention_cnn_forward.8} parent=0 // loop_pre_header
    _
  $region3: #{attention_cnn_forward.8} parent=0 // loop_header
    %s9 = sphi 0, %s13
    %p10 = scmp.ge.s32.totalorder %s9, 4
    %s19 = sphi 0, %s21
    %s22 = sphi 0, %s19
    %s23 = sphi 0, %s22
    %s39 = sphi 0, %s23
    %s43 = sphi 0, %s43
    %s45 = sphi 0, %s43
    %s46 = sphi 0, %s45
    %s60 = sphi 0, %s46
    %s64 = sphi 0, %s64
    %s66 = sphi 0, %s64
    %s67 = sphi 0, %s66
    %s81 = sphi 0, %s67
    %s87 = sphi 0, %s89
    %s90 = sphi 0, %s87
    %s91 = sphi 0, %s90
    %s107 = sphi 0, %s91
  $region4: #{attention_cnn_forward.8} parent=0 // loop_header_branch
    %12 = sbr.rel (%p10) target = $region8
  $region5: #{attention_cnn_forward.8} parent=0 // loop_body
    %s14 = ssub.s32 %s9, 1
    %s15 = ssub.s32 %s9, 2
    %s16 = sadd.s32 %s9, 1
    %s17 = ssub.s32 %s9, %s16
    %p18 = scmp.eq.s32.totalorder %s17, 0
    %s20 = sadd.s32 %s19, 1
    %s21 = scalar_select %p18, %s19, %s20
    %p24 = pneg %p18
    %p25 = scmp.eq.s32.totalorder %s9, 1
    %p26 = por %p24, %p25
    %p27 = scmp.ne.s32.totalorder %s19, %s22
    %p28 = scmp.eq.s32.totalorder %s9, 0
    %p29 = por %p27, %p28
    %p30 = scmp.ne.s32.totalorder %s19, %s22
    %p31 = scmp.eq.s32.totalorder %s14, 1
    %p32 = por %p30, %p31
    %p33 = scmp.ne.s32.totalorder %s22, %s23
    %p34 = scmp.eq.s32.totalorder %s14, 0
    %p35 = por %p33, %p34
    %p36 = scmp.ne.s32.totalorder %s22, %s23
    %p37 = scmp.eq.s32.totalorder %s15, 1
    %p38 = por %p36, %p37
    %p40 = scmp.ne.s32.totalorder %s23, %s39
    %p41 = scmp.eq.s32.totalorder %s15, 0
    %p42 = por %p40, %p41
    %s44 = sadd.s32 %s43, 1
    %p47 = scmp.eq.s32.totalorder %s9, 1
    %p48 = scmp.ne.s32.totalorder %s43, %s45
    %p49 = scmp.eq.s32.totalorder %s9, 0
    %p50 = por %p48, %p49
    %p51 = scmp.ne.s32.totalorder %s43, %s45
    %p52 = scmp.eq.s32.totalorder %s14, 1
    %p53 = por %p51, %p52
    %p54 = scmp.ne.s32.totalorder %s45, %s46
    %p55 = scmp.eq.s32.totalorder %s14, 0
    %p56 = por %p54, %p55
    %p57 = scmp.ne.s32.totalorder %s45, %s46
    %p58 = scmp.eq.s32.totalorder %s15, 1
    %p59 = por %p57, %p58
    %p61 = scmp.ne.s32.totalorder %s46, %s60
    %p62 = scmp.eq.s32.totalorder %s15, 0
    %p63 = por %p61, %p62
    %s65 = sadd.s32 %s64, 1
    %p68 = scmp.eq.s32.totalorder %s9, 1
    %p69 = scmp.ne.s32.totalorder %s64, %s66
    %p70 = scmp.eq.s32.totalorder %s9, 0
    %p71 = por %p69, %p70
    %p72 = scmp.ne.s32.totalorder %s64, %s66
    %p73 = scmp.eq.s32.totalorder %s14, 1
    %p74 = por %p72, %p73
    %p75 = scmp.ne.s32.totalorder %s66, %s67
    %p76 = scmp.eq.s32.totalorder %s14, 0
    %p77 = por %p75, %p76
    %p78 = scmp.ne.s32.totalorder %s66, %s67
    %p79 = scmp.eq.s32.totalorder %s15, 1
    %p80 = por %p78, %p79
    %p82 = scmp.ne.s32.totalorder %s67, %s81
    %p83 = scmp.eq.s32.totalorder %s15, 0
    %p84 = por %p82, %p83
    %s85 = ssub.s32 %s9, %s16
    %p86 = scmp.eq.s32.totalorder %s85, 0
    %s88 = sadd.s32 %s87, 1
    %s89 = scalar_select %p86, %s87, %s88
    %p92 = pneg %p86
    %p93 = scmp.eq.s32.totalorder %s9, 1
    %p94 = por %p92, %p93
    %p95 = scmp.ne.s32.totalorder %s87, %s90
    %p96 = scmp.eq.s32.totalorder %s9, 0
    %p97 = por %p95, %p96
    %p98 = scmp.ne.s32.totalorder %s87, %s90
    %p99 = scmp.eq.s32.totalorder %s14, 1
    %p100 = por %p98, %p99
    %p101 = scmp.ne.s32.totalorder %s90, %s91
    %p102 = scmp.eq.s32.totalorder %s14, 0
    %p103 = por %p101, %p102
    %p104 = scmp.ne.s32.totalorder %s90, %s91
    %p105 = scmp.eq.s32.totalorder %s15, 1
    %p106 = por %p104, %p105
    %p108 = scmp.ne.s32.totalorder %s91, %s107
    %p109 = scmp.eq.s32.totalorder %s15, 0
    %p110 = por %p108, %p109
    %p111 = scmp.le.s32.totalorder 1, %s9
    %p112 = scmp.lt.s32.totalorder %s9, 3
    %p113 = pnand %p111, %p112
    %p114 = pneg %p113
    // Predicated region
    $region9: #{attention_cnn_forward.8} parent=5 // pred_check
      _
    $region10: #{attention_cnn_forward.8} parent=5 // pred_check_branch
      %116 = sbr.rel (%p113) target = $region12
    $region11: #{attention_cnn_forward.8} parent=5 // pred_region
      %s117 = ssub.s32 %s9, 1
      // Predicated region
      $region13: #{attention_cnn_forward.8} parent=11 // pred_check
        %p118 = pneg %p56
      $region14: #{attention_cnn_forward.8} parent=11 // pred_check_branch
        %120 = sbr.rel (%p118) target = $region16
      $region15: #{attention_cnn_forward.8} parent=11 // pred_region
        _
      $region16: #{attention_cnn_forward.8} parent=11 // pred_fallthru
        _
      // Predicated region
      $region17: #{attention_cnn_forward.8} parent=11 // pred_check
        %p121 = pneg %p77
      $region18: #{attention_cnn_forward.8} parent=11 // pred_check_branch
        %123 = sbr.rel (%p121) target = $region20
      $region19: #{attention_cnn_forward.8} parent=11 // pred_region
        _
      $region20: #{attention_cnn_forward.8} parent=11 // pred_fallthru
        _
    $region12: #{attention_cnn_forward.8} parent=5 // pred_fallthru
      _
    %p124 = scmp.lt.s32.totalorder %s9, 2
    // Predicated region
    $region21: #{attention_cnn_forward.8} parent=5 // pred_check
      %p125 = pneg %p124
    $region22: #{attention_cnn_forward.8} parent=5 // pred_check_branch
      %127 = sbr.rel (%p125) target = $region24
    $region23: #{attention_cnn_forward.8} parent=5 // pred_region
      // Predicated region
      $region25: #{attention_cnn_forward.8} parent=23 // pred_check
        %p128 = pneg %p29
      $region26: #{attention_cnn_forward.8} parent=23 // pred_check_branch
        %130 = sbr.rel (%p128) target = $region28
      $region27: #{attention_cnn_forward.8} parent=23 // pred_region
        %p131 = scmp.lt.s32.totalorder %s9, 1
        %s132 = scalar_select %p131, %s9, 1
        %s133 = smul.addr %s132, 5
        %s134 = smul.addr %s133, 8
        %s135 = scalar_lea.vmem %s0, %s134
      $region28: #{attention_cnn_forward.8} parent=23 // pred_fallthru
        _
    $region24: #{attention_cnn_forward.8} parent=5 // pred_fallthru
      _
    %p136 = scmp.le.s32.totalorder 1, %s9
    %p137 = scmp.lt.s32.totalorder %s9, 3
    %p138 = pnand %p136, %p137
    %p139 = pneg %p138
    // Predicated region
    $region29: #{attention_cnn_forward.8} parent=5 // pred_check
      _
    $region30: #{attention_cnn_forward.8} parent=5 // pred_check_branch
      %141 = sbr.rel (%p138) target = $region32
    $region31: #{attention_cnn_forward.8} parent=5 // pred_region
      %s142 = ssub.s32 %s9, 1
      %p143 = scmp.lt.s32.totalorder %s14, 1
      %s144 = scalar_select %p143, %s14, 1
      %s145 = smul.addr %s144, 5
      %s146 = smul.addr %s145, 8
      %s147 = scalar_lea.vmem %s0, %s146
      %p148 = pneg %p35
      %p149 = pneg %p32
      %p150 = pneg %p56
      %p151 = pneg %p53
      %p152 = pneg %p77
      %p153 = pneg %p74
      %p154 = pneg %p103
      %p155 = pneg %p100
      %p156 = scmp.lt.s32.totalorder %s14, 1
      %s157 = scalar_select %p156, %s14, 1
      %s158 = smul.addr %s157, 2
      %s159 = smul.addr %s158, 2
      %s160 = scalar_lea.vmem %s3, %s159
      %p161 = scmp.lt.s32.totalorder %s14, 1
      %s162 = scalar_select %p161, %s14, 1
      %s163 = smul.addr %s162, 5
      %s164 = smul.addr %s163, 8
      %s165 = scalar_lea.vmem %s0, %s164
      %p166 = scmp.lt.s32.totalorder %s14, 1
      %s167 = scalar_select %p166, %s14, 1
      %s168 = smul.addr %s167, 2
      %s169 = smul.addr %s168, 2
      %s170 = scalar_lea.vmem %s3, %s169
      %v171 = vld [vmem:[%s165] sm:$0xff]
      %v172 = vld [vmem:[%s165 + $0x8] sm:$0xff]
      %v173 = vld [vmem:[%s165 + $0x10] sm:$0x3f]
      %v174 = vld [vmem:[%s1] sm:$0xff]
      %v175 = vld [vmem:[%s1 + $0x8] sm:$0xff]
      %v176 = vld [vmem:[%s1 + $0x10] sm:$0xff]
      %v177 = vld [vmem:[%s1 + $0x18] sm:$0xff]
      %v178 = vld [vmem:[%s1 + $0x20] sm:$0xff]
      %v179 = vld [vmem:[%s1 + $0x28] sm:$0xff]
      %v180 = vld [vmem:[%s1 + $0x30] sm:$0xff]
      %v181 = vld [vmem:[%s1 + $0x38] sm:$0xff]
      %v182 = vld [vmem:[%s1 + $0x40] sm:$0xff]
      %v183 = vld [vmem:[%s1 + $0x48] sm:$0xff]
      %v184 = vld [vmem:[%s1 + $0x50] sm:$0xff]
      %v185 = vld [vmem:[%s1 + $0x58] sm:$0xff]
      %v186 = vld [vmem:[%s1 + $0x60] sm:$0xff]
      %v187 = vld [vmem:[%s1 + $0x68] sm:$0xff]
      %v188 = vld [vmem:[%s1 + $0x70] sm:$0xff]
      %v189 = vld [vmem:[%s1 + $0x78] sm:$0xff]
      %v190 = vld [vmem:[%s165 + $0x1] sm:$0xff]
      %v191 = vld [vmem:[%s165 + $0x9] sm:$0xff]
      %v192 = vld [vmem:[%s165 + $0x11] sm:$0x3f]
      %s193 = scalar_lea.vmem %s1, 128
      %v194 = vld [vmem:[%s193] sm:$0xff]
      %v195 = vld [vmem:[%s193 + $0x8] sm:$0xff]
      %v196 = vld [vmem:[%s193 + $0x10] sm:$0xff]
      %v197 = vld [vmem:[%s193 + $0x18] sm:$0xff]
      %v198 = vld [vmem:[%s193 + $0x20] sm:$0xff]
      %v199 = vld [vmem:[%s193 + $0x28] sm:$0xff]
      %v200 = vld [vmem:[%s193 + $0x30] sm:$0xff]
      %v201 = vld [vmem:[%s193 + $0x38] sm:$0xff]
      %v202 = vld [vmem:[%s193 + $0x40] sm:$0xff]
      %v203 = vld [vmem:[%s193 + $0x48] sm:$0xff]
      %v204 = vld [vmem:[%s193 + $0x50] sm:$0xff]
      %v205 = vld [vmem:[%s193 + $0x58] sm:$0xff]
      %v206 = vld [vmem:[%s193 + $0x60] sm:$0xff]
      %v207 = vld [vmem:[%s193 + $0x68] sm:$0xff]
      %v208 = vld [vmem:[%s193 + $0x70] sm:$0xff]
      %v209 = vld [vmem:[%s193 + $0x78] sm:$0xff]
      %210 = vmatprep.subr.mxu0 0.0
      %211 = vmatpush1.msra.mxu0 %v209
      %212 = vmatprep.subr.mxu0 0.0
      %213 = vmatpush1.msra.mxu0 %v208
      %214 = vmatprep.subr.mxu0 0.0
      %215 = vmatpush1.msra.mxu0 %v207
      %216 = vmatprep.subr.mxu0 0.0
      %217 = vmatpush1.msra.mxu0 %v206
      %218 = vmatprep.subr.mxu0 0.0
      %219 = vmatpush1.msra.mxu0 %v205
      %220 = vmatprep.subr.mxu0 0.0
      %221 = vmatpush1.msra.mxu0 %v204
      %222 = vmatprep.subr.mxu0 0.0
      %223 = vmatpush1.msra.mxu0 %v203
      %224 = vmatprep.subr.mxu0 0.0
      %225 = vmatpush1.msra.mxu0 %v202
      %226 = vmatprep.subr.mxu0 0.0
      %227 = vmatpush1.msra.mxu0 %v201
      %228 = vmatprep.subr.mxu0 0.0
      %229 = vmatpush1.msra.mxu0 %v200
      %230 = vmatprep.subr.mxu0 0.0
      %231 = vmatpush1.msra.mxu0 %v199
      %232 = vmatprep.subr.mxu0 0.0
      %233 = vmatpush1.msra.mxu0 %v198
      %234 = vmatprep.subr.mxu0 0.0
      %235 = vmatpush1.msra.mxu0 %v197
      %236 = vmatprep.subr.mxu0 0.0
      %237 = vmatpush1.msra.mxu0 %v196
      %238 = vmatprep.subr.mxu0 0.0
      %239 = vmatpush1.msra.mxu0 %v195
      %240 = vmatprep.subr.mxu0 0.0
      %241 = vmatpush1.msra.mxu0 %v194
      %242 = vmatprep.subr.mxu0 0.0
      %243 = vmatpush2.msra.mxu0 0.0
      %244 = vmatprep.subr.mxu0 0.0
      %245 = vmatpush2.msra.mxu0 0.0
      %246 = vmatprep.subr.mxu0 0.0
      %247 = vmatpush2.msra.mxu0 0.0
      %248 = vmatprep.subr.mxu0 0.0
      %249 = vmatpush2.msra.mxu0 0.0
      %250 = vmatprep.subr.mxu0 0.0
      %251 = vmatpush2.msra.mxu0 0.0
      %252 = vmatprep.subr.mxu0 0.0
      %253 = vmatpush2.msra.mxu0 0.0
      %254 = vmatprep.subr.mxu0 0.0
      %255 = vmatpush2.msra.mxu0 0.0
      %256 = vmatprep.subr.mxu0 0.0
      %257 = vmatpush2.msra.mxu0 0.0
      %258 = vmatprep.subr.mxu0 0.0
      %259 = vmatpush2.msra.mxu0 0.0
      %260 = vmatprep.subr.mxu0 0.0
      %261 = vmatpush2.msra.mxu0 0.0
      %262 = vmatprep.subr.mxu0 0.0
      %263 = vmatpush2.msra.mxu0 0.0
      %264 = vmatprep.subr.mxu0 0.0
      %265 = vmatpush2.msra.mxu0 0.0
      %266 = vmatprep.subr.mxu0 0.0
      %267 = vmatpush2.msra.mxu0 0.0
      %268 = vmatprep.subr.mxu0 0.0
      %269 = vmatpush2.msra.mxu0 0.0
      %270 = vmatprep.subr.mxu0 0.0
      %271 = vmatpush2.msra.mxu0 0.0
      %272 = vmatprep.subr.mxu0 0.0
      %273 = vmatpush2.msra.mxu0 0.0
      %274 = vmatprep.mubr.f32.mxu0 0.0
      %275 = vmatmul.mubr.f32.gmra.mxu0 %v190
      %v276 = vpop.f32.mrf.mxu0
      %v277 = vadd.f32 0.0, %v276
      %v278 = vpop.f32.mrf.mxu0
      %279 = vmatprep.mubr.f32.mxu0 0.0
      %280 = vmatmul.mubr.f32.gmra.mxu0 %v191
      %v281 = vpop.f32.mrf.mxu0
      %v282 = vadd.f32 0.0, %v281
      %v283 = vpop.f32.mrf.mxu0
      %284 = vmatprep.mubr.f32.mxu0 0.0
      %285 = vmatmul.mubr.f32.gmra.mxu0 %v192
      %v286 = vpop.f32.mrf.mxu0
      %v287 = vadd.f32 0.0, %v286
      %v288 = vpop.f32.mrf.mxu0
      %289 = vdwg.mxu0
      %290 = vmatprep.subr.mxu0 0.0
      %291 = vmatpush1.msra.mxu0 %v189
      %292 = vmatprep.subr.mxu0 0.0
      %293 = vmatpush1.msra.mxu0 %v188
      %294 = vmatprep.subr.mxu0 0.0
      %295 = vmatpush1.msra.mxu0 %v187
      %296 = vmatprep.subr.mxu0 0.0
      %297 = vmatpush1.msra.mxu0 %v186
      %298 = vmatprep.subr.mxu0 0.0
      %299 = vmatpush1.msra.mxu0 %v185
      %300 = vmatprep.subr.mxu0 0.0
      %301 = vmatpush1.msra.mxu0 %v184
      %302 = vmatprep.subr.mxu0 0.0
      %303 = vmatpush1.msra.mxu0 %v183
      %304 = vmatprep.subr.mxu0 0.0
      %305 = vmatpush1.msra.mxu0 %v182
      %306 = vmatprep.subr.mxu0 0.0
      %307 = vmatpush1.msra.mxu0 %v181
      %308 = vmatprep.subr.mxu0 0.0
      %309 = vmatpush1.msra.mxu0 %v180
      %310 = vmatprep.subr.mxu0 0.0
      %311 = vmatpush1.msra.mxu0 %v179
      %312 = vmatprep.subr.mxu0 0.0
      %313 = vmatpush1.msra.mxu0 %v178
      %314 = vmatprep.subr.mxu0 0.0
      %315 = vmatpush1.msra.mxu0 %v177
      %316 = vmatprep.subr.mxu0 0.0
      %317 = vmatpush1.msra.mxu0 %v176
      %318 = vmatprep.subr.mxu0 0.0
      %319 = vmatpush1.msra.mxu0 %v175
      %320 = vmatprep.subr.mxu0 0.0
      %321 = vmatpush1.msra.mxu0 %v174
      %322 = vmatprep.subr.mxu0 0.0
      %323 = vmatpush2.msra.mxu0 0.0
      %324 = vmatprep.subr.mxu0 0.0
      %325 = vmatpush2.msra.mxu0 0.0
      %326 = vmatprep.subr.mxu0 0.0
      %327 = vmatpush2.msra.mxu0 0.0
      %328 = vmatprep.subr.mxu0 0.0
      %329 = vmatpush2.msra.mxu0 0.0
      %330 = vmatprep.subr.mxu0 0.0
      %331 = vmatpush2.msra.mxu0 0.0
      %332 = vmatprep.subr.mxu0 0.0
      %333 = vmatpush2.msra.mxu0 0.0
      %334 = vmatprep.subr.mxu0 0.0
      %335 = vmatpush2.msra.mxu0 0.0
      %336 = vmatprep.subr.mxu0 0.0
      %337 = vmatpush2.msra.mxu0 0.0
      %338 = vmatprep.subr.mxu0 0.0
      %339 = vmatpush2.msra.mxu0 0.0
      %340 = vmatprep.subr.mxu0 0.0
      %341 = vmatpush2.msra.mxu0 0.0
      %342 = vmatprep.subr.mxu0 0.0
      %343 = vmatpush2.msra.mxu0 0.0
      %344 = vmatprep.subr.mxu0 0.0
      %345 = vmatpush2.msra.mxu0 0.0
      %346 = vmatprep.subr.mxu0 0.0
      %347 = vmatpush2.msra.mxu0 0.0
      %348 = vmatprep.subr.mxu0 0.0
      %349 = vmatpush2.msra.mxu0 0.0
      %350 = vmatprep.subr.mxu0 0.0
      %351 = vmatpush2.msra.mxu0 0.0
      %352 = vmatprep.subr.mxu0 0.0
      %353 = vmatpush2.msra.mxu0 0.0
      %354 = vmatprep.mubr.f32.mxu0 0.0
      %355 = vmatmul.mubr.f32.gmra.mxu0 %v171
      %v356 = vpop.f32.mrf.mxu0
      %v357 = vadd.f32 %v277, %v356
      %v358 = vpop.f32.mrf.mxu0
      %359 = vmatprep.mubr.f32.mxu0 0.0
      %360 = vmatmul.mubr.f32.gmra.mxu0 %v172
      %v361 = vpop.f32.mrf.mxu0
      %v362 = vadd.f32 %v282, %v361
      %v363 = vpop.f32.mrf.mxu0
      %364 = vmatprep.mubr.f32.mxu0 0.0
      %365 = vmatmul.mubr.f32.gmra.mxu0 %v173
      %v366 = vpop.f32.mrf.mxu0
      %v367 = vadd.f32 %v287, %v366
      %v368 = vpop.f32.mrf.mxu0
      %369 = vdwg.mxu0
      %v370 = vld [vmem:[%s165 + $0x2] sm:$0xff]
      %v371 = vld [vmem:[%s165 + $0xa] sm:$0xff]
      %v372 = vld [vmem:[%s165 + $0x12] sm:$0x3f]
      %s373 = scalar_lea.vmem %s1, 256
      %v374 = vld [vmem:[%s373] sm:$0xff]
      %v375 = vld [vmem:[%s373 + $0x8] sm:$0xff]
      %v376 = vld [vmem:[%s373 + $0x10] sm:$0xff]
      %v377 = vld [vmem:[%s373 + $0x18] sm:$0xff]
      %v378 = vld [vmem:[%s373 + $0x20] sm:$0xff]
      %v379 = vld [vmem:[%s373 + $0x28] sm:$0xff]
      %v380 = vld [vmem:[%s373 + $0x30] sm:$0xff]
      %v381 = vld [vmem:[%s373 + $0x38] sm:$0xff]
      %v382 = vld [vmem:[%s373 + $0x40] sm:$0xff]
      %v383 = vld [vmem:[%s373 + $0x48] sm:$0xff]
      %v384 = vld [vmem:[%s373 + $0x50] sm:$0xff]
      %v385 = vld [vmem:[%s373 + $0x58] sm:$0xff]
      %v386 = vld [vmem:[%s373 + $0x60] sm:$0xff]
      %v387 = vld [vmem:[%s373 + $0x68] sm:$0xff]
      %v388 = vld [vmem:[%s373 + $0x70] sm:$0xff]
      %v389 = vld [vmem:[%s373 + $0x78] sm:$0xff]
      %390 = vmatprep.subr.mxu0 0.0
      %391 = vmatpush1.msra.mxu0 %v389
      %392 = vmatprep.subr.mxu0 0.0
      %393 = vmatpush1.msra.mxu0 %v388
      %394 = vmatprep.subr.mxu0 0.0
      %395 = vmatpush1.msra.mxu0 %v387
      %396 = vmatprep.subr.mxu0 0.0
      %397 = vmatpush1.msra.mxu0 %v386
      %398 = vmatprep.subr.mxu0 0.0
      %399 = vmatpush1.msra.mxu0 %v385
      %400 = vmatprep.subr.mxu0 0.0
      %401 = vmatpush1.msra.mxu0 %v384
      %402 = vmatprep.subr.mxu0 0.0
      %403 = vmatpush1.msra.mxu0 %v383
      %404 = vmatprep.subr.mxu0 0.0
      %405 = vmatpush1.msra.mxu0 %v382
      %406 = vmatprep.subr.mxu0 0.0
      %407 = vmatpush1.msra.mxu0 %v381
      %408 = vmatprep.subr.mxu0 0.0
      %409 = vmatpush1.msra.mxu0 %v380
      %410 = vmatprep.subr.mxu0 0.0
      %411 = vmatpush1.msra.mxu0 %v379
      %412 = vmatprep.subr.mxu0 0.0
      %413 = vmatpush1.msra.mxu0 %v378
      %414 = vmatprep.subr.mxu0 0.0
      %415 = vmatpush1.msra.mxu0 %v377
      %416 = vmatprep.subr.mxu0 0.0
      %417 = vmatpush1.msra.mxu0 %v376
      %418 = vmatprep.subr.mxu0 0.0
      %419 = vmatpush1.msra.mxu0 %v375
      %420 = vmatprep.subr.mxu0 0.0
      %421 = vmatpush1.msra.mxu0 %v374
      %422 = vmatprep.subr.mxu0 0.0
      %423 = vmatpush2.msra.mxu0 0.0
      %424 = vmatprep.subr.mxu0 0.0
      %425 = vmatpush2.msra.mxu0 0.0
      %426 = vmatprep.subr.mxu0 0.0
      %427 = vmatpush2.msra.mxu0 0.0
      %428 = vmatprep.subr.mxu0 0.0
      %429 = vmatpush2.msra.mxu0 0.0
      %430 = vmatprep.subr.mxu0 0.0
      %431 = vmatpush2.msra.mxu0 0.0
      %432 = vmatprep.subr.mxu0 0.0
      %433 = vmatpush2.msra.mxu0 0.0
      %434 = vmatprep.subr.mxu0 0.0
      %435 = vmatpush2.msra.mxu0 0.0
      %436 = vmatprep.subr.mxu0 0.0
      %437 = vmatpush2.msra.mxu0 0.0
      %438 = vmatprep.subr.mxu0 0.0
      %439 = vmatpush2.msra.mxu0 0.0
      %440 = vmatprep.subr.mxu0 0.0
      %441 = vmatpush2.msra.mxu0 0.0
      %442 = vmatprep.subr.mxu0 0.0
      %443 = vmatpush2.msra.mxu0 0.0
      %444 = vmatprep.subr.mxu0 0.0
      %445 = vmatpush2.msra.mxu0 0.0
      %446 = vmatprep.subr.mxu0 0.0
      %447 = vmatpush2.msra.mxu0 0.0
      %448 = vmatprep.subr.mxu0 0.0
      %449 = vmatpush2.msra.mxu0 0.0
      %450 = vmatprep.subr.mxu0 0.0
      %451 = vmatpush2.msra.mxu0 0.0
      %452 = vmatprep.subr.mxu0 0.0
      %453 = vmatpush2.msra.mxu0 0.0
      %454 = vmatprep.mubr.f32.mxu0 0.0
      %455 = vmatmul.mubr.f32.gmra.mxu0 %v370
      %v456 = vpop.f32.mrf.mxu0
      %v457 = vadd.f32 0.0, %v456
      %v458 = vpop.f32.mrf.mxu0
      %459 = vmatprep.mubr.f32.mxu0 0.0
      %460 = vmatmul.mubr.f32.gmra.mxu0 %v371
      %v461 = vpop.f32.mrf.mxu0
      %v462 = vadd.f32 0.0, %v461
      %v463 = vpop.f32.mrf.mxu0
      %464 = vmatprep.mubr.f32.mxu0 0.0
      %465 = vmatmul.mubr.f32.gmra.mxu0 %v372
      %v466 = vpop.f32.mrf.mxu0
      %v467 = vadd.f32 0.0, %v466
      %v468 = vpop.f32.mrf.mxu0
      %469 = vdwg.mxu0
      %v470 = vadd.f32 %v357, %v457
      %v471 = vadd.f32 %v362, %v462
      %v472 = vadd.f32 %v367, %v467
      %v473 = vld [vmem:[%s165 + $0x6] sm:$0xff]
      %v474 = vld [vmem:[%s165 + $0xe] sm:$0xff]
      %v475 = vld [vmem:[%s165 + $0x16] sm:$0x3f]
      %s476 = scalar_lea.vmem %s1, 384
      %v477 = vld [vmem:[%s476] sm:$0xff]
      %v478 = vld [vmem:[%s476 + $0x8] sm:$0xff]
      %v479 = vld [vmem:[%s476 + $0x10] sm:$0xff]
      %v480 = vld [vmem:[%s476 + $0x18] sm:$0xff]
      %v481 = vld [vmem:[%s476 + $0x20] sm:$0xff]
      %v482 = vld [vmem:[%s476 + $0x28] sm:$0xff]
      %v483 = vld [vmem:[%s476 + $0x30] sm:$0xff]
      %v484 = vld [vmem:[%s476 + $0x38] sm:$0xff]
      %v485 = vld [vmem:[%s476 + $0x40] sm:$0xff]
      %v486 = vld [vmem:[%s476 + $0x48] sm:$0xff]
      %v487 = vld [vmem:[%s476 + $0x50] sm:$0xff]
      %v488 = vld [vmem:[%s476 + $0x58] sm:$0xff]
      %v489 = vld [vmem:[%s476 + $0x60] sm:$0xff]
      %v490 = vld [vmem:[%s476 + $0x68] sm:$0xff]
      %v491 = vld [vmem:[%s476 + $0x70] sm:$0xff]
      %v492 = vld [vmem:[%s476 + $0x78] sm:$0xff]
      %493 = vmatprep.subr.mxu0 0.0
      %494 = vmatpush1.msra.mxu0 %v492
      %495 = vmatprep.subr.mxu0 0.0
      %496 = vmatpush1.msra.mxu0 %v491
      %497 = vmatprep.subr.mxu0 0.0
      %498 = vmatpush1.msra.mxu0 %v490
      %499 = vmatprep.subr.mxu0 0.0
      %500 = vmatpush1.msra.mxu0 %v489
      %501 = vmatprep.subr.mxu0 0.0
      %502 = vmatpush1.msra.mxu0 %v488
      %503 = vmatprep.subr.mxu0 0.0
      %504 = vmatpush1.msra.mxu0 %v487
      %505 = vmatprep.subr.mxu0 0.0
      %506 = vmatpush1.msra.mxu0 %v486
      %507 = vmatprep.subr.mxu0 0.0
      %508 = vmatpush1.msra.mxu0 %v485
      %509 = vmatprep.subr.mxu0 0.0
      %510 = vmatpush1.msra.mxu0 %v484
      %511 = vmatprep.subr.mxu0 0.0
      %512 = vmatpush1.msra.mxu0 %v483
      %513 = vmatprep.subr.mxu0 0.0
      %514 = vmatpush1.msra.mxu0 %v482
      %515 = vmatprep.subr.mxu0 0.0
      %516 = vmatpush1.msra.mxu0 %v481
      %517 = vmatprep.subr.mxu0 0.0
      %518 = vmatpush1.msra.mxu0 %v480
      %519 = vmatprep.subr.mxu0 0.0
      %520 = vmatpush1.msra.mxu0 %v479
      %521 = vmatprep.subr.mxu0 0.0
      %522 = vmatpush1.msra.mxu0 %v478
      %523 = vmatprep.subr.mxu0 0.0
      %524 = vmatpush1.msra.mxu0 %v477
      %525 = vmatprep.subr.mxu0 0.0
      %526 = vmatpush2.msra.mxu0 0.0
      %527 = vmatprep.subr.mxu0 0.0
      %528 = vmatpush2.msra.mxu0 0.0
      %529 = vmatprep.subr.mxu0 0.0
      %530 = vmatpush2.msra.mxu0 0.0
      %531 = vmatprep.subr.mxu0 0.0
      %532 = vmatpush2.msra.mxu0 0.0
      %533 = vmatprep.subr.mxu0 0.0
      %534 = vmatpush2.msra.mxu0 0.0
      %535 = vmatprep.subr.mxu0 0.0
      %536 = vmatpush2.msra.mxu0 0.0
      %537 = vmatprep.subr.mxu0 0.0
      %538 = vmatpush2.msra.mxu0 0.0
      %539 = vmatprep.subr.mxu0 0.0
      %540 = vmatpush2.msra.mxu0 0.0
      %541 = vmatprep.subr.mxu0 0.0
      %542 = vmatpush2.msra.mxu0 0.0
      %543 = vmatprep.subr.mxu0 0.0
      %544 = vmatpush2.msra.mxu0 0.0
      %545 = vmatprep.subr.mxu0 0.0
      %546 = vmatpush2.msra.mxu0 0.0
      %547 = vmatprep.subr.mxu0 0.0
      %548 = vmatpush2.msra.mxu0 0.0
      %549 = vmatprep.subr.mxu0 0.0
      %550 = vmatpush2.msra.mxu0 0.0
      %551 = vmatprep.subr.mxu0 0.0
      %552 = vmatpush2.msra.mxu0 0.0
      %553 = vmatprep.subr.mxu0 0.0
      %554 = vmatpush2.msra.mxu0 0.0
      %555 = vmatprep.subr.mxu0 0.0
      %556 = vmatpush2.msra.mxu0 0.0
      %557 = vmatprep.mubr.f32.mxu0 0.0
      %558 = vmatmul.mubr.f32.gmra.mxu0 %v473
      %v559 = vpop.f32.mrf.mxu0
      %v560 = vadd.f32 0.0, %v559
      %v561 = vpop.f32.mrf.mxu0
      %562 = vmatprep.mubr.f32.mxu0 0.0
      %563 = vmatmul.mubr.f32.gmra.mxu0 %v474
      %v564 = vpop.f32.mrf.mxu0
      %v565 = vadd.f32 0.0, %v564
      %v566 = vpop.f32.mrf.mxu0
      %567 = vmatprep.mubr.f32.mxu0 0.0
      %568 = vmatmul.mubr.f32.gmra.mxu0 %v475
      %v569 = vpop.f32.mrf.mxu0
      %v570 = vadd.f32 0.0, %v569
      %v571 = vpop.f32.mrf.mxu0
      %572 = vdwg.mxu0
      %v573 = vadd.f32 %v470, %v560
      %v574 = vadd.f32 %v471, %v565
      %v575 = vadd.f32 %v472, %v570
      %v576 = vld [vmem:[%s165 + $0x7] sm:$0xff]
      %v577 = vld [vmem:[%s165 + $0xf] sm:$0xff]
      %v578 = vld [vmem:[%s165 + $0x17] sm:$0x3f]
      %s579 = scalar_lea.vmem %s1, 512
      %v580 = vld [vmem:[%s579] sm:$0xff]
      %v581 = vld [vmem:[%s579 + $0x8] sm:$0xff]
      %v582 = vld [vmem:[%s579 + $0x10] sm:$0xff]
      %v583 = vld [vmem:[%s579 + $0x18] sm:$0xff]
      %v584 = vld [vmem:[%s579 + $0x20] sm:$0xff]
      %v585 = vld [vmem:[%s579 + $0x28] sm:$0xff]
      %v586 = vld [vmem:[%s579 + $0x30] sm:$0xff]
      %v587 = vld [vmem:[%s579 + $0x38] sm:$0xff]
      %v588 = vld [vmem:[%s579 + $0x40] sm:$0xff]
      %v589 = vld [vmem:[%s579 + $0x48] sm:$0xff]
      %v590 = vld [vmem:[%s579 + $0x50] sm:$0xff]
      %v591 = vld [vmem:[%s579 + $0x58] sm:$0xff]
      %v592 = vld [vmem:[%s579 + $0x60] sm:$0xff]
      %v593 = vld [vmem:[%s579 + $0x68] sm:$0xff]
      %v594 = vld [vmem:[%s579 + $0x70] sm:$0xff]
      %v595 = vld [vmem:[%s579 + $0x78] sm:$0xff]
      %596 = vmatprep.subr.mxu0 0.0
      %597 = vmatpush1.msra.mxu0 %v595
      %598 = vmatprep.subr.mxu0 0.0
      %599 = vmatpush1.msra.mxu0 %v594
      %600 = vmatprep.subr.mxu0 0.0
      %601 = vmatpush1.msra.mxu0 %v593
      %602 = vmatprep.subr.mxu0 0.0
      %603 = vmatpush1.msra.mxu0 %v592
      %604 = vmatprep.subr.mxu0 0.0
      %605 = vmatpush1.msra.mxu0 %v591
      %606 = vmatprep.subr.mxu0 0.0
      %607 = vmatpush1.msra.mxu0 %v590
      %608 = vmatprep.subr.mxu0 0.0
      %609 = vmatpush1.msra.mxu0 %v589
      %610 = vmatprep.subr.mxu0 0.0
      %611 = vmatpush1.msra.mxu0 %v588
      %612 = vmatprep.subr.mxu0 0.0
      %613 = vmatpush1.msra.mxu0 %v587
      %614 = vmatprep.subr.mxu0 0.0
      %615 = vmatpush1.msra.mxu0 %v586
      %616 = vmatprep.subr.mxu0 0.0
      %617 = vmatpush1.msra.mxu0 %v585
      %618 = vmatprep.subr.mxu0 0.0
      %619 = vmatpush1.msra.mxu0 %v584
      %620 = vmatprep.subr.mxu0 0.0
      %621 = vmatpush1.msra.mxu0 %v583
      %622 = vmatprep.subr.mxu0 0.0
      %623 = vmatpush1.msra.mxu0 %v582
      %624 = vmatprep.subr.mxu0 0.0
      %625 = vmatpush1.msra.mxu0 %v581
      %626 = vmatprep.subr.mxu0 0.0
      %627 = vmatpush1.msra.mxu0 %v580
      %628 = vmatprep.subr.mxu0 0.0
      %629 = vmatpush2.msra.mxu0 0.0
      %630 = vmatprep.subr.mxu0 0.0
      %631 = vmatpush2.msra.mxu0 0.0
      %632 = vmatprep.subr.mxu0 0.0
      %633 = vmatpush2.msra.mxu0 0.0
      %634 = vmatprep.subr.mxu0 0.0
      %635 = vmatpush2.msra.mxu0 0.0
      %636 = vmatprep.subr.mxu0 0.0
      %637 = vmatpush2.msra.mxu0 0.0
      %638 = vmatprep.subr.mxu0 0.0
      %639 = vmatpush2.msra.mxu0 0.0
      %640 = vmatprep.subr.mxu0 0.0
      %641 = vmatpush2.msra.mxu0 0.0
      %642 = vmatprep.subr.mxu0 0.0
      %643 = vmatpush2.msra.mxu0 0.0
      %644 = vmatprep.subr.mxu0 0.0
      %645 = vmatpush2.msra.mxu0 0.0
      %646 = vmatprep.subr.mxu0 0.0
      %647 = vmatpush2.msra.mxu0 0.0
      %648 = vmatprep.subr.mxu0 0.0
      %649 = vmatpush2.msra.mxu0 0.0
      %650 = vmatprep.subr.mxu0 0.0
      %651 = vmatpush2.msra.mxu0 0.0
      %652 = vmatprep.subr.mxu0 0.0
      %653 = vmatpush2.msra.mxu0 0.0
      %654 = vmatprep.subr.mxu0 0.0
      %655 = vmatpush2.msra.mxu0 0.0
      %656 = vmatprep.subr.mxu0 0.0
      %657 = vmatpush2.msra.mxu0 0.0
      %658 = vmatprep.subr.mxu0 0.0
      %659 = vmatpush2.msra.mxu0 0.0
      %660 = vmatprep.mubr.f32.mxu0 0.0
      %661 = vmatmul.mubr.f32.gmra.mxu0 %v576
      %v662 = vpop.f32.mrf.mxu0
      %v663 = vadd.f32 0.0, %v662
      %v664 = vpop.f32.mrf.mxu0
      %665 = vmatprep.mubr.f32.mxu0 0.0
      %666 = vmatmul.mubr.f32.gmra.mxu0 %v577
      %v667 = vpop.f32.mrf.mxu0
      %v668 = vadd.f32 0.0, %v667
      %v669 = vpop.f32.mrf.mxu0
      %670 = vmatprep.mubr.f32.mxu0 0.0
      %671 = vmatmul.mubr.f32.gmra.mxu0 %v578
      %v672 = vpop.f32.mrf.mxu0
      %v673 = vadd.f32 0.0, %v672
      %v674 = vpop.f32.mrf.mxu0
      %675 = vdwg.mxu0
      %v676 = vadd.f32 %v573, %v663
      %v677 = vadd.f32 %v574, %v668
      %v678 = vadd.f32 %v575, %v673
      %v679 = vld [vmem:[%s165 + $0x8] sm:$0xff]
      %v680 = vld [vmem:[%s165 + $0x10] sm:$0xff]
      %v681 = vld [vmem:[%s165 + $0x18] sm:$0x3f]
      %s682 = scalar_lea.vmem %s1, 640
      %v683 = vld [vmem:[%s682] sm:$0xff]
      %v684 = vld [vmem:[%s682 + $0x8] sm:$0xff]
      %v685 = vld [vmem:[%s682 + $0x10] sm:$0xff]
      %v686 = vld [vmem:[%s682 + $0x18] sm:$0xff]
      %v687 = vld [vmem:[%s682 + $0x20] sm:$0xff]
      %v688 = vld [vmem:[%s682 + $0x28] sm:$0xff]
      %v689 = vld [vmem:[%s682 + $0x30] sm:$0xff]
      %v690 = vld [vmem:[%s682 + $0x38] sm:$0xff]
      %v691 = vld [vmem:[%s682 + $0x40] sm:$0xff]
      %v692 = vld [vmem:[%s682 + $0x48] sm:$0xff]
      %v693 = vld [vmem:[%s682 + $0x50] sm:$0xff]
      %v694 = vld [vmem:[%s682 + $0x58] sm:$0xff]
      %v695 = vld [vmem:[%s682 + $0x60] sm:$0xff]
      %v696 = vld [vmem:[%s682 + $0x68] sm:$0xff]
      %v697 = vld [vmem:[%s682 + $0x70] sm:$0xff]
      %v698 = vld [vmem:[%s682 + $0x78] sm:$0xff]
      %699 = vmatprep.subr.mxu0 0.0
      %700 = vmatpush1.msra.mxu0 %v698
      %701 = vmatprep.subr.mxu0 0.0
      %702 = vmatpush1.msra.mxu0 %v697
      %703 = vmatprep.subr.mxu0 0.0
      %704 = vmatpush1.msra.mxu0 %v696
      %705 = vmatprep.subr.mxu0 0.0
      %706 = vmatpush1.msra.mxu0 %v695
      %707 = vmatprep.subr.mxu0 0.0
      %708 = vmatpush1.msra.mxu0 %v694
      %709 = vmatprep.subr.mxu0 0.0
      %710 = vmatpush1.msra.mxu0 %v693
      %711 = vmatprep.subr.mxu0 0.0
      %712 = vmatpush1.msra.mxu0 %v692
      %713 = vmatprep.subr.mxu0 0.0
      %714 = vmatpush1.msra.mxu0 %v691
      %715 = vmatprep.subr.mxu0 0.0
      %716 = vmatpush1.msra.mxu0 %v690
      %717 = vmatprep.subr.mxu0 0.0
      %718 = vmatpush1.msra.mxu0 %v689
      %719 = vmatprep.subr.mxu0 0.0
      %720 = vmatpush1.msra.mxu0 %v688
      %721 = vmatprep.subr.mxu0 0.0
      %722 = vmatpush1.msra.mxu0 %v687
      %723 = vmatprep.subr.mxu0 0.0
      %724 = vmatpush1.msra.mxu0 %v686
      %725 = vmatprep.subr.mxu0 0.0
      %726 = vmatpush1.msra.mxu0 %v685
      %727 = vmatprep.subr.mxu0 0.0
      %728 = vmatpush1.msra.mxu0 %v684
      %729 = vmatprep.subr.mxu0 0.0
      %730 = vmatpush1.msra.mxu0 %v683
      %731 = vmatprep.subr.mxu0 0.0
      %732 = vmatpush2.msra.mxu0 0.0
      %733 = vmatprep.subr.mxu0 0.0
      %734 = vmatpush2.msra.mxu0 0.0
      %735 = vmatprep.subr.mxu0 0.0
      %736 = vmatpush2.msra.mxu0 0.0
      %737 = vmatprep.subr.mxu0 0.0
      %738 = vmatpush2.msra.mxu0 0.0
      %739 = vmatprep.subr.mxu0 0.0
      %740 = vmatpush2.msra.mxu0 0.0
      %741 = vmatprep.subr.mxu0 0.0
      %742 = vmatpush2.msra.mxu0 0.0
      %743 = vmatprep.subr.mxu0 0.0
      %744 = vmatpush2.msra.mxu0 0.0
      %745 = vmatprep.subr.mxu0 0.0
      %746 = vmatpush2.msra.mxu0 0.0
      %747 = vmatprep.subr.mxu0 0.0
      %748 = vmatpush2.msra.mxu0 0.0
      %749 = vmatprep.subr.mxu0 0.0
      %750 = vmatpush2.msra.mxu0 0.0
      %751 = vmatprep.subr.mxu0 0.0
      %752 = vmatpush2.msra.mxu0 0.0
      %753 = vmatprep.subr.mxu0 0.0
      %754 = vmatpush2.msra.mxu0 0.0
      %755 = vmatprep.subr.mxu0 0.0
      %756 = vmatpush2.msra.mxu0 0.0
      %757 = vmatprep.subr.mxu0 0.0
      %758 = vmatpush2.msra.mxu0 0.0
      %759 = vmatprep.subr.mxu0 0.0
      %760 = vmatpush2.msra.mxu0 0.0
      %761 = vmatprep.subr.mxu0 0.0
      %762 = vmatpush2.msra.mxu0 0.0
      %763 = vmatprep.mubr.f32.mxu0 0.0
      %764 = vmatmul.mubr.f32.gmra.mxu0 %v679
      %v765 = vpop.f32.mrf.mxu0
      %v766 = vadd.f32 0.0, %v765
      %v767 = vpop.f32.mrf.mxu0
      %768 = vmatprep.mubr.f32.mxu0 0.0
      %769 = vmatmul.mubr.f32.gmra.mxu0 %v680
      %v770 = vpop.f32.mrf.mxu0
      %v771 = vadd.f32 0.0, %v770
      %v772 = vpop.f32.mrf.mxu0
      %773 = vmatprep.mubr.f32.mxu0 0.0
      %774 = vmatmul.mubr.f32.gmra.mxu0 %v681
      %v775 = vpop.f32.mrf.mxu0
      %v776 = vadd.f32 0.0, %v775
      %v777 = vpop.f32.mrf.mxu0
      %778 = vdwg.mxu0
      %v779 = vadd.f32 %v676, %v766
      %v780 = vadd.f32 %v677, %v771
      %v781 = vadd.f32 %v678, %v776
      %v782 = vld [vmem:[%s165 + $0xc] sm:$0xff]
      %v783 = vld [vmem:[%s165 + $0x14] sm:$0xff]
      %v784 = vld [vmem:[%s165 + $0x1c] sm:$0x3f]
      %s785 = scalar_lea.vmem %s1, 768
      %v786 = vld [vmem:[%s785] sm:$0xff]
      %v787 = vld [vmem:[%s785 + $0x8] sm:$0xff]
      %v788 = vld [vmem:[%s785 + $0x10] sm:$0xff]
      %v789 = vld [vmem:[%s785 + $0x18] sm:$0xff]
      %v790 = vld [vmem:[%s785 + $0x20] sm:$0xff]
      %v791 = vld [vmem:[%s785 + $0x28] sm:$0xff]
      %v792 = vld [vmem:[%s785 + $0x30] sm:$0xff]
      %v793 = vld [vmem:[%s785 + $0x38] sm:$0xff]
      %v794 = vld [vmem:[%s785 + $0x40] sm:$0xff]
      %v795 = vld [vmem:[%s785 + $0x48] sm:$0xff]
      %v796 = vld [vmem:[%s785 + $0x50] sm:$0xff]
      %v797 = vld [vmem:[%s785 + $0x58] sm:$0xff]
      %v798 = vld [vmem:[%s785 + $0x60] sm:$0xff]
      %v799 = vld [vmem:[%s785 + $0x68] sm:$0xff]
      %v800 = vld [vmem:[%s785 + $0x70] sm:$0xff]
      %v801 = vld [vmem:[%s785 + $0x78] sm:$0xff]
      %802 = vmatprep.subr.mxu0 0.0
      %803 = vmatpush1.msra.mxu0 %v801
      %804 = vmatprep.subr.mxu0 0.0
      %805 = vmatpush1.msra.mxu0 %v800
      %806 = vmatprep.subr.mxu0 0.0
      %807 = vmatpush1.msra.mxu0 %v799
      %808 = vmatprep.subr.mxu0 0.0
      %809 = vmatpush1.msra.mxu0 %v798
      %810 = vmatprep.subr.mxu0 0.0
      %811 = vmatpush1.msra.mxu0 %v797
      %812 = vmatprep.subr.mxu0 0.0
      %813 = vmatpush1.msra.mxu0 %v796
      %814 = vmatprep.subr.mxu0 0.0
      %815 = vmatpush1.msra.mxu0 %v795
      %816 = vmatprep.subr.mxu0 0.0
      %817 = vmatpush1.msra.mxu0 %v794
      %818 = vmatprep.subr.mxu0 0.0
      %819 = vmatpush1.msra.mxu0 %v793
      %820 = vmatprep.subr.mxu0 0.0
      %821 = vmatpush1.msra.mxu0 %v792
      %822 = vmatprep.subr.mxu0 0.0
      %823 = vmatpush1.msra.mxu0 %v791
      %824 = vmatprep.subr.mxu0 0.0
      %825 = vmatpush1.msra.mxu0 %v790
      %826 = vmatprep.subr.mxu0 0.0
      %827 = vmatpush1.msra.mxu0 %v789
      %828 = vmatprep.subr.mxu0 0.0
      %829 = vmatpush1.msra.mxu0 %v788
      %830 = vmatprep.subr.mxu0 0.0
      %831 = vmatpush1.msra.mxu0 %v787
      %832 = vmatprep.subr.mxu0 0.0
      %833 = vmatpush1.msra.mxu0 %v786
      %834 = vmatprep.subr.mxu0 0.0
      %835 = vmatpush2.msra.mxu0 0.0
      %836 = vmatprep.subr.mxu0 0.0
      %837 = vmatpush2.msra.mxu0 0.0
      %838 = vmatprep.subr.mxu0 0.0
      %839 = vmatpush2.msra.mxu0 0.0
      %840 = vmatprep.subr.mxu0 0.0
      %841 = vmatpush2.msra.mxu0 0.0
      %842 = vmatprep.subr.mxu0 0.0
      %843 = vmatpush2.msra.mxu0 0.0
      %844 = vmatprep.subr.mxu0 0.0
      %845 = vmatpush2.msra.mxu0 0.0
      %846 = vmatprep.subr.mxu0 0.0
      %847 = vmatpush2.msra.mxu0 0.0
      %848 = vmatprep.subr.mxu0 0.0
      %849 = vmatpush2.msra.mxu0 0.0
      %850 = vmatprep.subr.mxu0 0.0
      %851 = vmatpush2.msra.mxu0 0.0
      %852 = vmatprep.subr.mxu0 0.0
      %853 = vmatpush2.msra.mxu0 0.0
      %854 = vmatprep.subr.mxu0 0.0
      %855 = vmatpush2.msra.mxu0 0.0
      %856 = vmatprep.subr.mxu0 0.0
      %857 = vmatpush2.msra.mxu0 0.0
      %858 = vmatprep.subr.mxu0 0.0
      %859 = vmatpush2.msra.mxu0 0.0
      %860 = vmatprep.subr.mxu0 0.0
      %861 = vmatpush2.msra.mxu0 0.0
      %862 = vmatprep.subr.mxu0 0.0
      %863 = vmatpush2.msra.mxu0 0.0
      %864 = vmatprep.subr.mxu0 0.0
      %865 = vmatpush2.msra.mxu0 0.0
      %866 = vmatprep.mubr.f32.mxu0 0.0
      %867 = vmatmul.mubr.f32.gmra.mxu0 %v782
      %v868 = vpop.f32.mrf.mxu0
      %v869 = vadd.f32 0.0, %v868
      %v870 = vpop.f32.mrf.mxu0
      %871 = vmatprep.mubr.f32.mxu0 0.0
      %872 = vmatmul.mubr.f32.gmra.mxu0 %v783
      %v873 = vpop.f32.mrf.mxu0
      %v874 = vadd.f32 0.0, %v873
      %v875 = vpop.f32.mrf.mxu0
      %876 = vmatprep.mubr.f32.mxu0 0.0
      %877 = vmatmul.mubr.f32.gmra.mxu0 %v784
      %v878 = vpop.f32.mrf.mxu0
      %v879 = vadd.f32 0.0, %v878
      %v880 = vpop.f32.mrf.mxu0
      %881 = vdwg.mxu0
      %v882 = vadd.f32 %v779, %v869
      %v883 = vadd.f32 %v780, %v874
      %v884 = vadd.f32 %v781, %v879
      %v885 = vld [vmem:[%s165 + $0xd] sm:$0xff]
      %v886 = vld [vmem:[%s165 + $0x15] sm:$0xff]
      %v887 = vld [vmem:[%s165 + $0x1d] sm:$0x3f]
      %s888 = scalar_lea.vmem %s1, 896
      %v889 = vld [vmem:[%s888] sm:$0xff]
      %v890 = vld [vmem:[%s888 + $0x8] sm:$0xff]
      %v891 = vld [vmem:[%s888 + $0x10] sm:$0xff]
      %v892 = vld [vmem:[%s888 + $0x18] sm:$0xff]
      %v893 = vld [vmem:[%s888 + $0x20] sm:$0xff]
      %v894 = vld [vmem:[%s888 + $0x28] sm:$0xff]
      %v895 = vld [vmem:[%s888 + $0x30] sm:$0xff]
      %v896 = vld [vmem:[%s888 + $0x38] sm:$0xff]
      %v897 = vld [vmem:[%s888 + $0x40] sm:$0xff]
      %v898 = vld [vmem:[%s888 + $0x48] sm:$0xff]
      %v899 = vld [vmem:[%s888 + $0x50] sm:$0xff]
      %v900 = vld [vmem:[%s888 + $0x58] sm:$0xff]
      %v901 = vld [vmem:[%s888 + $0x60] sm:$0xff]
      %v902 = vld [vmem:[%s888 + $0x68] sm:$0xff]
      %v903 = vld [vmem:[%s888 + $0x70] sm:$0xff]
      %v904 = vld [vmem:[%s888 + $0x78] sm:$0xff]
      %905 = vmatprep.subr.mxu0 0.0
      %906 = vmatpush1.msra.mxu0 %v904
      %907 = vmatprep.subr.mxu0 0.0
      %908 = vmatpush1.msra.mxu0 %v903
      %909 = vmatprep.subr.mxu0 0.0
      %910 = vmatpush1.msra.mxu0 %v902
      %911 = vmatprep.subr.mxu0 0.0
      %912 = vmatpush1.msra.mxu0 %v901
      %913 = vmatprep.subr.mxu0 0.0
      %914 = vmatpush1.msra.mxu0 %v900
      %915 = vmatprep.subr.mxu0 0.0
      %916 = vmatpush1.msra.mxu0 %v899
      %917 = vmatprep.subr.mxu0 0.0
      %918 = vmatpush1.msra.mxu0 %v898
      %919 = vmatprep.subr.mxu0 0.0
      %920 = vmatpush1.msra.mxu0 %v897
      %921 = vmatprep.subr.mxu0 0.0
      %922 = vmatpush1.msra.mxu0 %v896
      %923 = vmatprep.subr.mxu0 0.0
      %924 = vmatpush1.msra.mxu0 %v895
      %925 = vmatprep.subr.mxu0 0.0
      %926 = vmatpush1.msra.mxu0 %v894
      %927 = vmatprep.subr.mxu0 0.0
      %928 = vmatpush1.msra.mxu0 %v893
      %929 = vmatprep.subr.mxu0 0.0
      %930 = vmatpush1.msra.mxu0 %v892
      %931 = vmatprep.subr.mxu0 0.0
      %932 = vmatpush1.msra.mxu0 %v891
      %933 = vmatprep.subr.mxu0 0.0
      %934 = vmatpush1.msra.mxu0 %v890
      %935 = vmatprep.subr.mxu0 0.0
      %936 = vmatpush1.msra.mxu0 %v889
      %937 = vmatprep.subr.mxu0 0.0
      %938 = vmatpush2.msra.mxu0 0.0
      %939 = vmatprep.subr.mxu0 0.0
      %940 = vmatpush2.msra.mxu0 0.0
      %941 = vmatprep.subr.mxu0 0.0
      %942 = vmatpush2.msra.mxu0 0.0
      %943 = vmatprep.subr.mxu0 0.0
      %944 = vmatpush2.msra.mxu0 0.0
      %945 = vmatprep.subr.mxu0 0.0
      %946 = vmatpush2.msra.mxu0 0.0
      %947 = vmatprep.subr.mxu0 0.0
      %948 = vmatpush2.msra.mxu0 0.0
      %949 = vmatprep.subr.mxu0 0.0
      %950 = vmatpush2.msra.mxu0 0.0
      %951 = vmatprep.subr.mxu0 0.0
      %952 = vmatpush2.msra.mxu0 0.0
      %953 = vmatprep.subr.mxu0 0.0
      %954 = vmatpush2.msra.mxu0 0.0
      %955 = vmatprep.subr.mxu0 0.0
      %956 = vmatpush2.msra.mxu0 0.0
      %957 = vmatprep.subr.mxu0 0.0
      %958 = vmatpush2.msra.mxu0 0.0
      %959 = vmatprep.subr.mxu0 0.0
      %960 = vmatpush2.msra.mxu0 0.0
      %961 = vmatprep.subr.mxu0 0.0
      %962 = vmatpush2.msra.mxu0 0.0
      %963 = vmatprep.subr.mxu0 0.0
      %964 = vmatpush2.msra.mxu0 0.0
      %965 = vmatprep.subr.mxu0 0.0
      %966 = vmatpush2.msra.mxu0 0.0
      %967 = vmatprep.subr.mxu0 0.0
      %968 = vmatpush2.msra.mxu0 0.0
      %969 = vmatprep.mubr.f32.mxu0 0.0
      %970 = vmatmul.mubr.f32.gmra.mxu0 %v885
      %v971 = vpop.f32.mrf.mxu0
      %v972 = vadd.f32 0.0, %v971
      %v973 = vpop.f32.mrf.mxu0
      %974 = vmatprep.mubr.f32.mxu0 0.0
      %975 = vmatmul.mubr.f32.gmra.mxu0 %v886
      %v976 = vpop.f32.mrf.mxu0
      %v977 = vadd.f32 0.0, %v976
      %v978 = vpop.f32.mrf.mxu0
      %979 = vmatprep.mubr.f32.mxu0 0.0
      %980 = vmatmul.mubr.f32.gmra.mxu0 %v887
      %v981 = vpop.f32.mrf.mxu0
      %v982 = vadd.f32 0.0, %v981
      %v983 = vpop.f32.mrf.mxu0
      %984 = vdwg.mxu0
      %v985 = vadd.f32 %v882, %v972
      %v986 = vadd.f32 %v883, %v977
      %v987 = vadd.f32 %v884, %v982
      %v988 = vld [vmem:[%s165 + $0xe] sm:$0xff]
      %v989 = vld [vmem:[%s165 + $0x16] sm:$0xff]
      %v990 = vld [vmem:[%s165 + $0x1e] sm:$0x3f]
      %s991 = scalar_lea.vmem %s1, 1024
      %v992 = vld [vmem:[%s991] sm:$0xff]
      %v993 = vld [vmem:[%s991 + $0x8] sm:$0xff]
      %v994 = vld [vmem:[%s991 + $0x10] sm:$0xff]
      %v995 = vld [vmem:[%s991 + $0x18] sm:$0xff]
      %v996 = vld [vmem:[%s991 + $0x20] sm:$0xff]
      %v997 = vld [vmem:[%s991 + $0x28] sm:$0xff]
      %v998 = vld [vmem:[%s991 + $0x30] sm:$0xff]
      %v999 = vld [vmem:[%s991 + $0x38] sm:$0xff]
      %v1000 = vld [vmem:[%s991 + $0x40] sm:$0xff]
      %v1001 = vld [vmem:[%s991 + $0x48] sm:$0xff]
      %v1002 = vld [vmem:[%s991 + $0x50] sm:$0xff]
      %v1003 = vld [vmem:[%s991 + $0x58] sm:$0xff]
      %v1004 = vld [vmem:[%s991 + $0x60] sm:$0xff]
      %v1005 = vld [vmem:[%s991 + $0x68] sm:$0xff]
      %v1006 = vld [vmem:[%s991 + $0x70] sm:$0xff]
      %v1007 = vld [vmem:[%s991 + $0x78] sm:$0xff]
      %1008 = vmatprep.subr.mxu0 0.0
      %1009 = vmatpush1.msra.mxu0 %v1007
      %1010 = vmatprep.subr.mxu0 0.0
      %1011 = vmatpush1.msra.mxu0 %v1006
      %1012 = vmatprep.subr.mxu0 0.0
      %1013 = vmatpush1.msra.mxu0 %v1005
      %1014 = vmatprep.subr.mxu0 0.0
      %1015 = vmatpush1.msra.mxu0 %v1004
      %1016 = vmatprep.subr.mxu0 0.0
      %1017 = vmatpush1.msra.mxu0 %v1003
      %1018 = vmatprep.subr.mxu0 0.0
      %1019 = vmatpush1.msra.mxu0 %v1002
      %1020 = vmatprep.subr.mxu0 0.0
      %1021 = vmatpush1.msra.mxu0 %v1001
      %1022 = vmatprep.subr.mxu0 0.0
      %1023 = vmatpush1.msra.mxu0 %v1000
      %1024 = vmatprep.subr.mxu0 0.0
      %1025 = vmatpush1.msra.mxu0 %v999
      %1026 = vmatprep.subr.mxu0 0.0
      %1027 = vmatpush1.msra.mxu0 %v998
      %1028 = vmatprep.subr.mxu0 0.0
      %1029 = vmatpush1.msra.mxu0 %v997
      %1030 = vmatprep.subr.mxu0 0.0
      %1031 = vmatpush1.msra.mxu0 %v996
      %1032 = vmatprep.subr.mxu0 0.0
      %1033 = vmatpush1.msra.mxu0 %v995
      %1034 = vmatprep.subr.mxu0 0.0
      %1035 = vmatpush1.msra.mxu0 %v994
      %1036 = vmatprep.subr.mxu0 0.0
      %1037 = vmatpush1.msra.mxu0 %v993
      %1038 = vmatprep.subr.mxu0 0.0
      %1039 = vmatpush1.msra.mxu0 %v992
      %1040 = vmatprep.subr.mxu0 0.0
      %1041 = vmatpush2.msra.mxu0 0.0
      %1042 = vmatprep.subr.mxu0 0.0
      %1043 = vmatpush2.msra.mxu0 0.0
      %1044 = vmatprep.subr.mxu0 0.0
      %1045 = vmatpush2.msra.mxu0 0.0
      %1046 = vmatprep.subr.mxu0 0.0
      %1047 = vmatpush2.msra.mxu0 0.0
      %1048 = vmatprep.subr.mxu0 0.0
      %1049 = vmatpush2.msra.mxu0 0.0
      %1050 = vmatprep.subr.mxu0 0.0
      %1051 = vmatpush2.msra.mxu0 0.0
      %1052 = vmatprep.subr.mxu0 0.0
      %1053 = vmatpush2.msra.mxu0 0.0
      %1054 = vmatprep.subr.mxu0 0.0
      %1055 = vmatpush2.msra.mxu0 0.0
      %1056 = vmatprep.subr.mxu0 0.0
      %1057 = vmatpush2.msra.mxu0 0.0
      %1058 = vmatprep.subr.mxu0 0.0
      %1059 = vmatpush2.msra.mxu0 0.0
      %1060 = vmatprep.subr.mxu0 0.0
      %1061 = vmatpush2.msra.mxu0 0.0
      %1062 = vmatprep.subr.mxu0 0.0
      %1063 = vmatpush2.msra.mxu0 0.0
      %1064 = vmatprep.subr.mxu0 0.0
      %1065 = vmatpush2.msra.mxu0 0.0
      %1066 = vmatprep.subr.mxu0 0.0
      %1067 = vmatpush2.msra.mxu0 0.0
      %1068 = vmatprep.subr.mxu0 0.0
      %1069 = vmatpush2.msra.mxu0 0.0
      %1070 = vmatprep.subr.mxu0 0.0
      %1071 = vmatpush2.msra.mxu0 0.0
      %1072 = vmatprep.mubr.f32.mxu0 0.0
      %1073 = vmatmul.mubr.f32.gmra.mxu0 %v988
      %v1074 = vpop.f32.mrf.mxu0
      %v1075 = vadd.f32 0.0, %v1074
      %v1076 = vpop.f32.mrf.mxu0
      %1077 = vmatprep.mubr.f32.mxu0 0.0
      %1078 = vmatmul.mubr.f32.gmra.mxu0 %v989
      %v1079 = vpop.f32.mrf.mxu0
      %v1080 = vadd.f32 0.0, %v1079
      %v1081 = vpop.f32.mrf.mxu0
      %1082 = vmatprep.mubr.f32.mxu0 0.0
      %1083 = vmatmul.mubr.f32.gmra.mxu0 %v990
      %v1084 = vpop.f32.mrf.mxu0
      %v1085 = vadd.f32 0.0, %v1084
      %v1086 = vpop.f32.mrf.mxu0
      %1087 = vdwg.mxu0
      %v1088 = vadd.f32 %v985, %v1075
      %v1089 = vadd.f32 %v986, %v1080
      %v1090 = vadd.f32 %v987, %v1085
      %v1091 = vld [vmem:[%s2] sm:$0x1]
      %v1093 = vlaneseq
      %v1094 = vshrl.u32 %v1093, 7
      %v1095 = vsub.s32 0, %v1094
      %v1096 = vrot.slane %v1091, %v1095
      %v1098 = vadd.f32 %v1088, %v1096
      %v1099 = vadd.f32 %v1089, %v1096
      %v1100 = vadd.f32 %v1090, %v1096
      %v1101 = vmax.f32 %v1098, 0.0
      %v1102 = vmax.f32 %v1099, 0.0
      %v1103 = vmax.f32 %v1100, 0.0
      %1104 = vst [vmem:[#allocation2] sm:$0xff] %v1101
      %1105 = vst [vmem:[#allocation2 + $0x8] sm:$0xff] %v1102
      %1106 = vst [vmem:[#allocation2 + $0x10] sm:$0x3f] %v1103
      %v1107 = vld [vmem:[#allocation2] ss:$2 sm:$0x3]
      %s1108 = scalar_lea.vmem [#allocation2], 1
      %v1109 = vld [vmem:[%s1108] ss:$2 sm:$0x3]
      %s1110 = scalar_lea.vmem [#allocation2], 6
      %v1111 = vld [vmem:[%s1110] ss:$2 sm:$0x3]
      %s1112 = scalar_lea.vmem [#allocation2], 7
      %v1113 = vld [vmem:[%s1112] ss:$2 sm:$0x3]
      %v1114 = vmax.f32 %v1107, %v1109
      %v1115 = vmax.f32 %v1111, %v1113
      %v1116 = vmax.f32 %v1114, %v1115
      %1117 = vst [vmem:[%s170] sm:$0x3] %v1116
      %s1118 = scalar_lea.vmem [#allocation2], 12
      %v1119 = vld [vmem:[%s1118] ss:$2 sm:$0x3]
      %s1120 = scalar_lea.vmem [#allocation2], 13
      %v1121 = vld [vmem:[%s1120] ss:$2 sm:$0x3]
      %s1122 = scalar_lea.vmem [#allocation2], 18
      %v1123 = vld [vmem:[%s1122] ss:$2 sm:$0x3]
      %s1124 = scalar_lea.vmem [#allocation2], 19
      %v1125 = vld [vmem:[%s1124] ss:$2 sm:$0x3]
      %v1126 = vmax.f32 %v1119, %v1121
      %v1127 = vmax.f32 %v1123, %v1125
      %v1128 = vmax.f32 %v1126, %v1127
      %s1129 = scalar_lea.vmem %s170, 2
      %1130 = vst [vmem:[%s1129] sm:$0x3] %v1128
      %p1131 = scmp.lt.s32.totalorder %s14, 1
      %s1132 = scalar_select %p1131, %s14, 1
      %s1133 = smul.addr %s1132, 2
      %s1134 = smul.addr %s1133, 2
      %s1135 = scalar_lea.vmem %s3, %s1134
      // Predicated region
      $region33: #{attention_cnn_forward.8} parent=31 // pred_check
        %p1136 = pneg %p100
      $region34: #{attention_cnn_forward.8} parent=31 // pred_check_branch
        %1138 = sbr.rel (%p1136) target = $region36
      $region35: #{attention_cnn_forward.8} parent=31 // pred_region
        _
      $region36: #{attention_cnn_forward.8} parent=31 // pred_fallthru
        _
    $region32: #{attention_cnn_forward.8} parent=5 // pred_fallthru
      _
    %p1139 = scmp.le.s32.totalorder 2, %s9
    // Predicated region
    $region37: #{attention_cnn_forward.8} parent=5 // pred_check
      %p1140 = pneg %p1139
    $region38: #{attention_cnn_forward.8} parent=5 // pred_check_branch
      %1142 = sbr.rel (%p1140) target = $region40
    $region39: #{attention_cnn_forward.8} parent=5 // pred_region
      %s1143 = ssub.s32 %s9, 2
      // Predicated region
      $region41: #{attention_cnn_forward.8} parent=39 // pred_check
        %p1144 = pneg %p106
      $region42: #{attention_cnn_forward.8} parent=39 // pred_check_branch
        %1146 = sbr.rel (%p1144) target = $region44
      $region43: #{attention_cnn_forward.8} parent=39 // pred_region
        %p1147 = scmp.lt.s32.totalorder %s15, 1
        %s1148 = scalar_select %p1147, %s15, 1
        %s1149 = smul.addr %s1148, 2
        %s1150 = smul.addr %s1149, 2
        %s1151 = scalar_lea.vmem %s3, %s1150
      $region44: #{attention_cnn_forward.8} parent=39 // pred_fallthru
        _
    $region40: #{attention_cnn_forward.8} parent=5 // pred_fallthru
      _
  $region6: #{attention_cnn_forward.8} parent=0 // loop_footer
    %s13 = sadd.s32 1, %s9
  $region7: #{attention_cnn_forward.8} parent=0 // loop_footer_branch
    %8 = sbr.rel target = $region3
  $region8: #{attention_cnn_forward.8} parent=0 // loop_exit
    _

// kernel: attention_cnn_forward.9
$region0: #{attention_cnn_forward.9}
  #allocation0 [shape = 'u32[]', space=smem, size = 0x4, offset = 0x4, fixed_abs, tag = 'smem constant byte address 0x4 - core index']
  #allocation1 [shape = 'u32[144,128]{1,0:T(1,128)}', space=vmem, size = 0x12000, scoped, tag = 'internal scratch']
  %s0 = inlined_call_operand.vmem [shape: f32[2,16,128], index: 0, kind: input, shape index: {}]
  %s1 = inlined_call_operand.vmem [shape: f32[3,3,128,128], index: 1, kind: input, shape index: {}]
  %s2 = inlined_call_operand.vmem [shape: f32[1,128], index: 2, kind: input, shape index: {}]
  %s3 = inlined_call_operand.vmem [shape: f32[2,16,128], index: 3, kind: output, shape index: {}]
  %s4 = sld [smem:[#allocation0]]
  $region45: #{attention_cnn_forward.9} parent=0
    _
  %s6 = ssub.s32 1, %s4
  %s7 = scalar_select 0, %s6, %s4
  loop: start=0, step=1, limit=4
  $region2: #{attention_cnn_forward.9} parent=0 // loop_pre_header
    _
  $region3: #{attention_cnn_forward.9} parent=0 // loop_header
    %s9 = sphi 0, %s13
    %p10 = scmp.ge.s32.totalorder %s9, 4
    %s19 = sphi 0, %s21
    %s22 = sphi 0, %s19
    %s23 = sphi 0, %s22
    %s39 = sphi 0, %s23
    %s43 = sphi 0, %s43
    %s45 = sphi 0, %s43
    %s46 = sphi 0, %s45
    %s60 = sphi 0, %s46
    %s64 = sphi 0, %s64
    %s66 = sphi 0, %s64
    %s67 = sphi 0, %s66
    %s81 = sphi 0, %s67
    %s87 = sphi 0, %s89
    %s90 = sphi 0, %s87
    %s91 = sphi 0, %s90
    %s107 = sphi 0, %s91
  $region4: #{attention_cnn_forward.9} parent=0 // loop_header_branch
    %12 = sbr.rel (%p10) target = $region8
  $region5: #{attention_cnn_forward.9} parent=0 // loop_body
    %s14 = ssub.s32 %s9, 1
    %s15 = ssub.s32 %s9, 2
    %s16 = sadd.s32 %s9, 1
    %s17 = ssub.s32 %s9, %s16
    %p18 = scmp.eq.s32.totalorder %s17, 0
    %s20 = sadd.s32 %s19, 1
    %s21 = scalar_select %p18, %s19, %s20
    %p24 = pneg %p18
    %p25 = scmp.eq.s32.totalorder %s9, 1
    %p26 = por %p24, %p25
    %p27 = scmp.ne.s32.totalorder %s19, %s22
    %p28 = scmp.eq.s32.totalorder %s9, 0
    %p29 = por %p27, %p28
    %p30 = scmp.ne.s32.totalorder %s19, %s22
    %p31 = scmp.eq.s32.totalorder %s14, 1
    %p32 = por %p30, %p31
    %p33 = scmp.ne.s32.totalorder %s22, %s23
    %p34 = scmp.eq.s32.totalorder %s14, 0
    %p35 = por %p33, %p34
    %p36 = scmp.ne.s32.totalorder %s22, %s23
    %p37 = scmp.eq.s32.totalorder %s15, 1
    %p38 = por %p36, %p37
    %p40 = scmp.ne.s32.totalorder %s23, %s39
    %p41 = scmp.eq.s32.totalorder %s15, 0
    %p42 = por %p40, %p41
    %s44 = sadd.s32 %s43, 1
    %p47 = scmp.eq.s32.totalorder %s9, 1
    %p48 = scmp.ne.s32.totalorder %s43, %s45
    %p49 = scmp.eq.s32.totalorder %s9, 0
    %p50 = por %p48, %p49
    %p51 = scmp.ne.s32.totalorder %s43, %s45
    %p52 = scmp.eq.s32.totalorder %s14, 1
    %p53 = por %p51, %p52
    %p54 = scmp.ne.s32.totalorder %s45, %s46
    %p55 = scmp.eq.s32.totalorder %s14, 0
    %p56 = por %p54, %p55
    %p57 = scmp.ne.s32.totalorder %s45, %s46
    %p58 = scmp.eq.s32.totalorder %s15, 1
    %p59 = por %p57, %p58
    %p61 = scmp.ne.s32.totalorder %s46, %s60
    %p62 = scmp.eq.s32.totalorder %s15, 0
    %p63 = por %p61, %p62
    %s65 = sadd.s32 %s64, 1
    %p68 = scmp.eq.s32.totalorder %s9, 1
    %p69 = scmp.ne.s32.totalorder %s64, %s66
    %p70 = scmp.eq.s32.totalorder %s9, 0
    %p71 = por %p69, %p70
    %p72 = scmp.ne.s32.totalorder %s64, %s66
    %p73 = scmp.eq.s32.totalorder %s14, 1
    %p74 = por %p72, %p73
    %p75 = scmp.ne.s32.totalorder %s66, %s67
    %p76 = scmp.eq.s32.totalorder %s14, 0
    %p77 = por %p75, %p76
    %p78 = scmp.ne.s32.totalorder %s66, %s67
    %p79 = scmp.eq.s32.totalorder %s15, 1
    %p80 = por %p78, %p79
    %p82 = scmp.ne.s32.totalorder %s67, %s81
    %p83 = scmp.eq.s32.totalorder %s15, 0
    %p84 = por %p82, %p83
    %s85 = ssub.s32 %s9, %s16
    %p86 = scmp.eq.s32.totalorder %s85, 0
    %s88 = sadd.s32 %s87, 1
    %s89 = scalar_select %p86, %s87, %s88
    %p92 = pneg %p86
    %p93 = scmp.eq.s32.totalorder %s9, 1
    %p94 = por %p92, %p93
    %p95 = scmp.ne.s32.totalorder %s87, %s90
    %p96 = scmp.eq.s32.totalorder %s9, 0
    %p97 = por %p95, %p96
    %p98 = scmp.ne.s32.totalorder %s87, %s90
    %p99 = scmp.eq.s32.totalorder %s14, 1
    %p100 = por %p98, %p99
    %p101 = scmp.ne.s32.totalorder %s90, %s91
    %p102 = scmp.eq.s32.totalorder %s14, 0
    %p103 = por %p101, %p102
    %p104 = scmp.ne.s32.totalorder %s90, %s91
    %p105 = scmp.eq.s32.totalorder %s15, 1
    %p106 = por %p104, %p105
    %p108 = scmp.ne.s32.totalorder %s91, %s107
    %p109 = scmp.eq.s32.totalorder %s15, 0
    %p110 = por %p108, %p109
    %p111 = scmp.le.s32.totalorder 1, %s9
    %p112 = scmp.lt.s32.totalorder %s9, 3
    %p113 = pnand %p111, %p112
    %p114 = pneg %p113
    // Predicated region
    $region9: #{attention_cnn_forward.9} parent=5 // pred_check
      _
    $region10: #{attention_cnn_forward.9} parent=5 // pred_check_branch
      %116 = sbr.rel (%p113) target = $region12
    $region11: #{attention_cnn_forward.9} parent=5 // pred_region
      %s117 = ssub.s32 %s9, 1
      // Predicated region
      $region13: #{attention_cnn_forward.9} parent=11 // pred_check
        %p118 = pneg %p56
      $region14: #{attention_cnn_forward.9} parent=11 // pred_check_branch
        %120 = sbr.rel (%p118) target = $region16
      $region15: #{attention_cnn_forward.9} parent=11 // pred_region
        _
      $region16: #{attention_cnn_forward.9} parent=11 // pred_fallthru
        _
      // Predicated region
      $region17: #{attention_cnn_forward.9} parent=11 // pred_check
        %p121 = pneg %p77
      $region18: #{attention_cnn_forward.9} parent=11 // pred_check_branch
        %123 = sbr.rel (%p121) target = $region20
      $region19: #{attention_cnn_forward.9} parent=11 // pred_region
        _
      $region20: #{attention_cnn_forward.9} parent=11 // pred_fallthru
        _
    $region12: #{attention_cnn_forward.9} parent=5 // pred_fallthru
      _
    %p124 = scmp.lt.s32.totalorder %s9, 2
    // Predicated region
    $region21: #{attention_cnn_forward.9} parent=5 // pred_check
      %p125 = pneg %p124
    $region22: #{attention_cnn_forward.9} parent=5 // pred_check_branch
      %127 = sbr.rel (%p125) target = $region24
    $region23: #{attention_cnn_forward.9} parent=5 // pred_region
      // Predicated region
      $region25: #{attention_cnn_forward.9} parent=23 // pred_check
        %p128 = pneg %p29
      $region26: #{attention_cnn_forward.9} parent=23 // pred_check_branch
        %130 = sbr.rel (%p128) target = $region28
      $region27: #{attention_cnn_forward.9} parent=23 // pred_region
        %p131 = scmp.lt.s32.totalorder %s9, 1
        %s132 = scalar_select %p131, %s9, 1
        %s133 = smul.addr %s132, 2
        %s134 = smul.addr %s133, 8
        %s135 = scalar_lea.vmem %s0, %s134
      $region28: #{attention_cnn_forward.9} parent=23 // pred_fallthru
        _
    $region24: #{attention_cnn_forward.9} parent=5 // pred_fallthru
      _
    %p136 = scmp.le.s32.totalorder 1, %s9
    %p137 = scmp.lt.s32.totalorder %s9, 3
    %p138 = pnand %p136, %p137
    %p139 = pneg %p138
    // Predicated region
    $region29: #{attention_cnn_forward.9} parent=5 // pred_check
      _
    $region30: #{attention_cnn_forward.9} parent=5 // pred_check_branch
      %141 = sbr.rel (%p138) target = $region32
    $region31: #{attention_cnn_forward.9} parent=5 // pred_region
      %s142 = ssub.s32 %s9, 1
      %p143 = scmp.lt.s32.totalorder %s14, 1
      %s144 = scalar_select %p143, %s14, 1
      %s145 = smul.addr %s144, 2
      %s146 = smul.addr %s145, 8
      %s147 = scalar_lea.vmem %s0, %s146
      %p148 = pneg %p35
      %p149 = pneg %p32
      %p150 = pneg %p56
      %p151 = pneg %p53
      %p152 = pneg %p77
      %p153 = pneg %p74
      %p154 = pneg %p103
      %p155 = pneg %p100
      %p156 = scmp.lt.s32.totalorder %s14, 1
      %s157 = scalar_select %p156, %s14, 1
      %s158 = smul.addr %s157, 2
      %s159 = smul.addr %s158, 8
      %s160 = scalar_lea.vmem %s3, %s159
      %p161 = scmp.lt.s32.totalorder %s14, 1
      %s162 = scalar_select %p161, %s14, 1
      %s163 = smul.addr %s162, 2
      %s164 = smul.addr %s163, 8
      %s165 = scalar_lea.vmem %s0, %s164
      %p166 = scmp.lt.s32.totalorder %s14, 1
      %s167 = scalar_select %p166, %s14, 1
      %s168 = smul.addr %s167, 2
      %s169 = smul.addr %s168, 8
      %s170 = scalar_lea.vmem %s3, %s169
      %v171 = vld [vmem:[%s165] sm:$0x3f]
      %v172 = vld [vmem:[%s1] sm:$0xff]
      %v173 = vld [vmem:[%s1 + $0x8] sm:$0xff]
      %v174 = vld [vmem:[%s1 + $0x10] sm:$0xff]
      %v175 = vld [vmem:[%s1 + $0x18] sm:$0xff]
      %v176 = vld [vmem:[%s1 + $0x20] sm:$0xff]
      %v177 = vld [vmem:[%s1 + $0x28] sm:$0xff]
      %v178 = vld [vmem:[%s1 + $0x30] sm:$0xff]
      %v179 = vld [vmem:[%s1 + $0x38] sm:$0xff]
      %v180 = vld [vmem:[%s1 + $0x40] sm:$0xff]
      %v181 = vld [vmem:[%s1 + $0x48] sm:$0xff]
      %v182 = vld [vmem:[%s1 + $0x50] sm:$0xff]
      %v183 = vld [vmem:[%s1 + $0x58] sm:$0xff]
      %v184 = vld [vmem:[%s1 + $0x60] sm:$0xff]
      %v185 = vld [vmem:[%s1 + $0x68] sm:$0xff]
      %v186 = vld [vmem:[%s1 + $0x70] sm:$0xff]
      %v187 = vld [vmem:[%s1 + $0x78] sm:$0xff]
      %v188 = vld [vmem:[%s165 + $0x1] sm:$0x3f]
      %s189 = scalar_lea.vmem %s1, 128
      %v190 = vld [vmem:[%s189] sm:$0xff]
      %v191 = vld [vmem:[%s189 + $0x8] sm:$0xff]
      %v192 = vld [vmem:[%s189 + $0x10] sm:$0xff]
      %v193 = vld [vmem:[%s189 + $0x18] sm:$0xff]
      %v194 = vld [vmem:[%s189 + $0x20] sm:$0xff]
      %v195 = vld [vmem:[%s189 + $0x28] sm:$0xff]
      %v196 = vld [vmem:[%s189 + $0x30] sm:$0xff]
      %v197 = vld [vmem:[%s189 + $0x38] sm:$0xff]
      %v198 = vld [vmem:[%s189 + $0x40] sm:$0xff]
      %v199 = vld [vmem:[%s189 + $0x48] sm:$0xff]
      %v200 = vld [vmem:[%s189 + $0x50] sm:$0xff]
      %v201 = vld [vmem:[%s189 + $0x58] sm:$0xff]
      %v202 = vld [vmem:[%s189 + $0x60] sm:$0xff]
      %v203 = vld [vmem:[%s189 + $0x68] sm:$0xff]
      %v204 = vld [vmem:[%s189 + $0x70] sm:$0xff]
      %v205 = vld [vmem:[%s189 + $0x78] sm:$0xff]
      %206 = vmatprep.subr.mxu0 0.0
      %207 = vmatpush1.msra.mxu0 %v205
      %208 = vmatprep.subr.mxu0 0.0
      %209 = vmatpush1.msra.mxu0 %v204
      %210 = vmatprep.subr.mxu0 0.0
      %211 = vmatpush1.msra.mxu0 %v203
      %212 = vmatprep.subr.mxu0 0.0
      %213 = vmatpush1.msra.mxu0 %v202
      %214 = vmatprep.subr.mxu0 0.0
      %215 = vmatpush1.msra.mxu0 %v201
      %216 = vmatprep.subr.mxu0 0.0
      %217 = vmatpush1.msra.mxu0 %v200
      %218 = vmatprep.subr.mxu0 0.0
      %219 = vmatpush1.msra.mxu0 %v199
      %220 = vmatprep.subr.mxu0 0.0
      %221 = vmatpush1.msra.mxu0 %v198
      %222 = vmatprep.subr.mxu0 0.0
      %223 = vmatpush1.msra.mxu0 %v197
      %224 = vmatprep.subr.mxu0 0.0
      %225 = vmatpush1.msra.mxu0 %v196
      %226 = vmatprep.subr.mxu0 0.0
      %227 = vmatpush1.msra.mxu0 %v195
      %228 = vmatprep.subr.mxu0 0.0
      %229 = vmatpush1.msra.mxu0 %v194
      %230 = vmatprep.subr.mxu0 0.0
      %231 = vmatpush1.msra.mxu0 %v193
      %232 = vmatprep.subr.mxu0 0.0
      %233 = vmatpush1.msra.mxu0 %v192
      %234 = vmatprep.subr.mxu0 0.0
      %235 = vmatpush1.msra.mxu0 %v191
      %236 = vmatprep.subr.mxu0 0.0
      %237 = vmatpush1.msra.mxu0 %v190
      %238 = vmatprep.subr.mxu0 0.0
      %239 = vmatpush2.msra.mxu0 0.0
      %240 = vmatprep.subr.mxu0 0.0
      %241 = vmatpush2.msra.mxu0 0.0
      %242 = vmatprep.subr.mxu0 0.0
      %243 = vmatpush2.msra.mxu0 0.0
      %244 = vmatprep.subr.mxu0 0.0
      %245 = vmatpush2.msra.mxu0 0.0
      %246 = vmatprep.subr.mxu0 0.0
      %247 = vmatpush2.msra.mxu0 0.0
      %248 = vmatprep.subr.mxu0 0.0
      %249 = vmatpush2.msra.mxu0 0.0
      %250 = vmatprep.subr.mxu0 0.0
      %251 = vmatpush2.msra.mxu0 0.0
      %252 = vmatprep.subr.mxu0 0.0
      %253 = vmatpush2.msra.mxu0 0.0
      %254 = vmatprep.subr.mxu0 0.0
      %255 = vmatpush2.msra.mxu0 0.0
      %256 = vmatprep.subr.mxu0 0.0
      %257 = vmatpush2.msra.mxu0 0.0
      %258 = vmatprep.subr.mxu0 0.0
      %259 = vmatpush2.msra.mxu0 0.0
      %260 = vmatprep.subr.mxu0 0.0
      %261 = vmatpush2.msra.mxu0 0.0
      %262 = vmatprep.subr.mxu0 0.0
      %263 = vmatpush2.msra.mxu0 0.0
      %264 = vmatprep.subr.mxu0 0.0
      %265 = vmatpush2.msra.mxu0 0.0
      %266 = vmatprep.subr.mxu0 0.0
      %267 = vmatpush2.msra.mxu0 0.0
      %268 = vmatprep.subr.mxu0 0.0
      %269 = vmatpush2.msra.mxu0 0.0
      %270 = vmatprep.mubr.f32.mxu0 0.0
      %271 = vmatmul.mubr.f32.gmra.mxu0 %v188
      %v272 = vpop.f32.mrf.mxu0
      %v273 = vadd.f32 0.0, %v272
      %v274 = vpop.f32.mrf.mxu0
      %275 = vdwg.mxu0
      %276 = vmatprep.subr.mxu0 0.0
      %277 = vmatpush1.msra.mxu0 %v187
      %278 = vmatprep.subr.mxu0 0.0
      %279 = vmatpush1.msra.mxu0 %v186
      %280 = vmatprep.subr.mxu0 0.0
      %281 = vmatpush1.msra.mxu0 %v185
      %282 = vmatprep.subr.mxu0 0.0
      %283 = vmatpush1.msra.mxu0 %v184
      %284 = vmatprep.subr.mxu0 0.0
      %285 = vmatpush1.msra.mxu0 %v183
      %286 = vmatprep.subr.mxu0 0.0
      %287 = vmatpush1.msra.mxu0 %v182
      %288 = vmatprep.subr.mxu0 0.0
      %289 = vmatpush1.msra.mxu0 %v181
      %290 = vmatprep.subr.mxu0 0.0
      %291 = vmatpush1.msra.mxu0 %v180
      %292 = vmatprep.subr.mxu0 0.0
      %293 = vmatpush1.msra.mxu0 %v179
      %294 = vmatprep.subr.mxu0 0.0
      %295 = vmatpush1.msra.mxu0 %v178
      %296 = vmatprep.subr.mxu0 0.0
      %297 = vmatpush1.msra.mxu0 %v177
      %298 = vmatprep.subr.mxu0 0.0
      %299 = vmatpush1.msra.mxu0 %v176
      %300 = vmatprep.subr.mxu0 0.0
      %301 = vmatpush1.msra.mxu0 %v175
      %302 = vmatprep.subr.mxu0 0.0
      %303 = vmatpush1.msra.mxu0 %v174
      %304 = vmatprep.subr.mxu0 0.0
      %305 = vmatpush1.msra.mxu0 %v173
      %306 = vmatprep.subr.mxu0 0.0
      %307 = vmatpush1.msra.mxu0 %v172
      %308 = vmatprep.subr.mxu0 0.0
      %309 = vmatpush2.msra.mxu0 0.0
      %310 = vmatprep.subr.mxu0 0.0
      %311 = vmatpush2.msra.mxu0 0.0
      %312 = vmatprep.subr.mxu0 0.0
      %313 = vmatpush2.msra.mxu0 0.0
      %314 = vmatprep.subr.mxu0 0.0
      %315 = vmatpush2.msra.mxu0 0.0
      %316 = vmatprep.subr.mxu0 0.0
      %317 = vmatpush2.msra.mxu0 0.0
      %318 = vmatprep.subr.mxu0 0.0
      %319 = vmatpush2.msra.mxu0 0.0
      %320 = vmatprep.subr.mxu0 0.0
      %321 = vmatpush2.msra.mxu0 0.0
      %322 = vmatprep.subr.mxu0 0.0
      %323 = vmatpush2.msra.mxu0 0.0
      %324 = vmatprep.subr.mxu0 0.0
      %325 = vmatpush2.msra.mxu0 0.0
      %326 = vmatprep.subr.mxu0 0.0
      %327 = vmatpush2.msra.mxu0 0.0
      %328 = vmatprep.subr.mxu0 0.0
      %329 = vmatpush2.msra.mxu0 0.0
      %330 = vmatprep.subr.mxu0 0.0
      %331 = vmatpush2.msra.mxu0 0.0
      %332 = vmatprep.subr.mxu0 0.0
      %333 = vmatpush2.msra.mxu0 0.0
      %334 = vmatprep.subr.mxu0 0.0
      %335 = vmatpush2.msra.mxu0 0.0
      %336 = vmatprep.subr.mxu0 0.0
      %337 = vmatpush2.msra.mxu0 0.0
      %338 = vmatprep.subr.mxu0 0.0
      %339 = vmatpush2.msra.mxu0 0.0
      %340 = vmatprep.mubr.f32.mxu0 0.0
      %341 = vmatmul.mubr.f32.gmra.mxu0 %v171
      %v342 = vpop.f32.mrf.mxu0
      %v343 = vadd.f32 %v273, %v342
      %v344 = vpop.f32.mrf.mxu0
      %345 = vdwg.mxu0
      %v346 = vld [vmem:[%s165 + $0x2] sm:$0x3f]
      %s347 = scalar_lea.vmem %s1, 256
      %v348 = vld [vmem:[%s347] sm:$0xff]
      %v349 = vld [vmem:[%s347 + $0x8] sm:$0xff]
      %v350 = vld [vmem:[%s347 + $0x10] sm:$0xff]
      %v351 = vld [vmem:[%s347 + $0x18] sm:$0xff]
      %v352 = vld [vmem:[%s347 + $0x20] sm:$0xff]
      %v353 = vld [vmem:[%s347 + $0x28] sm:$0xff]
      %v354 = vld [vmem:[%s347 + $0x30] sm:$0xff]
      %v355 = vld [vmem:[%s347 + $0x38] sm:$0xff]
      %v356 = vld [vmem:[%s347 + $0x40] sm:$0xff]
      %v357 = vld [vmem:[%s347 + $0x48] sm:$0xff]
      %v358 = vld [vmem:[%s347 + $0x50] sm:$0xff]
      %v359 = vld [vmem:[%s347 + $0x58] sm:$0xff]
      %v360 = vld [vmem:[%s347 + $0x60] sm:$0xff]
      %v361 = vld [vmem:[%s347 + $0x68] sm:$0xff]
      %v362 = vld [vmem:[%s347 + $0x70] sm:$0xff]
      %v363 = vld [vmem:[%s347 + $0x78] sm:$0xff]
      %364 = vmatprep.subr.mxu0 0.0
      %365 = vmatpush1.msra.mxu0 %v363
      %366 = vmatprep.subr.mxu0 0.0
      %367 = vmatpush1.msra.mxu0 %v362
      %368 = vmatprep.subr.mxu0 0.0
      %369 = vmatpush1.msra.mxu0 %v361
      %370 = vmatprep.subr.mxu0 0.0
      %371 = vmatpush1.msra.mxu0 %v360
      %372 = vmatprep.subr.mxu0 0.0
      %373 = vmatpush1.msra.mxu0 %v359
      %374 = vmatprep.subr.mxu0 0.0
      %375 = vmatpush1.msra.mxu0 %v358
      %376 = vmatprep.subr.mxu0 0.0
      %377 = vmatpush1.msra.mxu0 %v357
      %378 = vmatprep.subr.mxu0 0.0
      %379 = vmatpush1.msra.mxu0 %v356
      %380 = vmatprep.subr.mxu0 0.0
      %381 = vmatpush1.msra.mxu0 %v355
      %382 = vmatprep.subr.mxu0 0.0
      %383 = vmatpush1.msra.mxu0 %v354
      %384 = vmatprep.subr.mxu0 0.0
      %385 = vmatpush1.msra.mxu0 %v353
      %386 = vmatprep.subr.mxu0 0.0
      %387 = vmatpush1.msra.mxu0 %v352
      %388 = vmatprep.subr.mxu0 0.0
      %389 = vmatpush1.msra.mxu0 %v351
      %390 = vmatprep.subr.mxu0 0.0
      %391 = vmatpush1.msra.mxu0 %v350
      %392 = vmatprep.subr.mxu0 0.0
      %393 = vmatpush1.msra.mxu0 %v349
      %394 = vmatprep.subr.mxu0 0.0
      %395 = vmatpush1.msra.mxu0 %v348
      %396 = vmatprep.subr.mxu0 0.0
      %397 = vmatpush2.msra.mxu0 0.0
      %398 = vmatprep.subr.mxu0 0.0
      %399 = vmatpush2.msra.mxu0 0.0
      %400 = vmatprep.subr.mxu0 0.0
      %401 = vmatpush2.msra.mxu0 0.0
      %402 = vmatprep.subr.mxu0 0.0
      %403 = vmatpush2.msra.mxu0 0.0
      %404 = vmatprep.subr.mxu0 0.0
      %405 = vmatpush2.msra.mxu0 0.0
      %406 = vmatprep.subr.mxu0 0.0
      %407 = vmatpush2.msra.mxu0 0.0
      %408 = vmatprep.subr.mxu0 0.0
      %409 = vmatpush2.msra.mxu0 0.0
      %410 = vmatprep.subr.mxu0 0.0
      %411 = vmatpush2.msra.mxu0 0.0
      %412 = vmatprep.subr.mxu0 0.0
      %413 = vmatpush2.msra.mxu0 0.0
      %414 = vmatprep.subr.mxu0 0.0
      %415 = vmatpush2.msra.mxu0 0.0
      %416 = vmatprep.subr.mxu0 0.0
      %417 = vmatpush2.msra.mxu0 0.0
      %418 = vmatprep.subr.mxu0 0.0
      %419 = vmatpush2.msra.mxu0 0.0
      %420 = vmatprep.subr.mxu0 0.0
      %421 = vmatpush2.msra.mxu0 0.0
      %422 = vmatprep.subr.mxu0 0.0
      %423 = vmatpush2.msra.mxu0 0.0
      %424 = vmatprep.subr.mxu0 0.0
      %425 = vmatpush2.msra.mxu0 0.0
      %426 = vmatprep.subr.mxu0 0.0
      %427 = vmatpush2.msra.mxu0 0.0
      %428 = vmatprep.mubr.f32.mxu0 0.0
      %429 = vmatmul.mubr.f32.gmra.mxu0 %v346
      %v430 = vpop.f32.mrf.mxu0
      %v431 = vadd.f32 0.0, %v430
      %v432 = vpop.f32.mrf.mxu0
      %433 = vdwg.mxu0
      %v434 = vadd.f32 %v343, %v431
      %v435 = vld [vmem:[%s165 + $0x4] sm:$0x3f]
      %s436 = scalar_lea.vmem %s1, 384
      %v437 = vld [vmem:[%s436] sm:$0xff]
      %v438 = vld [vmem:[%s436 + $0x8] sm:$0xff]
      %v439 = vld [vmem:[%s436 + $0x10] sm:$0xff]
      %v440 = vld [vmem:[%s436 + $0x18] sm:$0xff]
      %v441 = vld [vmem:[%s436 + $0x20] sm:$0xff]
      %v442 = vld [vmem:[%s436 + $0x28] sm:$0xff]
      %v443 = vld [vmem:[%s436 + $0x30] sm:$0xff]
      %v444 = vld [vmem:[%s436 + $0x38] sm:$0xff]
      %v445 = vld [vmem:[%s436 + $0x40] sm:$0xff]
      %v446 = vld [vmem:[%s436 + $0x48] sm:$0xff]
      %v447 = vld [vmem:[%s436 + $0x50] sm:$0xff]
      %v448 = vld [vmem:[%s436 + $0x58] sm:$0xff]
      %v449 = vld [vmem:[%s436 + $0x60] sm:$0xff]
      %v450 = vld [vmem:[%s436 + $0x68] sm:$0xff]
      %v451 = vld [vmem:[%s436 + $0x70] sm:$0xff]
      %v452 = vld [vmem:[%s436 + $0x78] sm:$0xff]
      %453 = vmatprep.subr.mxu0 0.0
      %454 = vmatpush1.msra.mxu0 %v452
      %455 = vmatprep.subr.mxu0 0.0
      %456 = vmatpush1.msra.mxu0 %v451
      %457 = vmatprep.subr.mxu0 0.0
      %458 = vmatpush1.msra.mxu0 %v450
      %459 = vmatprep.subr.mxu0 0.0
      %460 = vmatpush1.msra.mxu0 %v449
      %461 = vmatprep.subr.mxu0 0.0
      %462 = vmatpush1.msra.mxu0 %v448
      %463 = vmatprep.subr.mxu0 0.0
      %464 = vmatpush1.msra.mxu0 %v447
      %465 = vmatprep.subr.mxu0 0.0
      %466 = vmatpush1.msra.mxu0 %v446
      %467 = vmatprep.subr.mxu0 0.0
      %468 = vmatpush1.msra.mxu0 %v445
      %469 = vmatprep.subr.mxu0 0.0
      %470 = vmatpush1.msra.mxu0 %v444
      %471 = vmatprep.subr.mxu0 0.0
      %472 = vmatpush1.msra.mxu0 %v443
      %473 = vmatprep.subr.mxu0 0.0
      %474 = vmatpush1.msra.mxu0 %v442
      %475 = vmatprep.subr.mxu0 0.0
      %476 = vmatpush1.msra.mxu0 %v441
      %477 = vmatprep.subr.mxu0 0.0
      %478 = vmatpush1.msra.mxu0 %v440
      %479 = vmatprep.subr.mxu0 0.0
      %480 = vmatpush1.msra.mxu0 %v439
      %481 = vmatprep.subr.mxu0 0.0
      %482 = vmatpush1.msra.mxu0 %v438
      %483 = vmatprep.subr.mxu0 0.0
      %484 = vmatpush1.msra.mxu0 %v437
      %485 = vmatprep.subr.mxu0 0.0
      %486 = vmatpush2.msra.mxu0 0.0
      %487 = vmatprep.subr.mxu0 0.0
      %488 = vmatpush2.msra.mxu0 0.0
      %489 = vmatprep.subr.mxu0 0.0
      %490 = vmatpush2.msra.mxu0 0.0
      %491 = vmatprep.subr.mxu0 0.0
      %492 = vmatpush2.msra.mxu0 0.0
      %493 = vmatprep.subr.mxu0 0.0
      %494 = vmatpush2.msra.mxu0 0.0
      %495 = vmatprep.subr.mxu0 0.0
      %496 = vmatpush2.msra.mxu0 0.0
      %497 = vmatprep.subr.mxu0 0.0
      %498 = vmatpush2.msra.mxu0 0.0
      %499 = vmatprep.subr.mxu0 0.0
      %500 = vmatpush2.msra.mxu0 0.0
      %501 = vmatprep.subr.mxu0 0.0
      %502 = vmatpush2.msra.mxu0 0.0
      %503 = vmatprep.subr.mxu0 0.0
      %504 = vmatpush2.msra.mxu0 0.0
      %505 = vmatprep.subr.mxu0 0.0
      %506 = vmatpush2.msra.mxu0 0.0
      %507 = vmatprep.subr.mxu0 0.0
      %508 = vmatpush2.msra.mxu0 0.0
      %509 = vmatprep.subr.mxu0 0.0
      %510 = vmatpush2.msra.mxu0 0.0
      %511 = vmatprep.subr.mxu0 0.0
      %512 = vmatpush2.msra.mxu0 0.0
      %513 = vmatprep.subr.mxu0 0.0
      %514 = vmatpush2.msra.mxu0 0.0
      %515 = vmatprep.subr.mxu0 0.0
      %516 = vmatpush2.msra.mxu0 0.0
      %517 = vmatprep.mubr.f32.mxu0 0.0
      %518 = vmatmul.mubr.f32.gmra.mxu0 %v435
      %v519 = vpop.f32.mrf.mxu0
      %v520 = vadd.f32 0.0, %v519
      %v521 = vpop.f32.mrf.mxu0
      %522 = vdwg.mxu0
      %v523 = vadd.f32 %v434, %v520
      %v524 = vld [vmem:[%s165 + $0x5] sm:$0x3f]
      %s525 = scalar_lea.vmem %s1, 512
      %v526 = vld [vmem:[%s525] sm:$0xff]
      %v527 = vld [vmem:[%s525 + $0x8] sm:$0xff]
      %v528 = vld [vmem:[%s525 + $0x10] sm:$0xff]
      %v529 = vld [vmem:[%s525 + $0x18] sm:$0xff]
      %v530 = vld [vmem:[%s525 + $0x20] sm:$0xff]
      %v531 = vld [vmem:[%s525 + $0x28] sm:$0xff]
      %v532 = vld [vmem:[%s525 + $0x30] sm:$0xff]
      %v533 = vld [vmem:[%s525 + $0x38] sm:$0xff]
      %v534 = vld [vmem:[%s525 + $0x40] sm:$0xff]
      %v535 = vld [vmem:[%s525 + $0x48] sm:$0xff]
      %v536 = vld [vmem:[%s525 + $0x50] sm:$0xff]
      %v537 = vld [vmem:[%s525 + $0x58] sm:$0xff]
      %v538 = vld [vmem:[%s525 + $0x60] sm:$0xff]
      %v539 = vld [vmem:[%s525 + $0x68] sm:$0xff]
      %v540 = vld [vmem:[%s525 + $0x70] sm:$0xff]
      %v541 = vld [vmem:[%s525 + $0x78] sm:$0xff]
      %542 = vmatprep.subr.mxu0 0.0
      %543 = vmatpush1.msra.mxu0 %v541
      %544 = vmatprep.subr.mxu0 0.0
      %545 = vmatpush1.msra.mxu0 %v540
      %546 = vmatprep.subr.mxu0 0.0
      %547 = vmatpush1.msra.mxu0 %v539
      %548 = vmatprep.subr.mxu0 0.0
      %549 = vmatpush1.msra.mxu0 %v538
      %550 = vmatprep.subr.mxu0 0.0
      %551 = vmatpush1.msra.mxu0 %v537
      %552 = vmatprep.subr.mxu0 0.0
      %553 = vmatpush1.msra.mxu0 %v536
      %554 = vmatprep.subr.mxu0 0.0
      %555 = vmatpush1.msra.mxu0 %v535
      %556 = vmatprep.subr.mxu0 0.0
      %557 = vmatpush1.msra.mxu0 %v534
      %558 = vmatprep.subr.mxu0 0.0
      %559 = vmatpush1.msra.mxu0 %v533
      %560 = vmatprep.subr.mxu0 0.0
      %561 = vmatpush1.msra.mxu0 %v532
      %562 = vmatprep.subr.mxu0 0.0
      %563 = vmatpush1.msra.mxu0 %v531
      %564 = vmatprep.subr.mxu0 0.0
      %565 = vmatpush1.msra.mxu0 %v530
      %566 = vmatprep.subr.mxu0 0.0
      %567 = vmatpush1.msra.mxu0 %v529
      %568 = vmatprep.subr.mxu0 0.0
      %569 = vmatpush1.msra.mxu0 %v528
      %570 = vmatprep.subr.mxu0 0.0
      %571 = vmatpush1.msra.mxu0 %v527
      %572 = vmatprep.subr.mxu0 0.0
      %573 = vmatpush1.msra.mxu0 %v526
      %574 = vmatprep.subr.mxu0 0.0
      %575 = vmatpush2.msra.mxu0 0.0
      %576 = vmatprep.subr.mxu0 0.0
      %577 = vmatpush2.msra.mxu0 0.0
      %578 = vmatprep.subr.mxu0 0.0
      %579 = vmatpush2.msra.mxu0 0.0
      %580 = vmatprep.subr.mxu0 0.0
      %581 = vmatpush2.msra.mxu0 0.0
      %582 = vmatprep.subr.mxu0 0.0
      %583 = vmatpush2.msra.mxu0 0.0
      %584 = vmatprep.subr.mxu0 0.0
      %585 = vmatpush2.msra.mxu0 0.0
      %586 = vmatprep.subr.mxu0 0.0
      %587 = vmatpush2.msra.mxu0 0.0
      %588 = vmatprep.subr.mxu0 0.0
      %589 = vmatpush2.msra.mxu0 0.0
      %590 = vmatprep.subr.mxu0 0.0
      %591 = vmatpush2.msra.mxu0 0.0
      %592 = vmatprep.subr.mxu0 0.0
      %593 = vmatpush2.msra.mxu0 0.0
      %594 = vmatprep.subr.mxu0 0.0
      %595 = vmatpush2.msra.mxu0 0.0
      %596 = vmatprep.subr.mxu0 0.0
      %597 = vmatpush2.msra.mxu0 0.0
      %598 = vmatprep.subr.mxu0 0.0
      %599 = vmatpush2.msra.mxu0 0.0
      %600 = vmatprep.subr.mxu0 0.0
      %601 = vmatpush2.msra.mxu0 0.0
      %602 = vmatprep.subr.mxu0 0.0
      %603 = vmatpush2.msra.mxu0 0.0
      %604 = vmatprep.subr.mxu0 0.0
      %605 = vmatpush2.msra.mxu0 0.0
      %606 = vmatprep.mubr.f32.mxu0 0.0
      %607 = vmatmul.mubr.f32.gmra.mxu0 %v524
      %v608 = vpop.f32.mrf.mxu0
      %v609 = vadd.f32 0.0, %v608
      %v610 = vpop.f32.mrf.mxu0
      %611 = vdwg.mxu0
      %v612 = vadd.f32 %v523, %v609
      %v613 = vld [vmem:[%s165 + $0x6] sm:$0x3f]
      %s614 = scalar_lea.vmem %s1, 640
      %v615 = vld [vmem:[%s614] sm:$0xff]
      %v616 = vld [vmem:[%s614 + $0x8] sm:$0xff]
      %v617 = vld [vmem:[%s614 + $0x10] sm:$0xff]
      %v618 = vld [vmem:[%s614 + $0x18] sm:$0xff]
      %v619 = vld [vmem:[%s614 + $0x20] sm:$0xff]
      %v620 = vld [vmem:[%s614 + $0x28] sm:$0xff]
      %v621 = vld [vmem:[%s614 + $0x30] sm:$0xff]
      %v622 = vld [vmem:[%s614 + $0x38] sm:$0xff]
      %v623 = vld [vmem:[%s614 + $0x40] sm:$0xff]
      %v624 = vld [vmem:[%s614 + $0x48] sm:$0xff]
      %v625 = vld [vmem:[%s614 + $0x50] sm:$0xff]
      %v626 = vld [vmem:[%s614 + $0x58] sm:$0xff]
      %v627 = vld [vmem:[%s614 + $0x60] sm:$0xff]
      %v628 = vld [vmem:[%s614 + $0x68] sm:$0xff]
      %v629 = vld [vmem:[%s614 + $0x70] sm:$0xff]
      %v630 = vld [vmem:[%s614 + $0x78] sm:$0xff]
      %631 = vmatprep.subr.mxu0 0.0
      %632 = vmatpush1.msra.mxu0 %v630
      %633 = vmatprep.subr.mxu0 0.0
      %634 = vmatpush1.msra.mxu0 %v629
      %635 = vmatprep.subr.mxu0 0.0
      %636 = vmatpush1.msra.mxu0 %v628
      %637 = vmatprep.subr.mxu0 0.0
      %638 = vmatpush1.msra.mxu0 %v627
      %639 = vmatprep.subr.mxu0 0.0
      %640 = vmatpush1.msra.mxu0 %v626
      %641 = vmatprep.subr.mxu0 0.0
      %642 = vmatpush1.msra.mxu0 %v625
      %643 = vmatprep.subr.mxu0 0.0
      %644 = vmatpush1.msra.mxu0 %v624
      %645 = vmatprep.subr.mxu0 0.0
      %646 = vmatpush1.msra.mxu0 %v623
      %647 = vmatprep.subr.mxu0 0.0
      %648 = vmatpush1.msra.mxu0 %v622
      %649 = vmatprep.subr.mxu0 0.0
      %650 = vmatpush1.msra.mxu0 %v621
      %651 = vmatprep.subr.mxu0 0.0
      %652 = vmatpush1.msra.mxu0 %v620
      %653 = vmatprep.subr.mxu0 0.0
      %654 = vmatpush1.msra.mxu0 %v619
      %655 = vmatprep.subr.mxu0 0.0
      %656 = vmatpush1.msra.mxu0 %v618
      %657 = vmatprep.subr.mxu0 0.0
      %658 = vmatpush1.msra.mxu0 %v617
      %659 = vmatprep.subr.mxu0 0.0
      %660 = vmatpush1.msra.mxu0 %v616
      %661 = vmatprep.subr.mxu0 0.0
      %662 = vmatpush1.msra.mxu0 %v615
      %663 = vmatprep.subr.mxu0 0.0
      %664 = vmatpush2.msra.mxu0 0.0
      %665 = vmatprep.subr.mxu0 0.0
      %666 = vmatpush2.msra.mxu0 0.0
      %667 = vmatprep.subr.mxu0 0.0
      %668 = vmatpush2.msra.mxu0 0.0
      %669 = vmatprep.subr.mxu0 0.0
      %670 = vmatpush2.msra.mxu0 0.0
      %671 = vmatprep.subr.mxu0 0.0
      %672 = vmatpush2.msra.mxu0 0.0
      %673 = vmatprep.subr.mxu0 0.0
      %674 = vmatpush2.msra.mxu0 0.0
      %675 = vmatprep.subr.mxu0 0.0
      %676 = vmatpush2.msra.mxu0 0.0
      %677 = vmatprep.subr.mxu0 0.0
      %678 = vmatpush2.msra.mxu0 0.0
      %679 = vmatprep.subr.mxu0 0.0
      %680 = vmatpush2.msra.mxu0 0.0
      %681 = vmatprep.subr.mxu0 0.0
      %682 = vmatpush2.msra.mxu0 0.0
      %683 = vmatprep.subr.mxu0 0.0
      %684 = vmatpush2.msra.mxu0 0.0
      %685 = vmatprep.subr.mxu0 0.0
      %686 = vmatpush2.msra.mxu0 0.0
      %687 = vmatprep.subr.mxu0 0.0
      %688 = vmatpush2.msra.mxu0 0.0
      %689 = vmatprep.subr.mxu0 0.0
      %690 = vmatpush2.msra.mxu0 0.0
      %691 = vmatprep.subr.mxu0 0.0
      %692 = vmatpush2.msra.mxu0 0.0
      %693 = vmatprep.subr.mxu0 0.0
      %694 = vmatpush2.msra.mxu0 0.0
      %695 = vmatprep.mubr.f32.mxu0 0.0
      %696 = vmatmul.mubr.f32.gmra.mxu0 %v613
      %v697 = vpop.f32.mrf.mxu0
      %v698 = vadd.f32 0.0, %v697
      %v699 = vpop.f32.mrf.mxu0
      %700 = vdwg.mxu0
      %v701 = vadd.f32 %v612, %v698
      %v702 = vld [vmem:[%s165 + $0x8] sm:$0x3f]
      %s703 = scalar_lea.vmem %s1, 768
      %v704 = vld [vmem:[%s703] sm:$0xff]
      %v705 = vld [vmem:[%s703 + $0x8] sm:$0xff]
      %v706 = vld [vmem:[%s703 + $0x10] sm:$0xff]
      %v707 = vld [vmem:[%s703 + $0x18] sm:$0xff]
      %v708 = vld [vmem:[%s703 + $0x20] sm:$0xff]
      %v709 = vld [vmem:[%s703 + $0x28] sm:$0xff]
      %v710 = vld [vmem:[%s703 + $0x30] sm:$0xff]
      %v711 = vld [vmem:[%s703 + $0x38] sm:$0xff]
      %v712 = vld [vmem:[%s703 + $0x40] sm:$0xff]
      %v713 = vld [vmem:[%s703 + $0x48] sm:$0xff]
      %v714 = vld [vmem:[%s703 + $0x50] sm:$0xff]
      %v715 = vld [vmem:[%s703 + $0x58] sm:$0xff]
      %v716 = vld [vmem:[%s703 + $0x60] sm:$0xff]
      %v717 = vld [vmem:[%s703 + $0x68] sm:$0xff]
      %v718 = vld [vmem:[%s703 + $0x70] sm:$0xff]
      %v719 = vld [vmem:[%s703 + $0x78] sm:$0xff]
      %720 = vmatprep.subr.mxu0 0.0
      %721 = vmatpush1.msra.mxu0 %v719
      %722 = vmatprep.subr.mxu0 0.0
      %723 = vmatpush1.msra.mxu0 %v718
      %724 = vmatprep.subr.mxu0 0.0
      %725 = vmatpush1.msra.mxu0 %v717
      %726 = vmatprep.subr.mxu0 0.0
      %727 = vmatpush1.msra.mxu0 %v716
      %728 = vmatprep.subr.mxu0 0.0
      %729 = vmatpush1.msra.mxu0 %v715
      %730 = vmatprep.subr.mxu0 0.0
      %731 = vmatpush1.msra.mxu0 %v714
      %732 = vmatprep.subr.mxu0 0.0
      %733 = vmatpush1.msra.mxu0 %v713
      %734 = vmatprep.subr.mxu0 0.0
      %735 = vmatpush1.msra.mxu0 %v712
      %736 = vmatprep.subr.mxu0 0.0
      %737 = vmatpush1.msra.mxu0 %v711
      %738 = vmatprep.subr.mxu0 0.0
      %739 = vmatpush1.msra.mxu0 %v710
      %740 = vmatprep.subr.mxu0 0.0
      %741 = vmatpush1.msra.mxu0 %v709
      %742 = vmatprep.subr.mxu0 0.0
      %743 = vmatpush1.msra.mxu0 %v708
      %744 = vmatprep.subr.mxu0 0.0
      %745 = vmatpush1.msra.mxu0 %v707
      %746 = vmatprep.subr.mxu0 0.0
      %747 = vmatpush1.msra.mxu0 %v706
      %748 = vmatprep.subr.mxu0 0.0
      %749 = vmatpush1.msra.mxu0 %v705
      %750 = vmatprep.subr.mxu0 0.0
      %751 = vmatpush1.msra.mxu0 %v704
      %752 = vmatprep.subr.mxu0 0.0
      %753 = vmatpush2.msra.mxu0 0.0
      %754 = vmatprep.subr.mxu0 0.0
      %755 = vmatpush2.msra.mxu0 0.0
      %756 = vmatprep.subr.mxu0 0.0
      %757 = vmatpush2.msra.mxu0 0.0
      %758 = vmatprep.subr.mxu0 0.0
      %759 = vmatpush2.msra.mxu0 0.0
      %760 = vmatprep.subr.mxu0 0.0
      %761 = vmatpush2.msra.mxu0 0.0
      %762 = vmatprep.subr.mxu0 0.0
      %763 = vmatpush2.msra.mxu0 0.0
      %764 = vmatprep.subr.mxu0 0.0
      %765 = vmatpush2.msra.mxu0 0.0
      %766 = vmatprep.subr.mxu0 0.0
      %767 = vmatpush2.msra.mxu0 0.0
      %768 = vmatprep.subr.mxu0 0.0
      %769 = vmatpush2.msra.mxu0 0.0
      %770 = vmatprep.subr.mxu0 0.0
      %771 = vmatpush2.msra.mxu0 0.0
      %772 = vmatprep.subr.mxu0 0.0
      %773 = vmatpush2.msra.mxu0 0.0
      %774 = vmatprep.subr.mxu0 0.0
      %775 = vmatpush2.msra.mxu0 0.0
      %776 = vmatprep.subr.mxu0 0.0
      %777 = vmatpush2.msra.mxu0 0.0
      %778 = vmatprep.subr.mxu0 0.0
      %779 = vmatpush2.msra.mxu0 0.0
      %780 = vmatprep.subr.mxu0 0.0
      %781 = vmatpush2.msra.mxu0 0.0
      %782 = vmatprep.subr.mxu0 0.0
      %783 = vmatpush2.msra.mxu0 0.0
      %784 = vmatprep.mubr.f32.mxu0 0.0
      %785 = vmatmul.mubr.f32.gmra.mxu0 %v702
      %v786 = vpop.f32.mrf.mxu0
      %v787 = vadd.f32 0.0, %v786
      %v788 = vpop.f32.mrf.mxu0
      %789 = vdwg.mxu0
      %v790 = vadd.f32 %v701, %v787
      %v791 = vld [vmem:[%s165 + $0x9] sm:$0x3f]
      %s792 = scalar_lea.vmem %s1, 896
      %v793 = vld [vmem:[%s792] sm:$0xff]
      %v794 = vld [vmem:[%s792 + $0x8] sm:$0xff]
      %v795 = vld [vmem:[%s792 + $0x10] sm:$0xff]
      %v796 = vld [vmem:[%s792 + $0x18] sm:$0xff]
      %v797 = vld [vmem:[%s792 + $0x20] sm:$0xff]
      %v798 = vld [vmem:[%s792 + $0x28] sm:$0xff]
      %v799 = vld [vmem:[%s792 + $0x30] sm:$0xff]
      %v800 = vld [vmem:[%s792 + $0x38] sm:$0xff]
      %v801 = vld [vmem:[%s792 + $0x40] sm:$0xff]
      %v802 = vld [vmem:[%s792 + $0x48] sm:$0xff]
      %v803 = vld [vmem:[%s792 + $0x50] sm:$0xff]
      %v804 = vld [vmem:[%s792 + $0x58] sm:$0xff]
      %v805 = vld [vmem:[%s792 + $0x60] sm:$0xff]
      %v806 = vld [vmem:[%s792 + $0x68] sm:$0xff]
      %v807 = vld [vmem:[%s792 + $0x70] sm:$0xff]
      %v808 = vld [vmem:[%s792 + $0x78] sm:$0xff]
      %809 = vmatprep.subr.mxu0 0.0
      %810 = vmatpush1.msra.mxu0 %v808
      %811 = vmatprep.subr.mxu0 0.0
      %812 = vmatpush1.msra.mxu0 %v807
      %813 = vmatprep.subr.mxu0 0.0
      %814 = vmatpush1.msra.mxu0 %v806
      %815 = vmatprep.subr.mxu0 0.0
      %816 = vmatpush1.msra.mxu0 %v805
      %817 = vmatprep.subr.mxu0 0.0
      %818 = vmatpush1.msra.mxu0 %v804
      %819 = vmatprep.subr.mxu0 0.0
      %820 = vmatpush1.msra.mxu0 %v803
      %821 = vmatprep.subr.mxu0 0.0
      %822 = vmatpush1.msra.mxu0 %v802
      %823 = vmatprep.subr.mxu0 0.0
      %824 = vmatpush1.msra.mxu0 %v801
      %825 = vmatprep.subr.mxu0 0.0
      %826 = vmatpush1.msra.mxu0 %v800
      %827 = vmatprep.subr.mxu0 0.0
      %828 = vmatpush1.msra.mxu0 %v799
      %829 = vmatprep.subr.mxu0 0.0
      %830 = vmatpush1.msra.mxu0 %v798
      %831 = vmatprep.subr.mxu0 0.0
      %832 = vmatpush1.msra.mxu0 %v797
      %833 = vmatprep.subr.mxu0 0.0
      %834 = vmatpush1.msra.mxu0 %v796
      %835 = vmatprep.subr.mxu0 0.0
      %836 = vmatpush1.msra.mxu0 %v795
      %837 = vmatprep.subr.mxu0 0.0
      %838 = vmatpush1.msra.mxu0 %v794
      %839 = vmatprep.subr.mxu0 0.0
      %840 = vmatpush1.msra.mxu0 %v793
      %841 = vmatprep.subr.mxu0 0.0
      %842 = vmatpush2.msra.mxu0 0.0
      %843 = vmatprep.subr.mxu0 0.0
      %844 = vmatpush2.msra.mxu0 0.0
      %845 = vmatprep.subr.mxu0 0.0
      %846 = vmatpush2.msra.mxu0 0.0
      %847 = vmatprep.subr.mxu0 0.0
      %848 = vmatpush2.msra.mxu0 0.0
      %849 = vmatprep.subr.mxu0 0.0
      %850 = vmatpush2.msra.mxu0 0.0
      %851 = vmatprep.subr.mxu0 0.0
      %852 = vmatpush2.msra.mxu0 0.0
      %853 = vmatprep.subr.mxu0 0.0
      %854 = vmatpush2.msra.mxu0 0.0
      %855 = vmatprep.subr.mxu0 0.0
      %856 = vmatpush2.msra.mxu0 0.0
      %857 = vmatprep.subr.mxu0 0.0
      %858 = vmatpush2.msra.mxu0 0.0
      %859 = vmatprep.subr.mxu0 0.0
      %860 = vmatpush2.msra.mxu0 0.0
      %861 = vmatprep.subr.mxu0 0.0
      %862 = vmatpush2.msra.mxu0 0.0
      %863 = vmatprep.subr.mxu0 0.0
      %864 = vmatpush2.msra.mxu0 0.0
      %865 = vmatprep.subr.mxu0 0.0
      %866 = vmatpush2.msra.mxu0 0.0
      %867 = vmatprep.subr.mxu0 0.0
      %868 = vmatpush2.msra.mxu0 0.0
      %869 = vmatprep.subr.mxu0 0.0
      %870 = vmatpush2.msra.mxu0 0.0
      %871 = vmatprep.subr.mxu0 0.0
      %872 = vmatpush2.msra.mxu0 0.0
      %873 = vmatprep.mubr.f32.mxu0 0.0
      %874 = vmatmul.mubr.f32.gmra.mxu0 %v791
      %v875 = vpop.f32.mrf.mxu0
      %v876 = vadd.f32 0.0, %v875
      %v877 = vpop.f32.mrf.mxu0
      %878 = vdwg.mxu0
      %v879 = vadd.f32 %v790, %v876
      %v880 = vld [vmem:[%s165 + $0xa] sm:$0x3f]
      %s881 = scalar_lea.vmem %s1, 1024
      %v882 = vld [vmem:[%s881] sm:$0xff]
      %v883 = vld [vmem:[%s881 + $0x8] sm:$0xff]
      %v884 = vld [vmem:[%s881 + $0x10] sm:$0xff]
      %v885 = vld [vmem:[%s881 + $0x18] sm:$0xff]
      %v886 = vld [vmem:[%s881 + $0x20] sm:$0xff]
      %v887 = vld [vmem:[%s881 + $0x28] sm:$0xff]
      %v888 = vld [vmem:[%s881 + $0x30] sm:$0xff]
      %v889 = vld [vmem:[%s881 + $0x38] sm:$0xff]
      %v890 = vld [vmem:[%s881 + $0x40] sm:$0xff]
      %v891 = vld [vmem:[%s881 + $0x48] sm:$0xff]
      %v892 = vld [vmem:[%s881 + $0x50] sm:$0xff]
      %v893 = vld [vmem:[%s881 + $0x58] sm:$0xff]
      %v894 = vld [vmem:[%s881 + $0x60] sm:$0xff]
      %v895 = vld [vmem:[%s881 + $0x68] sm:$0xff]
      %v896 = vld [vmem:[%s881 + $0x70] sm:$0xff]
      %v897 = vld [vmem:[%s881 + $0x78] sm:$0xff]
      %898 = vmatprep.subr.mxu0 0.0
      %899 = vmatpush1.msra.mxu0 %v897
      %900 = vmatprep.subr.mxu0 0.0
      %901 = vmatpush1.msra.mxu0 %v896
      %902 = vmatprep.subr.mxu0 0.0
      %903 = vmatpush1.msra.mxu0 %v895
      %904 = vmatprep.subr.mxu0 0.0
      %905 = vmatpush1.msra.mxu0 %v894
      %906 = vmatprep.subr.mxu0 0.0
      %907 = vmatpush1.msra.mxu0 %v893
      %908 = vmatprep.subr.mxu0 0.0
      %909 = vmatpush1.msra.mxu0 %v892
      %910 = vmatprep.subr.mxu0 0.0
      %911 = vmatpush1.msra.mxu0 %v891
      %912 = vmatprep.subr.mxu0 0.0
      %913 = vmatpush1.msra.mxu0 %v890
      %914 = vmatprep.subr.mxu0 0.0
      %915 = vmatpush1.msra.mxu0 %v889
      %916 = vmatprep.subr.mxu0 0.0
      %917 = vmatpush1.msra.mxu0 %v888
      %918 = vmatprep.subr.mxu0 0.0
      %919 = vmatpush1.msra.mxu0 %v887
      %920 = vmatprep.subr.mxu0 0.0
      %921 = vmatpush1.msra.mxu0 %v886
      %922 = vmatprep.subr.mxu0 0.0
      %923 = vmatpush1.msra.mxu0 %v885
      %924 = vmatprep.subr.mxu0 0.0
      %925 = vmatpush1.msra.mxu0 %v884
      %926 = vmatprep.subr.mxu0 0.0
      %927 = vmatpush1.msra.mxu0 %v883
      %928 = vmatprep.subr.mxu0 0.0
      %929 = vmatpush1.msra.mxu0 %v882
      %930 = vmatprep.subr.mxu0 0.0
      %931 = vmatpush2.msra.mxu0 0.0
      %932 = vmatprep.subr.mxu0 0.0
      %933 = vmatpush2.msra.mxu0 0.0
      %934 = vmatprep.subr.mxu0 0.0
      %935 = vmatpush2.msra.mxu0 0.0
      %936 = vmatprep.subr.mxu0 0.0
      %937 = vmatpush2.msra.mxu0 0.0
      %938 = vmatprep.subr.mxu0 0.0
      %939 = vmatpush2.msra.mxu0 0.0
      %940 = vmatprep.subr.mxu0 0.0
      %941 = vmatpush2.msra.mxu0 0.0
      %942 = vmatprep.subr.mxu0 0.0
      %943 = vmatpush2.msra.mxu0 0.0
      %944 = vmatprep.subr.mxu0 0.0
      %945 = vmatpush2.msra.mxu0 0.0
      %946 = vmatprep.subr.mxu0 0.0
      %947 = vmatpush2.msra.mxu0 0.0
      %948 = vmatprep.subr.mxu0 0.0
      %949 = vmatpush2.msra.mxu0 0.0
      %950 = vmatprep.subr.mxu0 0.0
      %951 = vmatpush2.msra.mxu0 0.0
      %952 = vmatprep.subr.mxu0 0.0
      %953 = vmatpush2.msra.mxu0 0.0
      %954 = vmatprep.subr.mxu0 0.0
      %955 = vmatpush2.msra.mxu0 0.0
      %956 = vmatprep.subr.mxu0 0.0
      %957 = vmatpush2.msra.mxu0 0.0
      %958 = vmatprep.subr.mxu0 0.0
      %959 = vmatpush2.msra.mxu0 0.0
      %960 = vmatprep.subr.mxu0 0.0
      %961 = vmatpush2.msra.mxu0 0.0
      %962 = vmatprep.mubr.f32.mxu0 0.0
      %963 = vmatmul.mubr.f32.gmra.mxu0 %v880
      %v964 = vpop.f32.mrf.mxu0
      %v965 = vadd.f32 0.0, %v964
      %v966 = vpop.f32.mrf.mxu0
      %967 = vdwg.mxu0
      %v968 = vadd.f32 %v879, %v965
      %v969 = vld [vmem:[%s2] sm:$0x1]
      %v971 = vlaneseq
      %v972 = vshrl.u32 %v971, 7
      %v973 = vsub.s32 0, %v972
      %v974 = vrot.slane %v969, %v973
      %v976 = vadd.f32 %v968, %v974
      %v977 = vmax.f32 %v976, 0.0
      %978 = vst [vmem:[%s170] sm:$0x3f] %v977
      %979 = vst [vmem:[%s170 + $0x6] sm:$0xff] 0.0
      %980 = vst [vmem:[%s170 + $0xe] sm:$0x3] 0.0
      %p981 = scmp.lt.s32.totalorder %s14, 1
      %s982 = scalar_select %p981, %s14, 1
      %s983 = smul.addr %s982, 2
      %s984 = smul.addr %s983, 8
      %s985 = scalar_lea.vmem %s3, %s984
      // Predicated region
      $region33: #{attention_cnn_forward.9} parent=31 // pred_check
        %p986 = pneg %p100
      $region34: #{attention_cnn_forward.9} parent=31 // pred_check_branch
        %988 = sbr.rel (%p986) target = $region36
      $region35: #{attention_cnn_forward.9} parent=31 // pred_region
        _
      $region36: #{attention_cnn_forward.9} parent=31 // pred_fallthru
        _
    $region32: #{attention_cnn_forward.9} parent=5 // pred_fallthru
      _
    %p989 = scmp.le.s32.totalorder 2, %s9
    // Predicated region
    $region37: #{attention_cnn_forward.9} parent=5 // pred_check
      %p990 = pneg %p989
    $region38: #{attention_cnn_forward.9} parent=5 // pred_check_branch
      %992 = sbr.rel (%p990) target = $region40
    $region39: #{attention_cnn_forward.9} parent=5 // pred_region
      %s993 = ssub.s32 %s9, 2
      // Predicated region
      $region41: #{attention_cnn_forward.9} parent=39 // pred_check
        %p994 = pneg %p106
      $region42: #{attention_cnn_forward.9} parent=39 // pred_check_branch
        %996 = sbr.rel (%p994) target = $region44
      $region43: #{attention_cnn_forward.9} parent=39 // pred_region
        %p997 = scmp.lt.s32.totalorder %s15, 1
        %s998 = scalar_select %p997, %s15, 1
        %s999 = smul.addr %s998, 2
        %s1000 = smul.addr %s999, 8
        %s1001 = scalar_lea.vmem %s3, %s1000
      $region44: #{attention_cnn_forward.9} parent=39 // pred_fallthru
        _
    $region40: #{attention_cnn_forward.9} parent=5 // pred_fallthru
      _
  $region6: #{attention_cnn_forward.9} parent=0 // loop_footer
    %s13 = sadd.s32 1, %s9
  $region7: #{attention_cnn_forward.9} parent=0 // loop_footer_branch
    %8 = sbr.rel target = $region3
  $region8: #{attention_cnn_forward.9} parent=0 // loop_exit
    _

// kernel: attention_cnn_forward.7
$region0: #{attention_cnn_forward.7}
  #allocation0 [shape = 'u32[]', space=smem, size = 0x4, offset = 0x4, fixed_abs, tag = 'smem constant byte address 0x4 - core index']
  #allocation1 [shape = 'u32[144,128]{1,0:T(1,128)}', space=vmem, size = 0x12000, scoped, tag = 'internal scratch']
  #allocation2 [shape = 'f32[78,128]{1,0:T(8,128)}', space=vmem, size = 0xa000, scoped, tag = 'scratch operand']
  %s0 = inlined_call_operand.vmem [shape: f32[2,100,128], index: 0, kind: input, shape index: {}]
  %s1 = inlined_call_operand.vmem [shape: f32[3,3,128,128], index: 1, kind: input, shape index: {}]
  %s2 = inlined_call_operand.vmem [shape: f32[1,128], index: 2, kind: input, shape index: {}]
  %s3 = inlined_call_operand.vmem [shape: f32[2,4,4,128], index: 3, kind: output, shape index: {}]
  %s4 = sld [smem:[#allocation0]]
  $region45: #{attention_cnn_forward.7} parent=0
    _
  %s6 = ssub.s32 1, %s4
  %s7 = scalar_select 0, %s6, %s4
  loop: start=0, step=1, limit=4
  $region2: #{attention_cnn_forward.7} parent=0 // loop_pre_header
    _
  $region3: #{attention_cnn_forward.7} parent=0 // loop_header
    %s9 = sphi 0, %s13
    %p10 = scmp.ge.s32.totalorder %s9, 4
    %s19 = sphi 0, %s21
    %s22 = sphi 0, %s19
    %s23 = sphi 0, %s22
    %s39 = sphi 0, %s23
    %s43 = sphi 0, %s43
    %s45 = sphi 0, %s43
    %s46 = sphi 0, %s45
    %s60 = sphi 0, %s46
    %s64 = sphi 0, %s64
    %s66 = sphi 0, %s64
    %s67 = sphi 0, %s66
    %s81 = sphi 0, %s67
    %s87 = sphi 0, %s89
    %s90 = sphi 0, %s87
    %s91 = sphi 0, %s90
    %s107 = sphi 0, %s91
  $region4: #{attention_cnn_forward.7} parent=0 // loop_header_branch
    %12 = sbr.rel (%p10) target = $region8
  $region5: #{attention_cnn_forward.7} parent=0 // loop_body
    %s14 = ssub.s32 %s9, 1
    %s15 = ssub.s32 %s9, 2
    %s16 = sadd.s32 %s9, 1
    %s17 = ssub.s32 %s9, %s16
    %p18 = scmp.eq.s32.totalorder %s17, 0
    %s20 = sadd.s32 %s19, 1
    %s21 = scalar_select %p18, %s19, %s20
    %p24 = pneg %p18
    %p25 = scmp.eq.s32.totalorder %s9, 1
    %p26 = por %p24, %p25
    %p27 = scmp.ne.s32.totalorder %s19, %s22
    %p28 = scmp.eq.s32.totalorder %s9, 0
    %p29 = por %p27, %p28
    %p30 = scmp.ne.s32.totalorder %s19, %s22
    %p31 = scmp.eq.s32.totalorder %s14, 1
    %p32 = por %p30, %p31
    %p33 = scmp.ne.s32.totalorder %s22, %s23
    %p34 = scmp.eq.s32.totalorder %s14, 0
    %p35 = por %p33, %p34
    %p36 = scmp.ne.s32.totalorder %s22, %s23
    %p37 = scmp.eq.s32.totalorder %s15, 1
    %p38 = por %p36, %p37
    %p40 = scmp.ne.s32.totalorder %s23, %s39
    %p41 = scmp.eq.s32.totalorder %s15, 0
    %p42 = por %p40, %p41
    %s44 = sadd.s32 %s43, 1
    %p47 = scmp.eq.s32.totalorder %s9, 1
    %p48 = scmp.ne.s32.totalorder %s43, %s45
    %p49 = scmp.eq.s32.totalorder %s9, 0
    %p50 = por %p48, %p49
    %p51 = scmp.ne.s32.totalorder %s43, %s45
    %p52 = scmp.eq.s32.totalorder %s14, 1
    %p53 = por %p51, %p52
    %p54 = scmp.ne.s32.totalorder %s45, %s46
    %p55 = scmp.eq.s32.totalorder %s14, 0
    %p56 = por %p54, %p55
    %p57 = scmp.ne.s32.totalorder %s45, %s46
    %p58 = scmp.eq.s32.totalorder %s15, 1
    %p59 = por %p57, %p58
    %p61 = scmp.ne.s32.totalorder %s46, %s60
    %p62 = scmp.eq.s32.totalorder %s15, 0
    %p63 = por %p61, %p62
    %s65 = sadd.s32 %s64, 1
    %p68 = scmp.eq.s32.totalorder %s9, 1
    %p69 = scmp.ne.s32.totalorder %s64, %s66
    %p70 = scmp.eq.s32.totalorder %s9, 0
    %p71 = por %p69, %p70
    %p72 = scmp.ne.s32.totalorder %s64, %s66
    %p73 = scmp.eq.s32.totalorder %s14, 1
    %p74 = por %p72, %p73
    %p75 = scmp.ne.s32.totalorder %s66, %s67
    %p76 = scmp.eq.s32.totalorder %s14, 0
    %p77 = por %p75, %p76
    %p78 = scmp.ne.s32.totalorder %s66, %s67
    %p79 = scmp.eq.s32.totalorder %s15, 1
    %p80 = por %p78, %p79
    %p82 = scmp.ne.s32.totalorder %s67, %s81
    %p83 = scmp.eq.s32.totalorder %s15, 0
    %p84 = por %p82, %p83
    %s85 = ssub.s32 %s9, %s16
    %p86 = scmp.eq.s32.totalorder %s85, 0
    %s88 = sadd.s32 %s87, 1
    %s89 = scalar_select %p86, %s87, %s88
    %p92 = pneg %p86
    %p93 = scmp.eq.s32.totalorder %s9, 1
    %p94 = por %p92, %p93
    %p95 = scmp.ne.s32.totalorder %s87, %s90
    %p96 = scmp.eq.s32.totalorder %s9, 0
    %p97 = por %p95, %p96
    %p98 = scmp.ne.s32.totalorder %s87, %s90
    %p99 = scmp.eq.s32.totalorder %s14, 1
    %p100 = por %p98, %p99
    %p101 = scmp.ne.s32.totalorder %s90, %s91
    %p102 = scmp.eq.s32.totalorder %s14, 0
    %p103 = por %p101, %p102
    %p104 = scmp.ne.s32.totalorder %s90, %s91
    %p105 = scmp.eq.s32.totalorder %s15, 1
    %p106 = por %p104, %p105
    %p108 = scmp.ne.s32.totalorder %s91, %s107
    %p109 = scmp.eq.s32.totalorder %s15, 0
    %p110 = por %p108, %p109
    %p111 = scmp.le.s32.totalorder 1, %s9
    %p112 = scmp.lt.s32.totalorder %s9, 3
    %p113 = pnand %p111, %p112
    %p114 = pneg %p113
    // Predicated region
    $region9: #{attention_cnn_forward.7} parent=5 // pred_check
      _
    $region10: #{attention_cnn_forward.7} parent=5 // pred_check_branch
      %116 = sbr.rel (%p113) target = $region12
    $region11: #{attention_cnn_forward.7} parent=5 // pred_region
      %s117 = ssub.s32 %s9, 1
      // Predicated region
      $region13: #{attention_cnn_forward.7} parent=11 // pred_check
        %p118 = pneg %p56
      $region14: #{attention_cnn_forward.7} parent=11 // pred_check_branch
        %120 = sbr.rel (%p118) target = $region16
      $region15: #{attention_cnn_forward.7} parent=11 // pred_region
        _
      $region16: #{attention_cnn_forward.7} parent=11 // pred_fallthru
        _
      // Predicated region
      $region17: #{attention_cnn_forward.7} parent=11 // pred_check
        %p121 = pneg %p77
      $region18: #{attention_cnn_forward.7} parent=11 // pred_check_branch
        %123 = sbr.rel (%p121) target = $region20
      $region19: #{attention_cnn_forward.7} parent=11 // pred_region
        _
      $region20: #{attention_cnn_forward.7} parent=11 // pred_fallthru
        _
    $region12: #{attention_cnn_forward.7} parent=5 // pred_fallthru
      _
    %p124 = scmp.lt.s32.totalorder %s9, 2
    // Predicated region
    $region21: #{attention_cnn_forward.7} parent=5 // pred_check
      %p125 = pneg %p124
    $region22: #{attention_cnn_forward.7} parent=5 // pred_check_branch
      %127 = sbr.rel (%p125) target = $region24
    $region23: #{attention_cnn_forward.7} parent=5 // pred_region
      // Predicated region
      $region25: #{attention_cnn_forward.7} parent=23 // pred_check
        %p128 = pneg %p29
      $region26: #{attention_cnn_forward.7} parent=23 // pred_check_branch
        %130 = sbr.rel (%p128) target = $region28
      $region27: #{attention_cnn_forward.7} parent=23 // pred_region
        %p131 = scmp.lt.s32.totalorder %s9, 1
        %s132 = scalar_select %p131, %s9, 1
        %s133 = smul.addr %s132, 13
        %s134 = smul.addr %s133, 8
        %s135 = scalar_lea.vmem %s0, %s134
      $region28: #{attention_cnn_forward.7} parent=23 // pred_fallthru
        _
    $region24: #{attention_cnn_forward.7} parent=5 // pred_fallthru
      _
    %p136 = scmp.le.s32.totalorder 1, %s9
    %p137 = scmp.lt.s32.totalorder %s9, 3
    %p138 = pnand %p136, %p137
    %p139 = pneg %p138
    // Predicated region
    $region29: #{attention_cnn_forward.7} parent=5 // pred_check
      _
    $region30: #{attention_cnn_forward.7} parent=5 // pred_check_branch
      %141 = sbr.rel (%p138) target = $region32
    $region31: #{attention_cnn_forward.7} parent=5 // pred_region
      %s142 = ssub.s32 %s9, 1
      %p143 = scmp.lt.s32.totalorder %s14, 1
      %s144 = scalar_select %p143, %s14, 1
      %s145 = smul.addr %s144, 13
      %s146 = smul.addr %s145, 8
      %s147 = scalar_lea.vmem %s0, %s146
      %p148 = pneg %p35
      %p149 = pneg %p32
      %p150 = pneg %p56
      %p151 = pneg %p53
      %p152 = pneg %p77
      %p153 = pneg %p74
      %p154 = pneg %p103
      %p155 = pneg %p100
      %p156 = scmp.lt.s32.totalorder %s14, 1
      %s157 = scalar_select %p156, %s14, 1
      %s158 = smul.addr %s157, 4
      %s159 = smul.addr %s158, 4
      %s160 = scalar_lea.vmem %s3, %s159
      %p161 = scmp.lt.s32.totalorder %s14, 1
      %s162 = scalar_select %p161, %s14, 1
      %s163 = smul.addr %s162, 13
      %s164 = smul.addr %s163, 8
      %s165 = scalar_lea.vmem %s0, %s164
      %p166 = scmp.lt.s32.totalorder %s14, 1
      %s167 = scalar_select %p166, %s14, 1
      %s168 = smul.addr %s167, 4
      %s169 = smul.addr %s168, 4
      %s170 = scalar_lea.vmem %s3, %s169
      %v171 = vld [vmem:[%s165] sm:$0xff]
      %v172 = vld [vmem:[%s165 + $0x8] sm:$0xff]
      %v173 = vld [vmem:[%s165 + $0x10] sm:$0xff]
      %v174 = vld [vmem:[%s165 + $0x18] sm:$0xff]
      %v175 = vld [vmem:[%s165 + $0x20] sm:$0xff]
      %v176 = vld [vmem:[%s165 + $0x28] sm:$0xff]
      %v177 = vld [vmem:[%s165 + $0x30] sm:$0xff]
      %v178 = vld [vmem:[%s165 + $0x38] sm:$0xff]
      %v179 = vld [vmem:[%s165 + $0x40] sm:$0xff]
      %v180 = vld [vmem:[%s165 + $0x48] sm:$0x3f]
      %v181 = vld [vmem:[%s1] sm:$0xff]
      %v182 = vld [vmem:[%s1 + $0x8] sm:$0xff]
      %v183 = vld [vmem:[%s1 + $0x10] sm:$0xff]
      %v184 = vld [vmem:[%s1 + $0x18] sm:$0xff]
      %v185 = vld [vmem:[%s1 + $0x20] sm:$0xff]
      %v186 = vld [vmem:[%s1 + $0x28] sm:$0xff]
      %v187 = vld [vmem:[%s1 + $0x30] sm:$0xff]
      %v188 = vld [vmem:[%s1 + $0x38] sm:$0xff]
      %v189 = vld [vmem:[%s1 + $0x40] sm:$0xff]
      %v190 = vld [vmem:[%s1 + $0x48] sm:$0xff]
      %v191 = vld [vmem:[%s1 + $0x50] sm:$0xff]
      %v192 = vld [vmem:[%s1 + $0x58] sm:$0xff]
      %v193 = vld [vmem:[%s1 + $0x60] sm:$0xff]
      %v194 = vld [vmem:[%s1 + $0x68] sm:$0xff]
      %v195 = vld [vmem:[%s1 + $0x70] sm:$0xff]
      %v196 = vld [vmem:[%s1 + $0x78] sm:$0xff]
      %v197 = vld [vmem:[%s165 + $0x1] sm:$0xff]
      %v198 = vld [vmem:[%s165 + $0x9] sm:$0xff]
      %v199 = vld [vmem:[%s165 + $0x11] sm:$0xff]
      %v200 = vld [vmem:[%s165 + $0x19] sm:$0xff]
      %v201 = vld [vmem:[%s165 + $0x21] sm:$0xff]
      %v202 = vld [vmem:[%s165 + $0x29] sm:$0xff]
      %v203 = vld [vmem:[%s165 + $0x31] sm:$0xff]
      %v204 = vld [vmem:[%s165 + $0x39] sm:$0xff]
      %v205 = vld [vmem:[%s165 + $0x41] sm:$0xff]
      %v206 = vld [vmem:[%s165 + $0x49] sm:$0x3f]
      %s207 = scalar_lea.vmem %s1, 128
      %v208 = vld [vmem:[%s207] sm:$0xff]
      %v209 = vld [vmem:[%s207 + $0x8] sm:$0xff]
      %v210 = vld [vmem:[%s207 + $0x10] sm:$0xff]
      %v211 = vld [vmem:[%s207 + $0x18] sm:$0xff]
      %v212 = vld [vmem:[%s207 + $0x20] sm:$0xff]
      %v213 = vld [vmem:[%s207 + $0x28] sm:$0xff]
      %v214 = vld [vmem:[%s207 + $0x30] sm:$0xff]
      %v215 = vld [vmem:[%s207 + $0x38] sm:$0xff]
      %v216 = vld [vmem:[%s207 + $0x40] sm:$0xff]
      %v217 = vld [vmem:[%s207 + $0x48] sm:$0xff]
      %v218 = vld [vmem:[%s207 + $0x50] sm:$0xff]
      %v219 = vld [vmem:[%s207 + $0x58] sm:$0xff]
      %v220 = vld [vmem:[%s207 + $0x60] sm:$0xff]
      %v221 = vld [vmem:[%s207 + $0x68] sm:$0xff]
      %v222 = vld [vmem:[%s207 + $0x70] sm:$0xff]
      %v223 = vld [vmem:[%s207 + $0x78] sm:$0xff]
      %224 = vmatprep.subr.mxu0 0.0
      %225 = vmatpush1.msra.mxu0 %v223
      %226 = vmatprep.subr.mxu0 0.0
      %227 = vmatpush1.msra.mxu0 %v222
      %228 = vmatprep.subr.mxu0 0.0
      %229 = vmatpush1.msra.mxu0 %v221
      %230 = vmatprep.subr.mxu0 0.0
      %231 = vmatpush1.msra.mxu0 %v220
      %232 = vmatprep.subr.mxu0 0.0
      %233 = vmatpush1.msra.mxu0 %v219
      %234 = vmatprep.subr.mxu0 0.0
      %235 = vmatpush1.msra.mxu0 %v218
      %236 = vmatprep.subr.mxu0 0.0
      %237 = vmatpush1.msra.mxu0 %v217
      %238 = vmatprep.subr.mxu0 0.0
      %239 = vmatpush1.msra.mxu0 %v216
      %240 = vmatprep.subr.mxu0 0.0
      %241 = vmatpush1.msra.mxu0 %v215
      %242 = vmatprep.subr.mxu0 0.0
      %243 = vmatpush1.msra.mxu0 %v214
      %244 = vmatprep.subr.mxu0 0.0
      %245 = vmatpush1.msra.mxu0 %v213
      %246 = vmatprep.subr.mxu0 0.0
      %247 = vmatpush1.msra.mxu0 %v212
      %248 = vmatprep.subr.mxu0 0.0
      %249 = vmatpush1.msra.mxu0 %v211
      %250 = vmatprep.subr.mxu0 0.0
      %251 = vmatpush1.msra.mxu0 %v210
      %252 = vmatprep.subr.mxu0 0.0
      %253 = vmatpush1.msra.mxu0 %v209
      %254 = vmatprep.subr.mxu0 0.0
      %255 = vmatpush1.msra.mxu0 %v208
      %256 = vmatprep.subr.mxu0 0.0
      %257 = vmatpush2.msra.mxu0 0.0
      %258 = vmatprep.subr.mxu0 0.0
      %259 = vmatpush2.msra.mxu0 0.0
      %260 = vmatprep.subr.mxu0 0.0
      %261 = vmatpush2.msra.mxu0 0.0
      %262 = vmatprep.subr.mxu0 0.0
      %263 = vmatpush2.msra.mxu0 0.0
      %264 = vmatprep.subr.mxu0 0.0
      %265 = vmatpush2.msra.mxu0 0.0
      %266 = vmatprep.subr.mxu0 0.0
      %267 = vmatpush2.msra.mxu0 0.0
      %268 = vmatprep.subr.mxu0 0.0
      %269 = vmatpush2.msra.mxu0 0.0
      %270 = vmatprep.subr.mxu0 0.0
      %271 = vmatpush2.msra.mxu0 0.0
      %272 = vmatprep.subr.mxu0 0.0
      %273 = vmatpush2.msra.mxu0 0.0
      %274 = vmatprep.subr.mxu0 0.0
      %275 = vmatpush2.msra.mxu0 0.0
      %276 = vmatprep.subr.mxu0 0.0
      %277 = vmatpush2.msra.mxu0 0.0
      %278 = vmatprep.subr.mxu0 0.0
      %279 = vmatpush2.msra.mxu0 0.0
      %280 = vmatprep.subr.mxu0 0.0
      %281 = vmatpush2.msra.mxu0 0.0
      %282 = vmatprep.subr.mxu0 0.0
      %283 = vmatpush2.msra.mxu0 0.0
      %284 = vmatprep.subr.mxu0 0.0
      %285 = vmatpush2.msra.mxu0 0.0
      %286 = vmatprep.subr.mxu0 0.0
      %287 = vmatpush2.msra.mxu0 0.0
      %288 = vmatprep.mubr.f32.mxu0 0.0
      %289 = vmatmul.mubr.f32.gmra.mxu0 %v197
      %v290 = vpop.f32.mrf.mxu0
      %v291 = vadd.f32 0.0, %v290
      %v292 = vpop.f32.mrf.mxu0
      %293 = vmatprep.mubr.f32.mxu0 0.0
      %294 = vmatmul.mubr.f32.gmra.mxu0 %v198
      %v295 = vpop.f32.mrf.mxu0
      %v296 = vadd.f32 0.0, %v295
      %v297 = vpop.f32.mrf.mxu0
      %298 = vmatprep.mubr.f32.mxu0 0.0
      %299 = vmatmul.mubr.f32.gmra.mxu0 %v199
      %v300 = vpop.f32.mrf.mxu0
      %v301 = vadd.f32 0.0, %v300
      %v302 = vpop.f32.mrf.mxu0
      %303 = vmatprep.mubr.f32.mxu0 0.0
      %304 = vmatmul.mubr.f32.gmra.mxu0 %v200
      %v305 = vpop.f32.mrf.mxu0
      %v306 = vadd.f32 0.0, %v305
      %v307 = vpop.f32.mrf.mxu0
      %308 = vmatprep.mubr.f32.mxu0 0.0
      %309 = vmatmul.mubr.f32.gmra.mxu0 %v201
      %v310 = vpop.f32.mrf.mxu0
      %v311 = vadd.f32 0.0, %v310
      %v312 = vpop.f32.mrf.mxu0
      %313 = vmatprep.mubr.f32.mxu0 0.0
      %314 = vmatmul.mubr.f32.gmra.mxu0 %v202
      %v315 = vpop.f32.mrf.mxu0
      %v316 = vadd.f32 0.0, %v315
      %v317 = vpop.f32.mrf.mxu0
      %318 = vmatprep.mubr.f32.mxu0 0.0
      %319 = vmatmul.mubr.f32.gmra.mxu0 %v203
      %v320 = vpop.f32.mrf.mxu0
      %v321 = vadd.f32 0.0, %v320
      %v322 = vpop.f32.mrf.mxu0
      %323 = vmatprep.mubr.f32.mxu0 0.0
      %324 = vmatmul.mubr.f32.gmra.mxu0 %v204
      %v325 = vpop.f32.mrf.mxu0
      %v326 = vadd.f32 0.0, %v325
      %v327 = vpop.f32.mrf.mxu0
      %328 = vmatprep.mubr.f32.mxu0 0.0
      %329 = vmatmul.mubr.f32.gmra.mxu0 %v205
      %v330 = vpop.f32.mrf.mxu0
      %v331 = vadd.f32 0.0, %v330
      %v332 = vpop.f32.mrf.mxu0
      %333 = vmatprep.mubr.f32.mxu0 0.0
      %334 = vmatmul.mubr.f32.gmra.mxu0 %v206
      %v335 = vpop.f32.mrf.mxu0
      %v336 = vadd.f32 0.0, %v335
      %v337 = vpop.f32.mrf.mxu0
      %338 = vdwg.mxu0
      %339 = vmatprep.subr.mxu0 0.0
      %340 = vmatpush1.msra.mxu0 %v196
      %341 = vmatprep.subr.mxu0 0.0
      %342 = vmatpush1.msra.mxu0 %v195
      %343 = vmatprep.subr.mxu0 0.0
      %344 = vmatpush1.msra.mxu0 %v194
      %345 = vmatprep.subr.mxu0 0.0
      %346 = vmatpush1.msra.mxu0 %v193
      %347 = vmatprep.subr.mxu0 0.0
      %348 = vmatpush1.msra.mxu0 %v192
      %349 = vmatprep.subr.mxu0 0.0
      %350 = vmatpush1.msra.mxu0 %v191
      %351 = vmatprep.subr.mxu0 0.0
      %352 = vmatpush1.msra.mxu0 %v190
      %353 = vmatprep.subr.mxu0 0.0
      %354 = vmatpush1.msra.mxu0 %v189
      %355 = vmatprep.subr.mxu0 0.0
      %356 = vmatpush1.msra.mxu0 %v188
      %357 = vmatprep.subr.mxu0 0.0
      %358 = vmatpush1.msra.mxu0 %v187
      %359 = vmatprep.subr.mxu0 0.0
      %360 = vmatpush1.msra.mxu0 %v186
      %361 = vmatprep.subr.mxu0 0.0
      %362 = vmatpush1.msra.mxu0 %v185
      %363 = vmatprep.subr.mxu0 0.0
      %364 = vmatpush1.msra.mxu0 %v184
      %365 = vmatprep.subr.mxu0 0.0
      %366 = vmatpush1.msra.mxu0 %v183
      %367 = vmatprep.subr.mxu0 0.0
      %368 = vmatpush1.msra.mxu0 %v182
      %369 = vmatprep.subr.mxu0 0.0
      %370 = vmatpush1.msra.mxu0 %v181
      %371 = vmatprep.subr.mxu0 0.0
      %372 = vmatpush2.msra.mxu0 0.0
      %373 = vmatprep.subr.mxu0 0.0
      %374 = vmatpush2.msra.mxu0 0.0
      %375 = vmatprep.subr.mxu0 0.0
      %376 = vmatpush2.msra.mxu0 0.0
      %377 = vmatprep.subr.mxu0 0.0
      %378 = vmatpush2.msra.mxu0 0.0
      %379 = vmatprep.subr.mxu0 0.0
      %380 = vmatpush2.msra.mxu0 0.0
      %381 = vmatprep.subr.mxu0 0.0
      %382 = vmatpush2.msra.mxu0 0.0
      %383 = vmatprep.subr.mxu0 0.0
      %384 = vmatpush2.msra.mxu0 0.0
      %385 = vmatprep.subr.mxu0 0.0
      %386 = vmatpush2.msra.mxu0 0.0
      %387 = vmatprep.subr.mxu0 0.0
      %388 = vmatpush2.msra.mxu0 0.0
      %389 = vmatprep.subr.mxu0 0.0
      %390 = vmatpush2.msra.mxu0 0.0
      %391 = vmatprep.subr.mxu0 0.0
      %392 = vmatpush2.msra.mxu0 0.0
      %393 = vmatprep.subr.mxu0 0.0
      %394 = vmatpush2.msra.mxu0 0.0
      %395 = vmatprep.subr.mxu0 0.0
      %396 = vmatpush2.msra.mxu0 0.0
      %397 = vmatprep.subr.mxu0 0.0
      %398 = vmatpush2.msra.mxu0 0.0
      %399 = vmatprep.subr.mxu0 0.0
      %400 = vmatpush2.msra.mxu0 0.0
      %401 = vmatprep.subr.mxu0 0.0
      %402 = vmatpush2.msra.mxu0 0.0
      %403 = vmatprep.mubr.f32.mxu0 0.0
      %404 = vmatmul.mubr.f32.gmra.mxu0 %v171
      %v405 = vpop.f32.mrf.mxu0
      %v406 = vadd.f32 %v291, %v405
      %v407 = vpop.f32.mrf.mxu0
      %408 = vmatprep.mubr.f32.mxu0 0.0
      %409 = vmatmul.mubr.f32.gmra.mxu0 %v172
      %v410 = vpop.f32.mrf.mxu0
      %v411 = vadd.f32 %v296, %v410
      %v412 = vpop.f32.mrf.mxu0
      %413 = vmatprep.mubr.f32.mxu0 0.0
      %414 = vmatmul.mubr.f32.gmra.mxu0 %v173
      %v415 = vpop.f32.mrf.mxu0
      %v416 = vadd.f32 %v301, %v415
      %v417 = vpop.f32.mrf.mxu0
      %418 = vmatprep.mubr.f32.mxu0 0.0
      %419 = vmatmul.mubr.f32.gmra.mxu0 %v174
      %v420 = vpop.f32.mrf.mxu0
      %v421 = vadd.f32 %v306, %v420
      %v422 = vpop.f32.mrf.mxu0
      %423 = vmatprep.mubr.f32.mxu0 0.0
      %424 = vmatmul.mubr.f32.gmra.mxu0 %v175
      %v425 = vpop.f32.mrf.mxu0
      %v426 = vadd.f32 %v311, %v425
      %v427 = vpop.f32.mrf.mxu0
      %428 = vmatprep.mubr.f32.mxu0 0.0
      %429 = vmatmul.mubr.f32.gmra.mxu0 %v176
      %v430 = vpop.f32.mrf.mxu0
      %v431 = vadd.f32 %v316, %v430
      %v432 = vpop.f32.mrf.mxu0
      %433 = vmatprep.mubr.f32.mxu0 0.0
      %434 = vmatmul.mubr.f32.gmra.mxu0 %v177
      %v435 = vpop.f32.mrf.mxu0
      %v436 = vadd.f32 %v321, %v435
      %v437 = vpop.f32.mrf.mxu0
      %438 = vmatprep.mubr.f32.mxu0 0.0
      %439 = vmatmul.mubr.f32.gmra.mxu0 %v178
      %v440 = vpop.f32.mrf.mxu0
      %v441 = vadd.f32 %v326, %v440
      %v442 = vpop.f32.mrf.mxu0
      %443 = vmatprep.mubr.f32.mxu0 0.0
      %444 = vmatmul.mubr.f32.gmra.mxu0 %v179
      %v445 = vpop.f32.mrf.mxu0
      %v446 = vadd.f32 %v331, %v445
      %v447 = vpop.f32.mrf.mxu0
      %448 = vmatprep.mubr.f32.mxu0 0.0
      %449 = vmatmul.mubr.f32.gmra.mxu0 %v180
      %v450 = vpop.f32.mrf.mxu0
      %v451 = vadd.f32 %v336, %v450
      %v452 = vpop.f32.mrf.mxu0
      %453 = vdwg.mxu0
      %v454 = vld [vmem:[%s165 + $0x2] sm:$0xff]
      %v455 = vld [vmem:[%s165 + $0xa] sm:$0xff]
      %v456 = vld [vmem:[%s165 + $0x12] sm:$0xff]
      %v457 = vld [vmem:[%s165 + $0x1a] sm:$0xff]
      %v458 = vld [vmem:[%s165 + $0x22] sm:$0xff]
      %v459 = vld [vmem:[%s165 + $0x2a] sm:$0xff]
      %v460 = vld [vmem:[%s165 + $0x32] sm:$0xff]
      %v461 = vld [vmem:[%s165 + $0x3a] sm:$0xff]
      %v462 = vld [vmem:[%s165 + $0x42] sm:$0xff]
      %v463 = vld [vmem:[%s165 + $0x4a] sm:$0x3f]
      %s464 = scalar_lea.vmem %s1, 256
      %v465 = vld [vmem:[%s464] sm:$0xff]
      %v466 = vld [vmem:[%s464 + $0x8] sm:$0xff]
      %v467 = vld [vmem:[%s464 + $0x10] sm:$0xff]
      %v468 = vld [vmem:[%s464 + $0x18] sm:$0xff]
      %v469 = vld [vmem:[%s464 + $0x20] sm:$0xff]
      %v470 = vld [vmem:[%s464 + $0x28] sm:$0xff]
      %v471 = vld [vmem:[%s464 + $0x30] sm:$0xff]
      %v472 = vld [vmem:[%s464 + $0x38] sm:$0xff]
      %v473 = vld [vmem:[%s464 + $0x40] sm:$0xff]
      %v474 = vld [vmem:[%s464 + $0x48] sm:$0xff]
      %v475 = vld [vmem:[%s464 + $0x50] sm:$0xff]
      %v476 = vld [vmem:[%s464 + $0x58] sm:$0xff]
      %v477 = vld [vmem:[%s464 + $0x60] sm:$0xff]
      %v478 = vld [vmem:[%s464 + $0x68] sm:$0xff]
      %v479 = vld [vmem:[%s464 + $0x70] sm:$0xff]
      %v480 = vld [vmem:[%s464 + $0x78] sm:$0xff]
      %481 = vmatprep.subr.mxu0 0.0
      %482 = vmatpush1.msra.mxu0 %v480
      %483 = vmatprep.subr.mxu0 0.0
      %484 = vmatpush1.msra.mxu0 %v479
      %485 = vmatprep.subr.mxu0 0.0
      %486 = vmatpush1.msra.mxu0 %v478
      %487 = vmatprep.subr.mxu0 0.0
      %488 = vmatpush1.msra.mxu0 %v477
      %489 = vmatprep.subr.mxu0 0.0
      %490 = vmatpush1.msra.mxu0 %v476
      %491 = vmatprep.subr.mxu0 0.0
      %492 = vmatpush1.msra.mxu0 %v475
      %493 = vmatprep.subr.mxu0 0.0
      %494 = vmatpush1.msra.mxu0 %v474
      %495 = vmatprep.subr.mxu0 0.0
      %496 = vmatpush1.msra.mxu0 %v473
      %497 = vmatprep.subr.mxu0 0.0
      %498 = vmatpush1.msra.mxu0 %v472
      %499 = vmatprep.subr.mxu0 0.0
      %500 = vmatpush1.msra.mxu0 %v471
      %501 = vmatprep.subr.mxu0 0.0
      %502 = vmatpush1.msra.mxu0 %v470
      %503 = vmatprep.subr.mxu0 0.0
      %504 = vmatpush1.msra.mxu0 %v469
      %505 = vmatprep.subr.mxu0 0.0
      %506 = vmatpush1.msra.mxu0 %v468
      %507 = vmatprep.subr.mxu0 0.0
      %508 = vmatpush1.msra.mxu0 %v467
      %509 = vmatprep.subr.mxu0 0.0
      %510 = vmatpush1.msra.mxu0 %v466
      %511 = vmatprep.subr.mxu0 0.0
      %512 = vmatpush1.msra.mxu0 %v465
      %513 = vmatprep.subr.mxu0 0.0
      %514 = vmatpush2.msra.mxu0 0.0
      %515 = vmatprep.subr.mxu0 0.0
      %516 = vmatpush2.msra.mxu0 0.0
      %517 = vmatprep.subr.mxu0 0.0
      %518 = vmatpush2.msra.mxu0 0.0
      %519 = vmatprep.subr.mxu0 0.0
      %520 = vmatpush2.msra.mxu0 0.0
      %521 = vmatprep.subr.mxu0 0.0
      %522 = vmatpush2.msra.mxu0 0.0
      %523 = vmatprep.subr.mxu0 0.0
      %524 = vmatpush2.msra.mxu0 0.0
      %525 = vmatprep.subr.mxu0 0.0
      %526 = vmatpush2.msra.mxu0 0.0
      %527 = vmatprep.subr.mxu0 0.0
      %528 = vmatpush2.msra.mxu0 0.0
      %529 = vmatprep.subr.mxu0 0.0
      %530 = vmatpush2.msra.mxu0 0.0
      %531 = vmatprep.subr.mxu0 0.0
      %532 = vmatpush2.msra.mxu0 0.0
      %533 = vmatprep.subr.mxu0 0.0
      %534 = vmatpush2.msra.mxu0 0.0
      %535 = vmatprep.subr.mxu0 0.0
      %536 = vmatpush2.msra.mxu0 0.0
      %537 = vmatprep.subr.mxu0 0.0
      %538 = vmatpush2.msra.mxu0 0.0
      %539 = vmatprep.subr.mxu0 0.0
      %540 = vmatpush2.msra.mxu0 0.0
      %541 = vmatprep.subr.mxu0 0.0
      %542 = vmatpush2.msra.mxu0 0.0
      %543 = vmatprep.subr.mxu0 0.0
      %544 = vmatpush2.msra.mxu0 0.0
      %545 = vmatprep.mubr.f32.mxu0 0.0
      %546 = vmatmul.mubr.f32.gmra.mxu0 %v454
      %v547 = vpop.f32.mrf.mxu0
      %v548 = vadd.f32 0.0, %v547
      %v549 = vpop.f32.mrf.mxu0
      %550 = vmatprep.mubr.f32.mxu0 0.0
      %551 = vmatmul.mubr.f32.gmra.mxu0 %v455
      %v552 = vpop.f32.mrf.mxu0
      %v553 = vadd.f32 0.0, %v552
      %v554 = vpop.f32.mrf.mxu0
      %555 = vmatprep.mubr.f32.mxu0 0.0
      %556 = vmatmul.mubr.f32.gmra.mxu0 %v456
      %v557 = vpop.f32.mrf.mxu0
      %v558 = vadd.f32 0.0, %v557
      %v559 = vpop.f32.mrf.mxu0
      %560 = vmatprep.mubr.f32.mxu0 0.0
      %561 = vmatmul.mubr.f32.gmra.mxu0 %v457
      %v562 = vpop.f32.mrf.mxu0
      %v563 = vadd.f32 0.0, %v562
      %v564 = vpop.f32.mrf.mxu0
      %565 = vmatprep.mubr.f32.mxu0 0.0
      %566 = vmatmul.mubr.f32.gmra.mxu0 %v458
      %v567 = vpop.f32.mrf.mxu0
      %v568 = vadd.f32 0.0, %v567
      %v569 = vpop.f32.mrf.mxu0
      %570 = vmatprep.mubr.f32.mxu0 0.0
      %571 = vmatmul.mubr.f32.gmra.mxu0 %v459
      %v572 = vpop.f32.mrf.mxu0
      %v573 = vadd.f32 0.0, %v572
      %v574 = vpop.f32.mrf.mxu0
      %575 = vmatprep.mubr.f32.mxu0 0.0
      %576 = vmatmul.mubr.f32.gmra.mxu0 %v460
      %v577 = vpop.f32.mrf.mxu0
      %v578 = vadd.f32 0.0, %v577
      %v579 = vpop.f32.mrf.mxu0
      %580 = vmatprep.mubr.f32.mxu0 0.0
      %581 = vmatmul.mubr.f32.gmra.mxu0 %v461
      %v582 = vpop.f32.mrf.mxu0
      %v583 = vadd.f32 0.0, %v582
      %v584 = vpop.f32.mrf.mxu0
      %585 = vmatprep.mubr.f32.mxu0 0.0
      %586 = vmatmul.mubr.f32.gmra.mxu0 %v462
      %v587 = vpop.f32.mrf.mxu0
      %v588 = vadd.f32 0.0, %v587
      %v589 = vpop.f32.mrf.mxu0
      %590 = vmatprep.mubr.f32.mxu0 0.0
      %591 = vmatmul.mubr.f32.gmra.mxu0 %v463
      %v592 = vpop.f32.mrf.mxu0
      %v593 = vadd.f32 0.0, %v592
      %v594 = vpop.f32.mrf.mxu0
      %595 = vdwg.mxu0
      %v596 = vadd.f32 %v406, %v548
      %v597 = vadd.f32 %v411, %v553
      %v598 = vadd.f32 %v416, %v558
      %v599 = vadd.f32 %v421, %v563
      %v600 = vadd.f32 %v426, %v568
      %v601 = vadd.f32 %v431, %v573
      %v602 = vadd.f32 %v436, %v578
      %v603 = vadd.f32 %v441, %v583
      %v604 = vadd.f32 %v446, %v588
      %v605 = vadd.f32 %v451, %v593
      %v606 = vld [vmem:[%s165 + $0xa] sm:$0xff]
      %v607 = vld [vmem:[%s165 + $0x12] sm:$0xff]
      %v608 = vld [vmem:[%s165 + $0x1a] sm:$0xff]
      %v609 = vld [vmem:[%s165 + $0x22] sm:$0xff]
      %v610 = vld [vmem:[%s165 + $0x2a] sm:$0xff]
      %v611 = vld [vmem:[%s165 + $0x32] sm:$0xff]
      %v612 = vld [vmem:[%s165 + $0x3a] sm:$0xff]
      %v613 = vld [vmem:[%s165 + $0x42] sm:$0xff]
      %v614 = vld [vmem:[%s165 + $0x4a] sm:$0xff]
      %v615 = vld [vmem:[%s165 + $0x52] sm:$0x3f]
      %s616 = scalar_lea.vmem %s1, 384
      %v617 = vld [vmem:[%s616] sm:$0xff]
      %v618 = vld [vmem:[%s616 + $0x8] sm:$0xff]
      %v619 = vld [vmem:[%s616 + $0x10] sm:$0xff]
      %v620 = vld [vmem:[%s616 + $0x18] sm:$0xff]
      %v621 = vld [vmem:[%s616 + $0x20] sm:$0xff]
      %v622 = vld [vmem:[%s616 + $0x28] sm:$0xff]
      %v623 = vld [vmem:[%s616 + $0x30] sm:$0xff]
      %v624 = vld [vmem:[%s616 + $0x38] sm:$0xff]
      %v625 = vld [vmem:[%s616 + $0x40] sm:$0xff]
      %v626 = vld [vmem:[%s616 + $0x48] sm:$0xff]
      %v627 = vld [vmem:[%s616 + $0x50] sm:$0xff]
      %v628 = vld [vmem:[%s616 + $0x58] sm:$0xff]
      %v629 = vld [vmem:[%s616 + $0x60] sm:$0xff]
      %v630 = vld [vmem:[%s616 + $0x68] sm:$0xff]
      %v631 = vld [vmem:[%s616 + $0x70] sm:$0xff]
      %v632 = vld [vmem:[%s616 + $0x78] sm:$0xff]
      %633 = vmatprep.subr.mxu0 0.0
      %634 = vmatpush1.msra.mxu0 %v632
      %635 = vmatprep.subr.mxu0 0.0
      %636 = vmatpush1.msra.mxu0 %v631
      %637 = vmatprep.subr.mxu0 0.0
      %638 = vmatpush1.msra.mxu0 %v630
      %639 = vmatprep.subr.mxu0 0.0
      %640 = vmatpush1.msra.mxu0 %v629
      %641 = vmatprep.subr.mxu0 0.0
      %642 = vmatpush1.msra.mxu0 %v628
      %643 = vmatprep.subr.mxu0 0.0
      %644 = vmatpush1.msra.mxu0 %v627
      %645 = vmatprep.subr.mxu0 0.0
      %646 = vmatpush1.msra.mxu0 %v626
      %647 = vmatprep.subr.mxu0 0.0
      %648 = vmatpush1.msra.mxu0 %v625
      %649 = vmatprep.subr.mxu0 0.0
      %650 = vmatpush1.msra.mxu0 %v624
      %651 = vmatprep.subr.mxu0 0.0
      %652 = vmatpush1.msra.mxu0 %v623
      %653 = vmatprep.subr.mxu0 0.0
      %654 = vmatpush1.msra.mxu0 %v622
      %655 = vmatprep.subr.mxu0 0.0
      %656 = vmatpush1.msra.mxu0 %v621
      %657 = vmatprep.subr.mxu0 0.0
      %658 = vmatpush1.msra.mxu0 %v620
      %659 = vmatprep.subr.mxu0 0.0
      %660 = vmatpush1.msra.mxu0 %v619
      %661 = vmatprep.subr.mxu0 0.0
      %662 = vmatpush1.msra.mxu0 %v618
      %663 = vmatprep.subr.mxu0 0.0
      %664 = vmatpush1.msra.mxu0 %v617
      %665 = vmatprep.subr.mxu0 0.0
      %666 = vmatpush2.msra.mxu0 0.0
      %667 = vmatprep.subr.mxu0 0.0
      %668 = vmatpush2.msra.mxu0 0.0
      %669 = vmatprep.subr.mxu0 0.0
      %670 = vmatpush2.msra.mxu0 0.0
      %671 = vmatprep.subr.mxu0 0.0
      %672 = vmatpush2.msra.mxu0 0.0
      %673 = vmatprep.subr.mxu0 0.0
      %674 = vmatpush2.msra.mxu0 0.0
      %675 = vmatprep.subr.mxu0 0.0
      %676 = vmatpush2.msra.mxu0 0.0
      %677 = vmatprep.subr.mxu0 0.0
      %678 = vmatpush2.msra.mxu0 0.0
      %679 = vmatprep.subr.mxu0 0.0
      %680 = vmatpush2.msra.mxu0 0.0
      %681 = vmatprep.subr.mxu0 0.0
      %682 = vmatpush2.msra.mxu0 0.0
      %683 = vmatprep.subr.mxu0 0.0
      %684 = vmatpush2.msra.mxu0 0.0
      %685 = vmatprep.subr.mxu0 0.0
      %686 = vmatpush2.msra.mxu0 0.0
      %687 = vmatprep.subr.mxu0 0.0
      %688 = vmatpush2.msra.mxu0 0.0
      %689 = vmatprep.subr.mxu0 0.0
      %690 = vmatpush2.msra.mxu0 0.0
      %691 = vmatprep.subr.mxu0 0.0
      %692 = vmatpush2.msra.mxu0 0.0
      %693 = vmatprep.subr.mxu0 0.0
      %694 = vmatpush2.msra.mxu0 0.0
      %695 = vmatprep.subr.mxu0 0.0
      %696 = vmatpush2.msra.mxu0 0.0
      %697 = vmatprep.mubr.f32.mxu0 0.0
      %698 = vmatmul.mubr.f32.gmra.mxu0 %v606
      %v699 = vpop.f32.mrf.mxu0
      %v700 = vadd.f32 0.0, %v699
      %v701 = vpop.f32.mrf.mxu0
      %702 = vmatprep.mubr.f32.mxu0 0.0
      %703 = vmatmul.mubr.f32.gmra.mxu0 %v607
      %v704 = vpop.f32.mrf.mxu0
      %v705 = vadd.f32 0.0, %v704
      %v706 = vpop.f32.mrf.mxu0
      %707 = vmatprep.mubr.f32.mxu0 0.0
      %708 = vmatmul.mubr.f32.gmra.mxu0 %v608
      %v709 = vpop.f32.mrf.mxu0
      %v710 = vadd.f32 0.0, %v709
      %v711 = vpop.f32.mrf.mxu0
      %712 = vmatprep.mubr.f32.mxu0 0.0
      %713 = vmatmul.mubr.f32.gmra.mxu0 %v609
      %v714 = vpop.f32.mrf.mxu0
      %v715 = vadd.f32 0.0, %v714
      %v716 = vpop.f32.mrf.mxu0
      %717 = vmatprep.mubr.f32.mxu0 0.0
      %718 = vmatmul.mubr.f32.gmra.mxu0 %v610
      %v719 = vpop.f32.mrf.mxu0
      %v720 = vadd.f32 0.0, %v719
      %v721 = vpop.f32.mrf.mxu0
      %722 = vmatprep.mubr.f32.mxu0 0.0
      %723 = vmatmul.mubr.f32.gmra.mxu0 %v611
      %v724 = vpop.f32.mrf.mxu0
      %v725 = vadd.f32 0.0, %v724
      %v726 = vpop.f32.mrf.mxu0
      %727 = vmatprep.mubr.f32.mxu0 0.0
      %728 = vmatmul.mubr.f32.gmra.mxu0 %v612
      %v729 = vpop.f32.mrf.mxu0
      %v730 = vadd.f32 0.0, %v729
      %v731 = vpop.f32.mrf.mxu0
      %732 = vmatprep.mubr.f32.mxu0 0.0
      %733 = vmatmul.mubr.f32.gmra.mxu0 %v613
      %v734 = vpop.f32.mrf.mxu0
      %v735 = vadd.f32 0.0, %v734
      %v736 = vpop.f32.mrf.mxu0
      %737 = vmatprep.mubr.f32.mxu0 0.0
      %738 = vmatmul.mubr.f32.gmra.mxu0 %v614
      %v739 = vpop.f32.mrf.mxu0
      %v740 = vadd.f32 0.0, %v739
      %v741 = vpop.f32.mrf.mxu0
      %742 = vmatprep.mubr.f32.mxu0 0.0
      %743 = vmatmul.mubr.f32.gmra.mxu0 %v615
      %v744 = vpop.f32.mrf.mxu0
      %v745 = vadd.f32 0.0, %v744
      %v746 = vpop.f32.mrf.mxu0
      %747 = vdwg.mxu0
      %v748 = vadd.f32 %v596, %v700
      %v749 = vadd.f32 %v597, %v705
      %v750 = vadd.f32 %v598, %v710
      %v751 = vadd.f32 %v599, %v715
      %v752 = vadd.f32 %v600, %v720
      %v753 = vadd.f32 %v601, %v725
      %v754 = vadd.f32 %v602, %v730
      %v755 = vadd.f32 %v603, %v735
      %v756 = vadd.f32 %v604, %v740
      %v757 = vadd.f32 %v605, %v745
      %v758 = vld [vmem:[%s165 + $0xb] sm:$0xff]
      %v759 = vld [vmem:[%s165 + $0x13] sm:$0xff]
      %v760 = vld [vmem:[%s165 + $0x1b] sm:$0xff]
      %v761 = vld [vmem:[%s165 + $0x23] sm:$0xff]
      %v762 = vld [vmem:[%s165 + $0x2b] sm:$0xff]
      %v763 = vld [vmem:[%s165 + $0x33] sm:$0xff]
      %v764 = vld [vmem:[%s165 + $0x3b] sm:$0xff]
      %v765 = vld [vmem:[%s165 + $0x43] sm:$0xff]
      %v766 = vld [vmem:[%s165 + $0x4b] sm:$0xff]
      %v767 = vld [vmem:[%s165 + $0x53] sm:$0x3f]
      %s768 = scalar_lea.vmem %s1, 512
      %v769 = vld [vmem:[%s768] sm:$0xff]
      %v770 = vld [vmem:[%s768 + $0x8] sm:$0xff]
      %v771 = vld [vmem:[%s768 + $0x10] sm:$0xff]
      %v772 = vld [vmem:[%s768 + $0x18] sm:$0xff]
      %v773 = vld [vmem:[%s768 + $0x20] sm:$0xff]
      %v774 = vld [vmem:[%s768 + $0x28] sm:$0xff]
      %v775 = vld [vmem:[%s768 + $0x30] sm:$0xff]
      %v776 = vld [vmem:[%s768 + $0x38] sm:$0xff]
      %v777 = vld [vmem:[%s768 + $0x40] sm:$0xff]
      %v778 = vld [vmem:[%s768 + $0x48] sm:$0xff]
      %v779 = vld [vmem:[%s768 + $0x50] sm:$0xff]
      %v780 = vld [vmem:[%s768 + $0x58] sm:$0xff]
      %v781 = vld [vmem:[%s768 + $0x60] sm:$0xff]
      %v782 = vld [vmem:[%s768 + $0x68] sm:$0xff]
      %v783 = vld [vmem:[%s768 + $0x70] sm:$0xff]
      %v784 = vld [vmem:[%s768 + $0x78] sm:$0xff]
      %785 = vmatprep.subr.mxu0 0.0
      %786 = vmatpush1.msra.mxu0 %v784
      %787 = vmatprep.subr.mxu0 0.0
      %788 = vmatpush1.msra.mxu0 %v783
      %789 = vmatprep.subr.mxu0 0.0
      %790 = vmatpush1.msra.mxu0 %v782
      %791 = vmatprep.subr.mxu0 0.0
      %792 = vmatpush1.msra.mxu0 %v781
      %793 = vmatprep.subr.mxu0 0.0
      %794 = vmatpush1.msra.mxu0 %v780
      %795 = vmatprep.subr.mxu0 0.0
      %796 = vmatpush1.msra.mxu0 %v779
      %797 = vmatprep.subr.mxu0 0.0
      %798 = vmatpush1.msra.mxu0 %v778
      %799 = vmatprep.subr.mxu0 0.0
      %800 = vmatpush1.msra.mxu0 %v777
      %801 = vmatprep.subr.mxu0 0.0
      %802 = vmatpush1.msra.mxu0 %v776
      %803 = vmatprep.subr.mxu0 0.0
      %804 = vmatpush1.msra.mxu0 %v775
      %805 = vmatprep.subr.mxu0 0.0
      %806 = vmatpush1.msra.mxu0 %v774
      %807 = vmatprep.subr.mxu0 0.0
      %808 = vmatpush1.msra.mxu0 %v773
      %809 = vmatprep.subr.mxu0 0.0
      %810 = vmatpush1.msra.mxu0 %v772
      %811 = vmatprep.subr.mxu0 0.0
      %812 = vmatpush1.msra.mxu0 %v771
      %813 = vmatprep.subr.mxu0 0.0
      %814 = vmatpush1.msra.mxu0 %v770
      %815 = vmatprep.subr.mxu0 0.0
      %816 = vmatpush1.msra.mxu0 %v769
      %817 = vmatprep.subr.mxu0 0.0
      %818 = vmatpush2.msra.mxu0 0.0
      %819 = vmatprep.subr.mxu0 0.0
      %820 = vmatpush2.msra.mxu0 0.0
      %821 = vmatprep.subr.mxu0 0.0
      %822 = vmatpush2.msra.mxu0 0.0
      %823 = vmatprep.subr.mxu0 0.0
      %824 = vmatpush2.msra.mxu0 0.0
      %825 = vmatprep.subr.mxu0 0.0
      %826 = vmatpush2.msra.mxu0 0.0
      %827 = vmatprep.subr.mxu0 0.0
      %828 = vmatpush2.msra.mxu0 0.0
      %829 = vmatprep.subr.mxu0 0.0
      %830 = vmatpush2.msra.mxu0 0.0
      %831 = vmatprep.subr.mxu0 0.0
      %832 = vmatpush2.msra.mxu0 0.0
      %833 = vmatprep.subr.mxu0 0.0
      %834 = vmatpush2.msra.mxu0 0.0
      %835 = vmatprep.subr.mxu0 0.0
      %836 = vmatpush2.msra.mxu0 0.0
      %837 = vmatprep.subr.mxu0 0.0
      %838 = vmatpush2.msra.mxu0 0.0
      %839 = vmatprep.subr.mxu0 0.0
      %840 = vmatpush2.msra.mxu0 0.0
      %841 = vmatprep.subr.mxu0 0.0
      %842 = vmatpush2.msra.mxu0 0.0
      %843 = vmatprep.subr.mxu0 0.0
      %844 = vmatpush2.msra.mxu0 0.0
      %845 = vmatprep.subr.mxu0 0.0
      %846 = vmatpush2.msra.mxu0 0.0
      %847 = vmatprep.subr.mxu0 0.0
      %848 = vmatpush2.msra.mxu0 0.0
      %849 = vmatprep.mubr.f32.mxu0 0.0
      %850 = vmatmul.mubr.f32.gmra.mxu0 %v758
      %v851 = vpop.f32.mrf.mxu0
      %v852 = vadd.f32 0.0, %v851
      %v853 = vpop.f32.mrf.mxu0
      %854 = vmatprep.mubr.f32.mxu0 0.0
      %855 = vmatmul.mubr.f32.gmra.mxu0 %v759
      %v856 = vpop.f32.mrf.mxu0
      %v857 = vadd.f32 0.0, %v856
      %v858 = vpop.f32.mrf.mxu0
      %859 = vmatprep.mubr.f32.mxu0 0.0
      %860 = vmatmul.mubr.f32.gmra.mxu0 %v760
      %v861 = vpop.f32.mrf.mxu0
      %v862 = vadd.f32 0.0, %v861
      %v863 = vpop.f32.mrf.mxu0
      %864 = vmatprep.mubr.f32.mxu0 0.0
      %865 = vmatmul.mubr.f32.gmra.mxu0 %v761
      %v866 = vpop.f32.mrf.mxu0
      %v867 = vadd.f32 0.0, %v866
      %v868 = vpop.f32.mrf.mxu0
      %869 = vmatprep.mubr.f32.mxu0 0.0
      %870 = vmatmul.mubr.f32.gmra.mxu0 %v762
      %v871 = vpop.f32.mrf.mxu0
      %v872 = vadd.f32 0.0, %v871
      %v873 = vpop.f32.mrf.mxu0
      %874 = vmatprep.mubr.f32.mxu0 0.0
      %875 = vmatmul.mubr.f32.gmra.mxu0 %v763
      %v876 = vpop.f32.mrf.mxu0
      %v877 = vadd.f32 0.0, %v876
      %v878 = vpop.f32.mrf.mxu0
      %879 = vmatprep.mubr.f32.mxu0 0.0
      %880 = vmatmul.mubr.f32.gmra.mxu0 %v764
      %v881 = vpop.f32.mrf.mxu0
      %v882 = vadd.f32 0.0, %v881
      %v883 = vpop.f32.mrf.mxu0
      %884 = vmatprep.mubr.f32.mxu0 0.0
      %885 = vmatmul.mubr.f32.gmra.mxu0 %v765
      %v886 = vpop.f32.mrf.mxu0
      %v887 = vadd.f32 0.0, %v886
      %v888 = vpop.f32.mrf.mxu0
      %889 = vmatprep.mubr.f32.mxu0 0.0
      %890 = vmatmul.mubr.f32.gmra.mxu0 %v766
      %v891 = vpop.f32.mrf.mxu0
      %v892 = vadd.f32 0.0, %v891
      %v893 = vpop.f32.mrf.mxu0
      %894 = vmatprep.mubr.f32.mxu0 0.0
      %895 = vmatmul.mubr.f32.gmra.mxu0 %v767
      %v896 = vpop.f32.mrf.mxu0
      %v897 = vadd.f32 0.0, %v896
      %v898 = vpop.f32.mrf.mxu0
      %899 = vdwg.mxu0
      %v900 = vadd.f32 %v748, %v852
      %v901 = vadd.f32 %v749, %v857
      %v902 = vadd.f32 %v750, %v862
      %v903 = vadd.f32 %v751, %v867
      %v904 = vadd.f32 %v752, %v872
      %v905 = vadd.f32 %v753, %v877
      %v906 = vadd.f32 %v754, %v882
      %v907 = vadd.f32 %v755, %v887
      %v908 = vadd.f32 %v756, %v892
      %v909 = vadd.f32 %v757, %v897
      %v910 = vld [vmem:[%s165 + $0xc] sm:$0xff]
      %v911 = vld [vmem:[%s165 + $0x14] sm:$0xff]
      %v912 = vld [vmem:[%s165 + $0x1c] sm:$0xff]
      %v913 = vld [vmem:[%s165 + $0x24] sm:$0xff]
      %v914 = vld [vmem:[%s165 + $0x2c] sm:$0xff]
      %v915 = vld [vmem:[%s165 + $0x34] sm:$0xff]
      %v916 = vld [vmem:[%s165 + $0x3c] sm:$0xff]
      %v917 = vld [vmem:[%s165 + $0x44] sm:$0xff]
      %v918 = vld [vmem:[%s165 + $0x4c] sm:$0xff]
      %v919 = vld [vmem:[%s165 + $0x54] sm:$0x3f]
      %s920 = scalar_lea.vmem %s1, 640
      %v921 = vld [vmem:[%s920] sm:$0xff]
      %v922 = vld [vmem:[%s920 + $0x8] sm:$0xff]
      %v923 = vld [vmem:[%s920 + $0x10] sm:$0xff]
      %v924 = vld [vmem:[%s920 + $0x18] sm:$0xff]
      %v925 = vld [vmem:[%s920 + $0x20] sm:$0xff]
      %v926 = vld [vmem:[%s920 + $0x28] sm:$0xff]
      %v927 = vld [vmem:[%s920 + $0x30] sm:$0xff]
      %v928 = vld [vmem:[%s920 + $0x38] sm:$0xff]
      %v929 = vld [vmem:[%s920 + $0x40] sm:$0xff]
      %v930 = vld [vmem:[%s920 + $0x48] sm:$0xff]
      %v931 = vld [vmem:[%s920 + $0x50] sm:$0xff]
      %v932 = vld [vmem:[%s920 + $0x58] sm:$0xff]
      %v933 = vld [vmem:[%s920 + $0x60] sm:$0xff]
      %v934 = vld [vmem:[%s920 + $0x68] sm:$0xff]
      %v935 = vld [vmem:[%s920 + $0x70] sm:$0xff]
      %v936 = vld [vmem:[%s920 + $0x78] sm:$0xff]
      %937 = vmatprep.subr.mxu0 0.0
      %938 = vmatpush1.msra.mxu0 %v936
      %939 = vmatprep.subr.mxu0 0.0
      %940 = vmatpush1.msra.mxu0 %v935
      %941 = vmatprep.subr.mxu0 0.0
      %942 = vmatpush1.msra.mxu0 %v934
      %943 = vmatprep.subr.mxu0 0.0
      %944 = vmatpush1.msra.mxu0 %v933
      %945 = vmatprep.subr.mxu0 0.0
      %946 = vmatpush1.msra.mxu0 %v932
      %947 = vmatprep.subr.mxu0 0.0
      %948 = vmatpush1.msra.mxu0 %v931
      %949 = vmatprep.subr.mxu0 0.0
      %950 = vmatpush1.msra.mxu0 %v930
      %951 = vmatprep.subr.mxu0 0.0
      %952 = vmatpush1.msra.mxu0 %v929
      %953 = vmatprep.subr.mxu0 0.0
      %954 = vmatpush1.msra.mxu0 %v928
      %955 = vmatprep.subr.mxu0 0.0
      %956 = vmatpush1.msra.mxu0 %v927
      %957 = vmatprep.subr.mxu0 0.0
      %958 = vmatpush1.msra.mxu0 %v926
      %959 = vmatprep.subr.mxu0 0.0
      %960 = vmatpush1.msra.mxu0 %v925
      %961 = vmatprep.subr.mxu0 0.0
      %962 = vmatpush1.msra.mxu0 %v924
      %963 = vmatprep.subr.mxu0 0.0
      %964 = vmatpush1.msra.mxu0 %v923
      %965 = vmatprep.subr.mxu0 0.0
      %966 = vmatpush1.msra.mxu0 %v922
      %967 = vmatprep.subr.mxu0 0.0
      %968 = vmatpush1.msra.mxu0 %v921
      %969 = vmatprep.subr.mxu0 0.0
      %970 = vmatpush2.msra.mxu0 0.0
      %971 = vmatprep.subr.mxu0 0.0
      %972 = vmatpush2.msra.mxu0 0.0
      %973 = vmatprep.subr.mxu0 0.0
      %974 = vmatpush2.msra.mxu0 0.0
      %975 = vmatprep.subr.mxu0 0.0
      %976 = vmatpush2.msra.mxu0 0.0
      %977 = vmatprep.subr.mxu0 0.0
      %978 = vmatpush2.msra.mxu0 0.0
      %979 = vmatprep.subr.mxu0 0.0
      %980 = vmatpush2.msra.mxu0 0.0
      %981 = vmatprep.subr.mxu0 0.0
      %982 = vmatpush2.msra.mxu0 0.0
      %983 = vmatprep.subr.mxu0 0.0
      %984 = vmatpush2.msra.mxu0 0.0
      %985 = vmatprep.subr.mxu0 0.0
      %986 = vmatpush2.msra.mxu0 0.0
      %987 = vmatprep.subr.mxu0 0.0
      %988 = vmatpush2.msra.mxu0 0.0
      %989 = vmatprep.subr.mxu0 0.0
      %990 = vmatpush2.msra.mxu0 0.0
      %991 = vmatprep.subr.mxu0 0.0
      %992 = vmatpush2.msra.mxu0 0.0
      %993 = vmatprep.subr.mxu0 0.0
      %994 = vmatpush2.msra.mxu0 0.0
      %995 = vmatprep.subr.mxu0 0.0
      %996 = vmatpush2.msra.mxu0 0.0
      %997 = vmatprep.subr.mxu0 0.0
      %998 = vmatpush2.msra.mxu0 0.0
      %999 = vmatprep.subr.mxu0 0.0
      %1000 = vmatpush2.msra.mxu0 0.0
      %1001 = vmatprep.mubr.f32.mxu0 0.0
      %1002 = vmatmul.mubr.f32.gmra.mxu0 %v910
      %v1003 = vpop.f32.mrf.mxu0
      %v1004 = vadd.f32 0.0, %v1003
      %v1005 = vpop.f32.mrf.mxu0
      %1006 = vmatprep.mubr.f32.mxu0 0.0
      %1007 = vmatmul.mubr.f32.gmra.mxu0 %v911
      %v1008 = vpop.f32.mrf.mxu0
      %v1009 = vadd.f32 0.0, %v1008
      %v1010 = vpop.f32.mrf.mxu0
      %1011 = vmatprep.mubr.f32.mxu0 0.0
      %1012 = vmatmul.mubr.f32.gmra.mxu0 %v912
      %v1013 = vpop.f32.mrf.mxu0
      %v1014 = vadd.f32 0.0, %v1013
      %v1015 = vpop.f32.mrf.mxu0
      %1016 = vmatprep.mubr.f32.mxu0 0.0
      %1017 = vmatmul.mubr.f32.gmra.mxu0 %v913
      %v1018 = vpop.f32.mrf.mxu0
      %v1019 = vadd.f32 0.0, %v1018
      %v1020 = vpop.f32.mrf.mxu0
      %1021 = vmatprep.mubr.f32.mxu0 0.0
      %1022 = vmatmul.mubr.f32.gmra.mxu0 %v914
      %v1023 = vpop.f32.mrf.mxu0
      %v1024 = vadd.f32 0.0, %v1023
      %v1025 = vpop.f32.mrf.mxu0
      %1026 = vmatprep.mubr.f32.mxu0 0.0
      %1027 = vmatmul.mubr.f32.gmra.mxu0 %v915
      %v1028 = vpop.f32.mrf.mxu0
      %v1029 = vadd.f32 0.0, %v1028
      %v1030 = vpop.f32.mrf.mxu0
      %1031 = vmatprep.mubr.f32.mxu0 0.0
      %1032 = vmatmul.mubr.f32.gmra.mxu0 %v916
      %v1033 = vpop.f32.mrf.mxu0
      %v1034 = vadd.f32 0.0, %v1033
      %v1035 = vpop.f32.mrf.mxu0
      %1036 = vmatprep.mubr.f32.mxu0 0.0
      %1037 = vmatmul.mubr.f32.gmra.mxu0 %v917
      %v1038 = vpop.f32.mrf.mxu0
      %v1039 = vadd.f32 0.0, %v1038
      %v1040 = vpop.f32.mrf.mxu0
      %1041 = vmatprep.mubr.f32.mxu0 0.0
      %1042 = vmatmul.mubr.f32.gmra.mxu0 %v918
      %v1043 = vpop.f32.mrf.mxu0
      %v1044 = vadd.f32 0.0, %v1043
      %v1045 = vpop.f32.mrf.mxu0
      %1046 = vmatprep.mubr.f32.mxu0 0.0
      %1047 = vmatmul.mubr.f32.gmra.mxu0 %v919
      %v1048 = vpop.f32.mrf.mxu0
      %v1049 = vadd.f32 0.0, %v1048
      %v1050 = vpop.f32.mrf.mxu0
      %1051 = vdwg.mxu0
      %v1052 = vadd.f32 %v900, %v1004
      %v1053 = vadd.f32 %v901, %v1009
      %v1054 = vadd.f32 %v902, %v1014
      %v1055 = vadd.f32 %v903, %v1019
      %v1056 = vadd.f32 %v904, %v1024
      %v1057 = vadd.f32 %v905, %v1029
      %v1058 = vadd.f32 %v906, %v1034
      %v1059 = vadd.f32 %v907, %v1039
      %v1060 = vadd.f32 %v908, %v1044
      %v1061 = vadd.f32 %v909, %v1049
      %v1062 = vld [vmem:[%s165 + $0x14] sm:$0xff]
      %v1063 = vld [vmem:[%s165 + $0x1c] sm:$0xff]
      %v1064 = vld [vmem:[%s165 + $0x24] sm:$0xff]
      %v1065 = vld [vmem:[%s165 + $0x2c] sm:$0xff]
      %v1066 = vld [vmem:[%s165 + $0x34] sm:$0xff]
      %v1067 = vld [vmem:[%s165 + $0x3c] sm:$0xff]
      %v1068 = vld [vmem:[%s165 + $0x44] sm:$0xff]
      %v1069 = vld [vmem:[%s165 + $0x4c] sm:$0xff]
      %v1070 = vld [vmem:[%s165 + $0x54] sm:$0xff]
      %v1071 = vld [vmem:[%s165 + $0x5c] sm:$0x3f]
      %s1072 = scalar_lea.vmem %s1, 768
      %v1073 = vld [vmem:[%s1072] sm:$0xff]
      %v1074 = vld [vmem:[%s1072 + $0x8] sm:$0xff]
      %v1075 = vld [vmem:[%s1072 + $0x10] sm:$0xff]
      %v1076 = vld [vmem:[%s1072 + $0x18] sm:$0xff]
      %v1077 = vld [vmem:[%s1072 + $0x20] sm:$0xff]
      %v1078 = vld [vmem:[%s1072 + $0x28] sm:$0xff]
      %v1079 = vld [vmem:[%s1072 + $0x30] sm:$0xff]
      %v1080 = vld [vmem:[%s1072 + $0x38] sm:$0xff]
      %v1081 = vld [vmem:[%s1072 + $0x40] sm:$0xff]
      %v1082 = vld [vmem:[%s1072 + $0x48] sm:$0xff]
      %v1083 = vld [vmem:[%s1072 + $0x50] sm:$0xff]
      %v1084 = vld [vmem:[%s1072 + $0x58] sm:$0xff]
      %v1085 = vld [vmem:[%s1072 + $0x60] sm:$0xff]
      %v1086 = vld [vmem:[%s1072 + $0x68] sm:$0xff]
      %v1087 = vld [vmem:[%s1072 + $0x70] sm:$0xff]
      %v1088 = vld [vmem:[%s1072 + $0x78] sm:$0xff]
      %1089 = vmatprep.subr.mxu0 0.0
      %1090 = vmatpush1.msra.mxu0 %v1088
      %1091 = vmatprep.subr.mxu0 0.0
      %1092 = vmatpush1.msra.mxu0 %v1087
      %1093 = vmatprep.subr.mxu0 0.0
      %1094 = vmatpush1.msra.mxu0 %v1086
      %1095 = vmatprep.subr.mxu0 0.0
      %1096 = vmatpush1.msra.mxu0 %v1085
      %1097 = vmatprep.subr.mxu0 0.0
      %1098 = vmatpush1.msra.mxu0 %v1084
      %1099 = vmatprep.subr.mxu0 0.0
      %1100 = vmatpush1.msra.mxu0 %v1083
      %1101 = vmatprep.subr.mxu0 0.0
      %1102 = vmatpush1.msra.mxu0 %v1082
      %1103 = vmatprep.subr.mxu0 0.0
      %1104 = vmatpush1.msra.mxu0 %v1081
      %1105 = vmatprep.subr.mxu0 0.0
      %1106 = vmatpush1.msra.mxu0 %v1080
      %1107 = vmatprep.subr.mxu0 0.0
      %1108 = vmatpush1.msra.mxu0 %v1079
      %1109 = vmatprep.subr.mxu0 0.0
      %1110 = vmatpush1.msra.mxu0 %v1078
      %1111 = vmatprep.subr.mxu0 0.0
      %1112 = vmatpush1.msra.mxu0 %v1077
      %1113 = vmatprep.subr.mxu0 0.0
      %1114 = vmatpush1.msra.mxu0 %v1076
      %1115 = vmatprep.subr.mxu0 0.0
      %1116 = vmatpush1.msra.mxu0 %v1075
      %1117 = vmatprep.subr.mxu0 0.0
      %1118 = vmatpush1.msra.mxu0 %v1074
      %1119 = vmatprep.subr.mxu0 0.0
      %1120 = vmatpush1.msra.mxu0 %v1073
      %1121 = vmatprep.subr.mxu0 0.0
      %1122 = vmatpush2.msra.mxu0 0.0
      %1123 = vmatprep.subr.mxu0 0.0
      %1124 = vmatpush2.msra.mxu0 0.0
      %1125 = vmatprep.subr.mxu0 0.0
      %1126 = vmatpush2.msra.mxu0 0.0
      %1127 = vmatprep.subr.mxu0 0.0
      %1128 = vmatpush2.msra.mxu0 0.0
      %1129 = vmatprep.subr.mxu0 0.0
      %1130 = vmatpush2.msra.mxu0 0.0
      %1131 = vmatprep.subr.mxu0 0.0
      %1132 = vmatpush2.msra.mxu0 0.0
      %1133 = vmatprep.subr.mxu0 0.0
      %1134 = vmatpush2.msra.mxu0 0.0
      %1135 = vmatprep.subr.mxu0 0.0
      %1136 = vmatpush2.msra.mxu0 0.0
      %1137 = vmatprep.subr.mxu0 0.0
      %1138 = vmatpush2.msra.mxu0 0.0
      %1139 = vmatprep.subr.mxu0 0.0
      %1140 = vmatpush2.msra.mxu0 0.0
      %1141 = vmatprep.subr.mxu0 0.0
      %1142 = vmatpush2.msra.mxu0 0.0
      %1143 = vmatprep.subr.mxu0 0.0
      %1144 = vmatpush2.msra.mxu0 0.0
      %1145 = vmatprep.subr.mxu0 0.0
      %1146 = vmatpush2.msra.mxu0 0.0
      %1147 = vmatprep.subr.mxu0 0.0
      %1148 = vmatpush2.msra.mxu0 0.0
      %1149 = vmatprep.subr.mxu0 0.0
      %1150 = vmatpush2.msra.mxu0 0.0
      %1151 = vmatprep.subr.mxu0 0.0
      %1152 = vmatpush2.msra.mxu0 0.0
      %1153 = vmatprep.mubr.f32.mxu0 0.0
      %1154 = vmatmul.mubr.f32.gmra.mxu0 %v1062
      %v1155 = vpop.f32.mrf.mxu0
      %v1156 = vadd.f32 0.0, %v1155
      %v1157 = vpop.f32.mrf.mxu0
      %1158 = vmatprep.mubr.f32.mxu0 0.0
      %1159 = vmatmul.mubr.f32.gmra.mxu0 %v1063
      %v1160 = vpop.f32.mrf.mxu0
      %v1161 = vadd.f32 0.0, %v1160
      %v1162 = vpop.f32.mrf.mxu0
      %1163 = vmatprep.mubr.f32.mxu0 0.0
      %1164 = vmatmul.mubr.f32.gmra.mxu0 %v1064
      %v1165 = vpop.f32.mrf.mxu0
      %v1166 = vadd.f32 0.0, %v1165
      %v1167 = vpop.f32.mrf.mxu0
      %1168 = vmatprep.mubr.f32.mxu0 0.0
      %1169 = vmatmul.mubr.f32.gmra.mxu0 %v1065
      %v1170 = vpop.f32.mrf.mxu0
      %v1171 = vadd.f32 0.0, %v1170
      %v1172 = vpop.f32.mrf.mxu0
      %1173 = vmatprep.mubr.f32.mxu0 0.0
      %1174 = vmatmul.mubr.f32.gmra.mxu0 %v1066
      %v1175 = vpop.f32.mrf.mxu0
      %v1176 = vadd.f32 0.0, %v1175
      %v1177 = vpop.f32.mrf.mxu0
      %1178 = vmatprep.mubr.f32.mxu0 0.0
      %1179 = vmatmul.mubr.f32.gmra.mxu0 %v1067
      %v1180 = vpop.f32.mrf.mxu0
      %v1181 = vadd.f32 0.0, %v1180
      %v1182 = vpop.f32.mrf.mxu0
      %1183 = vmatprep.mubr.f32.mxu0 0.0
      %1184 = vmatmul.mubr.f32.gmra.mxu0 %v1068
      %v1185 = vpop.f32.mrf.mxu0
      %v1186 = vadd.f32 0.0, %v1185
      %v1187 = vpop.f32.mrf.mxu0
      %1188 = vmatprep.mubr.f32.mxu0 0.0
      %1189 = vmatmul.mubr.f32.gmra.mxu0 %v1069
      %v1190 = vpop.f32.mrf.mxu0
      %v1191 = vadd.f32 0.0, %v1190
      %v1192 = vpop.f32.mrf.mxu0
      %1193 = vmatprep.mubr.f32.mxu0 0.0
      %1194 = vmatmul.mubr.f32.gmra.mxu0 %v1070
      %v1195 = vpop.f32.mrf.mxu0
      %v1196 = vadd.f32 0.0, %v1195
      %v1197 = vpop.f32.mrf.mxu0
      %1198 = vmatprep.mubr.f32.mxu0 0.0
      %1199 = vmatmul.mubr.f32.gmra.mxu0 %v1071
      %v1200 = vpop.f32.mrf.mxu0
      %v1201 = vadd.f32 0.0, %v1200
      %v1202 = vpop.f32.mrf.mxu0
      %1203 = vdwg.mxu0
      %v1204 = vadd.f32 %v1052, %v1156
      %v1205 = vadd.f32 %v1053, %v1161
      %v1206 = vadd.f32 %v1054, %v1166
      %v1207 = vadd.f32 %v1055, %v1171
      %v1208 = vadd.f32 %v1056, %v1176
      %v1209 = vadd.f32 %v1057, %v1181
      %v1210 = vadd.f32 %v1058, %v1186
      %v1211 = vadd.f32 %v1059, %v1191
      %v1212 = vadd.f32 %v1060, %v1196
      %v1213 = vadd.f32 %v1061, %v1201
      %v1214 = vld [vmem:[%s165 + $0x15] sm:$0xff]
      %v1215 = vld [vmem:[%s165 + $0x1d] sm:$0xff]
      %v1216 = vld [vmem:[%s165 + $0x25] sm:$0xff]
      %v1217 = vld [vmem:[%s165 + $0x2d] sm:$0xff]
      %v1218 = vld [vmem:[%s165 + $0x35] sm:$0xff]
      %v1219 = vld [vmem:[%s165 + $0x3d] sm:$0xff]
      %v1220 = vld [vmem:[%s165 + $0x45] sm:$0xff]
      %v1221 = vld [vmem:[%s165 + $0x4d] sm:$0xff]
      %v1222 = vld [vmem:[%s165 + $0x55] sm:$0xff]
      %v1223 = vld [vmem:[%s165 + $0x5d] sm:$0x3f]
      %s1224 = scalar_lea.vmem %s1, 896
      %v1225 = vld [vmem:[%s1224] sm:$0xff]
      %v1226 = vld [vmem:[%s1224 + $0x8] sm:$0xff]
      %v1227 = vld [vmem:[%s1224 + $0x10] sm:$0xff]
      %v1228 = vld [vmem:[%s1224 + $0x18] sm:$0xff]
      %v1229 = vld [vmem:[%s1224 + $0x20] sm:$0xff]
      %v1230 = vld [vmem:[%s1224 + $0x28] sm:$0xff]
      %v1231 = vld [vmem:[%s1224 + $0x30] sm:$0xff]
      %v1232 = vld [vmem:[%s1224 + $0x38] sm:$0xff]
      %v1233 = vld [vmem:[%s1224 + $0x40] sm:$0xff]
      %v1234 = vld [vmem:[%s1224 + $0x48] sm:$0xff]
      %v1235 = vld [vmem:[%s1224 + $0x50] sm:$0xff]
      %v1236 = vld [vmem:[%s1224 + $0x58] sm:$0xff]
      %v1237 = vld [vmem:[%s1224 + $0x60] sm:$0xff]
      %v1238 = vld [vmem:[%s1224 + $0x68] sm:$0xff]
      %v1239 = vld [vmem:[%s1224 + $0x70] sm:$0xff]
      %v1240 = vld [vmem:[%s1224 + $0x78] sm:$0xff]
      %1241 = vmatprep.subr.mxu0 0.0
      %1242 = vmatpush1.msra.mxu0 %v1240
      %1243 = vmatprep.subr.mxu0 0.0
      %1244 = vmatpush1.msra.mxu0 %v1239
      %1245 = vmatprep.subr.mxu0 0.0
      %1246 = vmatpush1.msra.mxu0 %v1238
      %1247 = vmatprep.subr.mxu0 0.0
      %1248 = vmatpush1.msra.mxu0 %v1237
      %1249 = vmatprep.subr.mxu0 0.0
      %1250 = vmatpush1.msra.mxu0 %v1236
      %1251 = vmatprep.subr.mxu0 0.0
      %1252 = vmatpush1.msra.mxu0 %v1235
      %1253 = vmatprep.subr.mxu0 0.0
      %1254 = vmatpush1.msra.mxu0 %v1234
      %1255 = vmatprep.subr.mxu0 0.0
      %1256 = vmatpush1.msra.mxu0 %v1233
      %1257 = vmatprep.subr.mxu0 0.0
      %1258 = vmatpush1.msra.mxu0 %v1232
      %1259 = vmatprep.subr.mxu0 0.0
      %1260 = vmatpush1.msra.mxu0 %v1231
      %1261 = vmatprep.subr.mxu0 0.0
      %1262 = vmatpush1.msra.mxu0 %v1230
      %1263 = vmatprep.subr.mxu0 0.0
      %1264 = vmatpush1.msra.mxu0 %v1229
      %1265 = vmatprep.subr.mxu0 0.0
      %1266 = vmatpush1.msra.mxu0 %v1228
      %1267 = vmatprep.subr.mxu0 0.0
      %1268 = vmatpush1.msra.mxu0 %v1227
      %1269 = vmatprep.subr.mxu0 0.0
      %1270 = vmatpush1.msra.mxu0 %v1226
      %1271 = vmatprep.subr.mxu0 0.0
      %1272 = vmatpush1.msra.mxu0 %v1225
      %1273 = vmatprep.subr.mxu0 0.0
      %1274 = vmatpush2.msra.mxu0 0.0
      %1275 = vmatprep.subr.mxu0 0.0
      %1276 = vmatpush2.msra.mxu0 0.0
      %1277 = vmatprep.subr.mxu0 0.0
      %1278 = vmatpush2.msra.mxu0 0.0
      %1279 = vmatprep.subr.mxu0 0.0
      %1280 = vmatpush2.msra.mxu0 0.0
      %1281 = vmatprep.subr.mxu0 0.0
      %1282 = vmatpush2.msra.mxu0 0.0
      %1283 = vmatprep.subr.mxu0 0.0
      %1284 = vmatpush2.msra.mxu0 0.0
      %1285 = vmatprep.subr.mxu0 0.0
      %1286 = vmatpush2.msra.mxu0 0.0
      %1287 = vmatprep.subr.mxu0 0.0
      %1288 = vmatpush2.msra.mxu0 0.0
      %1289 = vmatprep.subr.mxu0 0.0
      %1290 = vmatpush2.msra.mxu0 0.0
      %1291 = vmatprep.subr.mxu0 0.0
      %1292 = vmatpush2.msra.mxu0 0.0
      %1293 = vmatprep.subr.mxu0 0.0
      %1294 = vmatpush2.msra.mxu0 0.0
      %1295 = vmatprep.subr.mxu0 0.0
      %1296 = vmatpush2.msra.mxu0 0.0
      %1297 = vmatprep.subr.mxu0 0.0
      %1298 = vmatpush2.msra.mxu0 0.0
      %1299 = vmatprep.subr.mxu0 0.0
      %1300 = vmatpush2.msra.mxu0 0.0
      %1301 = vmatprep.subr.mxu0 0.0
      %1302 = vmatpush2.msra.mxu0 0.0
      %1303 = vmatprep.subr.mxu0 0.0
      %1304 = vmatpush2.msra.mxu0 0.0
      %1305 = vmatprep.mubr.f32.mxu0 0.0
      %1306 = vmatmul.mubr.f32.gmra.mxu0 %v1214
      %v1307 = vpop.f32.mrf.mxu0
      %v1308 = vadd.f32 0.0, %v1307
      %v1309 = vpop.f32.mrf.mxu0
      %1310 = vmatprep.mubr.f32.mxu0 0.0
      %1311 = vmatmul.mubr.f32.gmra.mxu0 %v1215
      %v1312 = vpop.f32.mrf.mxu0
      %v1313 = vadd.f32 0.0, %v1312
      %v1314 = vpop.f32.mrf.mxu0
      %1315 = vmatprep.mubr.f32.mxu0 0.0
      %1316 = vmatmul.mubr.f32.gmra.mxu0 %v1216
      %v1317 = vpop.f32.mrf.mxu0
      %v1318 = vadd.f32 0.0, %v1317
      %v1319 = vpop.f32.mrf.mxu0
      %1320 = vmatprep.mubr.f32.mxu0 0.0
      %1321 = vmatmul.mubr.f32.gmra.mxu0 %v1217
      %v1322 = vpop.f32.mrf.mxu0
      %v1323 = vadd.f32 0.0, %v1322
      %v1324 = vpop.f32.mrf.mxu0
      %1325 = vmatprep.mubr.f32.mxu0 0.0
      %1326 = vmatmul.mubr.f32.gmra.mxu0 %v1218
      %v1327 = vpop.f32.mrf.mxu0
      %v1328 = vadd.f32 0.0, %v1327
      %v1329 = vpop.f32.mrf.mxu0
      %1330 = vmatprep.mubr.f32.mxu0 0.0
      %1331 = vmatmul.mubr.f32.gmra.mxu0 %v1219
      %v1332 = vpop.f32.mrf.mxu0
      %v1333 = vadd.f32 0.0, %v1332
      %v1334 = vpop.f32.mrf.mxu0
      %1335 = vmatprep.mubr.f32.mxu0 0.0
      %1336 = vmatmul.mubr.f32.gmra.mxu0 %v1220
      %v1337 = vpop.f32.mrf.mxu0
      %v1338 = vadd.f32 0.0, %v1337
      %v1339 = vpop.f32.mrf.mxu0
      %1340 = vmatprep.mubr.f32.mxu0 0.0
      %1341 = vmatmul.mubr.f32.gmra.mxu0 %v1221
      %v1342 = vpop.f32.mrf.mxu0
      %v1343 = vadd.f32 0.0, %v1342
      %v1344 = vpop.f32.mrf.mxu0
      %1345 = vmatprep.mubr.f32.mxu0 0.0
      %1346 = vmatmul.mubr.f32.gmra.mxu0 %v1222
      %v1347 = vpop.f32.mrf.mxu0
      %v1348 = vadd.f32 0.0, %v1347
      %v1349 = vpop.f32.mrf.mxu0
      %1350 = vmatprep.mubr.f32.mxu0 0.0
      %1351 = vmatmul.mubr.f32.gmra.mxu0 %v1223
      %v1352 = vpop.f32.mrf.mxu0
      %v1353 = vadd.f32 0.0, %v1352
      %v1354 = vpop.f32.mrf.mxu0
      %1355 = vdwg.mxu0
      %v1356 = vadd.f32 %v1204, %v1308
      %v1357 = vadd.f32 %v1205, %v1313
      %v1358 = vadd.f32 %v1206, %v1318
      %v1359 = vadd.f32 %v1207, %v1323
      %v1360 = vadd.f32 %v1208, %v1328
      %v1361 = vadd.f32 %v1209, %v1333
      %v1362 = vadd.f32 %v1210, %v1338
      %v1363 = vadd.f32 %v1211, %v1343
      %v1364 = vadd.f32 %v1212, %v1348
      %v1365 = vadd.f32 %v1213, %v1353
      %v1366 = vld [vmem:[%s165 + $0x16] sm:$0xff]
      %v1367 = vld [vmem:[%s165 + $0x1e] sm:$0xff]
      %v1368 = vld [vmem:[%s165 + $0x26] sm:$0xff]
      %v1369 = vld [vmem:[%s165 + $0x2e] sm:$0xff]
      %v1370 = vld [vmem:[%s165 + $0x36] sm:$0xff]
      %v1371 = vld [vmem:[%s165 + $0x3e] sm:$0xff]
      %v1372 = vld [vmem:[%s165 + $0x46] sm:$0xff]
      %v1373 = vld [vmem:[%s165 + $0x4e] sm:$0xff]
      %v1374 = vld [vmem:[%s165 + $0x56] sm:$0xff]
      %v1375 = vld [vmem:[%s165 + $0x5e] sm:$0x3f]
      %s1376 = scalar_lea.vmem %s1, 1024
      %v1377 = vld [vmem:[%s1376] sm:$0xff]
      %v1378 = vld [vmem:[%s1376 + $0x8] sm:$0xff]
      %v1379 = vld [vmem:[%s1376 + $0x10] sm:$0xff]
      %v1380 = vld [vmem:[%s1376 + $0x18] sm:$0xff]
      %v1381 = vld [vmem:[%s1376 + $0x20] sm:$0xff]
      %v1382 = vld [vmem:[%s1376 + $0x28] sm:$0xff]
      %v1383 = vld [vmem:[%s1376 + $0x30] sm:$0xff]
      %v1384 = vld [vmem:[%s1376 + $0x38] sm:$0xff]
      %v1385 = vld [vmem:[%s1376 + $0x40] sm:$0xff]
      %v1386 = vld [vmem:[%s1376 + $0x48] sm:$0xff]
      %v1387 = vld [vmem:[%s1376 + $0x50] sm:$0xff]
      %v1388 = vld [vmem:[%s1376 + $0x58] sm:$0xff]
      %v1389 = vld [vmem:[%s1376 + $0x60] sm:$0xff]
      %v1390 = vld [vmem:[%s1376 + $0x68] sm:$0xff]
      %v1391 = vld [vmem:[%s1376 + $0x70] sm:$0xff]
      %v1392 = vld [vmem:[%s1376 + $0x78] sm:$0xff]
      %1393 = vmatprep.subr.mxu0 0.0
      %1394 = vmatpush1.msra.mxu0 %v1392
      %1395 = vmatprep.subr.mxu0 0.0
      %1396 = vmatpush1.msra.mxu0 %v1391
      %1397 = vmatprep.subr.mxu0 0.0
      %1398 = vmatpush1.msra.mxu0 %v1390
      %1399 = vmatprep.subr.mxu0 0.0
      %1400 = vmatpush1.msra.mxu0 %v1389
      %1401 = vmatprep.subr.mxu0 0.0
      %1402 = vmatpush1.msra.mxu0 %v1388
      %1403 = vmatprep.subr.mxu0 0.0
      %1404 = vmatpush1.msra.mxu0 %v1387
      %1405 = vmatprep.subr.mxu0 0.0
      %1406 = vmatpush1.msra.mxu0 %v1386
      %1407 = vmatprep.subr.mxu0 0.0
      %1408 = vmatpush1.msra.mxu0 %v1385
      %1409 = vmatprep.subr.mxu0 0.0
      %1410 = vmatpush1.msra.mxu0 %v1384
      %1411 = vmatprep.subr.mxu0 0.0
      %1412 = vmatpush1.msra.mxu0 %v1383
      %1413 = vmatprep.subr.mxu0 0.0
      %1414 = vmatpush1.msra.mxu0 %v1382
      %1415 = vmatprep.subr.mxu0 0.0
      %1416 = vmatpush1.msra.mxu0 %v1381
      %1417 = vmatprep.subr.mxu0 0.0
      %1418 = vmatpush1.msra.mxu0 %v1380
      %1419 = vmatprep.subr.mxu0 0.0
      %1420 = vmatpush1.msra.mxu0 %v1379
      %1421 = vmatprep.subr.mxu0 0.0
      %1422 = vmatpush1.msra.mxu0 %v1378
      %1423 = vmatprep.subr.mxu0 0.0
      %1424 = vmatpush1.msra.mxu0 %v1377
      %1425 = vmatprep.subr.mxu0 0.0
      %1426 = vmatpush2.msra.mxu0 0.0
      %1427 = vmatprep.subr.mxu0 0.0
      %1428 = vmatpush2.msra.mxu0 0.0
      %1429 = vmatprep.subr.mxu0 0.0
      %1430 = vmatpush2.msra.mxu0 0.0
      %1431 = vmatprep.subr.mxu0 0.0
      %1432 = vmatpush2.msra.mxu0 0.0
      %1433 = vmatprep.subr.mxu0 0.0
      %1434 = vmatpush2.msra.mxu0 0.0
      %1435 = vmatprep.subr.mxu0 0.0
      %1436 = vmatpush2.msra.mxu0 0.0
      %1437 = vmatprep.subr.mxu0 0.0
      %1438 = vmatpush2.msra.mxu0 0.0
      %1439 = vmatprep.subr.mxu0 0.0
      %1440 = vmatpush2.msra.mxu0 0.0
      %1441 = vmatprep.subr.mxu0 0.0
      %1442 = vmatpush2.msra.mxu0 0.0
      %1443 = vmatprep.subr.mxu0 0.0
      %1444 = vmatpush2.msra.mxu0 0.0
      %1445 = vmatprep.subr.mxu0 0.0
      %1446 = vmatpush2.msra.mxu0 0.0
      %1447 = vmatprep.subr.mxu0 0.0
      %1448 = vmatpush2.msra.mxu0 0.0
      %1449 = vmatprep.subr.mxu0 0.0
      %1450 = vmatpush2.msra.mxu0 0.0
      %1451 = vmatprep.subr.mxu0 0.0
      %1452 = vmatpush2.msra.mxu0 0.0
      %1453 = vmatprep.subr.mxu0 0.0
      %1454 = vmatpush2.msra.mxu0 0.0
      %1455 = vmatprep.subr.mxu0 0.0
      %1456 = vmatpush2.msra.mxu0 0.0
      %1457 = vmatprep.mubr.f32.mxu0 0.0
      %1458 = vmatmul.mubr.f32.gmra.mxu0 %v1366
      %v1459 = vpop.f32.mrf.mxu0
      %v1460 = vadd.f32 0.0, %v1459
      %v1461 = vpop.f32.mrf.mxu0
      %1462 = vmatprep.mubr.f32.mxu0 0.0
      %1463 = vmatmul.mubr.f32.gmra.mxu0 %v1367
      %v1464 = vpop.f32.mrf.mxu0
      %v1465 = vadd.f32 0.0, %v1464
      %v1466 = vpop.f32.mrf.mxu0
      %1467 = vmatprep.mubr.f32.mxu0 0.0
      %1468 = vmatmul.mubr.f32.gmra.mxu0 %v1368
      %v1469 = vpop.f32.mrf.mxu0
      %v1470 = vadd.f32 0.0, %v1469
      %v1471 = vpop.f32.mrf.mxu0
      %1472 = vmatprep.mubr.f32.mxu0 0.0
      %1473 = vmatmul.mubr.f32.gmra.mxu0 %v1369
      %v1474 = vpop.f32.mrf.mxu0
      %v1475 = vadd.f32 0.0, %v1474
      %v1476 = vpop.f32.mrf.mxu0
      %1477 = vmatprep.mubr.f32.mxu0 0.0
      %1478 = vmatmul.mubr.f32.gmra.mxu0 %v1370
      %v1479 = vpop.f32.mrf.mxu0
      %v1480 = vadd.f32 0.0, %v1479
      %v1481 = vpop.f32.mrf.mxu0
      %1482 = vmatprep.mubr.f32.mxu0 0.0
      %1483 = vmatmul.mubr.f32.gmra.mxu0 %v1371
      %v1484 = vpop.f32.mrf.mxu0
      %v1485 = vadd.f32 0.0, %v1484
      %v1486 = vpop.f32.mrf.mxu0
      %1487 = vmatprep.mubr.f32.mxu0 0.0
      %1488 = vmatmul.mubr.f32.gmra.mxu0 %v1372
      %v1489 = vpop.f32.mrf.mxu0
      %v1490 = vadd.f32 0.0, %v1489
      %v1491 = vpop.f32.mrf.mxu0
      %1492 = vmatprep.mubr.f32.mxu0 0.0
      %1493 = vmatmul.mubr.f32.gmra.mxu0 %v1373
      %v1494 = vpop.f32.mrf.mxu0
      %v1495 = vadd.f32 0.0, %v1494
      %v1496 = vpop.f32.mrf.mxu0
      %1497 = vmatprep.mubr.f32.mxu0 0.0
      %1498 = vmatmul.mubr.f32.gmra.mxu0 %v1374
      %v1499 = vpop.f32.mrf.mxu0
      %v1500 = vadd.f32 0.0, %v1499
      %v1501 = vpop.f32.mrf.mxu0
      %1502 = vmatprep.mubr.f32.mxu0 0.0
      %1503 = vmatmul.mubr.f32.gmra.mxu0 %v1375
      %v1504 = vpop.f32.mrf.mxu0
      %v1505 = vadd.f32 0.0, %v1504
      %v1506 = vpop.f32.mrf.mxu0
      %1507 = vdwg.mxu0
      %v1508 = vadd.f32 %v1356, %v1460
      %v1509 = vadd.f32 %v1357, %v1465
      %v1510 = vadd.f32 %v1358, %v1470
      %v1511 = vadd.f32 %v1359, %v1475
      %v1512 = vadd.f32 %v1360, %v1480
      %v1513 = vadd.f32 %v1361, %v1485
      %v1514 = vadd.f32 %v1362, %v1490
      %v1515 = vadd.f32 %v1363, %v1495
      %v1516 = vadd.f32 %v1364, %v1500
      %v1517 = vadd.f32 %v1365, %v1505
      %v1518 = vld [vmem:[%s2] sm:$0x1]
      %v1520 = vlaneseq
      %v1521 = vshrl.u32 %v1520, 7
      %v1522 = vsub.s32 0, %v1521
      %v1523 = vrot.slane %v1518, %v1522
      %v1525 = vadd.f32 %v1508, %v1523
      %v1526 = vadd.f32 %v1509, %v1523
      %v1527 = vadd.f32 %v1510, %v1523
      %v1528 = vadd.f32 %v1511, %v1523
      %v1529 = vadd.f32 %v1512, %v1523
      %v1530 = vadd.f32 %v1513, %v1523
      %v1531 = vadd.f32 %v1514, %v1523
      %v1532 = vadd.f32 %v1515, %v1523
      %v1533 = vadd.f32 %v1516, %v1523
      %v1534 = vadd.f32 %v1517, %v1523
      %v1535 = vmax.f32 %v1525, 0.0
      %v1536 = vmax.f32 %v1526, 0.0
      %v1537 = vmax.f32 %v1527, 0.0
      %v1538 = vmax.f32 %v1528, 0.0
      %v1539 = vmax.f32 %v1529, 0.0
      %v1540 = vmax.f32 %v1530, 0.0
      %v1541 = vmax.f32 %v1531, 0.0
      %v1542 = vmax.f32 %v1532, 0.0
      %v1543 = vmax.f32 %v1533, 0.0
      %v1544 = vmax.f32 %v1534, 0.0
      %1545 = vst [vmem:[#allocation2] sm:$0xff] %v1535
      %1546 = vst [vmem:[#allocation2 + $0x8] sm:$0xff] %v1536
      %1547 = vst [vmem:[#allocation2 + $0x10] sm:$0xff] %v1537
      %1548 = vst [vmem:[#allocation2 + $0x18] sm:$0xff] %v1538
      %1549 = vst [vmem:[#allocation2 + $0x20] sm:$0xff] %v1539
      %1550 = vst [vmem:[#allocation2 + $0x28] sm:$0xff] %v1540
      %1551 = vst [vmem:[#allocation2 + $0x30] sm:$0xff] %v1541
      %1552 = vst [vmem:[#allocation2 + $0x38] sm:$0xff] %v1542
      %1553 = vst [vmem:[#allocation2 + $0x40] sm:$0xff] %v1543
      %1554 = vst [vmem:[#allocation2 + $0x48] sm:$0x3f] %v1544
      %v1555 = vld [vmem:[#allocation2] ss:$2 sm:$0xf]
      %s1556 = scalar_lea.vmem [#allocation2], 1
      %v1557 = vld [vmem:[%s1556] ss:$2 sm:$0xf]
      %s1558 = scalar_lea.vmem [#allocation2], 10
      %v1559 = vld [vmem:[%s1558] ss:$2 sm:$0xf]
      %s1560 = scalar_lea.vmem [#allocation2], 11
      %v1561 = vld [vmem:[%s1560] ss:$2 sm:$0xf]
      %v1562 = vmax.f32 %v1555, %v1557
      %v1563 = vmax.f32 %v1559, %v1561
      %v1564 = vmax.f32 %v1562, %v1563
      %1565 = vst [vmem:[%s170] sm:$0xf] %v1564
      %s1566 = scalar_lea.vmem [#allocation2], 20
      %v1567 = vld [vmem:[%s1566] ss:$2 sm:$0xf]
      %s1568 = scalar_lea.vmem [#allocation2], 21
      %v1569 = vld [vmem:[%s1568] ss:$2 sm:$0xf]
      %s1570 = scalar_lea.vmem [#allocation2], 30
      %v1571 = vld [vmem:[%s1570] ss:$2 sm:$0xf]
      %s1572 = scalar_lea.vmem [#allocation2], 31
      %v1573 = vld [vmem:[%s1572] ss:$2 sm:$0xf]
      %v1574 = vmax.f32 %v1567, %v1569
      %v1575 = vmax.f32 %v1571, %v1573
      %v1576 = vmax.f32 %v1574, %v1575
      %s1577 = scalar_lea.vmem %s170, 4
      %1578 = vst [vmem:[%s1577] sm:$0xf] %v1576
      %s1579 = scalar_lea.vmem [#allocation2], 40
      %v1580 = vld [vmem:[%s1579] ss:$2 sm:$0xf]
      %s1581 = scalar_lea.vmem [#allocation2], 41
      %v1582 = vld [vmem:[%s1581] ss:$2 sm:$0xf]
      %s1583 = scalar_lea.vmem [#allocation2], 50
      %v1584 = vld [vmem:[%s1583] ss:$2 sm:$0xf]
      %s1585 = scalar_lea.vmem [#allocation2], 51
      %v1586 = vld [vmem:[%s1585] ss:$2 sm:$0xf]
      %v1587 = vmax.f32 %v1580, %v1582
      %v1588 = vmax.f32 %v1584, %v1586
      %v1589 = vmax.f32 %v1587, %v1588
      %s1590 = scalar_lea.vmem %s170, 8
      %1591 = vst [vmem:[%s1590] sm:$0xf] %v1589
      %s1592 = scalar_lea.vmem [#allocation2], 60
      %v1593 = vld [vmem:[%s1592] ss:$2 sm:$0xf]
      %s1594 = scalar_lea.vmem [#allocation2], 61
      %v1595 = vld [vmem:[%s1594] ss:$2 sm:$0xf]
      %s1596 = scalar_lea.vmem [#allocation2], 70
      %v1597 = vld [vmem:[%s1596] ss:$2 sm:$0xf]
      %s1598 = scalar_lea.vmem [#allocation2], 71
      %v1599 = vld [vmem:[%s1598] ss:$2 sm:$0xf]
      %v1600 = vmax.f32 %v1593, %v1595
      %v1601 = vmax.f32 %v1597, %v1599
      %v1602 = vmax.f32 %v1600, %v1601
      %s1603 = scalar_lea.vmem %s170, 12
      %1604 = vst [vmem:[%s1603] sm:$0xf] %v1602
      %p1605 = scmp.lt.s32.totalorder %s14, 1
      %s1606 = scalar_select %p1605, %s14, 1
      %s1607 = smul.addr %s1606, 4
      %s1608 = smul.addr %s1607, 4
      %s1609 = scalar_lea.vmem %s3, %s1608
      // Predicated region
      $region33: #{attention_cnn_forward.7} parent=31 // pred_check
        %p1610 = pneg %p100
      $region34: #{attention_cnn_forward.7} parent=31 // pred_check_branch
        %1612 = sbr.rel (%p1610) target = $region36
      $region35: #{attention_cnn_forward.7} parent=31 // pred_region
        _
      $region36: #{attention_cnn_forward.7} parent=31 // pred_fallthru
        _
    $region32: #{attention_cnn_forward.7} parent=5 // pred_fallthru
      _
    %p1613 = scmp.le.s32.totalorder 2, %s9
    // Predicated region
    $region37: #{attention_cnn_forward.7} parent=5 // pred_check
      %p1614 = pneg %p1613
    $region38: #{attention_cnn_forward.7} parent=5 // pred_check_branch
      %1616 = sbr.rel (%p1614) target = $region40
    $region39: #{attention_cnn_forward.7} parent=5 // pred_region
      %s1617 = ssub.s32 %s9, 2
      // Predicated region
      $region41: #{attention_cnn_forward.7} parent=39 // pred_check
        %p1618 = pneg %p106
      $region42: #{attention_cnn_forward.7} parent=39 // pred_check_branch
        %1620 = sbr.rel (%p1618) target = $region44
      $region43: #{attention_cnn_forward.7} parent=39 // pred_region
        %p1621 = scmp.lt.s32.totalorder %s15, 1
        %s1622 = scalar_select %p1621, %s15, 1
        %s1623 = smul.addr %s1622, 4
        %s1624 = smul.addr %s1623, 4
        %s1625 = scalar_lea.vmem %s3, %s1624
      $region44: #{attention_cnn_forward.7} parent=39 // pred_fallthru
        _
    $region40: #{attention_cnn_forward.7} parent=5 // pred_fallthru
      _
  $region6: #{attention_cnn_forward.7} parent=0 // loop_footer
    %s13 = sadd.s32 1, %s9
  $region7: #{attention_cnn_forward.7} parent=0 // loop_footer_branch
    %8 = sbr.rel target = $region3
  $region8: #{attention_cnn_forward.7} parent=0 // loop_exit
    _

// kernel: attention_cnn_forward.6
$region0: #{attention_cnn_forward.6}
  #allocation0 [shape = 'u32[]', space=smem, size = 0x4, offset = 0x4, fixed_abs, tag = 'smem constant byte address 0x4 - core index']
  #allocation1 [shape = 'u32[144,128]{1,0:T(1,128)}', space=vmem, size = 0x12000, scoped, tag = 'internal scratch']
  #allocation2 [shape = 'f32[286,128]{1,0:T(8,128)}', space=vmem, size = 0x24000, scoped, tag = 'scratch operand']
  %s0 = inlined_call_operand.vmem [shape: f32[2,324,4], index: 0, kind: input, shape index: {}]
  %s1 = inlined_call_operand.vmem [shape: f32[3,3,4,128], index: 1, kind: input, shape index: {}]
  %s2 = inlined_call_operand.vmem [shape: f32[1,128], index: 2, kind: input, shape index: {}]
  %s3 = inlined_call_operand.vmem [shape: f32[1,128], index: 3, kind: input, shape index: {}]
  %s4 = inlined_call_operand.vmem [shape: f32[1,128], index: 4, kind: input, shape index: {}]
  %s5 = inlined_call_operand.vmem [shape: f32[2,8,8,128], index: 5, kind: output, shape index: {}]
  %s6 = sld [smem:[#allocation0]]
  $region53: #{attention_cnn_forward.6} parent=0
    _
  %s8 = ssub.s32 1, %s6
  %s9 = scalar_select 0, %s8, %s6
  loop: start=0, step=1, limit=4
  $region2: #{attention_cnn_forward.6} parent=0 // loop_pre_header
    _
  $region3: #{attention_cnn_forward.6} parent=0 // loop_header
    %s11 = sphi 0, %s15
    %p12 = scmp.ge.s32.totalorder %s11, 4
    %s21 = sphi 0, %s23
    %s24 = sphi 0, %s21
    %s25 = sphi 0, %s24
    %s41 = sphi 0, %s25
    %s45 = sphi 0, %s45
    %s47 = sphi 0, %s45
    %s48 = sphi 0, %s47
    %s62 = sphi 0, %s48
    %s66 = sphi 0, %s66
    %s68 = sphi 0, %s66
    %s69 = sphi 0, %s68
    %s83 = sphi 0, %s69
    %s87 = sphi 0, %s87
    %s89 = sphi 0, %s87
    %s90 = sphi 0, %s89
    %s104 = sphi 0, %s90
    %s108 = sphi 0, %s108
    %s110 = sphi 0, %s108
    %s111 = sphi 0, %s110
    %s125 = sphi 0, %s111
    %s131 = sphi 0, %s133
    %s134 = sphi 0, %s131
    %s135 = sphi 0, %s134
    %s151 = sphi 0, %s135
  $region4: #{attention_cnn_forward.6} parent=0 // loop_header_branch
    %14 = sbr.rel (%p12) target = $region8
  $region5: #{attention_cnn_forward.6} parent=0 // loop_body
    %s16 = ssub.s32 %s11, 1
    %s17 = ssub.s32 %s11, 2
    %s18 = sadd.s32 %s11, 1
    %s19 = ssub.s32 %s11, %s18
    %p20 = scmp.eq.s32.totalorder %s19, 0
    %s22 = sadd.s32 %s21, 1
    %s23 = scalar_select %p20, %s21, %s22
    %p26 = pneg %p20
    %p27 = scmp.eq.s32.totalorder %s11, 1
    %p28 = por %p26, %p27
    %p29 = scmp.ne.s32.totalorder %s21, %s24
    %p30 = scmp.eq.s32.totalorder %s11, 0
    %p31 = por %p29, %p30
    %p32 = scmp.ne.s32.totalorder %s21, %s24
    %p33 = scmp.eq.s32.totalorder %s16, 1
    %p34 = por %p32, %p33
    %p35 = scmp.ne.s32.totalorder %s24, %s25
    %p36 = scmp.eq.s32.totalorder %s16, 0
    %p37 = por %p35, %p36
    %p38 = scmp.ne.s32.totalorder %s24, %s25
    %p39 = scmp.eq.s32.totalorder %s17, 1
    %p40 = por %p38, %p39
    %p42 = scmp.ne.s32.totalorder %s25, %s41
    %p43 = scmp.eq.s32.totalorder %s17, 0
    %p44 = por %p42, %p43
    %s46 = sadd.s32 %s45, 1
    %p49 = scmp.eq.s32.totalorder %s11, 1
    %p50 = scmp.ne.s32.totalorder %s45, %s47
    %p51 = scmp.eq.s32.totalorder %s11, 0
    %p52 = por %p50, %p51
    %p53 = scmp.ne.s32.totalorder %s45, %s47
    %p54 = scmp.eq.s32.totalorder %s16, 1
    %p55 = por %p53, %p54
    %p56 = scmp.ne.s32.totalorder %s47, %s48
    %p57 = scmp.eq.s32.totalorder %s16, 0
    %p58 = por %p56, %p57
    %p59 = scmp.ne.s32.totalorder %s47, %s48
    %p60 = scmp.eq.s32.totalorder %s17, 1
    %p61 = por %p59, %p60
    %p63 = scmp.ne.s32.totalorder %s48, %s62
    %p64 = scmp.eq.s32.totalorder %s17, 0
    %p65 = por %p63, %p64
    %s67 = sadd.s32 %s66, 1
    %p70 = scmp.eq.s32.totalorder %s11, 1
    %p71 = scmp.ne.s32.totalorder %s66, %s68
    %p72 = scmp.eq.s32.totalorder %s11, 0
    %p73 = por %p71, %p72
    %p74 = scmp.ne.s32.totalorder %s66, %s68
    %p75 = scmp.eq.s32.totalorder %s16, 1
    %p76 = por %p74, %p75
    %p77 = scmp.ne.s32.totalorder %s68, %s69
    %p78 = scmp.eq.s32.totalorder %s16, 0
    %p79 = por %p77, %p78
    %p80 = scmp.ne.s32.totalorder %s68, %s69
    %p81 = scmp.eq.s32.totalorder %s17, 1
    %p82 = por %p80, %p81
    %p84 = scmp.ne.s32.totalorder %s69, %s83
    %p85 = scmp.eq.s32.totalorder %s17, 0
    %p86 = por %p84, %p85
    %s88 = sadd.s32 %s87, 1
    %p91 = scmp.eq.s32.totalorder %s11, 1
    %p92 = scmp.ne.s32.totalorder %s87, %s89
    %p93 = scmp.eq.s32.totalorder %s11, 0
    %p94 = por %p92, %p93
    %p95 = scmp.ne.s32.totalorder %s87, %s89
    %p96 = scmp.eq.s32.totalorder %s16, 1
    %p97 = por %p95, %p96
    %p98 = scmp.ne.s32.totalorder %s89, %s90
    %p99 = scmp.eq.s32.totalorder %s16, 0
    %p100 = por %p98, %p99
    %p101 = scmp.ne.s32.totalorder %s89, %s90
    %p102 = scmp.eq.s32.totalorder %s17, 1
    %p103 = por %p101, %p102
    %p105 = scmp.ne.s32.totalorder %s90, %s104
    %p106 = scmp.eq.s32.totalorder %s17, 0
    %p107 = por %p105, %p106
    %s109 = sadd.s32 %s108, 1
    %p112 = scmp.eq.s32.totalorder %s11, 1
    %p113 = scmp.ne.s32.totalorder %s108, %s110
    %p114 = scmp.eq.s32.totalorder %s11, 0
    %p115 = por %p113, %p114
    %p116 = scmp.ne.s32.totalorder %s108, %s110
    %p117 = scmp.eq.s32.totalorder %s16, 1
    %p118 = por %p116, %p117
    %p119 = scmp.ne.s32.totalorder %s110, %s111
    %p120 = scmp.eq.s32.totalorder %s16, 0
    %p121 = por %p119, %p120
    %p122 = scmp.ne.s32.totalorder %s110, %s111
    %p123 = scmp.eq.s32.totalorder %s17, 1
    %p124 = por %p122, %p123
    %p126 = scmp.ne.s32.totalorder %s111, %s125
    %p127 = scmp.eq.s32.totalorder %s17, 0
    %p128 = por %p126, %p127
    %s129 = ssub.s32 %s11, %s18
    %p130 = scmp.eq.s32.totalorder %s129, 0
    %s132 = sadd.s32 %s131, 1
    %s133 = scalar_select %p130, %s131, %s132
    %p136 = pneg %p130
    %p137 = scmp.eq.s32.totalorder %s11, 1
    %p138 = por %p136, %p137
    %p139 = scmp.ne.s32.totalorder %s131, %s134
    %p140 = scmp.eq.s32.totalorder %s11, 0
    %p141 = por %p139, %p140
    %p142 = scmp.ne.s32.totalorder %s131, %s134
    %p143 = scmp.eq.s32.totalorder %s16, 1
    %p144 = por %p142, %p143
    %p145 = scmp.ne.s32.totalorder %s134, %s135
    %p146 = scmp.eq.s32.totalorder %s16, 0
    %p147 = por %p145, %p146
    %p148 = scmp.ne.s32.totalorder %s134, %s135
    %p149 = scmp.eq.s32.totalorder %s17, 1
    %p150 = por %p148, %p149
    %p152 = scmp.ne.s32.totalorder %s135, %s151
    %p153 = scmp.eq.s32.totalorder %s17, 0
    %p154 = por %p152, %p153
    %p155 = scmp.le.s32.totalorder 1, %s11
    %p156 = scmp.lt.s32.totalorder %s11, 3
    %p157 = pnand %p155, %p156
    %p158 = pneg %p157
    // Predicated region
    $region9: #{attention_cnn_forward.6} parent=5 // pred_check
      _
    $region10: #{attention_cnn_forward.6} parent=5 // pred_check_branch
      %160 = sbr.rel (%p157) target = $region12
    $region11: #{attention_cnn_forward.6} parent=5 // pred_region
      %s161 = ssub.s32 %s11, 1
      // Predicated region
      $region13: #{attention_cnn_forward.6} parent=11 // pred_check
        %p162 = pneg %p58
      $region14: #{attention_cnn_forward.6} parent=11 // pred_check_branch
        %164 = sbr.rel (%p162) target = $region16
      $region15: #{attention_cnn_forward.6} parent=11 // pred_region
        _
      $region16: #{attention_cnn_forward.6} parent=11 // pred_fallthru
        _
      // Predicated region
      $region17: #{attention_cnn_forward.6} parent=11 // pred_check
        %p165 = pneg %p79
      $region18: #{attention_cnn_forward.6} parent=11 // pred_check_branch
        %167 = sbr.rel (%p165) target = $region20
      $region19: #{attention_cnn_forward.6} parent=11 // pred_region
        _
      $region20: #{attention_cnn_forward.6} parent=11 // pred_fallthru
        _
      // Predicated region
      $region21: #{attention_cnn_forward.6} parent=11 // pred_check
        %p168 = pneg %p100
      $region22: #{attention_cnn_forward.6} parent=11 // pred_check_branch
        %170 = sbr.rel (%p168) target = $region24
      $region23: #{attention_cnn_forward.6} parent=11 // pred_region
        _
      $region24: #{attention_cnn_forward.6} parent=11 // pred_fallthru
        _
      // Predicated region
      $region25: #{attention_cnn_forward.6} parent=11 // pred_check
        %p171 = pneg %p121
      $region26: #{attention_cnn_forward.6} parent=11 // pred_check_branch
        %173 = sbr.rel (%p171) target = $region28
      $region27: #{attention_cnn_forward.6} parent=11 // pred_region
        _
      $region28: #{attention_cnn_forward.6} parent=11 // pred_fallthru
        _
    $region12: #{attention_cnn_forward.6} parent=5 // pred_fallthru
      _
    %p174 = scmp.lt.s32.totalorder %s11, 2
    // Predicated region
    $region29: #{attention_cnn_forward.6} parent=5 // pred_check
      %p175 = pneg %p174
    $region30: #{attention_cnn_forward.6} parent=5 // pred_check_branch
      %177 = sbr.rel (%p175) target = $region32
    $region31: #{attention_cnn_forward.6} parent=5 // pred_region
      // Predicated region
      $region33: #{attention_cnn_forward.6} parent=31 // pred_check
        %p178 = pneg %p31
      $region34: #{attention_cnn_forward.6} parent=31 // pred_check_branch
        %180 = sbr.rel (%p178) target = $region36
      $region35: #{attention_cnn_forward.6} parent=31 // pred_region
        %p181 = scmp.lt.s32.totalorder %s11, 1
        %s182 = scalar_select %p181, %s11, 1
        %s183 = smul.addr %s182, 41
        %s184 = smul.addr %s183, 8
        %s185 = scalar_lea.vmem %s0, %s184
      $region36: #{attention_cnn_forward.6} parent=31 // pred_fallthru
        _
    $region32: #{attention_cnn_forward.6} parent=5 // pred_fallthru
      _
    %p186 = scmp.le.s32.totalorder 1, %s11
    %p187 = scmp.lt.s32.totalorder %s11, 3
    %p188 = pnand %p186, %p187
    %p189 = pneg %p188
    // Predicated region
    $region37: #{attention_cnn_forward.6} parent=5 // pred_check
      _
    $region38: #{attention_cnn_forward.6} parent=5 // pred_check_branch
      %191 = sbr.rel (%p188) target = $region40
    $region39: #{attention_cnn_forward.6} parent=5 // pred_region
      %s192 = ssub.s32 %s11, 1
      %p193 = scmp.lt.s32.totalorder %s16, 1
      %s194 = scalar_select %p193, %s16, 1
      %s195 = smul.addr %s194, 41
      %s196 = smul.addr %s195, 8
      %s197 = scalar_lea.vmem %s0, %s196
      %p198 = pneg %p37
      %p199 = pneg %p34
      %p200 = pneg %p58
      %p201 = pneg %p55
      %p202 = pneg %p79
      %p203 = pneg %p76
      %p204 = pneg %p100
      %p205 = pneg %p97
      %p206 = pneg %p121
      %p207 = pneg %p118
      %p208 = pneg %p147
      %p209 = pneg %p144
      %p210 = scmp.lt.s32.totalorder %s16, 1
      %s211 = scalar_select %p210, %s16, 1
      %s212 = smul.addr %s211, 8
      %s213 = smul.addr %s212, 8
      %s214 = scalar_lea.vmem %s5, %s213
      %p215 = scmp.lt.s32.totalorder %s16, 1
      %s216 = scalar_select %p215, %s16, 1
      %s217 = smul.addr %s216, 41
      %s218 = smul.addr %s217, 8
      %s219 = scalar_lea.vmem %s0, %s218
      %p220 = scmp.lt.s32.totalorder %s16, 1
      %s221 = scalar_select %p220, %s16, 1
      %s222 = smul.addr %s221, 8
      %s223 = smul.addr %s222, 8
      %s224 = scalar_lea.vmem %s5, %s223
      %v225 = vld [vmem:[%s219] sm:$0xff]
      %v226 = vld [vmem:[%s219 + $0x8] sm:$0xff]
      %v227 = vld [vmem:[%s219 + $0x10] sm:$0xff]
      %v228 = vld [vmem:[%s219 + $0x18] sm:$0xff]
      %v229 = vld [vmem:[%s219 + $0x20] sm:$0xff]
      %v230 = vld [vmem:[%s219 + $0x28] sm:$0xff]
      %v231 = vld [vmem:[%s219 + $0x30] sm:$0xff]
      %v232 = vld [vmem:[%s219 + $0x38] sm:$0xff]
      %v233 = vld [vmem:[%s219 + $0x40] sm:$0xff]
      %v234 = vld [vmem:[%s219 + $0x48] sm:$0xff]
      %v235 = vld [vmem:[%s219 + $0x50] sm:$0xff]
      %v236 = vld [vmem:[%s219 + $0x58] sm:$0xff]
      %v237 = vld [vmem:[%s219 + $0x60] sm:$0xff]
      %v238 = vld [vmem:[%s219 + $0x68] sm:$0xff]
      %v239 = vld [vmem:[%s219 + $0x70] sm:$0xff]
      %v240 = vld [vmem:[%s219 + $0x78] sm:$0xff]
      %v241 = vld [vmem:[%s219 + $0x80] sm:$0xff]
      %v242 = vld [vmem:[%s219 + $0x88] sm:$0xff]
      %v243 = vld [vmem:[%s219 + $0x90] sm:$0xff]
      %v244 = vld [vmem:[%s219 + $0x98] sm:$0xff]
      %v245 = vld [vmem:[%s219 + $0xa0] sm:$0xff]
      %v246 = vld [vmem:[%s219 + $0xa8] sm:$0xff]
      %v247 = vld [vmem:[%s219 + $0xb0] sm:$0xff]
      %v248 = vld [vmem:[%s219 + $0xb8] sm:$0xff]
      %v249 = vld [vmem:[%s219 + $0xc0] sm:$0xff]
      %v250 = vld [vmem:[%s219 + $0xc8] sm:$0xff]
      %v251 = vld [vmem:[%s219 + $0xd0] sm:$0xff]
      %v252 = vld [vmem:[%s219 + $0xd8] sm:$0xff]
      %v253 = vld [vmem:[%s219 + $0xe0] sm:$0xff]
      %v254 = vld [vmem:[%s219 + $0xe8] sm:$0xff]
      %v255 = vld [vmem:[%s219 + $0xf0] sm:$0xff]
      %v256 = vld [vmem:[%s219 + $0xf8] sm:$0xff]
      %v257 = vld [vmem:[%s219 + $0x100] sm:$0xff]
      %v258 = vld [vmem:[%s219 + $0x108] sm:$0xff]
      %v259 = vld [vmem:[%s219 + $0x110] sm:$0xff]
      %v260 = vld [vmem:[%s219 + $0x118] sm:$0x3f]
      %v261 = vld [vmem:[%s1] sm:$0xf]
      %v262 = vld [vmem:[%s219 + $0x1] sm:$0xff]
      %v263 = vld [vmem:[%s219 + $0x9] sm:$0xff]
      %v264 = vld [vmem:[%s219 + $0x11] sm:$0xff]
      %v265 = vld [vmem:[%s219 + $0x19] sm:$0xff]
      %v266 = vld [vmem:[%s219 + $0x21] sm:$0xff]
      %v267 = vld [vmem:[%s219 + $0x29] sm:$0xff]
      %v268 = vld [vmem:[%s219 + $0x31] sm:$0xff]
      %v269 = vld [vmem:[%s219 + $0x39] sm:$0xff]
      %v270 = vld [vmem:[%s219 + $0x41] sm:$0xff]
      %v271 = vld [vmem:[%s219 + $0x49] sm:$0xff]
      %v272 = vld [vmem:[%s219 + $0x51] sm:$0xff]
      %v273 = vld [vmem:[%s219 + $0x59] sm:$0xff]
      %v274 = vld [vmem:[%s219 + $0x61] sm:$0xff]
      %v275 = vld [vmem:[%s219 + $0x69] sm:$0xff]
      %v276 = vld [vmem:[%s219 + $0x71] sm:$0xff]
      %v277 = vld [vmem:[%s219 + $0x79] sm:$0xff]
      %v278 = vld [vmem:[%s219 + $0x81] sm:$0xff]
      %v279 = vld [vmem:[%s219 + $0x89] sm:$0xff]
      %v280 = vld [vmem:[%s219 + $0x91] sm:$0xff]
      %v281 = vld [vmem:[%s219 + $0x99] sm:$0xff]
      %v282 = vld [vmem:[%s219 + $0xa1] sm:$0xff]
      %v283 = vld [vmem:[%s219 + $0xa9] sm:$0xff]
      %v284 = vld [vmem:[%s219 + $0xb1] sm:$0xff]
      %v285 = vld [vmem:[%s219 + $0xb9] sm:$0xff]
      %v286 = vld [vmem:[%s219 + $0xc1] sm:$0xff]
      %v287 = vld [vmem:[%s219 + $0xc9] sm:$0xff]
      %v288 = vld [vmem:[%s219 + $0xd1] sm:$0xff]
      %v289 = vld [vmem:[%s219 + $0xd9] sm:$0xff]
      %v290 = vld [vmem:[%s219 + $0xe1] sm:$0xff]
      %v291 = vld [vmem:[%s219 + $0xe9] sm:$0xff]
      %v292 = vld [vmem:[%s219 + $0xf1] sm:$0xff]
      %v293 = vld [vmem:[%s219 + $0xf9] sm:$0xff]
      %v294 = vld [vmem:[%s219 + $0x101] sm:$0xff]
      %v295 = vld [vmem:[%s219 + $0x109] sm:$0xff]
      %v296 = vld [vmem:[%s219 + $0x111] sm:$0xff]
      %v297 = vld [vmem:[%s219 + $0x119] sm:$0x3f]
      %s298 = scalar_lea.vmem %s1, 4
      %v299 = vld [vmem:[%s298] sm:$0xf]
      %vm300 = vcmask 31744
      %v302 = vsel %vm300, %v262, 0
      %v305 = vsel %vm300, %v263, 0
      %v308 = vsel %vm300, %v264, 0
      %v311 = vsel %vm300, %v265, 0
      %v314 = vsel %vm300, %v266, 0
      %v317 = vsel %vm300, %v267, 0
      %v320 = vsel %vm300, %v268, 0
      %v323 = vsel %vm300, %v269, 0
      %v326 = vsel %vm300, %v270, 0
      %v329 = vsel %vm300, %v271, 0
      %v332 = vsel %vm300, %v272, 0
      %v335 = vsel %vm300, %v273, 0
      %v338 = vsel %vm300, %v274, 0
      %v341 = vsel %vm300, %v275, 0
      %v344 = vsel %vm300, %v276, 0
      %v347 = vsel %vm300, %v277, 0
      %v350 = vsel %vm300, %v278, 0
      %v353 = vsel %vm300, %v279, 0
      %v356 = vsel %vm300, %v280, 0
      %v359 = vsel %vm300, %v281, 0
      %v362 = vsel %vm300, %v282, 0
      %v365 = vsel %vm300, %v283, 0
      %v368 = vsel %vm300, %v284, 0
      %v371 = vsel %vm300, %v285, 0
      %v374 = vsel %vm300, %v286, 0
      %v377 = vsel %vm300, %v287, 0
      %v380 = vsel %vm300, %v288, 0
      %v383 = vsel %vm300, %v289, 0
      %v386 = vsel %vm300, %v290, 0
      %v389 = vsel %vm300, %v291, 0
      %v392 = vsel %vm300, %v292, 0
      %v395 = vsel %vm300, %v293, 0
      %v398 = vsel %vm300, %v294, 0
      %v401 = vsel %vm300, %v295, 0
      %v404 = vsel %vm300, %v296, 0
      %v407 = vsel %vm300, %v297, 0
      %vm409 = vcmask 1043456
      %v411 = vsel %vm409, %v299, 0
      %413 = vmatprep.subr.mxu0 0.0
      %414 = vmatpush1.msra.mxu0 0.0
      %415 = vmatprep.subr.mxu0 0.0
      %416 = vmatpush1.msra.mxu0 0.0
      %417 = vmatprep.subr.mxu0 0.0
      %418 = vmatpush1.msra.mxu0 0.0
      %419 = vmatprep.subr.mxu0 0.0
      %420 = vmatpush1.msra.mxu0 0.0
      %421 = vmatprep.subr.mxu0 0.0
      %422 = vmatpush1.msra.mxu0 0.0
      %423 = vmatprep.subr.mxu0 0.0
      %424 = vmatpush1.msra.mxu0 0.0
      %425 = vmatprep.subr.mxu0 0.0
      %426 = vmatpush1.msra.mxu0 0.0
      %427 = vmatprep.subr.mxu0 0.0
      %428 = vmatpush1.msra.mxu0 0.0
      %429 = vmatprep.subr.mxu0 0.0
      %430 = vmatpush1.msra.mxu0 0.0
      %431 = vmatprep.subr.mxu0 0.0
      %432 = vmatpush1.msra.mxu0 0.0
      %433 = vmatprep.subr.mxu0 0.0
      %434 = vmatpush1.msra.mxu0 0.0
      %435 = vmatprep.subr.mxu0 0.0
      %436 = vmatpush1.msra.mxu0 0.0
      %437 = vmatprep.subr.mxu0 0.0
      %438 = vmatpush1.msra.mxu0 0.0
      %439 = vmatprep.subr.mxu0 0.0
      %440 = vmatpush1.msra.mxu0 0.0
      %441 = vmatprep.subr.mxu0 0.0
      %442 = vmatpush1.msra.mxu0 0.0
      %443 = vmatprep.subr.mxu0 0.0
      %444 = vmatpush1.msra.mxu0 %v411
      %445 = vmatprep.subr.mxu0 0.0
      %446 = vmatpush2.msra.mxu0 0.0
      %447 = vmatprep.subr.mxu0 0.0
      %448 = vmatpush2.msra.mxu0 0.0
      %449 = vmatprep.subr.mxu0 0.0
      %450 = vmatpush2.msra.mxu0 0.0
      %451 = vmatprep.subr.mxu0 0.0
      %452 = vmatpush2.msra.mxu0 0.0
      %453 = vmatprep.subr.mxu0 0.0
      %454 = vmatpush2.msra.mxu0 0.0
      %455 = vmatprep.subr.mxu0 0.0
      %456 = vmatpush2.msra.mxu0 0.0
      %457 = vmatprep.subr.mxu0 0.0
      %458 = vmatpush2.msra.mxu0 0.0
      %459 = vmatprep.subr.mxu0 0.0
      %460 = vmatpush2.msra.mxu0 0.0
      %461 = vmatprep.subr.mxu0 0.0
      %462 = vmatpush2.msra.mxu0 0.0
      %463 = vmatprep.subr.mxu0 0.0
      %464 = vmatpush2.msra.mxu0 0.0
      %465 = vmatprep.subr.mxu0 0.0
      %466 = vmatpush2.msra.mxu0 0.0
      %467 = vmatprep.subr.mxu0 0.0
      %468 = vmatpush2.msra.mxu0 0.0
      %469 = vmatprep.subr.mxu0 0.0
      %470 = vmatpush2.msra.mxu0 0.0
      %471 = vmatprep.subr.mxu0 0.0
      %472 = vmatpush2.msra.mxu0 0.0
      %473 = vmatprep.subr.mxu0 0.0
      %474 = vmatpush2.msra.mxu0 0.0
      %475 = vmatprep.subr.mxu0 0.0
      %476 = vmatpush2.msra.mxu0 0.0
      %477 = vmatprep.mubr.f32.mxu0 0.0
      %478 = vmatmul.mubr.f32.gmra.mxu0 %v302
      %v479 = vpop.f32.mrf.mxu0
      %v480 = vadd.f32 0.0, %v479
      %v481 = vpop.f32.mrf.mxu0
      %482 = vmatprep.mubr.f32.mxu0 0.0
      %483 = vmatmul.mubr.f32.gmra.mxu0 %v305
      %v484 = vpop.f32.mrf.mxu0
      %v485 = vadd.f32 0.0, %v484
      %v486 = vpop.f32.mrf.mxu0
      %487 = vmatprep.mubr.f32.mxu0 0.0
      %488 = vmatmul.mubr.f32.gmra.mxu0 %v308
      %v489 = vpop.f32.mrf.mxu0
      %v490 = vadd.f32 0.0, %v489
      %v491 = vpop.f32.mrf.mxu0
      %492 = vmatprep.mubr.f32.mxu0 0.0
      %493 = vmatmul.mubr.f32.gmra.mxu0 %v311
      %v494 = vpop.f32.mrf.mxu0
      %v495 = vadd.f32 0.0, %v494
      %v496 = vpop.f32.mrf.mxu0
      %497 = vmatprep.mubr.f32.mxu0 0.0
      %498 = vmatmul.mubr.f32.gmra.mxu0 %v314
      %v499 = vpop.f32.mrf.mxu0
      %v500 = vadd.f32 0.0, %v499
      %v501 = vpop.f32.mrf.mxu0
      %502 = vmatprep.mubr.f32.mxu0 0.0
      %503 = vmatmul.mubr.f32.gmra.mxu0 %v317
      %v504 = vpop.f32.mrf.mxu0
      %v505 = vadd.f32 0.0, %v504
      %v506 = vpop.f32.mrf.mxu0
      %507 = vmatprep.mubr.f32.mxu0 0.0
      %508 = vmatmul.mubr.f32.gmra.mxu0 %v320
      %v509 = vpop.f32.mrf.mxu0
      %v510 = vadd.f32 0.0, %v509
      %v511 = vpop.f32.mrf.mxu0
      %512 = vmatprep.mubr.f32.mxu0 0.0
      %513 = vmatmul.mubr.f32.gmra.mxu0 %v323
      %v514 = vpop.f32.mrf.mxu0
      %v515 = vadd.f32 0.0, %v514
      %v516 = vpop.f32.mrf.mxu0
      %517 = vmatprep.mubr.f32.mxu0 0.0
      %518 = vmatmul.mubr.f32.gmra.mxu0 %v326
      %v519 = vpop.f32.mrf.mxu0
      %v520 = vadd.f32 0.0, %v519
      %v521 = vpop.f32.mrf.mxu0
      %522 = vmatprep.mubr.f32.mxu0 0.0
      %523 = vmatmul.mubr.f32.gmra.mxu0 %v329
      %v524 = vpop.f32.mrf.mxu0
      %v525 = vadd.f32 0.0, %v524
      %v526 = vpop.f32.mrf.mxu0
      %527 = vmatprep.mubr.f32.mxu0 0.0
      %528 = vmatmul.mubr.f32.gmra.mxu0 %v332
      %v529 = vpop.f32.mrf.mxu0
      %v530 = vadd.f32 0.0, %v529
      %v531 = vpop.f32.mrf.mxu0
      %532 = vmatprep.mubr.f32.mxu0 0.0
      %533 = vmatmul.mubr.f32.gmra.mxu0 %v335
      %v534 = vpop.f32.mrf.mxu0
      %v535 = vadd.f32 0.0, %v534
      %v536 = vpop.f32.mrf.mxu0
      %537 = vmatprep.mubr.f32.mxu0 0.0
      %538 = vmatmul.mubr.f32.gmra.mxu0 %v338
      %v539 = vpop.f32.mrf.mxu0
      %v540 = vadd.f32 0.0, %v539
      %v541 = vpop.f32.mrf.mxu0
      %542 = vmatprep.mubr.f32.mxu0 0.0
      %543 = vmatmul.mubr.f32.gmra.mxu0 %v341
      %v544 = vpop.f32.mrf.mxu0
      %v545 = vadd.f32 0.0, %v544
      %v546 = vpop.f32.mrf.mxu0
      %547 = vmatprep.mubr.f32.mxu0 0.0
      %548 = vmatmul.mubr.f32.gmra.mxu0 %v344
      %v549 = vpop.f32.mrf.mxu0
      %v550 = vadd.f32 0.0, %v549
      %v551 = vpop.f32.mrf.mxu0
      %552 = vmatprep.mubr.f32.mxu0 0.0
      %553 = vmatmul.mubr.f32.gmra.mxu0 %v347
      %v554 = vpop.f32.mrf.mxu0
      %v555 = vadd.f32 0.0, %v554
      %v556 = vpop.f32.mrf.mxu0
      %557 = vmatprep.mubr.f32.mxu0 0.0
      %558 = vmatmul.mubr.f32.gmra.mxu0 %v350
      %v559 = vpop.f32.mrf.mxu0
      %v560 = vadd.f32 0.0, %v559
      %v561 = vpop.f32.mrf.mxu0
      %562 = vmatprep.mubr.f32.mxu0 0.0
      %563 = vmatmul.mubr.f32.gmra.mxu0 %v353
      %v564 = vpop.f32.mrf.mxu0
      %v565 = vadd.f32 0.0, %v564
      %v566 = vpop.f32.mrf.mxu0
      %567 = vmatprep.mubr.f32.mxu0 0.0
      %568 = vmatmul.mubr.f32.gmra.mxu0 %v356
      %v569 = vpop.f32.mrf.mxu0
      %v570 = vadd.f32 0.0, %v569
      %v571 = vpop.f32.mrf.mxu0
      %572 = vmatprep.mubr.f32.mxu0 0.0
      %573 = vmatmul.mubr.f32.gmra.mxu0 %v359
      %v574 = vpop.f32.mrf.mxu0
      %v575 = vadd.f32 0.0, %v574
      %v576 = vpop.f32.mrf.mxu0
      %577 = vmatprep.mubr.f32.mxu0 0.0
      %578 = vmatmul.mubr.f32.gmra.mxu0 %v362
      %v579 = vpop.f32.mrf.mxu0
      %v580 = vadd.f32 0.0, %v579
      %v581 = vpop.f32.mrf.mxu0
      %582 = vmatprep.mubr.f32.mxu0 0.0
      %583 = vmatmul.mubr.f32.gmra.mxu0 %v365
      %v584 = vpop.f32.mrf.mxu0
      %v585 = vadd.f32 0.0, %v584
      %v586 = vpop.f32.mrf.mxu0
      %587 = vmatprep.mubr.f32.mxu0 0.0
      %588 = vmatmul.mubr.f32.gmra.mxu0 %v368
      %v589 = vpop.f32.mrf.mxu0
      %v590 = vadd.f32 0.0, %v589
      %v591 = vpop.f32.mrf.mxu0
      %592 = vmatprep.mubr.f32.mxu0 0.0
      %593 = vmatmul.mubr.f32.gmra.mxu0 %v371
      %v594 = vpop.f32.mrf.mxu0
      %v595 = vadd.f32 0.0, %v594
      %v596 = vpop.f32.mrf.mxu0
      %597 = vmatprep.mubr.f32.mxu0 0.0
      %598 = vmatmul.mubr.f32.gmra.mxu0 %v374
      %v599 = vpop.f32.mrf.mxu0
      %v600 = vadd.f32 0.0, %v599
      %v601 = vpop.f32.mrf.mxu0
      %602 = vmatprep.mubr.f32.mxu0 0.0
      %603 = vmatmul.mubr.f32.gmra.mxu0 %v377
      %v604 = vpop.f32.mrf.mxu0
      %v605 = vadd.f32 0.0, %v604
      %v606 = vpop.f32.mrf.mxu0
      %607 = vmatprep.mubr.f32.mxu0 0.0
      %608 = vmatmul.mubr.f32.gmra.mxu0 %v380
      %v609 = vpop.f32.mrf.mxu0
      %v610 = vadd.f32 0.0, %v609
      %v611 = vpop.f32.mrf.mxu0
      %612 = vmatprep.mubr.f32.mxu0 0.0
      %613 = vmatmul.mubr.f32.gmra.mxu0 %v383
      %v614 = vpop.f32.mrf.mxu0
      %v615 = vadd.f32 0.0, %v614
      %v616 = vpop.f32.mrf.mxu0
      %617 = vmatprep.mubr.f32.mxu0 0.0
      %618 = vmatmul.mubr.f32.gmra.mxu0 %v386
      %v619 = vpop.f32.mrf.mxu0
      %v620 = vadd.f32 0.0, %v619
      %v621 = vpop.f32.mrf.mxu0
      %622 = vmatprep.mubr.f32.mxu0 0.0
      %623 = vmatmul.mubr.f32.gmra.mxu0 %v389
      %v624 = vpop.f32.mrf.mxu0
      %v625 = vadd.f32 0.0, %v624
      %v626 = vpop.f32.mrf.mxu0
      %627 = vmatprep.mubr.f32.mxu0 0.0
      %628 = vmatmul.mubr.f32.gmra.mxu0 %v392
      %v629 = vpop.f32.mrf.mxu0
      %v630 = vadd.f32 0.0, %v629
      %v631 = vpop.f32.mrf.mxu0
      %632 = vmatprep.mubr.f32.mxu0 0.0
      %633 = vmatmul.mubr.f32.gmra.mxu0 %v395
      %v634 = vpop.f32.mrf.mxu0
      %v635 = vadd.f32 0.0, %v634
      %v636 = vpop.f32.mrf.mxu0
      %637 = vmatprep.mubr.f32.mxu0 0.0
      %638 = vmatmul.mubr.f32.gmra.mxu0 %v398
      %v639 = vpop.f32.mrf.mxu0
      %v640 = vadd.f32 0.0, %v639
      %v641 = vpop.f32.mrf.mxu0
      %642 = vmatprep.mubr.f32.mxu0 0.0
      %643 = vmatmul.mubr.f32.gmra.mxu0 %v401
      %v644 = vpop.f32.mrf.mxu0
      %v645 = vadd.f32 0.0, %v644
      %v646 = vpop.f32.mrf.mxu0
      %647 = vmatprep.mubr.f32.mxu0 0.0
      %648 = vmatmul.mubr.f32.gmra.mxu0 %v404
      %v649 = vpop.f32.mrf.mxu0
      %v650 = vadd.f32 0.0, %v649
      %v651 = vpop.f32.mrf.mxu0
      %652 = vmatprep.mubr.f32.mxu0 0.0
      %653 = vmatmul.mubr.f32.gmra.mxu0 %v407
      %v654 = vpop.f32.mrf.mxu0
      %v655 = vadd.f32 0.0, %v654
      %v656 = vpop.f32.mrf.mxu0
      %657 = vdwg.mxu0
      %v659 = vsel %vm300, %v225, 0
      %v662 = vsel %vm300, %v226, 0
      %v665 = vsel %vm300, %v227, 0
      %v668 = vsel %vm300, %v228, 0
      %v671 = vsel %vm300, %v229, 0
      %v674 = vsel %vm300, %v230, 0
      %v677 = vsel %vm300, %v231, 0
      %v680 = vsel %vm300, %v232, 0
      %v683 = vsel %vm300, %v233, 0
      %v686 = vsel %vm300, %v234, 0
      %v689 = vsel %vm300, %v235, 0
      %v692 = vsel %vm300, %v236, 0
      %v695 = vsel %vm300, %v237, 0
      %v698 = vsel %vm300, %v238, 0
      %v701 = vsel %vm300, %v239, 0
      %v704 = vsel %vm300, %v240, 0
      %v707 = vsel %vm300, %v241, 0
      %v710 = vsel %vm300, %v242, 0
      %v713 = vsel %vm300, %v243, 0
      %v716 = vsel %vm300, %v244, 0
      %v719 = vsel %vm300, %v245, 0
      %v722 = vsel %vm300, %v246, 0
      %v725 = vsel %vm300, %v247, 0
      %v728 = vsel %vm300, %v248, 0
      %v731 = vsel %vm300, %v249, 0
      %v734 = vsel %vm300, %v250, 0
      %v737 = vsel %vm300, %v251, 0
      %v740 = vsel %vm300, %v252, 0
      %v743 = vsel %vm300, %v253, 0
      %v746 = vsel %vm300, %v254, 0
      %v749 = vsel %vm300, %v255, 0
      %v752 = vsel %vm300, %v256, 0
      %v755 = vsel %vm300, %v257, 0
      %v758 = vsel %vm300, %v258, 0
      %v761 = vsel %vm300, %v259, 0
      %v764 = vsel %vm300, %v260, 0
      %v767 = vsel %vm409, %v261, 0
      %769 = vmatprep.subr.mxu0 0.0
      %770 = vmatpush1.msra.mxu0 0.0
      %771 = vmatprep.subr.mxu0 0.0
      %772 = vmatpush1.msra.mxu0 0.0
      %773 = vmatprep.subr.mxu0 0.0
      %774 = vmatpush1.msra.mxu0 0.0
      %775 = vmatprep.subr.mxu0 0.0
      %776 = vmatpush1.msra.mxu0 0.0
      %777 = vmatprep.subr.mxu0 0.0
      %778 = vmatpush1.msra.mxu0 0.0
      %779 = vmatprep.subr.mxu0 0.0
      %780 = vmatpush1.msra.mxu0 0.0
      %781 = vmatprep.subr.mxu0 0.0
      %782 = vmatpush1.msra.mxu0 0.0
      %783 = vmatprep.subr.mxu0 0.0
      %784 = vmatpush1.msra.mxu0 0.0
      %785 = vmatprep.subr.mxu0 0.0
      %786 = vmatpush1.msra.mxu0 0.0
      %787 = vmatprep.subr.mxu0 0.0
      %788 = vmatpush1.msra.mxu0 0.0
      %789 = vmatprep.subr.mxu0 0.0
      %790 = vmatpush1.msra.mxu0 0.0
      %791 = vmatprep.subr.mxu0 0.0
      %792 = vmatpush1.msra.mxu0 0.0
      %793 = vmatprep.subr.mxu0 0.0
      %794 = vmatpush1.msra.mxu0 0.0
      %795 = vmatprep.subr.mxu0 0.0
      %796 = vmatpush1.msra.mxu0 0.0
      %797 = vmatprep.subr.mxu0 0.0
      %798 = vmatpush1.msra.mxu0 0.0
      %799 = vmatprep.subr.mxu0 0.0
      %800 = vmatpush1.msra.mxu0 %v767
      %801 = vmatprep.subr.mxu0 0.0
      %802 = vmatpush2.msra.mxu0 0.0
      %803 = vmatprep.subr.mxu0 0.0
      %804 = vmatpush2.msra.mxu0 0.0
      %805 = vmatprep.subr.mxu0 0.0
      %806 = vmatpush2.msra.mxu0 0.0
      %807 = vmatprep.subr.mxu0 0.0
      %808 = vmatpush2.msra.mxu0 0.0
      %809 = vmatprep.subr.mxu0 0.0
      %810 = vmatpush2.msra.mxu0 0.0
      %811 = vmatprep.subr.mxu0 0.0
      %812 = vmatpush2.msra.mxu0 0.0
      %813 = vmatprep.subr.mxu0 0.0
      %814 = vmatpush2.msra.mxu0 0.0
      %815 = vmatprep.subr.mxu0 0.0
      %816 = vmatpush2.msra.mxu0 0.0
      %817 = vmatprep.subr.mxu0 0.0
      %818 = vmatpush2.msra.mxu0 0.0
      %819 = vmatprep.subr.mxu0 0.0
      %820 = vmatpush2.msra.mxu0 0.0
      %821 = vmatprep.subr.mxu0 0.0
      %822 = vmatpush2.msra.mxu0 0.0
      %823 = vmatprep.subr.mxu0 0.0
      %824 = vmatpush2.msra.mxu0 0.0
      %825 = vmatprep.subr.mxu0 0.0
      %826 = vmatpush2.msra.mxu0 0.0
      %827 = vmatprep.subr.mxu0 0.0
      %828 = vmatpush2.msra.mxu0 0.0
      %829 = vmatprep.subr.mxu0 0.0
      %830 = vmatpush2.msra.mxu0 0.0
      %831 = vmatprep.subr.mxu0 0.0
      %832 = vmatpush2.msra.mxu0 0.0
      %833 = vmatprep.mubr.f32.mxu0 0.0
      %834 = vmatmul.mubr.f32.gmra.mxu0 %v659
      %v835 = vpop.f32.mrf.mxu0
      %v836 = vadd.f32 %v480, %v835
      %v837 = vpop.f32.mrf.mxu0
      %838 = vmatprep.mubr.f32.mxu0 0.0
      %839 = vmatmul.mubr.f32.gmra.mxu0 %v662
      %v840 = vpop.f32.mrf.mxu0
      %v841 = vadd.f32 %v485, %v840
      %v842 = vpop.f32.mrf.mxu0
      %843 = vmatprep.mubr.f32.mxu0 0.0
      %844 = vmatmul.mubr.f32.gmra.mxu0 %v665
      %v845 = vpop.f32.mrf.mxu0
      %v846 = vadd.f32 %v490, %v845
      %v847 = vpop.f32.mrf.mxu0
      %848 = vmatprep.mubr.f32.mxu0 0.0
      %849 = vmatmul.mubr.f32.gmra.mxu0 %v668
      %v850 = vpop.f32.mrf.mxu0
      %v851 = vadd.f32 %v495, %v850
      %v852 = vpop.f32.mrf.mxu0
      %853 = vmatprep.mubr.f32.mxu0 0.0
      %854 = vmatmul.mubr.f32.gmra.mxu0 %v671
      %v855 = vpop.f32.mrf.mxu0
      %v856 = vadd.f32 %v500, %v855
      %v857 = vpop.f32.mrf.mxu0
      %858 = vmatprep.mubr.f32.mxu0 0.0
      %859 = vmatmul.mubr.f32.gmra.mxu0 %v674
      %v860 = vpop.f32.mrf.mxu0
      %v861 = vadd.f32 %v505, %v860
      %v862 = vpop.f32.mrf.mxu0
      %863 = vmatprep.mubr.f32.mxu0 0.0
      %864 = vmatmul.mubr.f32.gmra.mxu0 %v677
      %v865 = vpop.f32.mrf.mxu0
      %v866 = vadd.f32 %v510, %v865
      %v867 = vpop.f32.mrf.mxu0
      %868 = vmatprep.mubr.f32.mxu0 0.0
      %869 = vmatmul.mubr.f32.gmra.mxu0 %v680
      %v870 = vpop.f32.mrf.mxu0
      %v871 = vadd.f32 %v515, %v870
      %v872 = vpop.f32.mrf.mxu0
      %873 = vmatprep.mubr.f32.mxu0 0.0
      %874 = vmatmul.mubr.f32.gmra.mxu0 %v683
      %v875 = vpop.f32.mrf.mxu0
      %v876 = vadd.f32 %v520, %v875
      %v877 = vpop.f32.mrf.mxu0
      %878 = vmatprep.mubr.f32.mxu0 0.0
      %879 = vmatmul.mubr.f32.gmra.mxu0 %v686
      %v880 = vpop.f32.mrf.mxu0
      %v881 = vadd.f32 %v525, %v880
      %v882 = vpop.f32.mrf.mxu0
      %883 = vmatprep.mubr.f32.mxu0 0.0
      %884 = vmatmul.mubr.f32.gmra.mxu0 %v689
      %v885 = vpop.f32.mrf.mxu0
      %v886 = vadd.f32 %v530, %v885
      %v887 = vpop.f32.mrf.mxu0
      %888 = vmatprep.mubr.f32.mxu0 0.0
      %889 = vmatmul.mubr.f32.gmra.mxu0 %v692
      %v890 = vpop.f32.mrf.mxu0
      %v891 = vadd.f32 %v535, %v890
      %v892 = vpop.f32.mrf.mxu0
      %893 = vmatprep.mubr.f32.mxu0 0.0
      %894 = vmatmul.mubr.f32.gmra.mxu0 %v695
      %v895 = vpop.f32.mrf.mxu0
      %v896 = vadd.f32 %v540, %v895
      %v897 = vpop.f32.mrf.mxu0
      %898 = vmatprep.mubr.f32.mxu0 0.0
      %899 = vmatmul.mubr.f32.gmra.mxu0 %v698
      %v900 = vpop.f32.mrf.mxu0
      %v901 = vadd.f32 %v545, %v900
      %v902 = vpop.f32.mrf.mxu0
      %903 = vmatprep.mubr.f32.mxu0 0.0
      %904 = vmatmul.mubr.f32.gmra.mxu0 %v701
      %v905 = vpop.f32.mrf.mxu0
      %v906 = vadd.f32 %v550, %v905
      %v907 = vpop.f32.mrf.mxu0
      %908 = vmatprep.mubr.f32.mxu0 0.0
      %909 = vmatmul.mubr.f32.gmra.mxu0 %v704
      %v910 = vpop.f32.mrf.mxu0
      %v911 = vadd.f32 %v555, %v910
      %v912 = vpop.f32.mrf.mxu0
      %913 = vmatprep.mubr.f32.mxu0 0.0
      %914 = vmatmul.mubr.f32.gmra.mxu0 %v707
      %v915 = vpop.f32.mrf.mxu0
      %v916 = vadd.f32 %v560, %v915
      %v917 = vpop.f32.mrf.mxu0
      %918 = vmatprep.mubr.f32.mxu0 0.0
      %919 = vmatmul.mubr.f32.gmra.mxu0 %v710
      %v920 = vpop.f32.mrf.mxu0
      %v921 = vadd.f32 %v565, %v920
      %v922 = vpop.f32.mrf.mxu0
      %923 = vmatprep.mubr.f32.mxu0 0.0
      %924 = vmatmul.mubr.f32.gmra.mxu0 %v713
      %v925 = vpop.f32.mrf.mxu0
      %v926 = vadd.f32 %v570, %v925
      %v927 = vpop.f32.mrf.mxu0
      %928 = vmatprep.mubr.f32.mxu0 0.0
      %929 = vmatmul.mubr.f32.gmra.mxu0 %v716
      %v930 = vpop.f32.mrf.mxu0
      %v931 = vadd.f32 %v575, %v930
      %v932 = vpop.f32.mrf.mxu0
      %933 = vmatprep.mubr.f32.mxu0 0.0
      %934 = vmatmul.mubr.f32.gmra.mxu0 %v719
      %v935 = vpop.f32.mrf.mxu0
      %v936 = vadd.f32 %v580, %v935
      %v937 = vpop.f32.mrf.mxu0
      %938 = vmatprep.mubr.f32.mxu0 0.0
      %939 = vmatmul.mubr.f32.gmra.mxu0 %v722
      %v940 = vpop.f32.mrf.mxu0
      %v941 = vadd.f32 %v585, %v940
      %v942 = vpop.f32.mrf.mxu0
      %943 = vmatprep.mubr.f32.mxu0 0.0
      %944 = vmatmul.mubr.f32.gmra.mxu0 %v725
      %v945 = vpop.f32.mrf.mxu0
      %v946 = vadd.f32 %v590, %v945
      %v947 = vpop.f32.mrf.mxu0
      %948 = vmatprep.mubr.f32.mxu0 0.0
      %949 = vmatmul.mubr.f32.gmra.mxu0 %v728
      %v950 = vpop.f32.mrf.mxu0
      %v951 = vadd.f32 %v595, %v950
      %v952 = vpop.f32.mrf.mxu0
      %953 = vmatprep.mubr.f32.mxu0 0.0
      %954 = vmatmul.mubr.f32.gmra.mxu0 %v731
      %v955 = vpop.f32.mrf.mxu0
      %v956 = vadd.f32 %v600, %v955
      %v957 = vpop.f32.mrf.mxu0
      %958 = vmatprep.mubr.f32.mxu0 0.0
      %959 = vmatmul.mubr.f32.gmra.mxu0 %v734
      %v960 = vpop.f32.mrf.mxu0
      %v961 = vadd.f32 %v605, %v960
      %v962 = vpop.f32.mrf.mxu0
      %963 = vmatprep.mubr.f32.mxu0 0.0
      %964 = vmatmul.mubr.f32.gmra.mxu0 %v737
      %v965 = vpop.f32.mrf.mxu0
      %v966 = vadd.f32 %v610, %v965
      %v967 = vpop.f32.mrf.mxu0
      %968 = vmatprep.mubr.f32.mxu0 0.0
      %969 = vmatmul.mubr.f32.gmra.mxu0 %v740
      %v970 = vpop.f32.mrf.mxu0
      %v971 = vadd.f32 %v615, %v970
      %v972 = vpop.f32.mrf.mxu0
      %973 = vmatprep.mubr.f32.mxu0 0.0
      %974 = vmatmul.mubr.f32.gmra.mxu0 %v743
      %v975 = vpop.f32.mrf.mxu0
      %v976 = vadd.f32 %v620, %v975
      %v977 = vpop.f32.mrf.mxu0
      %978 = vmatprep.mubr.f32.mxu0 0.0
      %979 = vmatmul.mubr.f32.gmra.mxu0 %v746
      %v980 = vpop.f32.mrf.mxu0
      %v981 = vadd.f32 %v625, %v980
      %v982 = vpop.f32.mrf.mxu0
      %983 = vmatprep.mubr.f32.mxu0 0.0
      %984 = vmatmul.mubr.f32.gmra.mxu0 %v749
      %v985 = vpop.f32.mrf.mxu0
      %v986 = vadd.f32 %v630, %v985
      %v987 = vpop.f32.mrf.mxu0
      %988 = vmatprep.mubr.f32.mxu0 0.0
      %989 = vmatmul.mubr.f32.gmra.mxu0 %v752
      %v990 = vpop.f32.mrf.mxu0
      %v991 = vadd.f32 %v635, %v990
      %v992 = vpop.f32.mrf.mxu0
      %993 = vmatprep.mubr.f32.mxu0 0.0
      %994 = vmatmul.mubr.f32.gmra.mxu0 %v755
      %v995 = vpop.f32.mrf.mxu0
      %v996 = vadd.f32 %v640, %v995
      %v997 = vpop.f32.mrf.mxu0
      %998 = vmatprep.mubr.f32.mxu0 0.0
      %999 = vmatmul.mubr.f32.gmra.mxu0 %v758
      %v1000 = vpop.f32.mrf.mxu0
      %v1001 = vadd.f32 %v645, %v1000
      %v1002 = vpop.f32.mrf.mxu0
      %1003 = vmatprep.mubr.f32.mxu0 0.0
      %1004 = vmatmul.mubr.f32.gmra.mxu0 %v761
      %v1005 = vpop.f32.mrf.mxu0
      %v1006 = vadd.f32 %v650, %v1005
      %v1007 = vpop.f32.mrf.mxu0
      %1008 = vmatprep.mubr.f32.mxu0 0.0
      %1009 = vmatmul.mubr.f32.gmra.mxu0 %v764
      %v1010 = vpop.f32.mrf.mxu0
      %v1011 = vadd.f32 %v655, %v1010
      %v1012 = vpop.f32.mrf.mxu0
      %1013 = vdwg.mxu0
      %v1014 = vld [vmem:[%s219 + $0x2] sm:$0xff]
      %v1015 = vld [vmem:[%s219 + $0xa] sm:$0xff]
      %v1016 = vld [vmem:[%s219 + $0x12] sm:$0xff]
      %v1017 = vld [vmem:[%s219 + $0x1a] sm:$0xff]
      %v1018 = vld [vmem:[%s219 + $0x22] sm:$0xff]
      %v1019 = vld [vmem:[%s219 + $0x2a] sm:$0xff]
      %v1020 = vld [vmem:[%s219 + $0x32] sm:$0xff]
      %v1021 = vld [vmem:[%s219 + $0x3a] sm:$0xff]
      %v1022 = vld [vmem:[%s219 + $0x42] sm:$0xff]
      %v1023 = vld [vmem:[%s219 + $0x4a] sm:$0xff]
      %v1024 = vld [vmem:[%s219 + $0x52] sm:$0xff]
      %v1025 = vld [vmem:[%s219 + $0x5a] sm:$0xff]
      %v1026 = vld [vmem:[%s219 + $0x62] sm:$0xff]
      %v1027 = vld [vmem:[%s219 + $0x6a] sm:$0xff]
      %v1028 = vld [vmem:[%s219 + $0x72] sm:$0xff]
      %v1029 = vld [vmem:[%s219 + $0x7a] sm:$0xff]
      %v1030 = vld [vmem:[%s219 + $0x82] sm:$0xff]
      %v1031 = vld [vmem:[%s219 + $0x8a] sm:$0xff]
      %v1032 = vld [vmem:[%s219 + $0x92] sm:$0xff]
      %v1033 = vld [vmem:[%s219 + $0x9a] sm:$0xff]
      %v1034 = vld [vmem:[%s219 + $0xa2] sm:$0xff]
      %v1035 = vld [vmem:[%s219 + $0xaa] sm:$0xff]
      %v1036 = vld [vmem:[%s219 + $0xb2] sm:$0xff]
      %v1037 = vld [vmem:[%s219 + $0xba] sm:$0xff]
      %v1038 = vld [vmem:[%s219 + $0xc2] sm:$0xff]
      %v1039 = vld [vmem:[%s219 + $0xca] sm:$0xff]
      %v1040 = vld [vmem:[%s219 + $0xd2] sm:$0xff]
      %v1041 = vld [vmem:[%s219 + $0xda] sm:$0xff]
      %v1042 = vld [vmem:[%s219 + $0xe2] sm:$0xff]
      %v1043 = vld [vmem:[%s219 + $0xea] sm:$0xff]
      %v1044 = vld [vmem:[%s219 + $0xf2] sm:$0xff]
      %v1045 = vld [vmem:[%s219 + $0xfa] sm:$0xff]
      %v1046 = vld [vmem:[%s219 + $0x102] sm:$0xff]
      %v1047 = vld [vmem:[%s219 + $0x10a] sm:$0xff]
      %v1048 = vld [vmem:[%s219 + $0x112] sm:$0xff]
      %v1049 = vld [vmem:[%s219 + $0x11a] sm:$0x3f]
      %s1050 = scalar_lea.vmem %s1, 8
      %v1051 = vld [vmem:[%s1050] sm:$0xf]
      %v1053 = vsel %vm300, %v1014, 0
      %v1056 = vsel %vm300, %v1015, 0
      %v1059 = vsel %vm300, %v1016, 0
      %v1062 = vsel %vm300, %v1017, 0
      %v1065 = vsel %vm300, %v1018, 0
      %v1068 = vsel %vm300, %v1019, 0
      %v1071 = vsel %vm300, %v1020, 0
      %v1074 = vsel %vm300, %v1021, 0
      %v1077 = vsel %vm300, %v1022, 0
      %v1080 = vsel %vm300, %v1023, 0
      %v1083 = vsel %vm300, %v1024, 0
      %v1086 = vsel %vm300, %v1025, 0
      %v1089 = vsel %vm300, %v1026, 0
      %v1092 = vsel %vm300, %v1027, 0
      %v1095 = vsel %vm300, %v1028, 0
      %v1098 = vsel %vm300, %v1029, 0
      %v1101 = vsel %vm300, %v1030, 0
      %v1104 = vsel %vm300, %v1031, 0
      %v1107 = vsel %vm300, %v1032, 0
      %v1110 = vsel %vm300, %v1033, 0
      %v1113 = vsel %vm300, %v1034, 0
      %v1116 = vsel %vm300, %v1035, 0
      %v1119 = vsel %vm300, %v1036, 0
      %v1122 = vsel %vm300, %v1037, 0
      %v1125 = vsel %vm300, %v1038, 0
      %v1128 = vsel %vm300, %v1039, 0
      %v1131 = vsel %vm300, %v1040, 0
      %v1134 = vsel %vm300, %v1041, 0
      %v1137 = vsel %vm300, %v1042, 0
      %v1140 = vsel %vm300, %v1043, 0
      %v1143 = vsel %vm300, %v1044, 0
      %v1146 = vsel %vm300, %v1045, 0
      %v1149 = vsel %vm300, %v1046, 0
      %v1152 = vsel %vm300, %v1047, 0
      %v1155 = vsel %vm300, %v1048, 0
      %v1158 = vsel %vm300, %v1049, 0
      %v1161 = vsel %vm409, %v1051, 0
      %1163 = vmatprep.subr.mxu0 0.0
      %1164 = vmatpush1.msra.mxu0 0.0
      %1165 = vmatprep.subr.mxu0 0.0
      %1166 = vmatpush1.msra.mxu0 0.0
      %1167 = vmatprep.subr.mxu0 0.0
      %1168 = vmatpush1.msra.mxu0 0.0
      %1169 = vmatprep.subr.mxu0 0.0
      %1170 = vmatpush1.msra.mxu0 0.0
      %1171 = vmatprep.subr.mxu0 0.0
      %1172 = vmatpush1.msra.mxu0 0.0
      %1173 = vmatprep.subr.mxu0 0.0
      %1174 = vmatpush1.msra.mxu0 0.0
      %1175 = vmatprep.subr.mxu0 0.0
      %1176 = vmatpush1.msra.mxu0 0.0
      %1177 = vmatprep.subr.mxu0 0.0
      %1178 = vmatpush1.msra.mxu0 0.0
      %1179 = vmatprep.subr.mxu0 0.0
      %1180 = vmatpush1.msra.mxu0 0.0
      %1181 = vmatprep.subr.mxu0 0.0
      %1182 = vmatpush1.msra.mxu0 0.0
      %1183 = vmatprep.subr.mxu0 0.0
      %1184 = vmatpush1.msra.mxu0 0.0
      %1185 = vmatprep.subr.mxu0 0.0
      %1186 = vmatpush1.msra.mxu0 0.0
      %1187 = vmatprep.subr.mxu0 0.0
      %1188 = vmatpush1.msra.mxu0 0.0
      %1189 = vmatprep.subr.mxu0 0.0
      %1190 = vmatpush1.msra.mxu0 0.0
      %1191 = vmatprep.subr.mxu0 0.0
      %1192 = vmatpush1.msra.mxu0 0.0
      %1193 = vmatprep.subr.mxu0 0.0
      %1194 = vmatpush1.msra.mxu0 %v1161
      %1195 = vmatprep.subr.mxu0 0.0
      %1196 = vmatpush2.msra.mxu0 0.0
      %1197 = vmatprep.subr.mxu0 0.0
      %1198 = vmatpush2.msra.mxu0 0.0
      %1199 = vmatprep.subr.mxu0 0.0
      %1200 = vmatpush2.msra.mxu0 0.0
      %1201 = vmatprep.subr.mxu0 0.0
      %1202 = vmatpush2.msra.mxu0 0.0
      %1203 = vmatprep.subr.mxu0 0.0
      %1204 = vmatpush2.msra.mxu0 0.0
      %1205 = vmatprep.subr.mxu0 0.0
      %1206 = vmatpush2.msra.mxu0 0.0
      %1207 = vmatprep.subr.mxu0 0.0
      %1208 = vmatpush2.msra.mxu0 0.0
      %1209 = vmatprep.subr.mxu0 0.0
      %1210 = vmatpush2.msra.mxu0 0.0
      %1211 = vmatprep.subr.mxu0 0.0
      %1212 = vmatpush2.msra.mxu0 0.0
      %1213 = vmatprep.subr.mxu0 0.0
      %1214 = vmatpush2.msra.mxu0 0.0
      %1215 = vmatprep.subr.mxu0 0.0
      %1216 = vmatpush2.msra.mxu0 0.0
      %1217 = vmatprep.subr.mxu0 0.0
      %1218 = vmatpush2.msra.mxu0 0.0
      %1219 = vmatprep.subr.mxu0 0.0
      %1220 = vmatpush2.msra.mxu0 0.0
      %1221 = vmatprep.subr.mxu0 0.0
      %1222 = vmatpush2.msra.mxu0 0.0
      %1223 = vmatprep.subr.mxu0 0.0
      %1224 = vmatpush2.msra.mxu0 0.0
      %1225 = vmatprep.subr.mxu0 0.0
      %1226 = vmatpush2.msra.mxu0 0.0
      %1227 = vmatprep.mubr.f32.mxu0 0.0
      %1228 = vmatmul.mubr.f32.gmra.mxu0 %v1053
      %v1229 = vpop.f32.mrf.mxu0
      %v1230 = vadd.f32 0.0, %v1229
      %v1231 = vpop.f32.mrf.mxu0
      %1232 = vmatprep.mubr.f32.mxu0 0.0
      %1233 = vmatmul.mubr.f32.gmra.mxu0 %v1056
      %v1234 = vpop.f32.mrf.mxu0
      %v1235 = vadd.f32 0.0, %v1234
      %v1236 = vpop.f32.mrf.mxu0
      %1237 = vmatprep.mubr.f32.mxu0 0.0
      %1238 = vmatmul.mubr.f32.gmra.mxu0 %v1059
      %v1239 = vpop.f32.mrf.mxu0
      %v1240 = vadd.f32 0.0, %v1239
      %v1241 = vpop.f32.mrf.mxu0
      %1242 = vmatprep.mubr.f32.mxu0 0.0
      %1243 = vmatmul.mubr.f32.gmra.mxu0 %v1062
      %v1244 = vpop.f32.mrf.mxu0
      %v1245 = vadd.f32 0.0, %v1244
      %v1246 = vpop.f32.mrf.mxu0
      %1247 = vmatprep.mubr.f32.mxu0 0.0
      %1248 = vmatmul.mubr.f32.gmra.mxu0 %v1065
      %v1249 = vpop.f32.mrf.mxu0
      %v1250 = vadd.f32 0.0, %v1249
      %v1251 = vpop.f32.mrf.mxu0
      %1252 = vmatprep.mubr.f32.mxu0 0.0
      %1253 = vmatmul.mubr.f32.gmra.mxu0 %v1068
      %v1254 = vpop.f32.mrf.mxu0
      %v1255 = vadd.f32 0.0, %v1254
      %v1256 = vpop.f32.mrf.mxu0
      %1257 = vmatprep.mubr.f32.mxu0 0.0
      %1258 = vmatmul.mubr.f32.gmra.mxu0 %v1071
      %v1259 = vpop.f32.mrf.mxu0
      %v1260 = vadd.f32 0.0, %v1259
      %v1261 = vpop.f32.mrf.mxu0
      %1262 = vmatprep.mubr.f32.mxu0 0.0
      %1263 = vmatmul.mubr.f32.gmra.mxu0 %v1074
      %v1264 = vpop.f32.mrf.mxu0
      %v1265 = vadd.f32 0.0, %v1264
      %v1266 = vpop.f32.mrf.mxu0
      %1267 = vmatprep.mubr.f32.mxu0 0.0
      %1268 = vmatmul.mubr.f32.gmra.mxu0 %v1077
      %v1269 = vpop.f32.mrf.mxu0
      %v1270 = vadd.f32 0.0, %v1269
      %v1271 = vpop.f32.mrf.mxu0
      %1272 = vmatprep.mubr.f32.mxu0 0.0
      %1273 = vmatmul.mubr.f32.gmra.mxu0 %v1080
      %v1274 = vpop.f32.mrf.mxu0
      %v1275 = vadd.f32 0.0, %v1274
      %v1276 = vpop.f32.mrf.mxu0
      %1277 = vmatprep.mubr.f32.mxu0 0.0
      %1278 = vmatmul.mubr.f32.gmra.mxu0 %v1083
      %v1279 = vpop.f32.mrf.mxu0
      %v1280 = vadd.f32 0.0, %v1279
      %v1281 = vpop.f32.mrf.mxu0
      %1282 = vmatprep.mubr.f32.mxu0 0.0
      %1283 = vmatmul.mubr.f32.gmra.mxu0 %v1086
      %v1284 = vpop.f32.mrf.mxu0
      %v1285 = vadd.f32 0.0, %v1284
      %v1286 = vpop.f32.mrf.mxu0
      %1287 = vmatprep.mubr.f32.mxu0 0.0
      %1288 = vmatmul.mubr.f32.gmra.mxu0 %v1089
      %v1289 = vpop.f32.mrf.mxu0
      %v1290 = vadd.f32 0.0, %v1289
      %v1291 = vpop.f32.mrf.mxu0
      %1292 = vmatprep.mubr.f32.mxu0 0.0
      %1293 = vmatmul.mubr.f32.gmra.mxu0 %v1092
      %v1294 = vpop.f32.mrf.mxu0
      %v1295 = vadd.f32 0.0, %v1294
      %v1296 = vpop.f32.mrf.mxu0
      %1297 = vmatprep.mubr.f32.mxu0 0.0
      %1298 = vmatmul.mubr.f32.gmra.mxu0 %v1095
      %v1299 = vpop.f32.mrf.mxu0
      %v1300 = vadd.f32 0.0, %v1299
      %v1301 = vpop.f32.mrf.mxu0
      %1302 = vmatprep.mubr.f32.mxu0 0.0
      %1303 = vmatmul.mubr.f32.gmra.mxu0 %v1098
      %v1304 = vpop.f32.mrf.mxu0
      %v1305 = vadd.f32 0.0, %v1304
      %v1306 = vpop.f32.mrf.mxu0
      %1307 = vmatprep.mubr.f32.mxu0 0.0
      %1308 = vmatmul.mubr.f32.gmra.mxu0 %v1101
      %v1309 = vpop.f32.mrf.mxu0
      %v1310 = vadd.f32 0.0, %v1309
      %v1311 = vpop.f32.mrf.mxu0
      %1312 = vmatprep.mubr.f32.mxu0 0.0
      %1313 = vmatmul.mubr.f32.gmra.mxu0 %v1104
      %v1314 = vpop.f32.mrf.mxu0
      %v1315 = vadd.f32 0.0, %v1314
      %v1316 = vpop.f32.mrf.mxu0
      %1317 = vmatprep.mubr.f32.mxu0 0.0
      %1318 = vmatmul.mubr.f32.gmra.mxu0 %v1107
      %v1319 = vpop.f32.mrf.mxu0
      %v1320 = vadd.f32 0.0, %v1319
      %v1321 = vpop.f32.mrf.mxu0
      %1322 = vmatprep.mubr.f32.mxu0 0.0
      %1323 = vmatmul.mubr.f32.gmra.mxu0 %v1110
      %v1324 = vpop.f32.mrf.mxu0
      %v1325 = vadd.f32 0.0, %v1324
      %v1326 = vpop.f32.mrf.mxu0
      %1327 = vmatprep.mubr.f32.mxu0 0.0
      %1328 = vmatmul.mubr.f32.gmra.mxu0 %v1113
      %v1329 = vpop.f32.mrf.mxu0
      %v1330 = vadd.f32 0.0, %v1329
      %v1331 = vpop.f32.mrf.mxu0
      %1332 = vmatprep.mubr.f32.mxu0 0.0
      %1333 = vmatmul.mubr.f32.gmra.mxu0 %v1116
      %v1334 = vpop.f32.mrf.mxu0
      %v1335 = vadd.f32 0.0, %v1334
      %v1336 = vpop.f32.mrf.mxu0
      %1337 = vmatprep.mubr.f32.mxu0 0.0
      %1338 = vmatmul.mubr.f32.gmra.mxu0 %v1119
      %v1339 = vpop.f32.mrf.mxu0
      %v1340 = vadd.f32 0.0, %v1339
      %v1341 = vpop.f32.mrf.mxu0
      %1342 = vmatprep.mubr.f32.mxu0 0.0
      %1343 = vmatmul.mubr.f32.gmra.mxu0 %v1122
      %v1344 = vpop.f32.mrf.mxu0
      %v1345 = vadd.f32 0.0, %v1344
      %v1346 = vpop.f32.mrf.mxu0
      %1347 = vmatprep.mubr.f32.mxu0 0.0
      %1348 = vmatmul.mubr.f32.gmra.mxu0 %v1125
      %v1349 = vpop.f32.mrf.mxu0
      %v1350 = vadd.f32 0.0, %v1349
      %v1351 = vpop.f32.mrf.mxu0
      %1352 = vmatprep.mubr.f32.mxu0 0.0
      %1353 = vmatmul.mubr.f32.gmra.mxu0 %v1128
      %v1354 = vpop.f32.mrf.mxu0
      %v1355 = vadd.f32 0.0, %v1354
      %v1356 = vpop.f32.mrf.mxu0
      %1357 = vmatprep.mubr.f32.mxu0 0.0
      %1358 = vmatmul.mubr.f32.gmra.mxu0 %v1131
      %v1359 = vpop.f32.mrf.mxu0
      %v1360 = vadd.f32 0.0, %v1359
      %v1361 = vpop.f32.mrf.mxu0
      %1362 = vmatprep.mubr.f32.mxu0 0.0
      %1363 = vmatmul.mubr.f32.gmra.mxu0 %v1134
      %v1364 = vpop.f32.mrf.mxu0
      %v1365 = vadd.f32 0.0, %v1364
      %v1366 = vpop.f32.mrf.mxu0
      %1367 = vmatprep.mubr.f32.mxu0 0.0
      %1368 = vmatmul.mubr.f32.gmra.mxu0 %v1137
      %v1369 = vpop.f32.mrf.mxu0
      %v1370 = vadd.f32 0.0, %v1369
      %v1371 = vpop.f32.mrf.mxu0
      %1372 = vmatprep.mubr.f32.mxu0 0.0
      %1373 = vmatmul.mubr.f32.gmra.mxu0 %v1140
      %v1374 = vpop.f32.mrf.mxu0
      %v1375 = vadd.f32 0.0, %v1374
      %v1376 = vpop.f32.mrf.mxu0
      %1377 = vmatprep.mubr.f32.mxu0 0.0
      %1378 = vmatmul.mubr.f32.gmra.mxu0 %v1143
      %v1379 = vpop.f32.mrf.mxu0
      %v1380 = vadd.f32 0.0, %v1379
      %v1381 = vpop.f32.mrf.mxu0
      %1382 = vmatprep.mubr.f32.mxu0 0.0
      %1383 = vmatmul.mubr.f32.gmra.mxu0 %v1146
      %v1384 = vpop.f32.mrf.mxu0
      %v1385 = vadd.f32 0.0, %v1384
      %v1386 = vpop.f32.mrf.mxu0
      %1387 = vmatprep.mubr.f32.mxu0 0.0
      %1388 = vmatmul.mubr.f32.gmra.mxu0 %v1149
      %v1389 = vpop.f32.mrf.mxu0
      %v1390 = vadd.f32 0.0, %v1389
      %v1391 = vpop.f32.mrf.mxu0
      %1392 = vmatprep.mubr.f32.mxu0 0.0
      %1393 = vmatmul.mubr.f32.gmra.mxu0 %v1152
      %v1394 = vpop.f32.mrf.mxu0
      %v1395 = vadd.f32 0.0, %v1394
      %v1396 = vpop.f32.mrf.mxu0
      %1397 = vmatprep.mubr.f32.mxu0 0.0
      %1398 = vmatmul.mubr.f32.gmra.mxu0 %v1155
      %v1399 = vpop.f32.mrf.mxu0
      %v1400 = vadd.f32 0.0, %v1399
      %v1401 = vpop.f32.mrf.mxu0
      %1402 = vmatprep.mubr.f32.mxu0 0.0
      %1403 = vmatmul.mubr.f32.gmra.mxu0 %v1158
      %v1404 = vpop.f32.mrf.mxu0
      %v1405 = vadd.f32 0.0, %v1404
      %v1406 = vpop.f32.mrf.mxu0
      %1407 = vdwg.mxu0
      %v1408 = vadd.f32 %v836, %v1230
      %v1409 = vadd.f32 %v841, %v1235
      %v1410 = vadd.f32 %v846, %v1240
      %v1411 = vadd.f32 %v851, %v1245
      %v1412 = vadd.f32 %v856, %v1250
      %v1413 = vadd.f32 %v861, %v1255
      %v1414 = vadd.f32 %v866, %v1260
      %v1415 = vadd.f32 %v871, %v1265
      %v1416 = vadd.f32 %v876, %v1270
      %v1417 = vadd.f32 %v881, %v1275
      %v1418 = vadd.f32 %v886, %v1280
      %v1419 = vadd.f32 %v891, %v1285
      %v1420 = vadd.f32 %v896, %v1290
      %v1421 = vadd.f32 %v901, %v1295
      %v1422 = vadd.f32 %v906, %v1300
      %v1423 = vadd.f32 %v911, %v1305
      %v1424 = vadd.f32 %v916, %v1310
      %v1425 = vadd.f32 %v921, %v1315
      %v1426 = vadd.f32 %v926, %v1320
      %v1427 = vadd.f32 %v931, %v1325
      %v1428 = vadd.f32 %v936, %v1330
      %v1429 = vadd.f32 %v941, %v1335
      %v1430 = vadd.f32 %v946, %v1340
      %v1431 = vadd.f32 %v951, %v1345
      %v1432 = vadd.f32 %v956, %v1350
      %v1433 = vadd.f32 %v961, %v1355
      %v1434 = vadd.f32 %v966, %v1360
      %v1435 = vadd.f32 %v971, %v1365
      %v1436 = vadd.f32 %v976, %v1370
      %v1437 = vadd.f32 %v981, %v1375
      %v1438 = vadd.f32 %v986, %v1380
      %v1439 = vadd.f32 %v991, %v1385
      %v1440 = vadd.f32 %v996, %v1390
      %v1441 = vadd.f32 %v1001, %v1395
      %v1442 = vadd.f32 %v1006, %v1400
      %v1443 = vadd.f32 %v1011, %v1405
      %v1444 = vld [vmem:[%s219 + $0x12] sm:$0xff]
      %v1445 = vld [vmem:[%s219 + $0x1a] sm:$0xff]
      %v1446 = vld [vmem:[%s219 + $0x22] sm:$0xff]
      %v1447 = vld [vmem:[%s219 + $0x2a] sm:$0xff]
      %v1448 = vld [vmem:[%s219 + $0x32] sm:$0xff]
      %v1449 = vld [vmem:[%s219 + $0x3a] sm:$0xff]
      %v1450 = vld [vmem:[%s219 + $0x42] sm:$0xff]
      %v1451 = vld [vmem:[%s219 + $0x4a] sm:$0xff]
      %v1452 = vld [vmem:[%s219 + $0x52] sm:$0xff]
      %v1453 = vld [vmem:[%s219 + $0x5a] sm:$0xff]
      %v1454 = vld [vmem:[%s219 + $0x62] sm:$0xff]
      %v1455 = vld [vmem:[%s219 + $0x6a] sm:$0xff]
      %v1456 = vld [vmem:[%s219 + $0x72] sm:$0xff]
      %v1457 = vld [vmem:[%s219 + $0x7a] sm:$0xff]
      %v1458 = vld [vmem:[%s219 + $0x82] sm:$0xff]
      %v1459 = vld [vmem:[%s219 + $0x8a] sm:$0xff]
      %v1460 = vld [vmem:[%s219 + $0x92] sm:$0xff]
      %v1461 = vld [vmem:[%s219 + $0x9a] sm:$0xff]
      %v1462 = vld [vmem:[%s219 + $0xa2] sm:$0xff]
      %v1463 = vld [vmem:[%s219 + $0xaa] sm:$0xff]
      %v1464 = vld [vmem:[%s219 + $0xb2] sm:$0xff]
      %v1465 = vld [vmem:[%s219 + $0xba] sm:$0xff]
      %v1466 = vld [vmem:[%s219 + $0xc2] sm:$0xff]
      %v1467 = vld [vmem:[%s219 + $0xca] sm:$0xff]
      %v1468 = vld [vmem:[%s219 + $0xd2] sm:$0xff]
      %v1469 = vld [vmem:[%s219 + $0xda] sm:$0xff]
      %v1470 = vld [vmem:[%s219 + $0xe2] sm:$0xff]
      %v1471 = vld [vmem:[%s219 + $0xea] sm:$0xff]
      %v1472 = vld [vmem:[%s219 + $0xf2] sm:$0xff]
      %v1473 = vld [vmem:[%s219 + $0xfa] sm:$0xff]
      %v1474 = vld [vmem:[%s219 + $0x102] sm:$0xff]
      %v1475 = vld [vmem:[%s219 + $0x10a] sm:$0xff]
      %v1476 = vld [vmem:[%s219 + $0x112] sm:$0xff]
      %v1477 = vld [vmem:[%s219 + $0x11a] sm:$0xff]
      %v1478 = vld [vmem:[%s219 + $0x122] sm:$0xff]
      %v1479 = vld [vmem:[%s219 + $0x12a] sm:$0x3f]
      %s1480 = scalar_lea.vmem %s1, 12
      %v1481 = vld [vmem:[%s1480] sm:$0xf]
      %v1483 = vsel %vm300, %v1444, 0
      %v1486 = vsel %vm300, %v1445, 0
      %v1489 = vsel %vm300, %v1446, 0
      %v1492 = vsel %vm300, %v1447, 0
      %v1495 = vsel %vm300, %v1448, 0
      %v1498 = vsel %vm300, %v1449, 0
      %v1501 = vsel %vm300, %v1450, 0
      %v1504 = vsel %vm300, %v1451, 0
      %v1507 = vsel %vm300, %v1452, 0
      %v1510 = vsel %vm300, %v1453, 0
      %v1513 = vsel %vm300, %v1454, 0
      %v1516 = vsel %vm300, %v1455, 0
      %v1519 = vsel %vm300, %v1456, 0
      %v1522 = vsel %vm300, %v1457, 0
      %v1525 = vsel %vm300, %v1458, 0
      %v1528 = vsel %vm300, %v1459, 0
      %v1531 = vsel %vm300, %v1460, 0
      %v1534 = vsel %vm300, %v1461, 0
      %v1537 = vsel %vm300, %v1462, 0
      %v1540 = vsel %vm300, %v1463, 0
      %v1543 = vsel %vm300, %v1464, 0
      %v1546 = vsel %vm300, %v1465, 0
      %v1549 = vsel %vm300, %v1466, 0
      %v1552 = vsel %vm300, %v1467, 0
      %v1555 = vsel %vm300, %v1468, 0
      %v1558 = vsel %vm300, %v1469, 0
      %v1561 = vsel %vm300, %v1470, 0
      %v1564 = vsel %vm300, %v1471, 0
      %v1567 = vsel %vm300, %v1472, 0
      %v1570 = vsel %vm300, %v1473, 0
      %v1573 = vsel %vm300, %v1474, 0
      %v1576 = vsel %vm300, %v1475, 0
      %v1579 = vsel %vm300, %v1476, 0
      %v1582 = vsel %vm300, %v1477, 0
      %v1585 = vsel %vm300, %v1478, 0
      %v1588 = vsel %vm300, %v1479, 0
      %v1591 = vsel %vm409, %v1481, 0
      %1593 = vmatprep.subr.mxu0 0.0
      %1594 = vmatpush1.msra.mxu0 0.0
      %1595 = vmatprep.subr.mxu0 0.0
      %1596 = vmatpush1.msra.mxu0 0.0
      %1597 = vmatprep.subr.mxu0 0.0
      %1598 = vmatpush1.msra.mxu0 0.0
      %1599 = vmatprep.subr.mxu0 0.0
      %1600 = vmatpush1.msra.mxu0 0.0
      %1601 = vmatprep.subr.mxu0 0.0
      %1602 = vmatpush1.msra.mxu0 0.0
      %1603 = vmatprep.subr.mxu0 0.0
      %1604 = vmatpush1.msra.mxu0 0.0
      %1605 = vmatprep.subr.mxu0 0.0
      %1606 = vmatpush1.msra.mxu0 0.0
      %1607 = vmatprep.subr.mxu0 0.0
      %1608 = vmatpush1.msra.mxu0 0.0
      %1609 = vmatprep.subr.mxu0 0.0
      %1610 = vmatpush1.msra.mxu0 0.0
      %1611 = vmatprep.subr.mxu0 0.0
      %1612 = vmatpush1.msra.mxu0 0.0
      %1613 = vmatprep.subr.mxu0 0.0
      %1614 = vmatpush1.msra.mxu0 0.0
      %1615 = vmatprep.subr.mxu0 0.0
      %1616 = vmatpush1.msra.mxu0 0.0
      %1617 = vmatprep.subr.mxu0 0.0
      %1618 = vmatpush1.msra.mxu0 0.0
      %1619 = vmatprep.subr.mxu0 0.0
      %1620 = vmatpush1.msra.mxu0 0.0
      %1621 = vmatprep.subr.mxu0 0.0
      %1622 = vmatpush1.msra.mxu0 0.0
      %1623 = vmatprep.subr.mxu0 0.0
      %1624 = vmatpush1.msra.mxu0 %v1591
      %1625 = vmatprep.subr.mxu0 0.0
      %1626 = vmatpush2.msra.mxu0 0.0
      %1627 = vmatprep.subr.mxu0 0.0
      %1628 = vmatpush2.msra.mxu0 0.0
      %1629 = vmatprep.subr.mxu0 0.0
      %1630 = vmatpush2.msra.mxu0 0.0
      %1631 = vmatprep.subr.mxu0 0.0
      %1632 = vmatpush2.msra.mxu0 0.0
      %1633 = vmatprep.subr.mxu0 0.0
      %1634 = vmatpush2.msra.mxu0 0.0
      %1635 = vmatprep.subr.mxu0 0.0
      %1636 = vmatpush2.msra.mxu0 0.0
      %1637 = vmatprep.subr.mxu0 0.0
      %1638 = vmatpush2.msra.mxu0 0.0
      %1639 = vmatprep.subr.mxu0 0.0
      %1640 = vmatpush2.msra.mxu0 0.0
      %1641 = vmatprep.subr.mxu0 0.0
      %1642 = vmatpush2.msra.mxu0 0.0
      %1643 = vmatprep.subr.mxu0 0.0
      %1644 = vmatpush2.msra.mxu0 0.0
      %1645 = vmatprep.subr.mxu0 0.0
      %1646 = vmatpush2.msra.mxu0 0.0
      %1647 = vmatprep.subr.mxu0 0.0
      %1648 = vmatpush2.msra.mxu0 0.0
      %1649 = vmatprep.subr.mxu0 0.0
      %1650 = vmatpush2.msra.mxu0 0.0
      %1651 = vmatprep.subr.mxu0 0.0
      %1652 = vmatpush2.msra.mxu0 0.0
      %1653 = vmatprep.subr.mxu0 0.0
      %1654 = vmatpush2.msra.mxu0 0.0
      %1655 = vmatprep.subr.mxu0 0.0
      %1656 = vmatpush2.msra.mxu0 0.0
      %1657 = vmatprep.mubr.f32.mxu0 0.0
      %1658 = vmatmul.mubr.f32.gmra.mxu0 %v1483
      %v1659 = vpop.f32.mrf.mxu0
      %v1660 = vadd.f32 0.0, %v1659
      %v1661 = vpop.f32.mrf.mxu0
      %1662 = vmatprep.mubr.f32.mxu0 0.0
      %1663 = vmatmul.mubr.f32.gmra.mxu0 %v1486
      %v1664 = vpop.f32.mrf.mxu0
      %v1665 = vadd.f32 0.0, %v1664
      %v1666 = vpop.f32.mrf.mxu0
      %1667 = vmatprep.mubr.f32.mxu0 0.0
      %1668 = vmatmul.mubr.f32.gmra.mxu0 %v1489
      %v1669 = vpop.f32.mrf.mxu0
      %v1670 = vadd.f32 0.0, %v1669
      %v1671 = vpop.f32.mrf.mxu0
      %1672 = vmatprep.mubr.f32.mxu0 0.0
      %1673 = vmatmul.mubr.f32.gmra.mxu0 %v1492
      %v1674 = vpop.f32.mrf.mxu0
      %v1675 = vadd.f32 0.0, %v1674
      %v1676 = vpop.f32.mrf.mxu0
      %1677 = vmatprep.mubr.f32.mxu0 0.0
      %1678 = vmatmul.mubr.f32.gmra.mxu0 %v1495
      %v1679 = vpop.f32.mrf.mxu0
      %v1680 = vadd.f32 0.0, %v1679
      %v1681 = vpop.f32.mrf.mxu0
      %1682 = vmatprep.mubr.f32.mxu0 0.0
      %1683 = vmatmul.mubr.f32.gmra.mxu0 %v1498
      %v1684 = vpop.f32.mrf.mxu0
      %v1685 = vadd.f32 0.0, %v1684
      %v1686 = vpop.f32.mrf.mxu0
      %1687 = vmatprep.mubr.f32.mxu0 0.0
      %1688 = vmatmul.mubr.f32.gmra.mxu0 %v1501
      %v1689 = vpop.f32.mrf.mxu0
      %v1690 = vadd.f32 0.0, %v1689
      %v1691 = vpop.f32.mrf.mxu0
      %1692 = vmatprep.mubr.f32.mxu0 0.0
      %1693 = vmatmul.mubr.f32.gmra.mxu0 %v1504
      %v1694 = vpop.f32.mrf.mxu0
      %v1695 = vadd.f32 0.0, %v1694
      %v1696 = vpop.f32.mrf.mxu0
      %1697 = vmatprep.mubr.f32.mxu0 0.0
      %1698 = vmatmul.mubr.f32.gmra.mxu0 %v1507
      %v1699 = vpop.f32.mrf.mxu0
      %v1700 = vadd.f32 0.0, %v1699
      %v1701 = vpop.f32.mrf.mxu0
      %1702 = vmatprep.mubr.f32.mxu0 0.0
      %1703 = vmatmul.mubr.f32.gmra.mxu0 %v1510
      %v1704 = vpop.f32.mrf.mxu0
      %v1705 = vadd.f32 0.0, %v1704
      %v1706 = vpop.f32.mrf.mxu0
      %1707 = vmatprep.mubr.f32.mxu0 0.0
      %1708 = vmatmul.mubr.f32.gmra.mxu0 %v1513
      %v1709 = vpop.f32.mrf.mxu0
      %v1710 = vadd.f32 0.0, %v1709
      %v1711 = vpop.f32.mrf.mxu0
      %1712 = vmatprep.mubr.f32.mxu0 0.0
      %1713 = vmatmul.mubr.f32.gmra.mxu0 %v1516
      %v1714 = vpop.f32.mrf.mxu0
      %v1715 = vadd.f32 0.0, %v1714
      %v1716 = vpop.f32.mrf.mxu0
      %1717 = vmatprep.mubr.f32.mxu0 0.0
      %1718 = vmatmul.mubr.f32.gmra.mxu0 %v1519
      %v1719 = vpop.f32.mrf.mxu0
      %v1720 = vadd.f32 0.0, %v1719
      %v1721 = vpop.f32.mrf.mxu0
      %1722 = vmatprep.mubr.f32.mxu0 0.0
      %1723 = vmatmul.mubr.f32.gmra.mxu0 %v1522
      %v1724 = vpop.f32.mrf.mxu0
      %v1725 = vadd.f32 0.0, %v1724
      %v1726 = vpop.f32.mrf.mxu0
      %1727 = vmatprep.mubr.f32.mxu0 0.0
      %1728 = vmatmul.mubr.f32.gmra.mxu0 %v1525
      %v1729 = vpop.f32.mrf.mxu0
      %v1730 = vadd.f32 0.0, %v1729
      %v1731 = vpop.f32.mrf.mxu0
      %1732 = vmatprep.mubr.f32.mxu0 0.0
      %1733 = vmatmul.mubr.f32.gmra.mxu0 %v1528
      %v1734 = vpop.f32.mrf.mxu0
      %v1735 = vadd.f32 0.0, %v1734
      %v1736 = vpop.f32.mrf.mxu0
      %1737 = vmatprep.mubr.f32.mxu0 0.0
      %1738 = vmatmul.mubr.f32.gmra.mxu0 %v1531
      %v1739 = vpop.f32.mrf.mxu0
      %v1740 = vadd.f32 0.0, %v1739
      %v1741 = vpop.f32.mrf.mxu0
      %1742 = vmatprep.mubr.f32.mxu0 0.0
      %1743 = vmatmul.mubr.f32.gmra.mxu0 %v1534
      %v1744 = vpop.f32.mrf.mxu0
      %v1745 = vadd.f32 0.0, %v1744
      %v1746 = vpop.f32.mrf.mxu0
      %1747 = vmatprep.mubr.f32.mxu0 0.0
      %1748 = vmatmul.mubr.f32.gmra.mxu0 %v1537
      %v1749 = vpop.f32.mrf.mxu0
      %v1750 = vadd.f32 0.0, %v1749
      %v1751 = vpop.f32.mrf.mxu0
      %1752 = vmatprep.mubr.f32.mxu0 0.0
      %1753 = vmatmul.mubr.f32.gmra.mxu0 %v1540
      %v1754 = vpop.f32.mrf.mxu0
      %v1755 = vadd.f32 0.0, %v1754
      %v1756 = vpop.f32.mrf.mxu0
      %1757 = vmatprep.mubr.f32.mxu0 0.0
      %1758 = vmatmul.mubr.f32.gmra.mxu0 %v1543
      %v1759 = vpop.f32.mrf.mxu0
      %v1760 = vadd.f32 0.0, %v1759
      %v1761 = vpop.f32.mrf.mxu0
      %1762 = vmatprep.mubr.f32.mxu0 0.0
      %1763 = vmatmul.mubr.f32.gmra.mxu0 %v1546
      %v1764 = vpop.f32.mrf.mxu0
      %v1765 = vadd.f32 0.0, %v1764
      %v1766 = vpop.f32.mrf.mxu0
      %1767 = vmatprep.mubr.f32.mxu0 0.0
      %1768 = vmatmul.mubr.f32.gmra.mxu0 %v1549
      %v1769 = vpop.f32.mrf.mxu0
      %v1770 = vadd.f32 0.0, %v1769
      %v1771 = vpop.f32.mrf.mxu0
      %1772 = vmatprep.mubr.f32.mxu0 0.0
      %1773 = vmatmul.mubr.f32.gmra.mxu0 %v1552
      %v1774 = vpop.f32.mrf.mxu0
      %v1775 = vadd.f32 0.0, %v1774
      %v1776 = vpop.f32.mrf.mxu0
      %1777 = vmatprep.mubr.f32.mxu0 0.0
      %1778 = vmatmul.mubr.f32.gmra.mxu0 %v1555
      %v1779 = vpop.f32.mrf.mxu0
      %v1780 = vadd.f32 0.0, %v1779
      %v1781 = vpop.f32.mrf.mxu0
      %1782 = vmatprep.mubr.f32.mxu0 0.0
      %1783 = vmatmul.mubr.f32.gmra.mxu0 %v1558
      %v1784 = vpop.f32.mrf.mxu0
      %v1785 = vadd.f32 0.0, %v1784
      %v1786 = vpop.f32.mrf.mxu0
      %1787 = vmatprep.mubr.f32.mxu0 0.0
      %1788 = vmatmul.mubr.f32.gmra.mxu0 %v1561
      %v1789 = vpop.f32.mrf.mxu0
      %v1790 = vadd.f32 0.0, %v1789
      %v1791 = vpop.f32.mrf.mxu0
      %1792 = vmatprep.mubr.f32.mxu0 0.0
      %1793 = vmatmul.mubr.f32.gmra.mxu0 %v1564
      %v1794 = vpop.f32.mrf.mxu0
      %v1795 = vadd.f32 0.0, %v1794
      %v1796 = vpop.f32.mrf.mxu0
      %1797 = vmatprep.mubr.f32.mxu0 0.0
      %1798 = vmatmul.mubr.f32.gmra.mxu0 %v1567
      %v1799 = vpop.f32.mrf.mxu0
      %v1800 = vadd.f32 0.0, %v1799
      %v1801 = vpop.f32.mrf.mxu0
      %1802 = vmatprep.mubr.f32.mxu0 0.0
      %1803 = vmatmul.mubr.f32.gmra.mxu0 %v1570
      %v1804 = vpop.f32.mrf.mxu0
      %v1805 = vadd.f32 0.0, %v1804
      %v1806 = vpop.f32.mrf.mxu0
      %1807 = vmatprep.mubr.f32.mxu0 0.0
      %1808 = vmatmul.mubr.f32.gmra.mxu0 %v1573
      %v1809 = vpop.f32.mrf.mxu0
      %v1810 = vadd.f32 0.0, %v1809
      %v1811 = vpop.f32.mrf.mxu0
      %1812 = vmatprep.mubr.f32.mxu0 0.0
      %1813 = vmatmul.mubr.f32.gmra.mxu0 %v1576
      %v1814 = vpop.f32.mrf.mxu0
      %v1815 = vadd.f32 0.0, %v1814
      %v1816 = vpop.f32.mrf.mxu0
      %1817 = vmatprep.mubr.f32.mxu0 0.0
      %1818 = vmatmul.mubr.f32.gmra.mxu0 %v1579
      %v1819 = vpop.f32.mrf.mxu0
      %v1820 = vadd.f32 0.0, %v1819
      %v1821 = vpop.f32.mrf.mxu0
      %1822 = vmatprep.mubr.f32.mxu0 0.0
      %1823 = vmatmul.mubr.f32.gmra.mxu0 %v1582
      %v1824 = vpop.f32.mrf.mxu0
      %v1825 = vadd.f32 0.0, %v1824
      %v1826 = vpop.f32.mrf.mxu0
      %1827 = vmatprep.mubr.f32.mxu0 0.0
      %1828 = vmatmul.mubr.f32.gmra.mxu0 %v1585
      %v1829 = vpop.f32.mrf.mxu0
      %v1830 = vadd.f32 0.0, %v1829
      %v1831 = vpop.f32.mrf.mxu0
      %1832 = vmatprep.mubr.f32.mxu0 0.0
      %1833 = vmatmul.mubr.f32.gmra.mxu0 %v1588
      %v1834 = vpop.f32.mrf.mxu0
      %v1835 = vadd.f32 0.0, %v1834
      %v1836 = vpop.f32.mrf.mxu0
      %1837 = vdwg.mxu0
      %v1838 = vadd.f32 %v1408, %v1660
      %v1839 = vadd.f32 %v1409, %v1665
      %v1840 = vadd.f32 %v1410, %v1670
      %v1841 = vadd.f32 %v1411, %v1675
      %v1842 = vadd.f32 %v1412, %v1680
      %v1843 = vadd.f32 %v1413, %v1685
      %v1844 = vadd.f32 %v1414, %v1690
      %v1845 = vadd.f32 %v1415, %v1695
      %v1846 = vadd.f32 %v1416, %v1700
      %v1847 = vadd.f32 %v1417, %v1705
      %v1848 = vadd.f32 %v1418, %v1710
      %v1849 = vadd.f32 %v1419, %v1715
      %v1850 = vadd.f32 %v1420, %v1720
      %v1851 = vadd.f32 %v1421, %v1725
      %v1852 = vadd.f32 %v1422, %v1730
      %v1853 = vadd.f32 %v1423, %v1735
      %v1854 = vadd.f32 %v1424, %v1740
      %v1855 = vadd.f32 %v1425, %v1745
      %v1856 = vadd.f32 %v1426, %v1750
      %v1857 = vadd.f32 %v1427, %v1755
      %v1858 = vadd.f32 %v1428, %v1760
      %v1859 = vadd.f32 %v1429, %v1765
      %v1860 = vadd.f32 %v1430, %v1770
      %v1861 = vadd.f32 %v1431, %v1775
      %v1862 = vadd.f32 %v1432, %v1780
      %v1863 = vadd.f32 %v1433, %v1785
      %v1864 = vadd.f32 %v1434, %v1790
      %v1865 = vadd.f32 %v1435, %v1795
      %v1866 = vadd.f32 %v1436, %v1800
      %v1867 = vadd.f32 %v1437, %v1805
      %v1868 = vadd.f32 %v1438, %v1810
      %v1869 = vadd.f32 %v1439, %v1815
      %v1870 = vadd.f32 %v1440, %v1820
      %v1871 = vadd.f32 %v1441, %v1825
      %v1872 = vadd.f32 %v1442, %v1830
      %v1873 = vadd.f32 %v1443, %v1835
      %v1874 = vld [vmem:[%s219 + $0x13] sm:$0xff]
      %v1875 = vld [vmem:[%s219 + $0x1b] sm:$0xff]
      %v1876 = vld [vmem:[%s219 + $0x23] sm:$0xff]
      %v1877 = vld [vmem:[%s219 + $0x2b] sm:$0xff]
      %v1878 = vld [vmem:[%s219 + $0x33] sm:$0xff]
      %v1879 = vld [vmem:[%s219 + $0x3b] sm:$0xff]
      %v1880 = vld [vmem:[%s219 + $0x43] sm:$0xff]
      %v1881 = vld [vmem:[%s219 + $0x4b] sm:$0xff]
      %v1882 = vld [vmem:[%s219 + $0x53] sm:$0xff]
      %v1883 = vld [vmem:[%s219 + $0x5b] sm:$0xff]
      %v1884 = vld [vmem:[%s219 + $0x63] sm:$0xff]
      %v1885 = vld [vmem:[%s219 + $0x6b] sm:$0xff]
      %v1886 = vld [vmem:[%s219 + $0x73] sm:$0xff]
      %v1887 = vld [vmem:[%s219 + $0x7b] sm:$0xff]
      %v1888 = vld [vmem:[%s219 + $0x83] sm:$0xff]
      %v1889 = vld [vmem:[%s219 + $0x8b] sm:$0xff]
      %v1890 = vld [vmem:[%s219 + $0x93] sm:$0xff]
      %v1891 = vld [vmem:[%s219 + $0x9b] sm:$0xff]
      %v1892 = vld [vmem:[%s219 + $0xa3] sm:$0xff]
      %v1893 = vld [vmem:[%s219 + $0xab] sm:$0xff]
      %v1894 = vld [vmem:[%s219 + $0xb3] sm:$0xff]
      %v1895 = vld [vmem:[%s219 + $0xbb] sm:$0xff]
      %v1896 = vld [vmem:[%s219 + $0xc3] sm:$0xff]
      %v1897 = vld [vmem:[%s219 + $0xcb] sm:$0xff]
      %v1898 = vld [vmem:[%s219 + $0xd3] sm:$0xff]
      %v1899 = vld [vmem:[%s219 + $0xdb] sm:$0xff]
      %v1900 = vld [vmem:[%s219 + $0xe3] sm:$0xff]
      %v1901 = vld [vmem:[%s219 + $0xeb] sm:$0xff]
      %v1902 = vld [vmem:[%s219 + $0xf3] sm:$0xff]
      %v1903 = vld [vmem:[%s219 + $0xfb] sm:$0xff]
      %v1904 = vld [vmem:[%s219 + $0x103] sm:$0xff]
      %v1905 = vld [vmem:[%s219 + $0x10b] sm:$0xff]
      %v1906 = vld [vmem:[%s219 + $0x113] sm:$0xff]
      %v1907 = vld [vmem:[%s219 + $0x11b] sm:$0xff]
      %v1908 = vld [vmem:[%s219 + $0x123] sm:$0xff]
      %v1909 = vld [vmem:[%s219 + $0x12b] sm:$0x3f]
      %s1910 = scalar_lea.vmem %s1, 16
      %v1911 = vld [vmem:[%s1910] sm:$0xf]
      %v1913 = vsel %vm300, %v1874, 0
      %v1916 = vsel %vm300, %v1875, 0
      %v1919 = vsel %vm300, %v1876, 0
      %v1922 = vsel %vm300, %v1877, 0
      %v1925 = vsel %vm300, %v1878, 0
      %v1928 = vsel %vm300, %v1879, 0
      %v1931 = vsel %vm300, %v1880, 0
      %v1934 = vsel %vm300, %v1881, 0
      %v1937 = vsel %vm300, %v1882, 0
      %v1940 = vsel %vm300, %v1883, 0
      %v1943 = vsel %vm300, %v1884, 0
      %v1946 = vsel %vm300, %v1885, 0
      %v1949 = vsel %vm300, %v1886, 0
      %v1952 = vsel %vm300, %v1887, 0
      %v1955 = vsel %vm300, %v1888, 0
      %v1958 = vsel %vm300, %v1889, 0
      %v1961 = vsel %vm300, %v1890, 0
      %v1964 = vsel %vm300, %v1891, 0
      %v1967 = vsel %vm300, %v1892, 0
      %v1970 = vsel %vm300, %v1893, 0
      %v1973 = vsel %vm300, %v1894, 0
      %v1976 = vsel %vm300, %v1895, 0
      %v1979 = vsel %vm300, %v1896, 0
      %v1982 = vsel %vm300, %v1897, 0
      %v1985 = vsel %vm300, %v1898, 0
      %v1988 = vsel %vm300, %v1899, 0
      %v1991 = vsel %vm300, %v1900, 0
      %v1994 = vsel %vm300, %v1901, 0
      %v1997 = vsel %vm300, %v1902, 0
      %v2000 = vsel %vm300, %v1903, 0
      %v2003 = vsel %vm300, %v1904, 0
      %v2006 = vsel %vm300, %v1905, 0
      %v2009 = vsel %vm300, %v1906, 0
      %v2012 = vsel %vm300, %v1907, 0
      %v2015 = vsel %vm300, %v1908, 0
      %v2018 = vsel %vm300, %v1909, 0
      %v2021 = vsel %vm409, %v1911, 0
      %2023 = vmatprep.subr.mxu0 0.0
      %2024 = vmatpush1.msra.mxu0 0.0
      %2025 = vmatprep.subr.mxu0 0.0
      %2026 = vmatpush1.msra.mxu0 0.0
      %2027 = vmatprep.subr.mxu0 0.0
      %2028 = vmatpush1.msra.mxu0 0.0
      %2029 = vmatprep.subr.mxu0 0.0
      %2030 = vmatpush1.msra.mxu0 0.0
      %2031 = vmatprep.subr.mxu0 0.0
      %2032 = vmatpush1.msra.mxu0 0.0
      %2033 = vmatprep.subr.mxu0 0.0
      %2034 = vmatpush1.msra.mxu0 0.0
      %2035 = vmatprep.subr.mxu0 0.0
      %2036 = vmatpush1.msra.mxu0 0.0
      %2037 = vmatprep.subr.mxu0 0.0
      %2038 = vmatpush1.msra.mxu0 0.0
      %2039 = vmatprep.subr.mxu0 0.0
      %2040 = vmatpush1.msra.mxu0 0.0
      %2041 = vmatprep.subr.mxu0 0.0
      %2042 = vmatpush1.msra.mxu0 0.0
      %2043 = vmatprep.subr.mxu0 0.0
      %2044 = vmatpush1.msra.mxu0 0.0
      %2045 = vmatprep.subr.mxu0 0.0
      %2046 = vmatpush1.msra.mxu0 0.0
      %2047 = vmatprep.subr.mxu0 0.0
      %2048 = vmatpush1.msra.mxu0 0.0
      %2049 = vmatprep.subr.mxu0 0.0
      %2050 = vmatpush1.msra.mxu0 0.0
      %2051 = vmatprep.subr.mxu0 0.0
      %2052 = vmatpush1.msra.mxu0 0.0
      %2053 = vmatprep.subr.mxu0 0.0
      %2054 = vmatpush1.msra.mxu0 %v2021
      %2055 = vmatprep.subr.mxu0 0.0
      %2056 = vmatpush2.msra.mxu0 0.0
      %2057 = vmatprep.subr.mxu0 0.0
      %2058 = vmatpush2.msra.mxu0 0.0
      %2059 = vmatprep.subr.mxu0 0.0
      %2060 = vmatpush2.msra.mxu0 0.0
      %2061 = vmatprep.subr.mxu0 0.0
      %2062 = vmatpush2.msra.mxu0 0.0
      %2063 = vmatprep.subr.mxu0 0.0
      %2064 = vmatpush2.msra.mxu0 0.0
      %2065 = vmatprep.subr.mxu0 0.0
      %2066 = vmatpush2.msra.mxu0 0.0
      %2067 = vmatprep.subr.mxu0 0.0
      %2068 = vmatpush2.msra.mxu0 0.0
      %2069 = vmatprep.subr.mxu0 0.0
      %2070 = vmatpush2.msra.mxu0 0.0
      %2071 = vmatprep.subr.mxu0 0.0
      %2072 = vmatpush2.msra.mxu0 0.0
      %2073 = vmatprep.subr.mxu0 0.0
      %2074 = vmatpush2.msra.mxu0 0.0
      %2075 = vmatprep.subr.mxu0 0.0
      %2076 = vmatpush2.msra.mxu0 0.0
      %2077 = vmatprep.subr.mxu0 0.0
      %2078 = vmatpush2.msra.mxu0 0.0
      %2079 = vmatprep.subr.mxu0 0.0
      %2080 = vmatpush2.msra.mxu0 0.0
      %2081 = vmatprep.subr.mxu0 0.0
      %2082 = vmatpush2.msra.mxu0 0.0
      %2083 = vmatprep.subr.mxu0 0.0
      %2084 = vmatpush2.msra.mxu0 0.0
      %2085 = vmatprep.subr.mxu0 0.0
      %2086 = vmatpush2.msra.mxu0 0.0
      %2087 = vmatprep.mubr.f32.mxu0 0.0
      %2088 = vmatmul.mubr.f32.gmra.mxu0 %v1913
      %v2089 = vpop.f32.mrf.mxu0
      %v2090 = vadd.f32 0.0, %v2089
      %v2091 = vpop.f32.mrf.mxu0
      %2092 = vmatprep.mubr.f32.mxu0 0.0
      %2093 = vmatmul.mubr.f32.gmra.mxu0 %v1916
      %v2094 = vpop.f32.mrf.mxu0
      %v2095 = vadd.f32 0.0, %v2094
      %v2096 = vpop.f32.mrf.mxu0
      %2097 = vmatprep.mubr.f32.mxu0 0.0
      %2098 = vmatmul.mubr.f32.gmra.mxu0 %v1919
      %v2099 = vpop.f32.mrf.mxu0
      %v2100 = vadd.f32 0.0, %v2099
      %v2101 = vpop.f32.mrf.mxu0
      %2102 = vmatprep.mubr.f32.mxu0 0.0
      %2103 = vmatmul.mubr.f32.gmra.mxu0 %v1922
      %v2104 = vpop.f32.mrf.mxu0
      %v2105 = vadd.f32 0.0, %v2104
      %v2106 = vpop.f32.mrf.mxu0
      %2107 = vmatprep.mubr.f32.mxu0 0.0
      %2108 = vmatmul.mubr.f32.gmra.mxu0 %v1925
      %v2109 = vpop.f32.mrf.mxu0
      %v2110 = vadd.f32 0.0, %v2109
      %v2111 = vpop.f32.mrf.mxu0
      %2112 = vmatprep.mubr.f32.mxu0 0.0
      %2113 = vmatmul.mubr.f32.gmra.mxu0 %v1928
      %v2114 = vpop.f32.mrf.mxu0
      %v2115 = vadd.f32 0.0, %v2114
      %v2116 = vpop.f32.mrf.mxu0
      %2117 = vmatprep.mubr.f32.mxu0 0.0
      %2118 = vmatmul.mubr.f32.gmra.mxu0 %v1931
      %v2119 = vpop.f32.mrf.mxu0
      %v2120 = vadd.f32 0.0, %v2119
      %v2121 = vpop.f32.mrf.mxu0
      %2122 = vmatprep.mubr.f32.mxu0 0.0
      %2123 = vmatmul.mubr.f32.gmra.mxu0 %v1934
      %v2124 = vpop.f32.mrf.mxu0
      %v2125 = vadd.f32 0.0, %v2124
      %v2126 = vpop.f32.mrf.mxu0
      %2127 = vmatprep.mubr.f32.mxu0 0.0
      %2128 = vmatmul.mubr.f32.gmra.mxu0 %v1937
      %v2129 = vpop.f32.mrf.mxu0
      %v2130 = vadd.f32 0.0, %v2129
      %v2131 = vpop.f32.mrf.mxu0
      %2132 = vmatprep.mubr.f32.mxu0 0.0
      %2133 = vmatmul.mubr.f32.gmra.mxu0 %v1940
      %v2134 = vpop.f32.mrf.mxu0
      %v2135 = vadd.f32 0.0, %v2134
      %v2136 = vpop.f32.mrf.mxu0
      %2137 = vmatprep.mubr.f32.mxu0 0.0
      %2138 = vmatmul.mubr.f32.gmra.mxu0 %v1943
      %v2139 = vpop.f32.mrf.mxu0
      %v2140 = vadd.f32 0.0, %v2139
      %v2141 = vpop.f32.mrf.mxu0
      %2142 = vmatprep.mubr.f32.mxu0 0.0
      %2143 = vmatmul.mubr.f32.gmra.mxu0 %v1946
      %v2144 = vpop.f32.mrf.mxu0
      %v2145 = vadd.f32 0.0, %v2144
      %v2146 = vpop.f32.mrf.mxu0
      %2147 = vmatprep.mubr.f32.mxu0 0.0
      %2148 = vmatmul.mubr.f32.gmra.mxu0 %v1949
      %v2149 = vpop.f32.mrf.mxu0
      %v2150 = vadd.f32 0.0, %v2149
      %v2151 = vpop.f32.mrf.mxu0
      %2152 = vmatprep.mubr.f32.mxu0 0.0
      %2153 = vmatmul.mubr.f32.gmra.mxu0 %v1952
      %v2154 = vpop.f32.mrf.mxu0
      %v2155 = vadd.f32 0.0, %v2154
      %v2156 = vpop.f32.mrf.mxu0
      %2157 = vmatprep.mubr.f32.mxu0 0.0
      %2158 = vmatmul.mubr.f32.gmra.mxu0 %v1955
      %v2159 = vpop.f32.mrf.mxu0
      %v2160 = vadd.f32 0.0, %v2159
      %v2161 = vpop.f32.mrf.mxu0
      %2162 = vmatprep.mubr.f32.mxu0 0.0
      %2163 = vmatmul.mubr.f32.gmra.mxu0 %v1958
      %v2164 = vpop.f32.mrf.mxu0
      %v2165 = vadd.f32 0.0, %v2164
      %v2166 = vpop.f32.mrf.mxu0
      %2167 = vmatprep.mubr.f32.mxu0 0.0
      %2168 = vmatmul.mubr.f32.gmra.mxu0 %v1961
      %v2169 = vpop.f32.mrf.mxu0
      %v2170 = vadd.f32 0.0, %v2169
      %v2171 = vpop.f32.mrf.mxu0
      %2172 = vmatprep.mubr.f32.mxu0 0.0
      %2173 = vmatmul.mubr.f32.gmra.mxu0 %v1964
      %v2174 = vpop.f32.mrf.mxu0
      %v2175 = vadd.f32 0.0, %v2174
      %v2176 = vpop.f32.mrf.mxu0
      %2177 = vmatprep.mubr.f32.mxu0 0.0
      %2178 = vmatmul.mubr.f32.gmra.mxu0 %v1967
      %v2179 = vpop.f32.mrf.mxu0
      %v2180 = vadd.f32 0.0, %v2179
      %v2181 = vpop.f32.mrf.mxu0
      %2182 = vmatprep.mubr.f32.mxu0 0.0
      %2183 = vmatmul.mubr.f32.gmra.mxu0 %v1970
      %v2184 = vpop.f32.mrf.mxu0
      %v2185 = vadd.f32 0.0, %v2184
      %v2186 = vpop.f32.mrf.mxu0
      %2187 = vmatprep.mubr.f32.mxu0 0.0
      %2188 = vmatmul.mubr.f32.gmra.mxu0 %v1973
      %v2189 = vpop.f32.mrf.mxu0
      %v2190 = vadd.f32 0.0, %v2189
      %v2191 = vpop.f32.mrf.mxu0
      %2192 = vmatprep.mubr.f32.mxu0 0.0
      %2193 = vmatmul.mubr.f32.gmra.mxu0 %v1976
      %v2194 = vpop.f32.mrf.mxu0
      %v2195 = vadd.f32 0.0, %v2194
      %v2196 = vpop.f32.mrf.mxu0
      %2197 = vmatprep.mubr.f32.mxu0 0.0
      %2198 = vmatmul.mubr.f32.gmra.mxu0 %v1979
      %v2199 = vpop.f32.mrf.mxu0
      %v2200 = vadd.f32 0.0, %v2199
      %v2201 = vpop.f32.mrf.mxu0
      %2202 = vmatprep.mubr.f32.mxu0 0.0
      %2203 = vmatmul.mubr.f32.gmra.mxu0 %v1982
      %v2204 = vpop.f32.mrf.mxu0
      %v2205 = vadd.f32 0.0, %v2204
      %v2206 = vpop.f32.mrf.mxu0
      %2207 = vmatprep.mubr.f32.mxu0 0.0
      %2208 = vmatmul.mubr.f32.gmra.mxu0 %v1985
      %v2209 = vpop.f32.mrf.mxu0
      %v2210 = vadd.f32 0.0, %v2209
      %v2211 = vpop.f32.mrf.mxu0
      %2212 = vmatprep.mubr.f32.mxu0 0.0
      %2213 = vmatmul.mubr.f32.gmra.mxu0 %v1988
      %v2214 = vpop.f32.mrf.mxu0
      %v2215 = vadd.f32 0.0, %v2214
      %v2216 = vpop.f32.mrf.mxu0
      %2217 = vmatprep.mubr.f32.mxu0 0.0
      %2218 = vmatmul.mubr.f32.gmra.mxu0 %v1991
      %v2219 = vpop.f32.mrf.mxu0
      %v2220 = vadd.f32 0.0, %v2219
      %v2221 = vpop.f32.mrf.mxu0
      %2222 = vmatprep.mubr.f32.mxu0 0.0
      %2223 = vmatmul.mubr.f32.gmra.mxu0 %v1994
      %v2224 = vpop.f32.mrf.mxu0
      %v2225 = vadd.f32 0.0, %v2224
      %v2226 = vpop.f32.mrf.mxu0
      %2227 = vmatprep.mubr.f32.mxu0 0.0
      %2228 = vmatmul.mubr.f32.gmra.mxu0 %v1997
      %v2229 = vpop.f32.mrf.mxu0
      %v2230 = vadd.f32 0.0, %v2229
      %v2231 = vpop.f32.mrf.mxu0
      %2232 = vmatprep.mubr.f32.mxu0 0.0
      %2233 = vmatmul.mubr.f32.gmra.mxu0 %v2000
      %v2234 = vpop.f32.mrf.mxu0
      %v2235 = vadd.f32 0.0, %v2234
      %v2236 = vpop.f32.mrf.mxu0
      %2237 = vmatprep.mubr.f32.mxu0 0.0
      %2238 = vmatmul.mubr.f32.gmra.mxu0 %v2003
      %v2239 = vpop.f32.mrf.mxu0
      %v2240 = vadd.f32 0.0, %v2239
      %v2241 = vpop.f32.mrf.mxu0
      %2242 = vmatprep.mubr.f32.mxu0 0.0
      %2243 = vmatmul.mubr.f32.gmra.mxu0 %v2006
      %v2244 = vpop.f32.mrf.mxu0
      %v2245 = vadd.f32 0.0, %v2244
      %v2246 = vpop.f32.mrf.mxu0
      %2247 = vmatprep.mubr.f32.mxu0 0.0
      %2248 = vmatmul.mubr.f32.gmra.mxu0 %v2009
      %v2249 = vpop.f32.mrf.mxu0
      %v2250 = vadd.f32 0.0, %v2249
      %v2251 = vpop.f32.mrf.mxu0
      %2252 = vmatprep.mubr.f32.mxu0 0.0
      %2253 = vmatmul.mubr.f32.gmra.mxu0 %v2012
      %v2254 = vpop.f32.mrf.mxu0
      %v2255 = vadd.f32 0.0, %v2254
      %v2256 = vpop.f32.mrf.mxu0
      %2257 = vmatprep.mubr.f32.mxu0 0.0
      %2258 = vmatmul.mubr.f32.gmra.mxu0 %v2015
      %v2259 = vpop.f32.mrf.mxu0
      %v2260 = vadd.f32 0.0, %v2259
      %v2261 = vpop.f32.mrf.mxu0
      %2262 = vmatprep.mubr.f32.mxu0 0.0
      %2263 = vmatmul.mubr.f32.gmra.mxu0 %v2018
      %v2264 = vpop.f32.mrf.mxu0
      %v2265 = vadd.f32 0.0, %v2264
      %v2266 = vpop.f32.mrf.mxu0
      %2267 = vdwg.mxu0
      %v2268 = vadd.f32 %v1838, %v2090
      %v2269 = vadd.f32 %v1839, %v2095
      %v2270 = vadd.f32 %v1840, %v2100
      %v2271 = vadd.f32 %v1841, %v2105
      %v2272 = vadd.f32 %v1842, %v2110
      %v2273 = vadd.f32 %v1843, %v2115
      %v2274 = vadd.f32 %v1844, %v2120
      %v2275 = vadd.f32 %v1845, %v2125
      %v2276 = vadd.f32 %v1846, %v2130
      %v2277 = vadd.f32 %v1847, %v2135
      %v2278 = vadd.f32 %v1848, %v2140
      %v2279 = vadd.f32 %v1849, %v2145
      %v2280 = vadd.f32 %v1850, %v2150
      %v2281 = vadd.f32 %v1851, %v2155
      %v2282 = vadd.f32 %v1852, %v2160
      %v2283 = vadd.f32 %v1853, %v2165
      %v2284 = vadd.f32 %v1854, %v2170
      %v2285 = vadd.f32 %v1855, %v2175
      %v2286 = vadd.f32 %v1856, %v2180
      %v2287 = vadd.f32 %v1857, %v2185
      %v2288 = vadd.f32 %v1858, %v2190
      %v2289 = vadd.f32 %v1859, %v2195
      %v2290 = vadd.f32 %v1860, %v2200
      %v2291 = vadd.f32 %v1861, %v2205
      %v2292 = vadd.f32 %v1862, %v2210
      %v2293 = vadd.f32 %v1863, %v2215
      %v2294 = vadd.f32 %v1864, %v2220
      %v2295 = vadd.f32 %v1865, %v2225
      %v2296 = vadd.f32 %v1866, %v2230
      %v2297 = vadd.f32 %v1867, %v2235
      %v2298 = vadd.f32 %v1868, %v2240
      %v2299 = vadd.f32 %v1869, %v2245
      %v2300 = vadd.f32 %v1870, %v2250
      %v2301 = vadd.f32 %v1871, %v2255
      %v2302 = vadd.f32 %v1872, %v2260
      %v2303 = vadd.f32 %v1873, %v2265
      %v2304 = vld [vmem:[%s219 + $0x14] sm:$0xff]
      %v2305 = vld [vmem:[%s219 + $0x1c] sm:$0xff]
      %v2306 = vld [vmem:[%s219 + $0x24] sm:$0xff]
      %v2307 = vld [vmem:[%s219 + $0x2c] sm:$0xff]
      %v2308 = vld [vmem:[%s219 + $0x34] sm:$0xff]
      %v2309 = vld [vmem:[%s219 + $0x3c] sm:$0xff]
      %v2310 = vld [vmem:[%s219 + $0x44] sm:$0xff]
      %v2311 = vld [vmem:[%s219 + $0x4c] sm:$0xff]
      %v2312 = vld [vmem:[%s219 + $0x54] sm:$0xff]
      %v2313 = vld [vmem:[%s219 + $0x5c] sm:$0xff]
      %v2314 = vld [vmem:[%s219 + $0x64] sm:$0xff]
      %v2315 = vld [vmem:[%s219 + $0x6c] sm:$0xff]
      %v2316 = vld [vmem:[%s219 + $0x74] sm:$0xff]
      %v2317 = vld [vmem:[%s219 + $0x7c] sm:$0xff]
      %v2318 = vld [vmem:[%s219 + $0x84] sm:$0xff]
      %v2319 = vld [vmem:[%s219 + $0x8c] sm:$0xff]
      %v2320 = vld [vmem:[%s219 + $0x94] sm:$0xff]
      %v2321 = vld [vmem:[%s219 + $0x9c] sm:$0xff]
      %v2322 = vld [vmem:[%s219 + $0xa4] sm:$0xff]
      %v2323 = vld [vmem:[%s219 + $0xac] sm:$0xff]
      %v2324 = vld [vmem:[%s219 + $0xb4] sm:$0xff]
      %v2325 = vld [vmem:[%s219 + $0xbc] sm:$0xff]
      %v2326 = vld [vmem:[%s219 + $0xc4] sm:$0xff]
      %v2327 = vld [vmem:[%s219 + $0xcc] sm:$0xff]
      %v2328 = vld [vmem:[%s219 + $0xd4] sm:$0xff]
      %v2329 = vld [vmem:[%s219 + $0xdc] sm:$0xff]
      %v2330 = vld [vmem:[%s219 + $0xe4] sm:$0xff]
      %v2331 = vld [vmem:[%s219 + $0xec] sm:$0xff]
      %v2332 = vld [vmem:[%s219 + $0xf4] sm:$0xff]
      %v2333 = vld [vmem:[%s219 + $0xfc] sm:$0xff]
      %v2334 = vld [vmem:[%s219 + $0x104] sm:$0xff]
      %v2335 = vld [vmem:[%s219 + $0x10c] sm:$0xff]
      %v2336 = vld [vmem:[%s219 + $0x114] sm:$0xff]
      %v2337 = vld [vmem:[%s219 + $0x11c] sm:$0xff]
      %v2338 = vld [vmem:[%s219 + $0x124] sm:$0xff]
      %v2339 = vld [vmem:[%s219 + $0x12c] sm:$0x3f]
      %s2340 = scalar_lea.vmem %s1, 20
      %v2341 = vld [vmem:[%s2340] sm:$0xf]
      %v2343 = vsel %vm300, %v2304, 0
      %v2346 = vsel %vm300, %v2305, 0
      %v2349 = vsel %vm300, %v2306, 0
      %v2352 = vsel %vm300, %v2307, 0
      %v2355 = vsel %vm300, %v2308, 0
      %v2358 = vsel %vm300, %v2309, 0
      %v2361 = vsel %vm300, %v2310, 0
      %v2364 = vsel %vm300, %v2311, 0
      %v2367 = vsel %vm300, %v2312, 0
      %v2370 = vsel %vm300, %v2313, 0
      %v2373 = vsel %vm300, %v2314, 0
      %v2376 = vsel %vm300, %v2315, 0
      %v2379 = vsel %vm300, %v2316, 0
      %v2382 = vsel %vm300, %v2317, 0
      %v2385 = vsel %vm300, %v2318, 0
      %v2388 = vsel %vm300, %v2319, 0
      %v2391 = vsel %vm300, %v2320, 0
      %v2394 = vsel %vm300, %v2321, 0
      %v2397 = vsel %vm300, %v2322, 0
      %v2400 = vsel %vm300, %v2323, 0
      %v2403 = vsel %vm300, %v2324, 0
      %v2406 = vsel %vm300, %v2325, 0
      %v2409 = vsel %vm300, %v2326, 0
      %v2412 = vsel %vm300, %v2327, 0
      %v2415 = vsel %vm300, %v2328, 0
      %v2418 = vsel %vm300, %v2329, 0
      %v2421 = vsel %vm300, %v2330, 0
      %v2424 = vsel %vm300, %v2331, 0
      %v2427 = vsel %vm300, %v2332, 0
      %v2430 = vsel %vm300, %v2333, 0
      %v2433 = vsel %vm300, %v2334, 0
      %v2436 = vsel %vm300, %v2335, 0
      %v2439 = vsel %vm300, %v2336, 0
      %v2442 = vsel %vm300, %v2337, 0
      %v2445 = vsel %vm300, %v2338, 0
      %v2448 = vsel %vm300, %v2339, 0
      %v2451 = vsel %vm409, %v2341, 0
      %2453 = vmatprep.subr.mxu0 0.0
      %2454 = vmatpush1.msra.mxu0 0.0
      %2455 = vmatprep.subr.mxu0 0.0
      %2456 = vmatpush1.msra.mxu0 0.0
      %2457 = vmatprep.subr.mxu0 0.0
      %2458 = vmatpush1.msra.mxu0 0.0
      %2459 = vmatprep.subr.mxu0 0.0
      %2460 = vmatpush1.msra.mxu0 0.0
      %2461 = vmatprep.subr.mxu0 0.0
      %2462 = vmatpush1.msra.mxu0 0.0
      %2463 = vmatprep.subr.mxu0 0.0
      %2464 = vmatpush1.msra.mxu0 0.0
      %2465 = vmatprep.subr.mxu0 0.0
      %2466 = vmatpush1.msra.mxu0 0.0
      %2467 = vmatprep.subr.mxu0 0.0
      %2468 = vmatpush1.msra.mxu0 0.0
      %2469 = vmatprep.subr.mxu0 0.0
      %2470 = vmatpush1.msra.mxu0 0.0
      %2471 = vmatprep.subr.mxu0 0.0
      %2472 = vmatpush1.msra.mxu0 0.0
      %2473 = vmatprep.subr.mxu0 0.0
      %2474 = vmatpush1.msra.mxu0 0.0
      %2475 = vmatprep.subr.mxu0 0.0
      %2476 = vmatpush1.msra.mxu0 0.0
      %2477 = vmatprep.subr.mxu0 0.0
      %2478 = vmatpush1.msra.mxu0 0.0
      %2479 = vmatprep.subr.mxu0 0.0
      %2480 = vmatpush1.msra.mxu0 0.0
      %2481 = vmatprep.subr.mxu0 0.0
      %2482 = vmatpush1.msra.mxu0 0.0
      %2483 = vmatprep.subr.mxu0 0.0
      %2484 = vmatpush1.msra.mxu0 %v2451
      %2485 = vmatprep.subr.mxu0 0.0
      %2486 = vmatpush2.msra.mxu0 0.0
      %2487 = vmatprep.subr.mxu0 0.0
      %2488 = vmatpush2.msra.mxu0 0.0
      %2489 = vmatprep.subr.mxu0 0.0
      %2490 = vmatpush2.msra.mxu0 0.0
      %2491 = vmatprep.subr.mxu0 0.0
      %2492 = vmatpush2.msra.mxu0 0.0
      %2493 = vmatprep.subr.mxu0 0.0
      %2494 = vmatpush2.msra.mxu0 0.0
      %2495 = vmatprep.subr.mxu0 0.0
      %2496 = vmatpush2.msra.mxu0 0.0
      %2497 = vmatprep.subr.mxu0 0.0
      %2498 = vmatpush2.msra.mxu0 0.0
      %2499 = vmatprep.subr.mxu0 0.0
      %2500 = vmatpush2.msra.mxu0 0.0
      %2501 = vmatprep.subr.mxu0 0.0
      %2502 = vmatpush2.msra.mxu0 0.0
      %2503 = vmatprep.subr.mxu0 0.0
      %2504 = vmatpush2.msra.mxu0 0.0
      %2505 = vmatprep.subr.mxu0 0.0
      %2506 = vmatpush2.msra.mxu0 0.0
      %2507 = vmatprep.subr.mxu0 0.0
      %2508 = vmatpush2.msra.mxu0 0.0
      %2509 = vmatprep.subr.mxu0 0.0
      %2510 = vmatpush2.msra.mxu0 0.0
      %2511 = vmatprep.subr.mxu0 0.0
      %2512 = vmatpush2.msra.mxu0 0.0
      %2513 = vmatprep.subr.mxu0 0.0
      %2514 = vmatpush2.msra.mxu0 0.0
      %2515 = vmatprep.subr.mxu0 0.0
      %2516 = vmatpush2.msra.mxu0 0.0
      %2517 = vmatprep.mubr.f32.mxu0 0.0
      %2518 = vmatmul.mubr.f32.gmra.mxu0 %v2343
      %v2519 = vpop.f32.mrf.mxu0
      %v2520 = vadd.f32 0.0, %v2519
      %v2521 = vpop.f32.mrf.mxu0
      %2522 = vmatprep.mubr.f32.mxu0 0.0
      %2523 = vmatmul.mubr.f32.gmra.mxu0 %v2346
      %v2524 = vpop.f32.mrf.mxu0
      %v2525 = vadd.f32 0.0, %v2524
      %v2526 = vpop.f32.mrf.mxu0
      %2527 = vmatprep.mubr.f32.mxu0 0.0
      %2528 = vmatmul.mubr.f32.gmra.mxu0 %v2349
      %v2529 = vpop.f32.mrf.mxu0
      %v2530 = vadd.f32 0.0, %v2529
      %v2531 = vpop.f32.mrf.mxu0
      %2532 = vmatprep.mubr.f32.mxu0 0.0
      %2533 = vmatmul.mubr.f32.gmra.mxu0 %v2352
      %v2534 = vpop.f32.mrf.mxu0
      %v2535 = vadd.f32 0.0, %v2534
      %v2536 = vpop.f32.mrf.mxu0
      %2537 = vmatprep.mubr.f32.mxu0 0.0
      %2538 = vmatmul.mubr.f32.gmra.mxu0 %v2355
      %v2539 = vpop.f32.mrf.mxu0
      %v2540 = vadd.f32 0.0, %v2539
      %v2541 = vpop.f32.mrf.mxu0
      %2542 = vmatprep.mubr.f32.mxu0 0.0
      %2543 = vmatmul.mubr.f32.gmra.mxu0 %v2358
      %v2544 = vpop.f32.mrf.mxu0
      %v2545 = vadd.f32 0.0, %v2544
      %v2546 = vpop.f32.mrf.mxu0
      %2547 = vmatprep.mubr.f32.mxu0 0.0
      %2548 = vmatmul.mubr.f32.gmra.mxu0 %v2361
      %v2549 = vpop.f32.mrf.mxu0
      %v2550 = vadd.f32 0.0, %v2549
      %v2551 = vpop.f32.mrf.mxu0
      %2552 = vmatprep.mubr.f32.mxu0 0.0
      %2553 = vmatmul.mubr.f32.gmra.mxu0 %v2364
      %v2554 = vpop.f32.mrf.mxu0
      %v2555 = vadd.f32 0.0, %v2554
      %v2556 = vpop.f32.mrf.mxu0
      %2557 = vmatprep.mubr.f32.mxu0 0.0
      %2558 = vmatmul.mubr.f32.gmra.mxu0 %v2367
      %v2559 = vpop.f32.mrf.mxu0
      %v2560 = vadd.f32 0.0, %v2559
      %v2561 = vpop.f32.mrf.mxu0
      %2562 = vmatprep.mubr.f32.mxu0 0.0
      %2563 = vmatmul.mubr.f32.gmra.mxu0 %v2370
      %v2564 = vpop.f32.mrf.mxu0
      %v2565 = vadd.f32 0.0, %v2564
      %v2566 = vpop.f32.mrf.mxu0
      %2567 = vmatprep.mubr.f32.mxu0 0.0
      %2568 = vmatmul.mubr.f32.gmra.mxu0 %v2373
      %v2569 = vpop.f32.mrf.mxu0
      %v2570 = vadd.f32 0.0, %v2569
      %v2571 = vpop.f32.mrf.mxu0
      %2572 = vmatprep.mubr.f32.mxu0 0.0
      %2573 = vmatmul.mubr.f32.gmra.mxu0 %v2376
      %v2574 = vpop.f32.mrf.mxu0
      %v2575 = vadd.f32 0.0, %v2574
      %v2576 = vpop.f32.mrf.mxu0
      %2577 = vmatprep.mubr.f32.mxu0 0.0
      %2578 = vmatmul.mubr.f32.gmra.mxu0 %v2379
      %v2579 = vpop.f32.mrf.mxu0
      %v2580 = vadd.f32 0.0, %v2579
      %v2581 = vpop.f32.mrf.mxu0
      %2582 = vmatprep.mubr.f32.mxu0 0.0
      %2583 = vmatmul.mubr.f32.gmra.mxu0 %v2382
      %v2584 = vpop.f32.mrf.mxu0
      %v2585 = vadd.f32 0.0, %v2584
      %v2586 = vpop.f32.mrf.mxu0
      %2587 = vmatprep.mubr.f32.mxu0 0.0
      %2588 = vmatmul.mubr.f32.gmra.mxu0 %v2385
      %v2589 = vpop.f32.mrf.mxu0
      %v2590 = vadd.f32 0.0, %v2589
      %v2591 = vpop.f32.mrf.mxu0
      %2592 = vmatprep.mubr.f32.mxu0 0.0
      %2593 = vmatmul.mubr.f32.gmra.mxu0 %v2388
      %v2594 = vpop.f32.mrf.mxu0
      %v2595 = vadd.f32 0.0, %v2594
      %v2596 = vpop.f32.mrf.mxu0
      %2597 = vmatprep.mubr.f32.mxu0 0.0
      %2598 = vmatmul.mubr.f32.gmra.mxu0 %v2391
      %v2599 = vpop.f32.mrf.mxu0
      %v2600 = vadd.f32 0.0, %v2599
      %v2601 = vpop.f32.mrf.mxu0
      %2602 = vmatprep.mubr.f32.mxu0 0.0
      %2603 = vmatmul.mubr.f32.gmra.mxu0 %v2394
      %v2604 = vpop.f32.mrf.mxu0
      %v2605 = vadd.f32 0.0, %v2604
      %v2606 = vpop.f32.mrf.mxu0
      %2607 = vmatprep.mubr.f32.mxu0 0.0
      %2608 = vmatmul.mubr.f32.gmra.mxu0 %v2397
      %v2609 = vpop.f32.mrf.mxu0
      %v2610 = vadd.f32 0.0, %v2609
      %v2611 = vpop.f32.mrf.mxu0
      %2612 = vmatprep.mubr.f32.mxu0 0.0
      %2613 = vmatmul.mubr.f32.gmra.mxu0 %v2400
      %v2614 = vpop.f32.mrf.mxu0
      %v2615 = vadd.f32 0.0, %v2614
      %v2616 = vpop.f32.mrf.mxu0
      %2617 = vmatprep.mubr.f32.mxu0 0.0
      %2618 = vmatmul.mubr.f32.gmra.mxu0 %v2403
      %v2619 = vpop.f32.mrf.mxu0
      %v2620 = vadd.f32 0.0, %v2619
      %v2621 = vpop.f32.mrf.mxu0
      %2622 = vmatprep.mubr.f32.mxu0 0.0
      %2623 = vmatmul.mubr.f32.gmra.mxu0 %v2406
      %v2624 = vpop.f32.mrf.mxu0
      %v2625 = vadd.f32 0.0, %v2624
      %v2626 = vpop.f32.mrf.mxu0
      %2627 = vmatprep.mubr.f32.mxu0 0.0
      %2628 = vmatmul.mubr.f32.gmra.mxu0 %v2409
      %v2629 = vpop.f32.mrf.mxu0
      %v2630 = vadd.f32 0.0, %v2629
      %v2631 = vpop.f32.mrf.mxu0
      %2632 = vmatprep.mubr.f32.mxu0 0.0
      %2633 = vmatmul.mubr.f32.gmra.mxu0 %v2412
      %v2634 = vpop.f32.mrf.mxu0
      %v2635 = vadd.f32 0.0, %v2634
      %v2636 = vpop.f32.mrf.mxu0
      %2637 = vmatprep.mubr.f32.mxu0 0.0
      %2638 = vmatmul.mubr.f32.gmra.mxu0 %v2415
      %v2639 = vpop.f32.mrf.mxu0
      %v2640 = vadd.f32 0.0, %v2639
      %v2641 = vpop.f32.mrf.mxu0
      %2642 = vmatprep.mubr.f32.mxu0 0.0
      %2643 = vmatmul.mubr.f32.gmra.mxu0 %v2418
      %v2644 = vpop.f32.mrf.mxu0
      %v2645 = vadd.f32 0.0, %v2644
      %v2646 = vpop.f32.mrf.mxu0
      %2647 = vmatprep.mubr.f32.mxu0 0.0
      %2648 = vmatmul.mubr.f32.gmra.mxu0 %v2421
      %v2649 = vpop.f32.mrf.mxu0
      %v2650 = vadd.f32 0.0, %v2649
      %v2651 = vpop.f32.mrf.mxu0
      %2652 = vmatprep.mubr.f32.mxu0 0.0
      %2653 = vmatmul.mubr.f32.gmra.mxu0 %v2424
      %v2654 = vpop.f32.mrf.mxu0
      %v2655 = vadd.f32 0.0, %v2654
      %v2656 = vpop.f32.mrf.mxu0
      %2657 = vmatprep.mubr.f32.mxu0 0.0
      %2658 = vmatmul.mubr.f32.gmra.mxu0 %v2427
      %v2659 = vpop.f32.mrf.mxu0
      %v2660 = vadd.f32 0.0, %v2659
      %v2661 = vpop.f32.mrf.mxu0
      %2662 = vmatprep.mubr.f32.mxu0 0.0
      %2663 = vmatmul.mubr.f32.gmra.mxu0 %v2430
      %v2664 = vpop.f32.mrf.mxu0
      %v2665 = vadd.f32 0.0, %v2664
      %v2666 = vpop.f32.mrf.mxu0
      %2667 = vmatprep.mubr.f32.mxu0 0.0
      %2668 = vmatmul.mubr.f32.gmra.mxu0 %v2433
      %v2669 = vpop.f32.mrf.mxu0
      %v2670 = vadd.f32 0.0, %v2669
      %v2671 = vpop.f32.mrf.mxu0
      %2672 = vmatprep.mubr.f32.mxu0 0.0
      %2673 = vmatmul.mubr.f32.gmra.mxu0 %v2436
      %v2674 = vpop.f32.mrf.mxu0
      %v2675 = vadd.f32 0.0, %v2674
      %v2676 = vpop.f32.mrf.mxu0
      %2677 = vmatprep.mubr.f32.mxu0 0.0
      %2678 = vmatmul.mubr.f32.gmra.mxu0 %v2439
      %v2679 = vpop.f32.mrf.mxu0
      %v2680 = vadd.f32 0.0, %v2679
      %v2681 = vpop.f32.mrf.mxu0
      %2682 = vmatprep.mubr.f32.mxu0 0.0
      %2683 = vmatmul.mubr.f32.gmra.mxu0 %v2442
      %v2684 = vpop.f32.mrf.mxu0
      %v2685 = vadd.f32 0.0, %v2684
      %v2686 = vpop.f32.mrf.mxu0
      %2687 = vmatprep.mubr.f32.mxu0 0.0
      %2688 = vmatmul.mubr.f32.gmra.mxu0 %v2445
      %v2689 = vpop.f32.mrf.mxu0
      %v2690 = vadd.f32 0.0, %v2689
      %v2691 = vpop.f32.mrf.mxu0
      %2692 = vmatprep.mubr.f32.mxu0 0.0
      %2693 = vmatmul.mubr.f32.gmra.mxu0 %v2448
      %v2694 = vpop.f32.mrf.mxu0
      %v2695 = vadd.f32 0.0, %v2694
      %v2696 = vpop.f32.mrf.mxu0
      %2697 = vdwg.mxu0
      %v2698 = vadd.f32 %v2268, %v2520
      %v2699 = vadd.f32 %v2269, %v2525
      %v2700 = vadd.f32 %v2270, %v2530
      %v2701 = vadd.f32 %v2271, %v2535
      %v2702 = vadd.f32 %v2272, %v2540
      %v2703 = vadd.f32 %v2273, %v2545
      %v2704 = vadd.f32 %v2274, %v2550
      %v2705 = vadd.f32 %v2275, %v2555
      %v2706 = vadd.f32 %v2276, %v2560
      %v2707 = vadd.f32 %v2277, %v2565
      %v2708 = vadd.f32 %v2278, %v2570
      %v2709 = vadd.f32 %v2279, %v2575
      %v2710 = vadd.f32 %v2280, %v2580
      %v2711 = vadd.f32 %v2281, %v2585
      %v2712 = vadd.f32 %v2282, %v2590
      %v2713 = vadd.f32 %v2283, %v2595
      %v2714 = vadd.f32 %v2284, %v2600
      %v2715 = vadd.f32 %v2285, %v2605
      %v2716 = vadd.f32 %v2286, %v2610
      %v2717 = vadd.f32 %v2287, %v2615
      %v2718 = vadd.f32 %v2288, %v2620
      %v2719 = vadd.f32 %v2289, %v2625
      %v2720 = vadd.f32 %v2290, %v2630
      %v2721 = vadd.f32 %v2291, %v2635
      %v2722 = vadd.f32 %v2292, %v2640
      %v2723 = vadd.f32 %v2293, %v2645
      %v2724 = vadd.f32 %v2294, %v2650
      %v2725 = vadd.f32 %v2295, %v2655
      %v2726 = vadd.f32 %v2296, %v2660
      %v2727 = vadd.f32 %v2297, %v2665
      %v2728 = vadd.f32 %v2298, %v2670
      %v2729 = vadd.f32 %v2299, %v2675
      %v2730 = vadd.f32 %v2300, %v2680
      %v2731 = vadd.f32 %v2301, %v2685
      %v2732 = vadd.f32 %v2302, %v2690
      %v2733 = vadd.f32 %v2303, %v2695
      %v2734 = vld [vmem:[%s219 + $0x24] sm:$0xff]
      %v2735 = vld [vmem:[%s219 + $0x2c] sm:$0xff]
      %v2736 = vld [vmem:[%s219 + $0x34] sm:$0xff]
      %v2737 = vld [vmem:[%s219 + $0x3c] sm:$0xff]
      %v2738 = vld [vmem:[%s219 + $0x44] sm:$0xff]
      %v2739 = vld [vmem:[%s219 + $0x4c] sm:$0xff]
      %v2740 = vld [vmem:[%s219 + $0x54] sm:$0xff]
      %v2741 = vld [vmem:[%s219 + $0x5c] sm:$0xff]
      %v2742 = vld [vmem:[%s219 + $0x64] sm:$0xff]
      %v2743 = vld [vmem:[%s219 + $0x6c] sm:$0xff]
      %v2744 = vld [vmem:[%s219 + $0x74] sm:$0xff]
      %v2745 = vld [vmem:[%s219 + $0x7c] sm:$0xff]
      %v2746 = vld [vmem:[%s219 + $0x84] sm:$0xff]
      %v2747 = vld [vmem:[%s219 + $0x8c] sm:$0xff]
      %v2748 = vld [vmem:[%s219 + $0x94] sm:$0xff]
      %v2749 = vld [vmem:[%s219 + $0x9c] sm:$0xff]
      %v2750 = vld [vmem:[%s219 + $0xa4] sm:$0xff]
      %v2751 = vld [vmem:[%s219 + $0xac] sm:$0xff]
      %v2752 = vld [vmem:[%s219 + $0xb4] sm:$0xff]
      %v2753 = vld [vmem:[%s219 + $0xbc] sm:$0xff]
      %v2754 = vld [vmem:[%s219 + $0xc4] sm:$0xff]
      %v2755 = vld [vmem:[%s219 + $0xcc] sm:$0xff]
      %v2756 = vld [vmem:[%s219 + $0xd4] sm:$0xff]
      %v2757 = vld [vmem:[%s219 + $0xdc] sm:$0xff]
      %v2758 = vld [vmem:[%s219 + $0xe4] sm:$0xff]
      %v2759 = vld [vmem:[%s219 + $0xec] sm:$0xff]
      %v2760 = vld [vmem:[%s219 + $0xf4] sm:$0xff]
      %v2761 = vld [vmem:[%s219 + $0xfc] sm:$0xff]
      %v2762 = vld [vmem:[%s219 + $0x104] sm:$0xff]
      %v2763 = vld [vmem:[%s219 + $0x10c] sm:$0xff]
      %v2764 = vld [vmem:[%s219 + $0x114] sm:$0xff]
      %v2765 = vld [vmem:[%s219 + $0x11c] sm:$0xff]
      %v2766 = vld [vmem:[%s219 + $0x124] sm:$0xff]
      %v2767 = vld [vmem:[%s219 + $0x12c] sm:$0xff]
      %v2768 = vld [vmem:[%s219 + $0x134] sm:$0xff]
      %v2769 = vld [vmem:[%s219 + $0x13c] sm:$0x3f]
      %s2770 = scalar_lea.vmem %s1, 24
      %v2771 = vld [vmem:[%s2770] sm:$0xf]
      %v2773 = vsel %vm300, %v2734, 0
      %v2776 = vsel %vm300, %v2735, 0
      %v2779 = vsel %vm300, %v2736, 0
      %v2782 = vsel %vm300, %v2737, 0
      %v2785 = vsel %vm300, %v2738, 0
      %v2788 = vsel %vm300, %v2739, 0
      %v2791 = vsel %vm300, %v2740, 0
      %v2794 = vsel %vm300, %v2741, 0
      %v2797 = vsel %vm300, %v2742, 0
      %v2800 = vsel %vm300, %v2743, 0
      %v2803 = vsel %vm300, %v2744, 0
      %v2806 = vsel %vm300, %v2745, 0
      %v2809 = vsel %vm300, %v2746, 0
      %v2812 = vsel %vm300, %v2747, 0
      %v2815 = vsel %vm300, %v2748, 0
      %v2818 = vsel %vm300, %v2749, 0
      %v2821 = vsel %vm300, %v2750, 0
      %v2824 = vsel %vm300, %v2751, 0
      %v2827 = vsel %vm300, %v2752, 0
      %v2830 = vsel %vm300, %v2753, 0
      %v2833 = vsel %vm300, %v2754, 0
      %v2836 = vsel %vm300, %v2755, 0
      %v2839 = vsel %vm300, %v2756, 0
      %v2842 = vsel %vm300, %v2757, 0
      %v2845 = vsel %vm300, %v2758, 0
      %v2848 = vsel %vm300, %v2759, 0
      %v2851 = vsel %vm300, %v2760, 0
      %v2854 = vsel %vm300, %v2761, 0
      %v2857 = vsel %vm300, %v2762, 0
      %v2860 = vsel %vm300, %v2763, 0
      %v2863 = vsel %vm300, %v2764, 0
      %v2866 = vsel %vm300, %v2765, 0
      %v2869 = vsel %vm300, %v2766, 0
      %v2872 = vsel %vm300, %v2767, 0
      %v2875 = vsel %vm300, %v2768, 0
      %v2878 = vsel %vm300, %v2769, 0
      %v2881 = vsel %vm409, %v2771, 0
      %2883 = vmatprep.subr.mxu0 0.0
      %2884 = vmatpush1.msra.mxu0 0.0
      %2885 = vmatprep.subr.mxu0 0.0
      %2886 = vmatpush1.msra.mxu0 0.0
      %2887 = vmatprep.subr.mxu0 0.0
      %2888 = vmatpush1.msra.mxu0 0.0
      %2889 = vmatprep.subr.mxu0 0.0
      %2890 = vmatpush1.msra.mxu0 0.0
      %2891 = vmatprep.subr.mxu0 0.0
      %2892 = vmatpush1.msra.mxu0 0.0
      %2893 = vmatprep.subr.mxu0 0.0
      %2894 = vmatpush1.msra.mxu0 0.0
      %2895 = vmatprep.subr.mxu0 0.0
      %2896 = vmatpush1.msra.mxu0 0.0
      %2897 = vmatprep.subr.mxu0 0.0
      %2898 = vmatpush1.msra.mxu0 0.0
      %2899 = vmatprep.subr.mxu0 0.0
      %2900 = vmatpush1.msra.mxu0 0.0
      %2901 = vmatprep.subr.mxu0 0.0
      %2902 = vmatpush1.msra.mxu0 0.0
      %2903 = vmatprep.subr.mxu0 0.0
      %2904 = vmatpush1.msra.mxu0 0.0
      %2905 = vmatprep.subr.mxu0 0.0
      %2906 = vmatpush1.msra.mxu0 0.0
      %2907 = vmatprep.subr.mxu0 0.0
      %2908 = vmatpush1.msra.mxu0 0.0
      %2909 = vmatprep.subr.mxu0 0.0
      %2910 = vmatpush1.msra.mxu0 0.0
      %2911 = vmatprep.subr.mxu0 0.0
      %2912 = vmatpush1.msra.mxu0 0.0
      %2913 = vmatprep.subr.mxu0 0.0
      %2914 = vmatpush1.msra.mxu0 %v2881
      %2915 = vmatprep.subr.mxu0 0.0
      %2916 = vmatpush2.msra.mxu0 0.0
      %2917 = vmatprep.subr.mxu0 0.0
      %2918 = vmatpush2.msra.mxu0 0.0
      %2919 = vmatprep.subr.mxu0 0.0
      %2920 = vmatpush2.msra.mxu0 0.0
      %2921 = vmatprep.subr.mxu0 0.0
      %2922 = vmatpush2.msra.mxu0 0.0
      %2923 = vmatprep.subr.mxu0 0.0
      %2924 = vmatpush2.msra.mxu0 0.0
      %2925 = vmatprep.subr.mxu0 0.0
      %2926 = vmatpush2.msra.mxu0 0.0
      %2927 = vmatprep.subr.mxu0 0.0
      %2928 = vmatpush2.msra.mxu0 0.0
      %2929 = vmatprep.subr.mxu0 0.0
      %2930 = vmatpush2.msra.mxu0 0.0
      %2931 = vmatprep.subr.mxu0 0.0
      %2932 = vmatpush2.msra.mxu0 0.0
      %2933 = vmatprep.subr.mxu0 0.0
      %2934 = vmatpush2.msra.mxu0 0.0
      %2935 = vmatprep.subr.mxu0 0.0
      %2936 = vmatpush2.msra.mxu0 0.0
      %2937 = vmatprep.subr.mxu0 0.0
      %2938 = vmatpush2.msra.mxu0 0.0
      %2939 = vmatprep.subr.mxu0 0.0
      %2940 = vmatpush2.msra.mxu0 0.0
      %2941 = vmatprep.subr.mxu0 0.0
      %2942 = vmatpush2.msra.mxu0 0.0
      %2943 = vmatprep.subr.mxu0 0.0
      %2944 = vmatpush2.msra.mxu0 0.0
      %2945 = vmatprep.subr.mxu0 0.0
      %2946 = vmatpush2.msra.mxu0 0.0
      %2947 = vmatprep.mubr.f32.mxu0 0.0
      %2948 = vmatmul.mubr.f32.gmra.mxu0 %v2773
      %v2949 = vpop.f32.mrf.mxu0
      %v2950 = vadd.f32 0.0, %v2949
      %v2951 = vpop.f32.mrf.mxu0
      %2952 = vmatprep.mubr.f32.mxu0 0.0
      %2953 = vmatmul.mubr.f32.gmra.mxu0 %v2776
      %v2954 = vpop.f32.mrf.mxu0
      %v2955 = vadd.f32 0.0, %v2954
      %v2956 = vpop.f32.mrf.mxu0
      %2957 = vmatprep.mubr.f32.mxu0 0.0
      %2958 = vmatmul.mubr.f32.gmra.mxu0 %v2779
      %v2959 = vpop.f32.mrf.mxu0
      %v2960 = vadd.f32 0.0, %v2959
      %v2961 = vpop.f32.mrf.mxu0
      %2962 = vmatprep.mubr.f32.mxu0 0.0
      %2963 = vmatmul.mubr.f32.gmra.mxu0 %v2782
      %v2964 = vpop.f32.mrf.mxu0
      %v2965 = vadd.f32 0.0, %v2964
      %v2966 = vpop.f32.mrf.mxu0
      %2967 = vmatprep.mubr.f32.mxu0 0.0
      %2968 = vmatmul.mubr.f32.gmra.mxu0 %v2785
      %v2969 = vpop.f32.mrf.mxu0
      %v2970 = vadd.f32 0.0, %v2969
      %v2971 = vpop.f32.mrf.mxu0
      %2972 = vmatprep.mubr.f32.mxu0 0.0
      %2973 = vmatmul.mubr.f32.gmra.mxu0 %v2788
      %v2974 = vpop.f32.mrf.mxu0
      %v2975 = vadd.f32 0.0, %v2974
      %v2976 = vpop.f32.mrf.mxu0
      %2977 = vmatprep.mubr.f32.mxu0 0.0
      %2978 = vmatmul.mubr.f32.gmra.mxu0 %v2791
      %v2979 = vpop.f32.mrf.mxu0
      %v2980 = vadd.f32 0.0, %v2979
      %v2981 = vpop.f32.mrf.mxu0
      %2982 = vmatprep.mubr.f32.mxu0 0.0
      %2983 = vmatmul.mubr.f32.gmra.mxu0 %v2794
      %v2984 = vpop.f32.mrf.mxu0
      %v2985 = vadd.f32 0.0, %v2984
      %v2986 = vpop.f32.mrf.mxu0
      %2987 = vmatprep.mubr.f32.mxu0 0.0
      %2988 = vmatmul.mubr.f32.gmra.mxu0 %v2797
      %v2989 = vpop.f32.mrf.mxu0
      %v2990 = vadd.f32 0.0, %v2989
      %v2991 = vpop.f32.mrf.mxu0
      %2992 = vmatprep.mubr.f32.mxu0 0.0
      %2993 = vmatmul.mubr.f32.gmra.mxu0 %v2800
      %v2994 = vpop.f32.mrf.mxu0
      %v2995 = vadd.f32 0.0, %v2994
      %v2996 = vpop.f32.mrf.mxu0
      %2997 = vmatprep.mubr.f32.mxu0 0.0
      %2998 = vmatmul.mubr.f32.gmra.mxu0 %v2803
      %v2999 = vpop.f32.mrf.mxu0
      %v3000 = vadd.f32 0.0, %v2999
      %v3001 = vpop.f32.mrf.mxu0
      %3002 = vmatprep.mubr.f32.mxu0 0.0
      %3003 = vmatmul.mubr.f32.gmra.mxu0 %v2806
      %v3004 = vpop.f32.mrf.mxu0
      %v3005 = vadd.f32 0.0, %v3004
      %v3006 = vpop.f32.mrf.mxu0
      %3007 = vmatprep.mubr.f32.mxu0 0.0
      %3008 = vmatmul.mubr.f32.gmra.mxu0 %v2809
      %v3009 = vpop.f32.mrf.mxu0
      %v3010 = vadd.f32 0.0, %v3009
      %v3011 = vpop.f32.mrf.mxu0
      %3012 = vmatprep.mubr.f32.mxu0 0.0
      %3013 = vmatmul.mubr.f32.gmra.mxu0 %v2812
      %v3014 = vpop.f32.mrf.mxu0
      %v3015 = vadd.f32 0.0, %v3014
      %v3016 = vpop.f32.mrf.mxu0
      %3017 = vmatprep.mubr.f32.mxu0 0.0
      %3018 = vmatmul.mubr.f32.gmra.mxu0 %v2815
      %v3019 = vpop.f32.mrf.mxu0
      %v3020 = vadd.f32 0.0, %v3019
      %v3021 = vpop.f32.mrf.mxu0
      %3022 = vmatprep.mubr.f32.mxu0 0.0
      %3023 = vmatmul.mubr.f32.gmra.mxu0 %v2818
      %v3024 = vpop.f32.mrf.mxu0
      %v3025 = vadd.f32 0.0, %v3024
      %v3026 = vpop.f32.mrf.mxu0
      %3027 = vmatprep.mubr.f32.mxu0 0.0
      %3028 = vmatmul.mubr.f32.gmra.mxu0 %v2821
      %v3029 = vpop.f32.mrf.mxu0
      %v3030 = vadd.f32 0.0, %v3029
      %v3031 = vpop.f32.mrf.mxu0
      %3032 = vmatprep.mubr.f32.mxu0 0.0
      %3033 = vmatmul.mubr.f32.gmra.mxu0 %v2824
      %v3034 = vpop.f32.mrf.mxu0
      %v3035 = vadd.f32 0.0, %v3034
      %v3036 = vpop.f32.mrf.mxu0
      %3037 = vmatprep.mubr.f32.mxu0 0.0
      %3038 = vmatmul.mubr.f32.gmra.mxu0 %v2827
      %v3039 = vpop.f32.mrf.mxu0
      %v3040 = vadd.f32 0.0, %v3039
      %v3041 = vpop.f32.mrf.mxu0
      %3042 = vmatprep.mubr.f32.mxu0 0.0
      %3043 = vmatmul.mubr.f32.gmra.mxu0 %v2830
      %v3044 = vpop.f32.mrf.mxu0
      %v3045 = vadd.f32 0.0, %v3044
      %v3046 = vpop.f32.mrf.mxu0
      %3047 = vmatprep.mubr.f32.mxu0 0.0
      %3048 = vmatmul.mubr.f32.gmra.mxu0 %v2833
      %v3049 = vpop.f32.mrf.mxu0
      %v3050 = vadd.f32 0.0, %v3049
      %v3051 = vpop.f32.mrf.mxu0
      %3052 = vmatprep.mubr.f32.mxu0 0.0
      %3053 = vmatmul.mubr.f32.gmra.mxu0 %v2836
      %v3054 = vpop.f32.mrf.mxu0
      %v3055 = vadd.f32 0.0, %v3054
      %v3056 = vpop.f32.mrf.mxu0
      %3057 = vmatprep.mubr.f32.mxu0 0.0
      %3058 = vmatmul.mubr.f32.gmra.mxu0 %v2839
      %v3059 = vpop.f32.mrf.mxu0
      %v3060 = vadd.f32 0.0, %v3059
      %v3061 = vpop.f32.mrf.mxu0
      %3062 = vmatprep.mubr.f32.mxu0 0.0
      %3063 = vmatmul.mubr.f32.gmra.mxu0 %v2842
      %v3064 = vpop.f32.mrf.mxu0
      %v3065 = vadd.f32 0.0, %v3064
      %v3066 = vpop.f32.mrf.mxu0
      %3067 = vmatprep.mubr.f32.mxu0 0.0
      %3068 = vmatmul.mubr.f32.gmra.mxu0 %v2845
      %v3069 = vpop.f32.mrf.mxu0
      %v3070 = vadd.f32 0.0, %v3069
      %v3071 = vpop.f32.mrf.mxu0
      %3072 = vmatprep.mubr.f32.mxu0 0.0
      %3073 = vmatmul.mubr.f32.gmra.mxu0 %v2848
      %v3074 = vpop.f32.mrf.mxu0
      %v3075 = vadd.f32 0.0, %v3074
      %v3076 = vpop.f32.mrf.mxu0
      %3077 = vmatprep.mubr.f32.mxu0 0.0
      %3078 = vmatmul.mubr.f32.gmra.mxu0 %v2851
      %v3079 = vpop.f32.mrf.mxu0
      %v3080 = vadd.f32 0.0, %v3079
      %v3081 = vpop.f32.mrf.mxu0
      %3082 = vmatprep.mubr.f32.mxu0 0.0
      %3083 = vmatmul.mubr.f32.gmra.mxu0 %v2854
      %v3084 = vpop.f32.mrf.mxu0
      %v3085 = vadd.f32 0.0, %v3084
      %v3086 = vpop.f32.mrf.mxu0
      %3087 = vmatprep.mubr.f32.mxu0 0.0
      %3088 = vmatmul.mubr.f32.gmra.mxu0 %v2857
      %v3089 = vpop.f32.mrf.mxu0
      %v3090 = vadd.f32 0.0, %v3089
      %v3091 = vpop.f32.mrf.mxu0
      %3092 = vmatprep.mubr.f32.mxu0 0.0
      %3093 = vmatmul.mubr.f32.gmra.mxu0 %v2860
      %v3094 = vpop.f32.mrf.mxu0
      %v3095 = vadd.f32 0.0, %v3094
      %v3096 = vpop.f32.mrf.mxu0
      %3097 = vmatprep.mubr.f32.mxu0 0.0
      %3098 = vmatmul.mubr.f32.gmra.mxu0 %v2863
      %v3099 = vpop.f32.mrf.mxu0
      %v3100 = vadd.f32 0.0, %v3099
      %v3101 = vpop.f32.mrf.mxu0
      %3102 = vmatprep.mubr.f32.mxu0 0.0
      %3103 = vmatmul.mubr.f32.gmra.mxu0 %v2866
      %v3104 = vpop.f32.mrf.mxu0
      %v3105 = vadd.f32 0.0, %v3104
      %v3106 = vpop.f32.mrf.mxu0
      %3107 = vmatprep.mubr.f32.mxu0 0.0
      %3108 = vmatmul.mubr.f32.gmra.mxu0 %v2869
      %v3109 = vpop.f32.mrf.mxu0
      %v3110 = vadd.f32 0.0, %v3109
      %v3111 = vpop.f32.mrf.mxu0
      %3112 = vmatprep.mubr.f32.mxu0 0.0
      %3113 = vmatmul.mubr.f32.gmra.mxu0 %v2872
      %v3114 = vpop.f32.mrf.mxu0
      %v3115 = vadd.f32 0.0, %v3114
      %v3116 = vpop.f32.mrf.mxu0
      %3117 = vmatprep.mubr.f32.mxu0 0.0
      %3118 = vmatmul.mubr.f32.gmra.mxu0 %v2875
      %v3119 = vpop.f32.mrf.mxu0
      %v3120 = vadd.f32 0.0, %v3119
      %v3121 = vpop.f32.mrf.mxu0
      %3122 = vmatprep.mubr.f32.mxu0 0.0
      %3123 = vmatmul.mubr.f32.gmra.mxu0 %v2878
      %v3124 = vpop.f32.mrf.mxu0
      %v3125 = vadd.f32 0.0, %v3124
      %v3126 = vpop.f32.mrf.mxu0
      %3127 = vdwg.mxu0
      %v3128 = vadd.f32 %v2698, %v2950
      %v3129 = vadd.f32 %v2699, %v2955
      %v3130 = vadd.f32 %v2700, %v2960
      %v3131 = vadd.f32 %v2701, %v2965
      %v3132 = vadd.f32 %v2702, %v2970
      %v3133 = vadd.f32 %v2703, %v2975
      %v3134 = vadd.f32 %v2704, %v2980
      %v3135 = vadd.f32 %v2705, %v2985
      %v3136 = vadd.f32 %v2706, %v2990
      %v3137 = vadd.f32 %v2707, %v2995
      %v3138 = vadd.f32 %v2708, %v3000
      %v3139 = vadd.f32 %v2709, %v3005
      %v3140 = vadd.f32 %v2710, %v3010
      %v3141 = vadd.f32 %v2711, %v3015
      %v3142 = vadd.f32 %v2712, %v3020
      %v3143 = vadd.f32 %v2713, %v3025
      %v3144 = vadd.f32 %v2714, %v3030
      %v3145 = vadd.f32 %v2715, %v3035
      %v3146 = vadd.f32 %v2716, %v3040
      %v3147 = vadd.f32 %v2717, %v3045
      %v3148 = vadd.f32 %v2718, %v3050
      %v3149 = vadd.f32 %v2719, %v3055
      %v3150 = vadd.f32 %v2720, %v3060
      %v3151 = vadd.f32 %v2721, %v3065
      %v3152 = vadd.f32 %v2722, %v3070
      %v3153 = vadd.f32 %v2723, %v3075
      %v3154 = vadd.f32 %v2724, %v3080
      %v3155 = vadd.f32 %v2725, %v3085
      %v3156 = vadd.f32 %v2726, %v3090
      %v3157 = vadd.f32 %v2727, %v3095
      %v3158 = vadd.f32 %v2728, %v3100
      %v3159 = vadd.f32 %v2729, %v3105
      %v3160 = vadd.f32 %v2730, %v3110
      %v3161 = vadd.f32 %v2731, %v3115
      %v3162 = vadd.f32 %v2732, %v3120
      %v3163 = vadd.f32 %v2733, %v3125
      %v3164 = vld [vmem:[%s219 + $0x25] sm:$0xff]
      %v3165 = vld [vmem:[%s219 + $0x2d] sm:$0xff]
      %v3166 = vld [vmem:[%s219 + $0x35] sm:$0xff]
      %v3167 = vld [vmem:[%s219 + $0x3d] sm:$0xff]
      %v3168 = vld [vmem:[%s219 + $0x45] sm:$0xff]
      %v3169 = vld [vmem:[%s219 + $0x4d] sm:$0xff]
      %v3170 = vld [vmem:[%s219 + $0x55] sm:$0xff]
      %v3171 = vld [vmem:[%s219 + $0x5d] sm:$0xff]
      %v3172 = vld [vmem:[%s219 + $0x65] sm:$0xff]
      %v3173 = vld [vmem:[%s219 + $0x6d] sm:$0xff]
      %v3174 = vld [vmem:[%s219 + $0x75] sm:$0xff]
      %v3175 = vld [vmem:[%s219 + $0x7d] sm:$0xff]
      %v3176 = vld [vmem:[%s219 + $0x85] sm:$0xff]
      %v3177 = vld [vmem:[%s219 + $0x8d] sm:$0xff]
      %v3178 = vld [vmem:[%s219 + $0x95] sm:$0xff]
      %v3179 = vld [vmem:[%s219 + $0x9d] sm:$0xff]
      %v3180 = vld [vmem:[%s219 + $0xa5] sm:$0xff]
      %v3181 = vld [vmem:[%s219 + $0xad] sm:$0xff]
      %v3182 = vld [vmem:[%s219 + $0xb5] sm:$0xff]
      %v3183 = vld [vmem:[%s219 + $0xbd] sm:$0xff]
      %v3184 = vld [vmem:[%s219 + $0xc5] sm:$0xff]
      %v3185 = vld [vmem:[%s219 + $0xcd] sm:$0xff]
      %v3186 = vld [vmem:[%s219 + $0xd5] sm:$0xff]
      %v3187 = vld [vmem:[%s219 + $0xdd] sm:$0xff]
      %v3188 = vld [vmem:[%s219 + $0xe5] sm:$0xff]
      %v3189 = vld [vmem:[%s219 + $0xed] sm:$0xff]
      %v3190 = vld [vmem:[%s219 + $0xf5] sm:$0xff]
      %v3191 = vld [vmem:[%s219 + $0xfd] sm:$0xff]
      %v3192 = vld [vmem:[%s219 + $0x105] sm:$0xff]
      %v3193 = vld [vmem:[%s219 + $0x10d] sm:$0xff]
      %v3194 = vld [vmem:[%s219 + $0x115] sm:$0xff]
      %v3195 = vld [vmem:[%s219 + $0x11d] sm:$0xff]
      %v3196 = vld [vmem:[%s219 + $0x125] sm:$0xff]
      %v3197 = vld [vmem:[%s219 + $0x12d] sm:$0xff]
      %v3198 = vld [vmem:[%s219 + $0x135] sm:$0xff]
      %v3199 = vld [vmem:[%s219 + $0x13d] sm:$0x3f]
      %s3200 = scalar_lea.vmem %s1, 28
      %v3201 = vld [vmem:[%s3200] sm:$0xf]
      %v3203 = vsel %vm300, %v3164, 0
      %v3206 = vsel %vm300, %v3165, 0
      %v3209 = vsel %vm300, %v3166, 0
      %v3212 = vsel %vm300, %v3167, 0
      %v3215 = vsel %vm300, %v3168, 0
      %v3218 = vsel %vm300, %v3169, 0
      %v3221 = vsel %vm300, %v3170, 0
      %v3224 = vsel %vm300, %v3171, 0
      %v3227 = vsel %vm300, %v3172, 0
      %v3230 = vsel %vm300, %v3173, 0
      %v3233 = vsel %vm300, %v3174, 0
      %v3236 = vsel %vm300, %v3175, 0
      %v3239 = vsel %vm300, %v3176, 0
      %v3242 = vsel %vm300, %v3177, 0
      %v3245 = vsel %vm300, %v3178, 0
      %v3248 = vsel %vm300, %v3179, 0
      %v3251 = vsel %vm300, %v3180, 0
      %v3254 = vsel %vm300, %v3181, 0
      %v3257 = vsel %vm300, %v3182, 0
      %v3260 = vsel %vm300, %v3183, 0
      %v3263 = vsel %vm300, %v3184, 0
      %v3266 = vsel %vm300, %v3185, 0
      %v3269 = vsel %vm300, %v3186, 0
      %v3272 = vsel %vm300, %v3187, 0
      %v3275 = vsel %vm300, %v3188, 0
      %v3278 = vsel %vm300, %v3189, 0
      %v3281 = vsel %vm300, %v3190, 0
      %v3284 = vsel %vm300, %v3191, 0
      %v3287 = vsel %vm300, %v3192, 0
      %v3290 = vsel %vm300, %v3193, 0
      %v3293 = vsel %vm300, %v3194, 0
      %v3296 = vsel %vm300, %v3195, 0
      %v3299 = vsel %vm300, %v3196, 0
      %v3302 = vsel %vm300, %v3197, 0
      %v3305 = vsel %vm300, %v3198, 0
      %v3308 = vsel %vm300, %v3199, 0
      %v3311 = vsel %vm409, %v3201, 0
      %3313 = vmatprep.subr.mxu0 0.0
      %3314 = vmatpush1.msra.mxu0 0.0
      %3315 = vmatprep.subr.mxu0 0.0
      %3316 = vmatpush1.msra.mxu0 0.0
      %3317 = vmatprep.subr.mxu0 0.0
      %3318 = vmatpush1.msra.mxu0 0.0
      %3319 = vmatprep.subr.mxu0 0.0
      %3320 = vmatpush1.msra.mxu0 0.0
      %3321 = vmatprep.subr.mxu0 0.0
      %3322 = vmatpush1.msra.mxu0 0.0
      %3323 = vmatprep.subr.mxu0 0.0
      %3324 = vmatpush1.msra.mxu0 0.0
      %3325 = vmatprep.subr.mxu0 0.0
      %3326 = vmatpush1.msra.mxu0 0.0
      %3327 = vmatprep.subr.mxu0 0.0
      %3328 = vmatpush1.msra.mxu0 0.0
      %3329 = vmatprep.subr.mxu0 0.0
      %3330 = vmatpush1.msra.mxu0 0.0
      %3331 = vmatprep.subr.mxu0 0.0
      %3332 = vmatpush1.msra.mxu0 0.0
      %3333 = vmatprep.subr.mxu0 0.0
      %3334 = vmatpush1.msra.mxu0 0.0
      %3335 = vmatprep.subr.mxu0 0.0
      %3336 = vmatpush1.msra.mxu0 0.0
      %3337 = vmatprep.subr.mxu0 0.0
      %3338 = vmatpush1.msra.mxu0 0.0
      %3339 = vmatprep.subr.mxu0 0.0
      %3340 = vmatpush1.msra.mxu0 0.0
      %3341 = vmatprep.subr.mxu0 0.0
      %3342 = vmatpush1.msra.mxu0 0.0
      %3343 = vmatprep.subr.mxu0 0.0
      %3344 = vmatpush1.msra.mxu0 %v3311
      %3345 = vmatprep.subr.mxu0 0.0
      %3346 = vmatpush2.msra.mxu0 0.0
      %3347 = vmatprep.subr.mxu0 0.0
      %3348 = vmatpush2.msra.mxu0 0.0
      %3349 = vmatprep.subr.mxu0 0.0
      %3350 = vmatpush2.msra.mxu0 0.0
      %3351 = vmatprep.subr.mxu0 0.0
      %3352 = vmatpush2.msra.mxu0 0.0
      %3353 = vmatprep.subr.mxu0 0.0
      %3354 = vmatpush2.msra.mxu0 0.0
      %3355 = vmatprep.subr.mxu0 0.0
      %3356 = vmatpush2.msra.mxu0 0.0
      %3357 = vmatprep.subr.mxu0 0.0
      %3358 = vmatpush2.msra.mxu0 0.0
      %3359 = vmatprep.subr.mxu0 0.0
      %3360 = vmatpush2.msra.mxu0 0.0
      %3361 = vmatprep.subr.mxu0 0.0
      %3362 = vmatpush2.msra.mxu0 0.0
      %3363 = vmatprep.subr.mxu0 0.0
      %3364 = vmatpush2.msra.mxu0 0.0
      %3365 = vmatprep.subr.mxu0 0.0
      %3366 = vmatpush2.msra.mxu0 0.0
      %3367 = vmatprep.subr.mxu0 0.0
      %3368 = vmatpush2.msra.mxu0 0.0
      %3369 = vmatprep.subr.mxu0 0.0
      %3370 = vmatpush2.msra.mxu0 0.0
      %3371 = vmatprep.subr.mxu0 0.0
      %3372 = vmatpush2.msra.mxu0 0.0
      %3373 = vmatprep.subr.mxu0 0.0
      %3374 = vmatpush2.msra.mxu0 0.0
      %3375 = vmatprep.subr.mxu0 0.0
      %3376 = vmatpush2.msra.mxu0 0.0
      %3377 = vmatprep.mubr.f32.mxu0 0.0
      %3378 = vmatmul.mubr.f32.gmra.mxu0 %v3203
      %v3379 = vpop.f32.mrf.mxu0
      %v3380 = vadd.f32 0.0, %v3379
      %v3381 = vpop.f32.mrf.mxu0
      %3382 = vmatprep.mubr.f32.mxu0 0.0
      %3383 = vmatmul.mubr.f32.gmra.mxu0 %v3206
      %v3384 = vpop.f32.mrf.mxu0
      %v3385 = vadd.f32 0.0, %v3384
      %v3386 = vpop.f32.mrf.mxu0
      %3387 = vmatprep.mubr.f32.mxu0 0.0
      %3388 = vmatmul.mubr.f32.gmra.mxu0 %v3209
      %v3389 = vpop.f32.mrf.mxu0
      %v3390 = vadd.f32 0.0, %v3389
      %v3391 = vpop.f32.mrf.mxu0
      %3392 = vmatprep.mubr.f32.mxu0 0.0
      %3393 = vmatmul.mubr.f32.gmra.mxu0 %v3212
      %v3394 = vpop.f32.mrf.mxu0
      %v3395 = vadd.f32 0.0, %v3394
      %v3396 = vpop.f32.mrf.mxu0
      %3397 = vmatprep.mubr.f32.mxu0 0.0
      %3398 = vmatmul.mubr.f32.gmra.mxu0 %v3215
      %v3399 = vpop.f32.mrf.mxu0
      %v3400 = vadd.f32 0.0, %v3399
      %v3401 = vpop.f32.mrf.mxu0
      %3402 = vmatprep.mubr.f32.mxu0 0.0
      %3403 = vmatmul.mubr.f32.gmra.mxu0 %v3218
      %v3404 = vpop.f32.mrf.mxu0
      %v3405 = vadd.f32 0.0, %v3404
      %v3406 = vpop.f32.mrf.mxu0
      %3407 = vmatprep.mubr.f32.mxu0 0.0
      %3408 = vmatmul.mubr.f32.gmra.mxu0 %v3221
      %v3409 = vpop.f32.mrf.mxu0
      %v3410 = vadd.f32 0.0, %v3409
      %v3411 = vpop.f32.mrf.mxu0
      %3412 = vmatprep.mubr.f32.mxu0 0.0
      %3413 = vmatmul.mubr.f32.gmra.mxu0 %v3224
      %v3414 = vpop.f32.mrf.mxu0
      %v3415 = vadd.f32 0.0, %v3414
      %v3416 = vpop.f32.mrf.mxu0
      %3417 = vmatprep.mubr.f32.mxu0 0.0
      %3418 = vmatmul.mubr.f32.gmra.mxu0 %v3227
      %v3419 = vpop.f32.mrf.mxu0
      %v3420 = vadd.f32 0.0, %v3419
      %v3421 = vpop.f32.mrf.mxu0
      %3422 = vmatprep.mubr.f32.mxu0 0.0
      %3423 = vmatmul.mubr.f32.gmra.mxu0 %v3230
      %v3424 = vpop.f32.mrf.mxu0
      %v3425 = vadd.f32 0.0, %v3424
      %v3426 = vpop.f32.mrf.mxu0
      %3427 = vmatprep.mubr.f32.mxu0 0.0
      %3428 = vmatmul.mubr.f32.gmra.mxu0 %v3233
      %v3429 = vpop.f32.mrf.mxu0
      %v3430 = vadd.f32 0.0, %v3429
      %v3431 = vpop.f32.mrf.mxu0
      %3432 = vmatprep.mubr.f32.mxu0 0.0
      %3433 = vmatmul.mubr.f32.gmra.mxu0 %v3236
      %v3434 = vpop.f32.mrf.mxu0
      %v3435 = vadd.f32 0.0, %v3434
      %v3436 = vpop.f32.mrf.mxu0
      %3437 = vmatprep.mubr.f32.mxu0 0.0
      %3438 = vmatmul.mubr.f32.gmra.mxu0 %v3239
      %v3439 = vpop.f32.mrf.mxu0
      %v3440 = vadd.f32 0.0, %v3439
      %v3441 = vpop.f32.mrf.mxu0
      %3442 = vmatprep.mubr.f32.mxu0 0.0
      %3443 = vmatmul.mubr.f32.gmra.mxu0 %v3242
      %v3444 = vpop.f32.mrf.mxu0
      %v3445 = vadd.f32 0.0, %v3444
      %v3446 = vpop.f32.mrf.mxu0
      %3447 = vmatprep.mubr.f32.mxu0 0.0
      %3448 = vmatmul.mubr.f32.gmra.mxu0 %v3245
      %v3449 = vpop.f32.mrf.mxu0
      %v3450 = vadd.f32 0.0, %v3449
      %v3451 = vpop.f32.mrf.mxu0
      %3452 = vmatprep.mubr.f32.mxu0 0.0
      %3453 = vmatmul.mubr.f32.gmra.mxu0 %v3248
      %v3454 = vpop.f32.mrf.mxu0
      %v3455 = vadd.f32 0.0, %v3454
      %v3456 = vpop.f32.mrf.mxu0
      %3457 = vmatprep.mubr.f32.mxu0 0.0
      %3458 = vmatmul.mubr.f32.gmra.mxu0 %v3251
      %v3459 = vpop.f32.mrf.mxu0
      %v3460 = vadd.f32 0.0, %v3459
      %v3461 = vpop.f32.mrf.mxu0
      %3462 = vmatprep.mubr.f32.mxu0 0.0
      %3463 = vmatmul.mubr.f32.gmra.mxu0 %v3254
      %v3464 = vpop.f32.mrf.mxu0
      %v3465 = vadd.f32 0.0, %v3464
      %v3466 = vpop.f32.mrf.mxu0
      %3467 = vmatprep.mubr.f32.mxu0 0.0
      %3468 = vmatmul.mubr.f32.gmra.mxu0 %v3257
      %v3469 = vpop.f32.mrf.mxu0
      %v3470 = vadd.f32 0.0, %v3469
      %v3471 = vpop.f32.mrf.mxu0
      %3472 = vmatprep.mubr.f32.mxu0 0.0
      %3473 = vmatmul.mubr.f32.gmra.mxu0 %v3260
      %v3474 = vpop.f32.mrf.mxu0
      %v3475 = vadd.f32 0.0, %v3474
      %v3476 = vpop.f32.mrf.mxu0
      %3477 = vmatprep.mubr.f32.mxu0 0.0
      %3478 = vmatmul.mubr.f32.gmra.mxu0 %v3263
      %v3479 = vpop.f32.mrf.mxu0
      %v3480 = vadd.f32 0.0, %v3479
      %v3481 = vpop.f32.mrf.mxu0
      %3482 = vmatprep.mubr.f32.mxu0 0.0
      %3483 = vmatmul.mubr.f32.gmra.mxu0 %v3266
      %v3484 = vpop.f32.mrf.mxu0
      %v3485 = vadd.f32 0.0, %v3484
      %v3486 = vpop.f32.mrf.mxu0
      %3487 = vmatprep.mubr.f32.mxu0 0.0
      %3488 = vmatmul.mubr.f32.gmra.mxu0 %v3269
      %v3489 = vpop.f32.mrf.mxu0
      %v3490 = vadd.f32 0.0, %v3489
      %v3491 = vpop.f32.mrf.mxu0
      %3492 = vmatprep.mubr.f32.mxu0 0.0
      %3493 = vmatmul.mubr.f32.gmra.mxu0 %v3272
      %v3494 = vpop.f32.mrf.mxu0
      %v3495 = vadd.f32 0.0, %v3494
      %v3496 = vpop.f32.mrf.mxu0
      %3497 = vmatprep.mubr.f32.mxu0 0.0
      %3498 = vmatmul.mubr.f32.gmra.mxu0 %v3275
      %v3499 = vpop.f32.mrf.mxu0
      %v3500 = vadd.f32 0.0, %v3499
      %v3501 = vpop.f32.mrf.mxu0
      %3502 = vmatprep.mubr.f32.mxu0 0.0
      %3503 = vmatmul.mubr.f32.gmra.mxu0 %v3278
      %v3504 = vpop.f32.mrf.mxu0
      %v3505 = vadd.f32 0.0, %v3504
      %v3506 = vpop.f32.mrf.mxu0
      %3507 = vmatprep.mubr.f32.mxu0 0.0
      %3508 = vmatmul.mubr.f32.gmra.mxu0 %v3281
      %v3509 = vpop.f32.mrf.mxu0
      %v3510 = vadd.f32 0.0, %v3509
      %v3511 = vpop.f32.mrf.mxu0
      %3512 = vmatprep.mubr.f32.mxu0 0.0
      %3513 = vmatmul.mubr.f32.gmra.mxu0 %v3284
      %v3514 = vpop.f32.mrf.mxu0
      %v3515 = vadd.f32 0.0, %v3514
      %v3516 = vpop.f32.mrf.mxu0
      %3517 = vmatprep.mubr.f32.mxu0 0.0
      %3518 = vmatmul.mubr.f32.gmra.mxu0 %v3287
      %v3519 = vpop.f32.mrf.mxu0
      %v3520 = vadd.f32 0.0, %v3519
      %v3521 = vpop.f32.mrf.mxu0
      %3522 = vmatprep.mubr.f32.mxu0 0.0
      %3523 = vmatmul.mubr.f32.gmra.mxu0 %v3290
      %v3524 = vpop.f32.mrf.mxu0
      %v3525 = vadd.f32 0.0, %v3524
      %v3526 = vpop.f32.mrf.mxu0
      %3527 = vmatprep.mubr.f32.mxu0 0.0
      %3528 = vmatmul.mubr.f32.gmra.mxu0 %v3293
      %v3529 = vpop.f32.mrf.mxu0
      %v3530 = vadd.f32 0.0, %v3529
      %v3531 = vpop.f32.mrf.mxu0
      %3532 = vmatprep.mubr.f32.mxu0 0.0
      %3533 = vmatmul.mubr.f32.gmra.mxu0 %v3296
      %v3534 = vpop.f32.mrf.mxu0
      %v3535 = vadd.f32 0.0, %v3534
      %v3536 = vpop.f32.mrf.mxu0
      %3537 = vmatprep.mubr.f32.mxu0 0.0
      %3538 = vmatmul.mubr.f32.gmra.mxu0 %v3299
      %v3539 = vpop.f32.mrf.mxu0
      %v3540 = vadd.f32 0.0, %v3539
      %v3541 = vpop.f32.mrf.mxu0
      %3542 = vmatprep.mubr.f32.mxu0 0.0
      %3543 = vmatmul.mubr.f32.gmra.mxu0 %v3302
      %v3544 = vpop.f32.mrf.mxu0
      %v3545 = vadd.f32 0.0, %v3544
      %v3546 = vpop.f32.mrf.mxu0
      %3547 = vmatprep.mubr.f32.mxu0 0.0
      %3548 = vmatmul.mubr.f32.gmra.mxu0 %v3305
      %v3549 = vpop.f32.mrf.mxu0
      %v3550 = vadd.f32 0.0, %v3549
      %v3551 = vpop.f32.mrf.mxu0
      %3552 = vmatprep.mubr.f32.mxu0 0.0
      %3553 = vmatmul.mubr.f32.gmra.mxu0 %v3308
      %v3554 = vpop.f32.mrf.mxu0
      %v3555 = vadd.f32 0.0, %v3554
      %v3556 = vpop.f32.mrf.mxu0
      %3557 = vdwg.mxu0
      %v3558 = vadd.f32 %v3128, %v3380
      %v3559 = vadd.f32 %v3129, %v3385
      %v3560 = vadd.f32 %v3130, %v3390
      %v3561 = vadd.f32 %v3131, %v3395
      %v3562 = vadd.f32 %v3132, %v3400
      %v3563 = vadd.f32 %v3133, %v3405
      %v3564 = vadd.f32 %v3134, %v3410
      %v3565 = vadd.f32 %v3135, %v3415
      %v3566 = vadd.f32 %v3136, %v3420
      %v3567 = vadd.f32 %v3137, %v3425
      %v3568 = vadd.f32 %v3138, %v3430
      %v3569 = vadd.f32 %v3139, %v3435
      %v3570 = vadd.f32 %v3140, %v3440
      %v3571 = vadd.f32 %v3141, %v3445
      %v3572 = vadd.f32 %v3142, %v3450
      %v3573 = vadd.f32 %v3143, %v3455
      %v3574 = vadd.f32 %v3144, %v3460
      %v3575 = vadd.f32 %v3145, %v3465
      %v3576 = vadd.f32 %v3146, %v3470
      %v3577 = vadd.f32 %v3147, %v3475
      %v3578 = vadd.f32 %v3148, %v3480
      %v3579 = vadd.f32 %v3149, %v3485
      %v3580 = vadd.f32 %v3150, %v3490
      %v3581 = vadd.f32 %v3151, %v3495
      %v3582 = vadd.f32 %v3152, %v3500
      %v3583 = vadd.f32 %v3153, %v3505
      %v3584 = vadd.f32 %v3154, %v3510
      %v3585 = vadd.f32 %v3155, %v3515
      %v3586 = vadd.f32 %v3156, %v3520
      %v3587 = vadd.f32 %v3157, %v3525
      %v3588 = vadd.f32 %v3158, %v3530
      %v3589 = vadd.f32 %v3159, %v3535
      %v3590 = vadd.f32 %v3160, %v3540
      %v3591 = vadd.f32 %v3161, %v3545
      %v3592 = vadd.f32 %v3162, %v3550
      %v3593 = vadd.f32 %v3163, %v3555
      %v3594 = vld [vmem:[%s219 + $0x26] sm:$0xff]
      %v3595 = vld [vmem:[%s219 + $0x2e] sm:$0xff]
      %v3596 = vld [vmem:[%s219 + $0x36] sm:$0xff]
      %v3597 = vld [vmem:[%s219 + $0x3e] sm:$0xff]
      %v3598 = vld [vmem:[%s219 + $0x46] sm:$0xff]
      %v3599 = vld [vmem:[%s219 + $0x4e] sm:$0xff]
      %v3600 = vld [vmem:[%s219 + $0x56] sm:$0xff]
      %v3601 = vld [vmem:[%s219 + $0x5e] sm:$0xff]
      %v3602 = vld [vmem:[%s219 + $0x66] sm:$0xff]
      %v3603 = vld [vmem:[%s219 + $0x6e] sm:$0xff]
      %v3604 = vld [vmem:[%s219 + $0x76] sm:$0xff]
      %v3605 = vld [vmem:[%s219 + $0x7e] sm:$0xff]
      %v3606 = vld [vmem:[%s219 + $0x86] sm:$0xff]
      %v3607 = vld [vmem:[%s219 + $0x8e] sm:$0xff]
      %v3608 = vld [vmem:[%s219 + $0x96] sm:$0xff]
      %v3609 = vld [vmem:[%s219 + $0x9e] sm:$0xff]
      %v3610 = vld [vmem:[%s219 + $0xa6] sm:$0xff]
      %v3611 = vld [vmem:[%s219 + $0xae] sm:$0xff]
      %v3612 = vld [vmem:[%s219 + $0xb6] sm:$0xff]
      %v3613 = vld [vmem:[%s219 + $0xbe] sm:$0xff]
      %v3614 = vld [vmem:[%s219 + $0xc6] sm:$0xff]
      %v3615 = vld [vmem:[%s219 + $0xce] sm:$0xff]
      %v3616 = vld [vmem:[%s219 + $0xd6] sm:$0xff]
      %v3617 = vld [vmem:[%s219 + $0xde] sm:$0xff]
      %v3618 = vld [vmem:[%s219 + $0xe6] sm:$0xff]
      %v3619 = vld [vmem:[%s219 + $0xee] sm:$0xff]
      %v3620 = vld [vmem:[%s219 + $0xf6] sm:$0xff]
      %v3621 = vld [vmem:[%s219 + $0xfe] sm:$0xff]
      %v3622 = vld [vmem:[%s219 + $0x106] sm:$0xff]
      %v3623 = vld [vmem:[%s219 + $0x10e] sm:$0xff]
      %v3624 = vld [vmem:[%s219 + $0x116] sm:$0xff]
      %v3625 = vld [vmem:[%s219 + $0x11e] sm:$0xff]
      %v3626 = vld [vmem:[%s219 + $0x126] sm:$0xff]
      %v3627 = vld [vmem:[%s219 + $0x12e] sm:$0xff]
      %v3628 = vld [vmem:[%s219 + $0x136] sm:$0xff]
      %v3629 = vld [vmem:[%s219 + $0x13e] sm:$0x3f]
      %s3630 = scalar_lea.vmem %s1, 32
      %v3631 = vld [vmem:[%s3630] sm:$0xf]
      %v3633 = vsel %vm300, %v3594, 0
      %v3636 = vsel %vm300, %v3595, 0
      %v3639 = vsel %vm300, %v3596, 0
      %v3642 = vsel %vm300, %v3597, 0
      %v3645 = vsel %vm300, %v3598, 0
      %v3648 = vsel %vm300, %v3599, 0
      %v3651 = vsel %vm300, %v3600, 0
      %v3654 = vsel %vm300, %v3601, 0
      %v3657 = vsel %vm300, %v3602, 0
      %v3660 = vsel %vm300, %v3603, 0
      %v3663 = vsel %vm300, %v3604, 0
      %v3666 = vsel %vm300, %v3605, 0
      %v3669 = vsel %vm300, %v3606, 0
      %v3672 = vsel %vm300, %v3607, 0
      %v3675 = vsel %vm300, %v3608, 0
      %v3678 = vsel %vm300, %v3609, 0
      %v3681 = vsel %vm300, %v3610, 0
      %v3684 = vsel %vm300, %v3611, 0
      %v3687 = vsel %vm300, %v3612, 0
      %v3690 = vsel %vm300, %v3613, 0
      %v3693 = vsel %vm300, %v3614, 0
      %v3696 = vsel %vm300, %v3615, 0
      %v3699 = vsel %vm300, %v3616, 0
      %v3702 = vsel %vm300, %v3617, 0
      %v3705 = vsel %vm300, %v3618, 0
      %v3708 = vsel %vm300, %v3619, 0
      %v3711 = vsel %vm300, %v3620, 0
      %v3714 = vsel %vm300, %v3621, 0
      %v3717 = vsel %vm300, %v3622, 0
      %v3720 = vsel %vm300, %v3623, 0
      %v3723 = vsel %vm300, %v3624, 0
      %v3726 = vsel %vm300, %v3625, 0
      %v3729 = vsel %vm300, %v3626, 0
      %v3732 = vsel %vm300, %v3627, 0
      %v3735 = vsel %vm300, %v3628, 0
      %v3738 = vsel %vm300, %v3629, 0
      %v3741 = vsel %vm409, %v3631, 0
      %3743 = vmatprep.subr.mxu0 0.0
      %3744 = vmatpush1.msra.mxu0 0.0
      %3745 = vmatprep.subr.mxu0 0.0
      %3746 = vmatpush1.msra.mxu0 0.0
      %3747 = vmatprep.subr.mxu0 0.0
      %3748 = vmatpush1.msra.mxu0 0.0
      %3749 = vmatprep.subr.mxu0 0.0
      %3750 = vmatpush1.msra.mxu0 0.0
      %3751 = vmatprep.subr.mxu0 0.0
      %3752 = vmatpush1.msra.mxu0 0.0
      %3753 = vmatprep.subr.mxu0 0.0
      %3754 = vmatpush1.msra.mxu0 0.0
      %3755 = vmatprep.subr.mxu0 0.0
      %3756 = vmatpush1.msra.mxu0 0.0
      %3757 = vmatprep.subr.mxu0 0.0
      %3758 = vmatpush1.msra.mxu0 0.0
      %3759 = vmatprep.subr.mxu0 0.0
      %3760 = vmatpush1.msra.mxu0 0.0
      %3761 = vmatprep.subr.mxu0 0.0
      %3762 = vmatpush1.msra.mxu0 0.0
      %3763 = vmatprep.subr.mxu0 0.0
      %3764 = vmatpush1.msra.mxu0 0.0
      %3765 = vmatprep.subr.mxu0 0.0
      %3766 = vmatpush1.msra.mxu0 0.0
      %3767 = vmatprep.subr.mxu0 0.0
      %3768 = vmatpush1.msra.mxu0 0.0
      %3769 = vmatprep.subr.mxu0 0.0
      %3770 = vmatpush1.msra.mxu0 0.0
      %3771 = vmatprep.subr.mxu0 0.0
      %3772 = vmatpush1.msra.mxu0 0.0
      %3773 = vmatprep.subr.mxu0 0.0
      %3774 = vmatpush1.msra.mxu0 %v3741
      %3775 = vmatprep.subr.mxu0 0.0
      %3776 = vmatpush2.msra.mxu0 0.0
      %3777 = vmatprep.subr.mxu0 0.0
      %3778 = vmatpush2.msra.mxu0 0.0
      %3779 = vmatprep.subr.mxu0 0.0
      %3780 = vmatpush2.msra.mxu0 0.0
      %3781 = vmatprep.subr.mxu0 0.0
      %3782 = vmatpush2.msra.mxu0 0.0
      %3783 = vmatprep.subr.mxu0 0.0
      %3784 = vmatpush2.msra.mxu0 0.0
      %3785 = vmatprep.subr.mxu0 0.0
      %3786 = vmatpush2.msra.mxu0 0.0
      %3787 = vmatprep.subr.mxu0 0.0
      %3788 = vmatpush2.msra.mxu0 0.0
      %3789 = vmatprep.subr.mxu0 0.0
      %3790 = vmatpush2.msra.mxu0 0.0
      %3791 = vmatprep.subr.mxu0 0.0
      %3792 = vmatpush2.msra.mxu0 0.0
      %3793 = vmatprep.subr.mxu0 0.0
      %3794 = vmatpush2.msra.mxu0 0.0
      %3795 = vmatprep.subr.mxu0 0.0
      %3796 = vmatpush2.msra.mxu0 0.0
      %3797 = vmatprep.subr.mxu0 0.0
      %3798 = vmatpush2.msra.mxu0 0.0
      %3799 = vmatprep.subr.mxu0 0.0
      %3800 = vmatpush2.msra.mxu0 0.0
      %3801 = vmatprep.subr.mxu0 0.0
      %3802 = vmatpush2.msra.mxu0 0.0
      %3803 = vmatprep.subr.mxu0 0.0
      %3804 = vmatpush2.msra.mxu0 0.0
      %3805 = vmatprep.subr.mxu0 0.0
      %3806 = vmatpush2.msra.mxu0 0.0
      %3807 = vmatprep.mubr.f32.mxu0 0.0
      %3808 = vmatmul.mubr.f32.gmra.mxu0 %v3633
      %v3809 = vpop.f32.mrf.mxu0
      %v3810 = vadd.f32 0.0, %v3809
      %v3811 = vpop.f32.mrf.mxu0
      %3812 = vmatprep.mubr.f32.mxu0 0.0
      %3813 = vmatmul.mubr.f32.gmra.mxu0 %v3636
      %v3814 = vpop.f32.mrf.mxu0
      %v3815 = vadd.f32 0.0, %v3814
      %v3816 = vpop.f32.mrf.mxu0
      %3817 = vmatprep.mubr.f32.mxu0 0.0
      %3818 = vmatmul.mubr.f32.gmra.mxu0 %v3639
      %v3819 = vpop.f32.mrf.mxu0
      %v3820 = vadd.f32 0.0, %v3819
      %v3821 = vpop.f32.mrf.mxu0
      %3822 = vmatprep.mubr.f32.mxu0 0.0
      %3823 = vmatmul.mubr.f32.gmra.mxu0 %v3642
      %v3824 = vpop.f32.mrf.mxu0
      %v3825 = vadd.f32 0.0, %v3824
      %v3826 = vpop.f32.mrf.mxu0
      %3827 = vmatprep.mubr.f32.mxu0 0.0
      %3828 = vmatmul.mubr.f32.gmra.mxu0 %v3645
      %v3829 = vpop.f32.mrf.mxu0
      %v3830 = vadd.f32 0.0, %v3829
      %v3831 = vpop.f32.mrf.mxu0
      %3832 = vmatprep.mubr.f32.mxu0 0.0
      %3833 = vmatmul.mubr.f32.gmra.mxu0 %v3648
      %v3834 = vpop.f32.mrf.mxu0
      %v3835 = vadd.f32 0.0, %v3834
      %v3836 = vpop.f32.mrf.mxu0
      %3837 = vmatprep.mubr.f32.mxu0 0.0
      %3838 = vmatmul.mubr.f32.gmra.mxu0 %v3651
      %v3839 = vpop.f32.mrf.mxu0
      %v3840 = vadd.f32 0.0, %v3839
      %v3841 = vpop.f32.mrf.mxu0
      %3842 = vmatprep.mubr.f32.mxu0 0.0
      %3843 = vmatmul.mubr.f32.gmra.mxu0 %v3654
      %v3844 = vpop.f32.mrf.mxu0
      %v3845 = vadd.f32 0.0, %v3844
      %v3846 = vpop.f32.mrf.mxu0
      %3847 = vmatprep.mubr.f32.mxu0 0.0
      %3848 = vmatmul.mubr.f32.gmra.mxu0 %v3657
      %v3849 = vpop.f32.mrf.mxu0
      %v3850 = vadd.f32 0.0, %v3849
      %v3851 = vpop.f32.mrf.mxu0
      %3852 = vmatprep.mubr.f32.mxu0 0.0
      %3853 = vmatmul.mubr.f32.gmra.mxu0 %v3660
      %v3854 = vpop.f32.mrf.mxu0
      %v3855 = vadd.f32 0.0, %v3854
      %v3856 = vpop.f32.mrf.mxu0
      %3857 = vmatprep.mubr.f32.mxu0 0.0
      %3858 = vmatmul.mubr.f32.gmra.mxu0 %v3663
      %v3859 = vpop.f32.mrf.mxu0
      %v3860 = vadd.f32 0.0, %v3859
      %v3861 = vpop.f32.mrf.mxu0
      %3862 = vmatprep.mubr.f32.mxu0 0.0
      %3863 = vmatmul.mubr.f32.gmra.mxu0 %v3666
      %v3864 = vpop.f32.mrf.mxu0
      %v3865 = vadd.f32 0.0, %v3864
      %v3866 = vpop.f32.mrf.mxu0
      %3867 = vmatprep.mubr.f32.mxu0 0.0
      %3868 = vmatmul.mubr.f32.gmra.mxu0 %v3669
      %v3869 = vpop.f32.mrf.mxu0
      %v3870 = vadd.f32 0.0, %v3869
      %v3871 = vpop.f32.mrf.mxu0
      %3872 = vmatprep.mubr.f32.mxu0 0.0
      %3873 = vmatmul.mubr.f32.gmra.mxu0 %v3672
      %v3874 = vpop.f32.mrf.mxu0
      %v3875 = vadd.f32 0.0, %v3874
      %v3876 = vpop.f32.mrf.mxu0
      %3877 = vmatprep.mubr.f32.mxu0 0.0
      %3878 = vmatmul.mubr.f32.gmra.mxu0 %v3675
      %v3879 = vpop.f32.mrf.mxu0
      %v3880 = vadd.f32 0.0, %v3879
      %v3881 = vpop.f32.mrf.mxu0
      %3882 = vmatprep.mubr.f32.mxu0 0.0
      %3883 = vmatmul.mubr.f32.gmra.mxu0 %v3678
      %v3884 = vpop.f32.mrf.mxu0
      %v3885 = vadd.f32 0.0, %v3884
      %v3886 = vpop.f32.mrf.mxu0
      %3887 = vmatprep.mubr.f32.mxu0 0.0
      %3888 = vmatmul.mubr.f32.gmra.mxu0 %v3681
      %v3889 = vpop.f32.mrf.mxu0
      %v3890 = vadd.f32 0.0, %v3889
      %v3891 = vpop.f32.mrf.mxu0
      %3892 = vmatprep.mubr.f32.mxu0 0.0
      %3893 = vmatmul.mubr.f32.gmra.mxu0 %v3684
      %v3894 = vpop.f32.mrf.mxu0
      %v3895 = vadd.f32 0.0, %v3894
      %v3896 = vpop.f32.mrf.mxu0
      %3897 = vmatprep.mubr.f32.mxu0 0.0
      %3898 = vmatmul.mubr.f32.gmra.mxu0 %v3687
      %v3899 = vpop.f32.mrf.mxu0
      %v3900 = vadd.f32 0.0, %v3899
      %v3901 = vpop.f32.mrf.mxu0
      %3902 = vmatprep.mubr.f32.mxu0 0.0
      %3903 = vmatmul.mubr.f32.gmra.mxu0 %v3690
      %v3904 = vpop.f32.mrf.mxu0
      %v3905 = vadd.f32 0.0, %v3904
      %v3906 = vpop.f32.mrf.mxu0
      %3907 = vmatprep.mubr.f32.mxu0 0.0
      %3908 = vmatmul.mubr.f32.gmra.mxu0 %v3693
      %v3909 = vpop.f32.mrf.mxu0
      %v3910 = vadd.f32 0.0, %v3909
      %v3911 = vpop.f32.mrf.mxu0
      %3912 = vmatprep.mubr.f32.mxu0 0.0
      %3913 = vmatmul.mubr.f32.gmra.mxu0 %v3696
      %v3914 = vpop.f32.mrf.mxu0
      %v3915 = vadd.f32 0.0, %v3914
      %v3916 = vpop.f32.mrf.mxu0
      %3917 = vmatprep.mubr.f32.mxu0 0.0
      %3918 = vmatmul.mubr.f32.gmra.mxu0 %v3699
      %v3919 = vpop.f32.mrf.mxu0
      %v3920 = vadd.f32 0.0, %v3919
      %v3921 = vpop.f32.mrf.mxu0
      %3922 = vmatprep.mubr.f32.mxu0 0.0
      %3923 = vmatmul.mubr.f32.gmra.mxu0 %v3702
      %v3924 = vpop.f32.mrf.mxu0
      %v3925 = vadd.f32 0.0, %v3924
      %v3926 = vpop.f32.mrf.mxu0
      %3927 = vmatprep.mubr.f32.mxu0 0.0
      %3928 = vmatmul.mubr.f32.gmra.mxu0 %v3705
      %v3929 = vpop.f32.mrf.mxu0
      %v3930 = vadd.f32 0.0, %v3929
      %v3931 = vpop.f32.mrf.mxu0
      %3932 = vmatprep.mubr.f32.mxu0 0.0
      %3933 = vmatmul.mubr.f32.gmra.mxu0 %v3708
      %v3934 = vpop.f32.mrf.mxu0
      %v3935 = vadd.f32 0.0, %v3934
      %v3936 = vpop.f32.mrf.mxu0
      %3937 = vmatprep.mubr.f32.mxu0 0.0
      %3938 = vmatmul.mubr.f32.gmra.mxu0 %v3711
      %v3939 = vpop.f32.mrf.mxu0
      %v3940 = vadd.f32 0.0, %v3939
      %v3941 = vpop.f32.mrf.mxu0
      %3942 = vmatprep.mubr.f32.mxu0 0.0
      %3943 = vmatmul.mubr.f32.gmra.mxu0 %v3714
      %v3944 = vpop.f32.mrf.mxu0
      %v3945 = vadd.f32 0.0, %v3944
      %v3946 = vpop.f32.mrf.mxu0
      %3947 = vmatprep.mubr.f32.mxu0 0.0
      %3948 = vmatmul.mubr.f32.gmra.mxu0 %v3717
      %v3949 = vpop.f32.mrf.mxu0
      %v3950 = vadd.f32 0.0, %v3949
      %v3951 = vpop.f32.mrf.mxu0
      %3952 = vmatprep.mubr.f32.mxu0 0.0
      %3953 = vmatmul.mubr.f32.gmra.mxu0 %v3720
      %v3954 = vpop.f32.mrf.mxu0
      %v3955 = vadd.f32 0.0, %v3954
      %v3956 = vpop.f32.mrf.mxu0
      %3957 = vmatprep.mubr.f32.mxu0 0.0
      %3958 = vmatmul.mubr.f32.gmra.mxu0 %v3723
      %v3959 = vpop.f32.mrf.mxu0
      %v3960 = vadd.f32 0.0, %v3959
      %v3961 = vpop.f32.mrf.mxu0
      %3962 = vmatprep.mubr.f32.mxu0 0.0
      %3963 = vmatmul.mubr.f32.gmra.mxu0 %v3726
      %v3964 = vpop.f32.mrf.mxu0
      %v3965 = vadd.f32 0.0, %v3964
      %v3966 = vpop.f32.mrf.mxu0
      %3967 = vmatprep.mubr.f32.mxu0 0.0
      %3968 = vmatmul.mubr.f32.gmra.mxu0 %v3729
      %v3969 = vpop.f32.mrf.mxu0
      %v3970 = vadd.f32 0.0, %v3969
      %v3971 = vpop.f32.mrf.mxu0
      %3972 = vmatprep.mubr.f32.mxu0 0.0
      %3973 = vmatmul.mubr.f32.gmra.mxu0 %v3732
      %v3974 = vpop.f32.mrf.mxu0
      %v3975 = vadd.f32 0.0, %v3974
      %v3976 = vpop.f32.mrf.mxu0
      %3977 = vmatprep.mubr.f32.mxu0 0.0
      %3978 = vmatmul.mubr.f32.gmra.mxu0 %v3735
      %v3979 = vpop.f32.mrf.mxu0
      %v3980 = vadd.f32 0.0, %v3979
      %v3981 = vpop.f32.mrf.mxu0
      %3982 = vmatprep.mubr.f32.mxu0 0.0
      %3983 = vmatmul.mubr.f32.gmra.mxu0 %v3738
      %v3984 = vpop.f32.mrf.mxu0
      %v3985 = vadd.f32 0.0, %v3984
      %v3986 = vpop.f32.mrf.mxu0
      %3987 = vdwg.mxu0
      %v3988 = vadd.f32 %v3558, %v3810
      %v3989 = vadd.f32 %v3559, %v3815
      %v3990 = vadd.f32 %v3560, %v3820
      %v3991 = vadd.f32 %v3561, %v3825
      %v3992 = vadd.f32 %v3562, %v3830
      %v3993 = vadd.f32 %v3563, %v3835
      %v3994 = vadd.f32 %v3564, %v3840
      %v3995 = vadd.f32 %v3565, %v3845
      %v3996 = vadd.f32 %v3566, %v3850
      %v3997 = vadd.f32 %v3567, %v3855
      %v3998 = vadd.f32 %v3568, %v3860
      %v3999 = vadd.f32 %v3569, %v3865
      %v4000 = vadd.f32 %v3570, %v3870
      %v4001 = vadd.f32 %v3571, %v3875
      %v4002 = vadd.f32 %v3572, %v3880
      %v4003 = vadd.f32 %v3573, %v3885
      %v4004 = vadd.f32 %v3574, %v3890
      %v4005 = vadd.f32 %v3575, %v3895
      %v4006 = vadd.f32 %v3576, %v3900
      %v4007 = vadd.f32 %v3577, %v3905
      %v4008 = vadd.f32 %v3578, %v3910
      %v4009 = vadd.f32 %v3579, %v3915
      %v4010 = vadd.f32 %v3580, %v3920
      %v4011 = vadd.f32 %v3581, %v3925
      %v4012 = vadd.f32 %v3582, %v3930
      %v4013 = vadd.f32 %v3583, %v3935
      %v4014 = vadd.f32 %v3584, %v3940
      %v4015 = vadd.f32 %v3585, %v3945
      %v4016 = vadd.f32 %v3586, %v3950
      %v4017 = vadd.f32 %v3587, %v3955
      %v4018 = vadd.f32 %v3588, %v3960
      %v4019 = vadd.f32 %v3589, %v3965
      %v4020 = vadd.f32 %v3590, %v3970
      %v4021 = vadd.f32 %v3591, %v3975
      %v4022 = vadd.f32 %v3592, %v3980
      %v4023 = vadd.f32 %v3593, %v3985
      %v4024 = vld [vmem:[%s2] sm:$0x1]
      %v4026 = vlaneseq
      %v4027 = vshrl.u32 %v4026, 7
      %v4028 = vsub.s32 0, %v4027
      %v4029 = vrot.slane %v4024, %v4028
      %v4031 = vadd.f32 %v3988, %v4029
      %v4032 = vadd.f32 %v3989, %v4029
      %v4033 = vadd.f32 %v3990, %v4029
      %v4034 = vadd.f32 %v3991, %v4029
      %v4035 = vadd.f32 %v3992, %v4029
      %v4036 = vadd.f32 %v3993, %v4029
      %v4037 = vadd.f32 %v3994, %v4029
      %v4038 = vadd.f32 %v3995, %v4029
      %v4039 = vadd.f32 %v3996, %v4029
      %v4040 = vadd.f32 %v3997, %v4029
      %v4041 = vadd.f32 %v3998, %v4029
      %v4042 = vadd.f32 %v3999, %v4029
      %v4043 = vadd.f32 %v4000, %v4029
      %v4044 = vadd.f32 %v4001, %v4029
      %v4045 = vadd.f32 %v4002, %v4029
      %v4046 = vadd.f32 %v4003, %v4029
      %v4047 = vadd.f32 %v4004, %v4029
      %v4048 = vadd.f32 %v4005, %v4029
      %v4049 = vadd.f32 %v4006, %v4029
      %v4050 = vadd.f32 %v4007, %v4029
      %v4051 = vadd.f32 %v4008, %v4029
      %v4052 = vadd.f32 %v4009, %v4029
      %v4053 = vadd.f32 %v4010, %v4029
      %v4054 = vadd.f32 %v4011, %v4029
      %v4055 = vadd.f32 %v4012, %v4029
      %v4056 = vadd.f32 %v4013, %v4029
      %v4057 = vadd.f32 %v4014, %v4029
      %v4058 = vadd.f32 %v4015, %v4029
      %v4059 = vadd.f32 %v4016, %v4029
      %v4060 = vadd.f32 %v4017, %v4029
      %v4061 = vadd.f32 %v4018, %v4029
      %v4062 = vadd.f32 %v4019, %v4029
      %v4063 = vadd.f32 %v4020, %v4029
      %v4064 = vadd.f32 %v4021, %v4029
      %v4065 = vadd.f32 %v4022, %v4029
      %v4066 = vadd.f32 %v4023, %v4029
      %v4067 = vmax.f32 %v4031, 0.0
      %v4068 = vmax.f32 %v4032, 0.0
      %v4069 = vmax.f32 %v4033, 0.0
      %v4070 = vmax.f32 %v4034, 0.0
      %v4071 = vmax.f32 %v4035, 0.0
      %v4072 = vmax.f32 %v4036, 0.0
      %v4073 = vmax.f32 %v4037, 0.0
      %v4074 = vmax.f32 %v4038, 0.0
      %v4075 = vmax.f32 %v4039, 0.0
      %v4076 = vmax.f32 %v4040, 0.0
      %v4077 = vmax.f32 %v4041, 0.0
      %v4078 = vmax.f32 %v4042, 0.0
      %v4079 = vmax.f32 %v4043, 0.0
      %v4080 = vmax.f32 %v4044, 0.0
      %v4081 = vmax.f32 %v4045, 0.0
      %v4082 = vmax.f32 %v4046, 0.0
      %v4083 = vmax.f32 %v4047, 0.0
      %v4084 = vmax.f32 %v4048, 0.0
      %v4085 = vmax.f32 %v4049, 0.0
      %v4086 = vmax.f32 %v4050, 0.0
      %v4087 = vmax.f32 %v4051, 0.0
      %v4088 = vmax.f32 %v4052, 0.0
      %v4089 = vmax.f32 %v4053, 0.0
      %v4090 = vmax.f32 %v4054, 0.0
      %v4091 = vmax.f32 %v4055, 0.0
      %v4092 = vmax.f32 %v4056, 0.0
      %v4093 = vmax.f32 %v4057, 0.0
      %v4094 = vmax.f32 %v4058, 0.0
      %v4095 = vmax.f32 %v4059, 0.0
      %v4096 = vmax.f32 %v4060, 0.0
      %v4097 = vmax.f32 %v4061, 0.0
      %v4098 = vmax.f32 %v4062, 0.0
      %v4099 = vmax.f32 %v4063, 0.0
      %v4100 = vmax.f32 %v4064, 0.0
      %v4101 = vmax.f32 %v4065, 0.0
      %v4102 = vmax.f32 %v4066, 0.0
      %v4103 = vld [vmem:[%s3] sm:$0x1]
      %v4105 = vlaneseq
      %v4106 = vshrl.u32 %v4105, 7
      %v4107 = vsub.s32 0, %v4106
      %v4108 = vrot.slane %v4103, %v4107
      %v4110 = vmul.f32 %v4067, %v4108
      %v4111 = vmul.f32 %v4068, %v4108
      %v4112 = vmul.f32 %v4069, %v4108
      %v4113 = vmul.f32 %v4070, %v4108
      %v4114 = vmul.f32 %v4071, %v4108
      %v4115 = vmul.f32 %v4072, %v4108
      %v4116 = vmul.f32 %v4073, %v4108
      %v4117 = vmul.f32 %v4074, %v4108
      %v4118 = vmul.f32 %v4075, %v4108
      %v4119 = vmul.f32 %v4076, %v4108
      %v4120 = vmul.f32 %v4077, %v4108
      %v4121 = vmul.f32 %v4078, %v4108
      %v4122 = vmul.f32 %v4079, %v4108
      %v4123 = vmul.f32 %v4080, %v4108
      %v4124 = vmul.f32 %v4081, %v4108
      %v4125 = vmul.f32 %v4082, %v4108
      %v4126 = vmul.f32 %v4083, %v4108
      %v4127 = vmul.f32 %v4084, %v4108
      %v4128 = vmul.f32 %v4085, %v4108
      %v4129 = vmul.f32 %v4086, %v4108
      %v4130 = vmul.f32 %v4087, %v4108
      %v4131 = vmul.f32 %v4088, %v4108
      %v4132 = vmul.f32 %v4089, %v4108
      %v4133 = vmul.f32 %v4090, %v4108
      %v4134 = vmul.f32 %v4091, %v4108
      %v4135 = vmul.f32 %v4092, %v4108
      %v4136 = vmul.f32 %v4093, %v4108
      %v4137 = vmul.f32 %v4094, %v4108
      %v4138 = vmul.f32 %v4095, %v4108
      %v4139 = vmul.f32 %v4096, %v4108
      %v4140 = vmul.f32 %v4097, %v4108
      %v4141 = vmul.f32 %v4098, %v4108
      %v4142 = vmul.f32 %v4099, %v4108
      %v4143 = vmul.f32 %v4100, %v4108
      %v4144 = vmul.f32 %v4101, %v4108
      %v4145 = vmul.f32 %v4102, %v4108
      %v4146 = vld [vmem:[%s4] sm:$0x1]
      %v4148 = vlaneseq
      %v4149 = vshrl.u32 %v4148, 7
      %v4150 = vsub.s32 0, %v4149
      %v4151 = vrot.slane %v4146, %v4150
      %v4153 = vadd.f32 %v4110, %v4151
      %v4154 = vadd.f32 %v4111, %v4151
      %v4155 = vadd.f32 %v4112, %v4151
      %v4156 = vadd.f32 %v4113, %v4151
      %v4157 = vadd.f32 %v4114, %v4151
      %v4158 = vadd.f32 %v4115, %v4151
      %v4159 = vadd.f32 %v4116, %v4151
      %v4160 = vadd.f32 %v4117, %v4151
      %v4161 = vadd.f32 %v4118, %v4151
      %v4162 = vadd.f32 %v4119, %v4151
      %v4163 = vadd.f32 %v4120, %v4151
      %v4164 = vadd.f32 %v4121, %v4151
      %v4165 = vadd.f32 %v4122, %v4151
      %v4166 = vadd.f32 %v4123, %v4151
      %v4167 = vadd.f32 %v4124, %v4151
      %v4168 = vadd.f32 %v4125, %v4151
      %v4169 = vadd.f32 %v4126, %v4151
      %v4170 = vadd.f32 %v4127, %v4151
      %v4171 = vadd.f32 %v4128, %v4151
      %v4172 = vadd.f32 %v4129, %v4151
      %v4173 = vadd.f32 %v4130, %v4151
      %v4174 = vadd.f32 %v4131, %v4151
      %v4175 = vadd.f32 %v4132, %v4151
      %v4176 = vadd.f32 %v4133, %v4151
      %v4177 = vadd.f32 %v4134, %v4151
      %v4178 = vadd.f32 %v4135, %v4151
      %v4179 = vadd.f32 %v4136, %v4151
      %v4180 = vadd.f32 %v4137, %v4151
      %v4181 = vadd.f32 %v4138, %v4151
      %v4182 = vadd.f32 %v4139, %v4151
      %v4183 = vadd.f32 %v4140, %v4151
      %v4184 = vadd.f32 %v4141, %v4151
      %v4185 = vadd.f32 %v4142, %v4151
      %v4186 = vadd.f32 %v4143, %v4151
      %v4187 = vadd.f32 %v4144, %v4151
      %v4188 = vadd.f32 %v4145, %v4151
      %4189 = vst [vmem:[#allocation2] sm:$0xff] %v4153
      %4190 = vst [vmem:[#allocation2 + $0x8] sm:$0xff] %v4154
      %4191 = vst [vmem:[#allocation2 + $0x10] sm:$0xff] %v4155
      %4192 = vst [vmem:[#allocation2 + $0x18] sm:$0xff] %v4156
      %4193 = vst [vmem:[#allocation2 + $0x20] sm:$0xff] %v4157
      %4194 = vst [vmem:[#allocation2 + $0x28] sm:$0xff] %v4158
      %4195 = vst [vmem:[#allocation2 + $0x30] sm:$0xff] %v4159
      %4196 = vst [vmem:[#allocation2 + $0x38] sm:$0xff] %v4160
      %4197 = vst [vmem:[#allocation2 + $0x40] sm:$0xff] %v4161
      %4198 = vst [vmem:[#allocation2 + $0x48] sm:$0xff] %v4162
      %4199 = vst [vmem:[#allocation2 + $0x50] sm:$0xff] %v4163
      %4200 = vst [vmem:[#allocation2 + $0x58] sm:$0xff] %v4164
      %4201 = vst [vmem:[#allocation2 + $0x60] sm:$0xff] %v4165
      %4202 = vst [vmem:[#allocation2 + $0x68] sm:$0xff] %v4166
      %4203 = vst [vmem:[#allocation2 + $0x70] sm:$0xff] %v4167
      %4204 = vst [vmem:[#allocation2 + $0x78] sm:$0xff] %v4168
      %4205 = vst [vmem:[#allocation2 + $0x80] sm:$0xff] %v4169
      %4206 = vst [vmem:[#allocation2 + $0x88] sm:$0xff] %v4170
      %4207 = vst [vmem:[#allocation2 + $0x90] sm:$0xff] %v4171
      %4208 = vst [vmem:[#allocation2 + $0x98] sm:$0xff] %v4172
      %4209 = vst [vmem:[#allocation2 + $0xa0] sm:$0xff] %v4173
      %4210 = vst [vmem:[#allocation2 + $0xa8] sm:$0xff] %v4174
      %4211 = vst [vmem:[#allocation2 + $0xb0] sm:$0xff] %v4175
      %4212 = vst [vmem:[#allocation2 + $0xb8] sm:$0xff] %v4176
      %4213 = vst [vmem:[#allocation2 + $0xc0] sm:$0xff] %v4177
      %4214 = vst [vmem:[#allocation2 + $0xc8] sm:$0xff] %v4178
      %4215 = vst [vmem:[#allocation2 + $0xd0] sm:$0xff] %v4179
      %4216 = vst [vmem:[#allocation2 + $0xd8] sm:$0xff] %v4180
      %4217 = vst [vmem:[#allocation2 + $0xe0] sm:$0xff] %v4181
      %4218 = vst [vmem:[#allocation2 + $0xe8] sm:$0xff] %v4182
      %4219 = vst [vmem:[#allocation2 + $0xf0] sm:$0xff] %v4183
      %4220 = vst [vmem:[#allocation2 + $0xf8] sm:$0xff] %v4184
      %4221 = vst [vmem:[#allocation2 + $0x100] sm:$0xff] %v4185
      %4222 = vst [vmem:[#allocation2 + $0x108] sm:$0xff] %v4186
      %4223 = vst [vmem:[#allocation2 + $0x110] sm:$0xff] %v4187
      %4224 = vst [vmem:[#allocation2 + $0x118] sm:$0x3f] %v4188
      %v4225 = vld [vmem:[#allocation2] ss:$2 sm:$0xff]
      %s4226 = scalar_lea.vmem [#allocation2], 1
      %v4227 = vld [vmem:[%s4226] ss:$2 sm:$0xff]
      %s4228 = scalar_lea.vmem [#allocation2], 18
      %v4229 = vld [vmem:[%s4228] ss:$2 sm:$0xff]
      %s4230 = scalar_lea.vmem [#allocation2], 19
      %v4231 = vld [vmem:[%s4230] ss:$2 sm:$0xff]
      %v4232 = vmax.f32 %v4225, %v4227
      %v4233 = vmax.f32 %v4229, %v4231
      %v4234 = vmax.f32 %v4232, %v4233
      %4235 = vst [vmem:[%s224] sm:$0xff] %v4234
      %s4236 = scalar_lea.vmem [#allocation2], 36
      %v4237 = vld [vmem:[%s4236] ss:$2 sm:$0xff]
      %s4238 = scalar_lea.vmem [#allocation2], 37
      %v4239 = vld [vmem:[%s4238] ss:$2 sm:$0xff]
      %s4240 = scalar_lea.vmem [#allocation2], 54
      %v4241 = vld [vmem:[%s4240] ss:$2 sm:$0xff]
      %s4242 = scalar_lea.vmem [#allocation2], 55
      %v4243 = vld [vmem:[%s4242] ss:$2 sm:$0xff]
      %v4244 = vmax.f32 %v4237, %v4239
      %v4245 = vmax.f32 %v4241, %v4243
      %v4246 = vmax.f32 %v4244, %v4245
      %s4247 = scalar_lea.vmem %s224, 8
      %4248 = vst [vmem:[%s4247] sm:$0xff] %v4246
      %s4249 = scalar_lea.vmem [#allocation2], 72
      %v4250 = vld [vmem:[%s4249] ss:$2 sm:$0xff]
      %s4251 = scalar_lea.vmem [#allocation2], 73
      %v4252 = vld [vmem:[%s4251] ss:$2 sm:$0xff]
      %s4253 = scalar_lea.vmem [#allocation2], 90
      %v4254 = vld [vmem:[%s4253] ss:$2 sm:$0xff]
      %s4255 = scalar_lea.vmem [#allocation2], 91
      %v4256 = vld [vmem:[%s4255] ss:$2 sm:$0xff]
      %v4257 = vmax.f32 %v4250, %v4252
      %v4258 = vmax.f32 %v4254, %v4256
      %v4259 = vmax.f32 %v4257, %v4258
      %s4260 = scalar_lea.vmem %s224, 16
      %4261 = vst [vmem:[%s4260] sm:$0xff] %v4259
      %s4262 = scalar_lea.vmem [#allocation2], 108
      %v4263 = vld [vmem:[%s4262] ss:$2 sm:$0xff]
      %s4264 = scalar_lea.vmem [#allocation2], 109
      %v4265 = vld [vmem:[%s4264] ss:$2 sm:$0xff]
      %s4266 = scalar_lea.vmem [#allocation2], 126
      %v4267 = vld [vmem:[%s4266] ss:$2 sm:$0xff]
      %s4268 = scalar_lea.vmem [#allocation2], 127
      %v4269 = vld [vmem:[%s4268] ss:$2 sm:$0xff]
      %v4270 = vmax.f32 %v4263, %v4265
      %v4271 = vmax.f32 %v4267, %v4269
      %v4272 = vmax.f32 %v4270, %v4271
      %s4273 = scalar_lea.vmem %s224, 24
      %4274 = vst [vmem:[%s4273] sm:$0xff] %v4272
      %s4275 = scalar_lea.vmem [#allocation2], 144
      %v4276 = vld [vmem:[%s4275] ss:$2 sm:$0xff]
      %s4277 = scalar_lea.vmem [#allocation2], 145
      %v4278 = vld [vmem:[%s4277] ss:$2 sm:$0xff]
      %s4279 = scalar_lea.vmem [#allocation2], 162
      %v4280 = vld [vmem:[%s4279] ss:$2 sm:$0xff]
      %s4281 = scalar_lea.vmem [#allocation2], 163
      %v4282 = vld [vmem:[%s4281] ss:$2 sm:$0xff]
      %v4283 = vmax.f32 %v4276, %v4278
      %v4284 = vmax.f32 %v4280, %v4282
      %v4285 = vmax.f32 %v4283, %v4284
      %s4286 = scalar_lea.vmem %s224, 32
      %4287 = vst [vmem:[%s4286] sm:$0xff] %v4285
      %s4288 = scalar_lea.vmem [#allocation2], 180
      %v4289 = vld [vmem:[%s4288] ss:$2 sm:$0xff]
      %s4290 = scalar_lea.vmem [#allocation2], 181
      %v4291 = vld [vmem:[%s4290] ss:$2 sm:$0xff]
      %s4292 = scalar_lea.vmem [#allocation2], 198
      %v4293 = vld [vmem:[%s4292] ss:$2 sm:$0xff]
      %s4294 = scalar_lea.vmem [#allocation2], 199
      %v4295 = vld [vmem:[%s4294] ss:$2 sm:$0xff]
      %v4296 = vmax.f32 %v4289, %v4291
      %v4297 = vmax.f32 %v4293, %v4295
      %v4298 = vmax.f32 %v4296, %v4297
      %s4299 = scalar_lea.vmem %s224, 40
      %4300 = vst [vmem:[%s4299] sm:$0xff] %v4298
      %s4301 = scalar_lea.vmem [#allocation2], 216
      %v4302 = vld [vmem:[%s4301] ss:$2 sm:$0xff]
      %s4303 = scalar_lea.vmem [#allocation2], 217
      %v4304 = vld [vmem:[%s4303] ss:$2 sm:$0xff]
      %s4305 = scalar_lea.vmem [#allocation2], 234
      %v4306 = vld [vmem:[%s4305] ss:$2 sm:$0xff]
      %s4307 = scalar_lea.vmem [#allocation2], 235
      %v4308 = vld [vmem:[%s4307] ss:$2 sm:$0xff]
      %v4309 = vmax.f32 %v4302, %v4304
      %v4310 = vmax.f32 %v4306, %v4308
      %v4311 = vmax.f32 %v4309, %v4310
      %s4312 = scalar_lea.vmem %s224, 48
      %4313 = vst [vmem:[%s4312] sm:$0xff] %v4311
      %s4314 = scalar_lea.vmem [#allocation2], 252
      %v4315 = vld [vmem:[%s4314] ss:$2 sm:$0xff]
      %s4316 = scalar_lea.vmem [#allocation2], 253
      %v4317 = vld [vmem:[%s4316] ss:$2 sm:$0xff]
      %s4318 = scalar_lea.vmem [#allocation2], 270
      %v4319 = vld [vmem:[%s4318] ss:$2 sm:$0xff]
      %s4320 = scalar_lea.vmem [#allocation2], 271
      %v4321 = vld [vmem:[%s4320] ss:$2 sm:$0xff]
      %v4322 = vmax.f32 %v4315, %v4317
      %v4323 = vmax.f32 %v4319, %v4321
      %v4324 = vmax.f32 %v4322, %v4323
      %s4325 = scalar_lea.vmem %s224, 56
      %4326 = vst [vmem:[%s4325] sm:$0xff] %v4324
      %p4327 = scmp.lt.s32.totalorder %s16, 1
      %s4328 = scalar_select %p4327, %s16, 1
      %s4329 = smul.addr %s4328, 8
      %s4330 = smul.addr %s4329, 8
      %s4331 = scalar_lea.vmem %s5, %s4330
      // Predicated region
      $region41: #{attention_cnn_forward.6} parent=39 // pred_check
        %p4332 = pneg %p144
      $region42: #{attention_cnn_forward.6} parent=39 // pred_check_branch
        %4334 = sbr.rel (%p4332) target = $region44
      $region43: #{attention_cnn_forward.6} parent=39 // pred_region
        _
      $region44: #{attention_cnn_forward.6} parent=39 // pred_fallthru
        _
    $region40: #{attention_cnn_forward.6} parent=5 // pred_fallthru
      _
    %p4335 = scmp.le.s32.totalorder 2, %s11
    // Predicated region
    $region45: #{attention_cnn_forward.6} parent=5 // pred_check
      %p4336 = pneg %p4335
    $region46: #{attention_cnn_forward.6} parent=5 // pred_check_branch
      %4338 = sbr.rel (%p4336) target = $region48
    $region47: #{attention_cnn_forward.6} parent=5 // pred_region
      %s4339 = ssub.s32 %s11, 2
      // Predicated region
      $region49: #{attention_cnn_forward.6} parent=47 // pred_check
        %p4340 = pneg %p150
      $region50: #{attention_cnn_forward.6} parent=47 // pred_check_branch
        %4342 = sbr.rel (%p4340) target = $region52
      $region51: #{attention_cnn_forward.6} parent=47 // pred_region
        %p4343 = scmp.lt.s32.totalorder %s17, 1
        %s4344 = scalar_select %p4343, %s17, 1
        %s4345 = smul.addr %s4344, 8
        %s4346 = smul.addr %s4345, 8
        %s4347 = scalar_lea.vmem %s5, %s4346
      $region52: #{attention_cnn_forward.6} parent=47 // pred_fallthru
        _
    $region48: #{attention_cnn_forward.6} parent=5 // pred_fallthru
      _
  $region6: #{attention_cnn_forward.6} parent=0 // loop_footer
    %s15 = sadd.s32 1, %s11
  $region7: #{attention_cnn_forward.6} parent=0 // loop_footer_branch
    %10 = sbr.rel target = $region3
  $region8: #{attention_cnn_forward.6} parent=0 // loop_exit
    _

// kernel: attention_cnn_forward.10
$region0: #{attention_cnn_forward.10}
  #allocation0 [shape = 'u32[]', space=smem, size = 0x4, offset = 0x4, fixed_abs, tag = 'smem constant byte address 0x4 - core index']
  #allocation1 [shape = 'u32[144,128]{1,0:T(1,128)}', space=vmem, size = 0x12000, scoped, tag = 'internal scratch']
  #allocation2 [shape = 'f32[2,256]{1,0:T(2,128)}', space=vmem, size = 0x800, scoped, tag = 'scratch operand']
  %s0 = inlined_call_operand.vmem [shape: f32[2,512], index: 0, kind: input, shape index: {}, may-alias: {0,4}]
  %s1 = inlined_call_operand.vmem [shape: bf16[512,512], index: 1, kind: input, shape index: {}]
  %s2 = inlined_call_operand.vmem [shape: f32[1,512], index: 2, kind: input, shape index: {}]
  %s3 = inlined_call_operand.vmem [shape: f32[1,512], index: 3, kind: input, shape index: {}]
  %s4 = inlined_call_operand.vmem [shape: f32[2,512], index: 4, kind: input, shape index: {}, may-alias: {0,4}]
  %s5 = inlined_call_operand.vmem [shape: f32[2,512], index: 5, kind: output, shape index: {}]
  %s6 = sld [smem:[#allocation0]]
  $region99: #{attention_cnn_forward.10} parent=0
    _
  %s8 = ssub.s32 1, %s6
  %s9 = scalar_select 0, %s8, %s6
  $region1: #{attention_cnn_forward.10} parent=0
    #allocation3 [shape = 'u8[262144]{0}', space=vmem, size = 0x40000, scoped, tag = 'input window, operand 1']
    loop: start=0, step=1, limit=6
    $region2: #{attention_cnn_forward.10} parent=1 // loop_pre_header
      _
    $region3: #{attention_cnn_forward.10} parent=1 // loop_header
      %s11 = sphi 0, %s15
      %p12 = scmp.ge.s32.totalorder %s11, 6
      %s18 = sphi 0, %s30
      %s19 = sphi 0, %s26
      %s20 = sphi 0, %s18
      %s21 = sphi 0, %s19
      %s22 = sphi 0, %s20
      %s23 = sphi 0, %s21
      %s33 = sphi 0, %s35
      %s36 = sphi 0, %s33
      %s37 = sphi 0, %s36
      %s53 = sphi 0, %s37
      %s61 = sphi 0, %s63
      %s64 = sphi 0, %s61
      %s65 = sphi 0, %s64
      %s81 = sphi 0, %s65
      %s87 = sphi 0, %s89
      %s90 = sphi 0, %s87
      %s91 = sphi 0, %s90
      %s107 = sphi 0, %s91
      %s113 = sphi 0, %s115
      %s116 = sphi 0, %s113
      %s117 = sphi 0, %s116
      %s133 = sphi 0, %s117
      %s139 = sphi 0, %s141
      %s142 = sphi 0, %s139
      %s143 = sphi 0, %s142
      %s159 = sphi 0, %s143
      %s165 = sphi 0, %s167
      %s168 = sphi 0, %s165
      %s169 = sphi 0, %s168
      %s185 = sphi 0, %s169
    $region4: #{attention_cnn_forward.10} parent=1 // loop_header_branch
      %14 = sbr.rel (%p12) target = $region8
    $region5: #{attention_cnn_forward.10} parent=1 // loop_body
      %s16 = ssub.s32 %s11, 1
      %s17 = ssub.s32 %s11, 2
      %s24 = sadd.s32 1, %s19
      %p25 = scmp.ge.s32.totalorder %s24, 2
      %s26 = scalar_select %p25, 0, %s24
      %s27 = sadd.s32 1, %s18
      %s28 = scalar_select %p25, %s27, %s18
      %p29 = scmp.ge.s32.totalorder %s28, 2
      %s30 = scalar_select %p29, 0, %s28
      %s31 = ssub.s32 %s19, %s26
      %p32 = scmp.eq.s32.totalorder %s31, 0
      %s34 = sadd.s32 %s33, 1
      %s35 = scalar_select %p32, %s33, %s34
      %p38 = pneg %p32
      %p39 = scmp.eq.s32.totalorder %s11, 3
      %p40 = por %p38, %p39
      %p41 = scmp.ne.s32.totalorder %s33, %s36
      %p42 = scmp.eq.s32.totalorder %s11, 0
      %p43 = por %p41, %p42
      %p44 = scmp.ne.s32.totalorder %s33, %s36
      %p45 = scmp.eq.s32.totalorder %s16, 3
      %p46 = por %p44, %p45
      %p47 = scmp.ne.s32.totalorder %s36, %s37
      %p48 = scmp.eq.s32.totalorder %s16, 0
      %p49 = por %p47, %p48
      %p50 = scmp.ne.s32.totalorder %s36, %s37
      %p51 = scmp.eq.s32.totalorder %s17, 3
      %p52 = por %p50, %p51
      %p54 = scmp.ne.s32.totalorder %s37, %s53
      %p55 = scmp.eq.s32.totalorder %s17, 0
      %p56 = por %p54, %p55
      %s57 = ssub.s32 %s19, %s26
      %s58 = ssub.s32 %s18, %s30
      %s59 = sor.u32 %s57, %s58
      %p60 = scmp.eq.s32.totalorder %s59, 0
      %s62 = sadd.s32 %s61, 1
      %s63 = scalar_select %p60, %s61, %s62
      %p66 = pneg %p60
      %p67 = scmp.eq.s32.totalorder %s11, 3
      %p68 = por %p66, %p67
      %p69 = scmp.ne.s32.totalorder %s61, %s64
      %p70 = scmp.eq.s32.totalorder %s11, 0
      %p71 = por %p69, %p70
      %p72 = scmp.ne.s32.totalorder %s61, %s64
      %p73 = scmp.eq.s32.totalorder %s16, 3
      %p74 = por %p72, %p73
      %p75 = scmp.ne.s32.totalorder %s64, %s65
      %p76 = scmp.eq.s32.totalorder %s16, 0
      %p77 = por %p75, %p76
      %p78 = scmp.ne.s32.totalorder %s64, %s65
      %p79 = scmp.eq.s32.totalorder %s17, 3
      %p80 = por %p78, %p79
      %p82 = scmp.ne.s32.totalorder %s65, %s81
      %p83 = scmp.eq.s32.totalorder %s17, 0
      %p84 = por %p82, %p83
      %s85 = ssub.s32 %s18, %s30
      %p86 = scmp.eq.s32.totalorder %s85, 0
      %s88 = sadd.s32 %s87, 1
      %s89 = scalar_select %p86, %s87, %s88
      %p92 = pneg %p86
      %p93 = scmp.eq.s32.totalorder %s11, 3
      %p94 = por %p92, %p93
      %p95 = scmp.ne.s32.totalorder %s87, %s90
      %p96 = scmp.eq.s32.totalorder %s11, 0
      %p97 = por %p95, %p96
      %p98 = scmp.ne.s32.totalorder %s87, %s90
      %p99 = scmp.eq.s32.totalorder %s16, 3
      %p100 = por %p98, %p99
      %p101 = scmp.ne.s32.totalorder %s90, %s91
      %p102 = scmp.eq.s32.totalorder %s16, 0
      %p103 = por %p101, %p102
      %p104 = scmp.ne.s32.totalorder %s90, %s91
      %p105 = scmp.eq.s32.totalorder %s17, 3
      %p106 = por %p104, %p105
      %p108 = scmp.ne.s32.totalorder %s91, %s107
      %p109 = scmp.eq.s32.totalorder %s17, 0
      %p110 = por %p108, %p109
      %s111 = ssub.s32 %s18, %s30
      %p112 = scmp.eq.s32.totalorder %s111, 0
      %s114 = sadd.s32 %s113, 1
      %s115 = scalar_select %p112, %s113, %s114
      %p118 = pneg %p112
      %p119 = scmp.eq.s32.totalorder %s11, 3
      %p120 = por %p118, %p119
      %p121 = scmp.ne.s32.totalorder %s113, %s116
      %p122 = scmp.eq.s32.totalorder %s11, 0
      %p123 = por %p121, %p122
      %p124 = scmp.ne.s32.totalorder %s113, %s116
      %p125 = scmp.eq.s32.totalorder %s16, 3
      %p126 = por %p124, %p125
      %p127 = scmp.ne.s32.totalorder %s116, %s117
      %p128 = scmp.eq.s32.totalorder %s16, 0
      %p129 = por %p127, %p128
      %p130 = scmp.ne.s32.totalorder %s116, %s117
      %p131 = scmp.eq.s32.totalorder %s17, 3
      %p132 = por %p130, %p131
      %p134 = scmp.ne.s32.totalorder %s117, %s133
      %p135 = scmp.eq.s32.totalorder %s17, 0
      %p136 = por %p134, %p135
      %s137 = ssub.s32 %s18, %s30
      %p138 = scmp.eq.s32.totalorder %s137, 0
      %s140 = sadd.s32 %s139, 1
      %s141 = scalar_select %p138, %s139, %s140
      %p144 = pneg %p138
      %p145 = scmp.eq.s32.totalorder %s11, 3
      %p146 = por %p144, %p145
      %p147 = scmp.ne.s32.totalorder %s139, %s142
      %p148 = scmp.eq.s32.totalorder %s11, 0
      %p149 = por %p147, %p148
      %p150 = scmp.ne.s32.totalorder %s139, %s142
      %p151 = scmp.eq.s32.totalorder %s16, 3
      %p152 = por %p150, %p151
      %p153 = scmp.ne.s32.totalorder %s142, %s143
      %p154 = scmp.eq.s32.totalorder %s16, 0
      %p155 = por %p153, %p154
      %p156 = scmp.ne.s32.totalorder %s142, %s143
      %p157 = scmp.eq.s32.totalorder %s17, 3
      %p158 = por %p156, %p157
      %p160 = scmp.ne.s32.totalorder %s143, %s159
      %p161 = scmp.eq.s32.totalorder %s17, 0
      %p162 = por %p160, %p161
      %s163 = ssub.s32 %s18, %s30
      %p164 = scmp.eq.s32.totalorder %s163, 0
      %s166 = sadd.s32 %s165, 1
      %s167 = scalar_select %p164, %s165, %s166
      %p170 = pneg %p164
      %p171 = scmp.eq.s32.totalorder %s11, 3
      %p172 = por %p170, %p171
      %p173 = scmp.ne.s32.totalorder %s165, %s168
      %p174 = scmp.eq.s32.totalorder %s11, 0
      %p175 = por %p173, %p174
      %p176 = scmp.ne.s32.totalorder %s165, %s168
      %p177 = scmp.eq.s32.totalorder %s16, 3
      %p178 = por %p176, %p177
      %p179 = scmp.ne.s32.totalorder %s168, %s169
      %p180 = scmp.eq.s32.totalorder %s16, 0
      %p181 = por %p179, %p180
      %p182 = scmp.ne.s32.totalorder %s168, %s169
      %p183 = scmp.eq.s32.totalorder %s17, 3
      %p184 = por %p182, %p183
      %p186 = scmp.ne.s32.totalorder %s169, %s185
      %p187 = scmp.eq.s32.totalorder %s17, 0
      %p188 = por %p186, %p187
      %p189 = scmp.le.s32.totalorder 1, %s11
      %p190 = scmp.lt.s32.totalorder %s11, 5
      %p191 = pnand %p189, %p190
      %p192 = pneg %p191
      // Predicated region
      $region9: #{attention_cnn_forward.10} parent=5 // pred_check
        _
      $region10: #{attention_cnn_forward.10} parent=5 // pred_check_branch
        %194 = sbr.rel (%p191) target = $region12
      $region11: #{attention_cnn_forward.10} parent=5 // pred_region
        %s195 = ssub.s32 %s11, 1
      $region12: #{attention_cnn_forward.10} parent=5 // pred_fallthru
        _
      %p196 = scmp.lt.s32.totalorder %s11, 4
      // Predicated region
      $region13: #{attention_cnn_forward.10} parent=5 // pred_check
        %p197 = pneg %p196
      $region14: #{attention_cnn_forward.10} parent=5 // pred_check_branch
        %199 = sbr.rel (%p197) target = $region16
      $region15: #{attention_cnn_forward.10} parent=5 // pred_region
        // Predicated region
        $region17: #{attention_cnn_forward.10} parent=15 // pred_check
          %p200 = pneg %p43
        $region18: #{attention_cnn_forward.10} parent=15 // pred_check_branch
          %202 = sbr.rel (%p200) target = $region20
        $region19: #{attention_cnn_forward.10} parent=15 // pred_region
          %s203 = smul.u32 2, %s19
          %p204 = scmp.lt.s32.totalorder %s203, 3
          %s205 = scalar_select %p204, %s203, 3
          %s206 = smul.addr %s205, 2
          %s207 = scalar_lea.vmem %s0, %s206
          %s208 = smul.u32 2, %s19
        $region20: #{attention_cnn_forward.10} parent=15 // pred_fallthru
          _
        // Predicated region
        $region21: #{attention_cnn_forward.10} parent=15 // pred_check
          %p209 = pneg %p71
        $region22: #{attention_cnn_forward.10} parent=15 // pred_check_branch
          %211 = sbr.rel (%p209) target = $region24
        $region23: #{attention_cnn_forward.10} parent=15 // pred_region
          %s212 = sand.u32 %s61, 1
          %s213 = sand.u32 %s61, 1
          %s214 = smul.addr %s213, 256
          %s215 = scalar_lea.vmem [#allocation3], %s214
          %s216 = smul.u32 32, %s19
          %s217 = smul.u32 2, %s18
          %s218 = smul.addr %s216, 4
          %s219 = sadd.s32 %s217, %s218
          %s220 = smul.addr %s219, 4
          %s221 = scalar_lea.vmem %s1, %s220
          // Predicated region
          $region25: #{attention_cnn_forward.10} parent=23 // pred_check
            _
          $region26: #{attention_cnn_forward.10} parent=23 // pred_check_branch
            %223 = sbr.rel (0) target = $region28
          $region27: #{attention_cnn_forward.10} parent=23 // pred_region
            // Predicated region
            $region29: #{attention_cnn_forward.10} parent=27 // pred_check
              _
            $region30: #{attention_cnn_forward.10} parent=27 // pred_check_branch
              %225 = sbr.rel (0) target = $region32
            $region31: #{attention_cnn_forward.10} parent=27 // pred_region
              // Predicated region
              $region44: #{attention_cnn_forward.10} parent=31 // pred_check
                _
              $region45: #{attention_cnn_forward.10} parent=31 // pred_check_branch
                %303 = sbr.rel (0) target = $region47
              $region46: #{attention_cnn_forward.10} parent=31 // pred_region
                loop: start=0, step=1, limit=1
                $region48: #{attention_cnn_forward.10} parent=46 // loop_pre_header
                  _
                $region49: #{attention_cnn_forward.10} parent=46 // loop_header
                  %s305 = sphi 0, %s309
                  %p306 = scmp.ge.s32.totalorder %s305, 1
                  %s310 = sphi %s221, %s221
                  %s311 = sphi %s215, %s215
                $region50: #{attention_cnn_forward.10} parent=46 // loop_header_branch
                  %308 = sbr.rel (%p306) target = $region54
                $region51: #{attention_cnn_forward.10} parent=46 // loop_body
                  %v312 = vld [vmem:[%s310] sm:$0xff]
                  %313 = vst [vmem:[%s311] sm:$0xff] %v312
                  %v314 = vld [vmem:[%s310 + $0x10] sm:$0xff]
                  %315 = vst [vmem:[%s311 + $0x8] sm:$0xff] %v314
                  %v316 = vld [vmem:[%s310 + $0x20] sm:$0xff]
                  %317 = vst [vmem:[%s311 + $0x10] sm:$0xff] %v316
                  %v318 = vld [vmem:[%s310 + $0x30] sm:$0xff]
                  %319 = vst [vmem:[%s311 + $0x18] sm:$0xff] %v318
                  %v320 = vld [vmem:[%s310 + $0x40] sm:$0xff]
                  %321 = vst [vmem:[%s311 + $0x20] sm:$0xff] %v320
                  %v322 = vld [vmem:[%s310 + $0x50] sm:$0xff]
                  %323 = vst [vmem:[%s311 + $0x28] sm:$0xff] %v322
                  %v324 = vld [vmem:[%s310 + $0x60] sm:$0xff]
                  %325 = vst [vmem:[%s311 + $0x30] sm:$0xff] %v324
                  %v326 = vld [vmem:[%s310 + $0x70] sm:$0xff]
                  %327 = vst [vmem:[%s311 + $0x38] sm:$0xff] %v326
                  %v328 = vld [vmem:[%s310 + $0x80] sm:$0xff]
                  %329 = vst [vmem:[%s311 + $0x40] sm:$0xff] %v328
                  %v330 = vld [vmem:[%s310 + $0x90] sm:$0xff]
                  %331 = vst [vmem:[%s311 + $0x48] sm:$0xff] %v330
                  %v332 = vld [vmem:[%s310 + $0xa0] sm:$0xff]
                  %333 = vst [vmem:[%s311 + $0x50] sm:$0xff] %v332
                  %v334 = vld [vmem:[%s310 + $0xb0] sm:$0xff]
                  %335 = vst [vmem:[%s311 + $0x58] sm:$0xff] %v334
                  %v336 = vld [vmem:[%s310 + $0xc0] sm:$0xff]
                  %337 = vst [vmem:[%s311 + $0x60] sm:$0xff] %v336
                  %v338 = vld [vmem:[%s310 + $0xd0] sm:$0xff]
                  %339 = vst [vmem:[%s311 + $0x68] sm:$0xff] %v338
                  %v340 = vld [vmem:[%s310 + $0xe0] sm:$0xff]
                  %341 = vst [vmem:[%s311 + $0x70] sm:$0xff] %v340
                  %v342 = vld [vmem:[%s310 + $0xf0] sm:$0xff]
                  %343 = vst [vmem:[%s311 + $0x78] sm:$0xff] %v342
                  %v344 = vld [vmem:[%s310 + $0x100] sm:$0xff]
                  %345 = vst [vmem:[%s311 + $0x80] sm:$0xff] %v344
                  %v346 = vld [vmem:[%s310 + $0x110] sm:$0xff]
                  %347 = vst [vmem:[%s311 + $0x88] sm:$0xff] %v346
                  %v348 = vld [vmem:[%s310 + $0x120] sm:$0xff]
                  %349 = vst [vmem:[%s311 + $0x90] sm:$0xff] %v348
                  %v350 = vld [vmem:[%s310 + $0x130] sm:$0xff]
                  %351 = vst [vmem:[%s311 + $0x98] sm:$0xff] %v350
                  %v352 = vld [vmem:[%s310 + $0x140] sm:$0xff]
                  %353 = vst [vmem:[%s311 + $0xa0] sm:$0xff] %v352
                  %v354 = vld [vmem:[%s310 + $0x150] sm:$0xff]
                  %355 = vst [vmem:[%s311 + $0xa8] sm:$0xff] %v354
                  %v356 = vld [vmem:[%s310 + $0x160] sm:$0xff]
                  %357 = vst [vmem:[%s311 + $0xb0] sm:$0xff] %v356
                  %v358 = vld [vmem:[%s310 + $0x170] sm:$0xff]
                  %359 = vst [vmem:[%s311 + $0xb8] sm:$0xff] %v358
                  %v360 = vld [vmem:[%s310 + $0x180] sm:$0xff]
                  %361 = vst [vmem:[%s311 + $0xc0] sm:$0xff] %v360
                  %v362 = vld [vmem:[%s310 + $0x190] sm:$0xff]
                  %363 = vst [vmem:[%s311 + $0xc8] sm:$0xff] %v362
                  %v364 = vld [vmem:[%s310 + $0x1a0] sm:$0xff]
                  %365 = vst [vmem:[%s311 + $0xd0] sm:$0xff] %v364
                  %v366 = vld [vmem:[%s310 + $0x1b0] sm:$0xff]
                  %367 = vst [vmem:[%s311 + $0xd8] sm:$0xff] %v366
                  %v368 = vld [vmem:[%s310 + $0x1c0] sm:$0xff]
                  %369 = vst [vmem:[%s311 + $0xe0] sm:$0xff] %v368
                  %v370 = vld [vmem:[%s310 + $0x1d0] sm:$0xff]
                  %371 = vst [vmem:[%s311 + $0xe8] sm:$0xff] %v370
                  %v372 = vld [vmem:[%s310 + $0x1e0] sm:$0xff]
                  %373 = vst [vmem:[%s311 + $0xf0] sm:$0xff] %v372
                  %v374 = vld [vmem:[%s310 + $0x1f0] sm:$0xff]
                  %375 = vst [vmem:[%s311 + $0xf8] sm:$0xff] %v374
                $region52: #{attention_cnn_forward.10} parent=46 // loop_footer
                  %s309 = sadd.s32 1, %s305
                $region53: #{attention_cnn_forward.10} parent=46 // loop_footer_branch
                  %304 = sbr.rel target = $region49
                $region54: #{attention_cnn_forward.10} parent=46 // loop_exit
                  _
              $region47: #{attention_cnn_forward.10} parent=31 // pred_fallthru
                _
              // Predicated region
              $region55: #{attention_cnn_forward.10} parent=31 // pred_check
                _
              $region56: #{attention_cnn_forward.10} parent=31 // pred_check_branch
                %377 = sbr.rel target = $region58
              $region57: #{attention_cnn_forward.10} parent=31 // pred_region
                _
              $region58: #{attention_cnn_forward.10} parent=31 // pred_fallthru
                _
            $region32: #{attention_cnn_forward.10} parent=27 // pred_fallthru
              _
            // Predicated region
            $region33: #{attention_cnn_forward.10} parent=27 // pred_check
              _
            $region34: #{attention_cnn_forward.10} parent=27 // pred_check_branch
              %227 = sbr.rel target = $region36
            $region35: #{attention_cnn_forward.10} parent=27 // pred_region
              %s229 = ssub.s32 256, 1
              loop: start=0, step=1, limit=1
              $region37: #{attention_cnn_forward.10} parent=35 // loop_pre_header
                _
              $region38: #{attention_cnn_forward.10} parent=35 // loop_header
                %s231 = sphi 0, %s235
                %p232 = scmp.ge.s32.totalorder %s231, 1
                %s236 = sphi %s221, %s221
                %s237 = sphi %s215, %s215
              $region39: #{attention_cnn_forward.10} parent=35 // loop_header_branch
                %234 = sbr.rel (%p232) target = $region43
              $region40: #{attention_cnn_forward.10} parent=35 // loop_body
                %v238 = vld [vmem:[%s236] sm:%s229]
                %239 = vst [vmem:[%s237] sm:%s229] %v238
                %v240 = vld [vmem:[%s236 + $0x10] sm:%s229]
                %241 = vst [vmem:[%s237 + $0x8] sm:%s229] %v240
                %v242 = vld [vmem:[%s236 + $0x20] sm:%s229]
                %243 = vst [vmem:[%s237 + $0x10] sm:%s229] %v242
                %v244 = vld [vmem:[%s236 + $0x30] sm:%s229]
                %245 = vst [vmem:[%s237 + $0x18] sm:%s229] %v244
                %v246 = vld [vmem:[%s236 + $0x40] sm:%s229]
                %247 = vst [vmem:[%s237 + $0x20] sm:%s229] %v246
                %v248 = vld [vmem:[%s236 + $0x50] sm:%s229]
                %249 = vst [vmem:[%s237 + $0x28] sm:%s229] %v248
                %v250 = vld [vmem:[%s236 + $0x60] sm:%s229]
                %251 = vst [vmem:[%s237 + $0x30] sm:%s229] %v250
                %v252 = vld [vmem:[%s236 + $0x70] sm:%s229]
                %253 = vst [vmem:[%s237 + $0x38] sm:%s229] %v252
                %v254 = vld [vmem:[%s236 + $0x80] sm:%s229]
                %255 = vst [vmem:[%s237 + $0x40] sm:%s229] %v254
                %v256 = vld [vmem:[%s236 + $0x90] sm:%s229]
                %257 = vst [vmem:[%s237 + $0x48] sm:%s229] %v256
                %v258 = vld [vmem:[%s236 + $0xa0] sm:%s229]
                %259 = vst [vmem:[%s237 + $0x50] sm:%s229] %v258
                %v260 = vld [vmem:[%s236 + $0xb0] sm:%s229]
                %261 = vst [vmem:[%s237 + $0x58] sm:%s229] %v260
                %v262 = vld [vmem:[%s236 + $0xc0] sm:%s229]
                %263 = vst [vmem:[%s237 + $0x60] sm:%s229] %v262
                %v264 = vld [vmem:[%s236 + $0xd0] sm:%s229]
                %265 = vst [vmem:[%s237 + $0x68] sm:%s229] %v264
                %v266 = vld [vmem:[%s236 + $0xe0] sm:%s229]
                %267 = vst [vmem:[%s237 + $0x70] sm:%s229] %v266
                %v268 = vld [vmem:[%s236 + $0xf0] sm:%s229]
                %269 = vst [vmem:[%s237 + $0x78] sm:%s229] %v268
                %v270 = vld [vmem:[%s236 + $0x100] sm:%s229]
                %271 = vst [vmem:[%s237 + $0x80] sm:%s229] %v270
                %v272 = vld [vmem:[%s236 + $0x110] sm:%s229]
                %273 = vst [vmem:[%s237 + $0x88] sm:%s229] %v272
                %v274 = vld [vmem:[%s236 + $0x120] sm:%s229]
                %275 = vst [vmem:[%s237 + $0x90] sm:%s229] %v274
                %v276 = vld [vmem:[%s236 + $0x130] sm:%s229]
                %277 = vst [vmem:[%s237 + $0x98] sm:%s229] %v276
                %v278 = vld [vmem:[%s236 + $0x140] sm:%s229]
                %279 = vst [vmem:[%s237 + $0xa0] sm:%s229] %v278
                %v280 = vld [vmem:[%s236 + $0x150] sm:%s229]
                %281 = vst [vmem:[%s237 + $0xa8] sm:%s229] %v280
                %v282 = vld [vmem:[%s236 + $0x160] sm:%s229]
                %283 = vst [vmem:[%s237 + $0xb0] sm:%s229] %v282
                %v284 = vld [vmem:[%s236 + $0x170] sm:%s229]
                %285 = vst [vmem:[%s237 + $0xb8] sm:%s229] %v284
                %v286 = vld [vmem:[%s236 + $0x180] sm:%s229]
                %287 = vst [vmem:[%s237 + $0xc0] sm:%s229] %v286
                %v288 = vld [vmem:[%s236 + $0x190] sm:%s229]
                %289 = vst [vmem:[%s237 + $0xc8] sm:%s229] %v288
                %v290 = vld [vmem:[%s236 + $0x1a0] sm:%s229]
                %291 = vst [vmem:[%s237 + $0xd0] sm:%s229] %v290
                %v292 = vld [vmem:[%s236 + $0x1b0] sm:%s229]
                %293 = vst [vmem:[%s237 + $0xd8] sm:%s229] %v292
                %v294 = vld [vmem:[%s236 + $0x1c0] sm:%s229]
                %295 = vst [vmem:[%s237 + $0xe0] sm:%s229] %v294
                %v296 = vld [vmem:[%s236 + $0x1d0] sm:%s229]
                %297 = vst [vmem:[%s237 + $0xe8] sm:%s229] %v296
                %v298 = vld [vmem:[%s236 + $0x1e0] sm:%s229]
                %299 = vst [vmem:[%s237 + $0xf0] sm:%s229] %v298
                %v300 = vld [vmem:[%s236 + $0x1f0] sm:%s229]
                %301 = vst [vmem:[%s237 + $0xf8] sm:%s229] %v300
              $region41: #{attention_cnn_forward.10} parent=35 // loop_footer
                %s235 = sadd.s32 1, %s231
              $region42: #{attention_cnn_forward.10} parent=35 // loop_footer_branch
                %230 = sbr.rel target = $region38
              $region43: #{attention_cnn_forward.10} parent=35 // loop_exit
                _
            $region36: #{attention_cnn_forward.10} parent=27 // pred_fallthru
              _
          $region28: #{attention_cnn_forward.10} parent=23 // pred_fallthru
            _
          %378 = vnop
        $region24: #{attention_cnn_forward.10} parent=15 // pred_fallthru
          _
        // Predicated region
        $region59: #{attention_cnn_forward.10} parent=15 // pred_check
          %p379 = pneg %p97
        $region60: #{attention_cnn_forward.10} parent=15 // pred_check_branch
          %381 = sbr.rel (%p379) target = $region62
        $region61: #{attention_cnn_forward.10} parent=15 // pred_region
          %s382 = smul.u32 2, %s18
          %p383 = scmp.lt.s32.totalorder %s382, 3
          %s384 = scalar_select %p383, %s382, 3
          %s385 = scalar_lea.vmem %s2, %s384
          %s386 = smul.u32 2, %s18
        $region62: #{attention_cnn_forward.10} parent=15 // pred_fallthru
          _
        // Predicated region
        $region63: #{attention_cnn_forward.10} parent=15 // pred_check
          %p387 = pneg %p123
        $region64: #{attention_cnn_forward.10} parent=15 // pred_check_branch
          %389 = sbr.rel (%p387) target = $region66
        $region65: #{attention_cnn_forward.10} parent=15 // pred_region
          %s390 = smul.u32 2, %s18
          %p391 = scmp.lt.s32.totalorder %s390, 3
          %s392 = scalar_select %p391, %s390, 3
          %s393 = scalar_lea.vmem %s3, %s392
          %s394 = smul.u32 2, %s18
        $region66: #{attention_cnn_forward.10} parent=15 // pred_fallthru
          _
        // Predicated region
        $region67: #{attention_cnn_forward.10} parent=15 // pred_check
          %p395 = pneg %p149
        $region68: #{attention_cnn_forward.10} parent=15 // pred_check_branch
          %397 = sbr.rel (%p395) target = $region70
        $region69: #{attention_cnn_forward.10} parent=15 // pred_region
          %s398 = smul.u32 2, %s18
          %p399 = scmp.lt.s32.totalorder %s398, 3
          %s400 = scalar_select %p399, %s398, 3
          %s401 = smul.addr %s400, 2
          %s402 = scalar_lea.vmem %s4, %s401
          %s403 = smul.u32 2, %s18
        $region70: #{attention_cnn_forward.10} parent=15 // pred_fallthru
          _
      $region16: #{attention_cnn_forward.10} parent=5 // pred_fallthru
        _
      %p404 = scmp.le.s32.totalorder 1, %s11
      %p405 = scmp.lt.s32.totalorder %s11, 5
      %p406 = pnand %p404, %p405
      %p407 = pneg %p406
      // Predicated region
      $region71: #{attention_cnn_forward.10} parent=5 // pred_check
        _
      $region72: #{attention_cnn_forward.10} parent=5 // pred_check_branch
        %409 = sbr.rel (%p406) target = $region74
      $region73: #{attention_cnn_forward.10} parent=5 // pred_region
        %s410 = ssub.s32 %s11, 1
        %s411 = sand.u32 %s64, 1
        %s412 = sand.u32 %s64, 1
        %s413 = smul.addr %s412, 256
        %s414 = scalar_lea.vmem [#allocation3], %s413
        // Predicated region
        $region75: #{attention_cnn_forward.10} parent=73 // pred_check
          %p415 = pneg %p77
        $region76: #{attention_cnn_forward.10} parent=73 // pred_check_branch
          %417 = sbr.rel (%p415) target = $region78
        $region77: #{attention_cnn_forward.10} parent=73 // pred_region
          _
        $region78: #{attention_cnn_forward.10} parent=73 // pred_fallthru
          _
        %s418 = smul.u32 2, %s21
        %p419 = scmp.lt.s32.totalorder %s418, 3
        %s420 = scalar_select %p419, %s418, 3
        %s421 = smul.addr %s420, 2
        %s422 = scalar_lea.vmem %s0, %s421
        %p423 = pneg %p49
        %p424 = pneg %p46
        %s425 = sand.u32 %s64, 1
        %s426 = sand.u32 %s64, 1
        %s427 = smul.addr %s426, 256
        %s428 = scalar_lea.vmem [#allocation3], %s427
        %p429 = pneg %p77
        %p430 = pneg %p74
        %s431 = smul.u32 2, %s20
        %p432 = scmp.lt.s32.totalorder %s431, 3
        %s433 = scalar_select %p432, %s431, 3
        %s434 = scalar_lea.vmem %s2, %s433
        %p435 = pneg %p103
        %p436 = pneg %p100
        %s437 = smul.u32 2, %s20
        %p438 = scmp.lt.s32.totalorder %s437, 3
        %s439 = scalar_select %p438, %s437, 3
        %s440 = scalar_lea.vmem %s3, %s439
        %p441 = pneg %p129
        %p442 = pneg %p126
        %s443 = smul.u32 2, %s20
        %p444 = scmp.lt.s32.totalorder %s443, 3
        %s445 = scalar_select %p444, %s443, 3
        %s446 = smul.addr %s445, 2
        %s447 = scalar_lea.vmem %s4, %s446
        %p448 = pneg %p155
        %p449 = pneg %p152
        %p450 = pneg %p181
        %p451 = pneg %p178
        %s452 = smul.u32 2, %s20
        %p453 = scmp.lt.s32.totalorder %s452, 3
        %s454 = scalar_select %p453, %s452, 3
        %s455 = smul.addr %s454, 2
        %s456 = scalar_lea.vmem %s5, %s455
        %s457 = smul.u32 2, %s21
        %p458 = scmp.lt.s32.totalorder %s457, 3
        %s459 = scalar_select %p458, %s457, 3
        %s460 = smul.addr %s459, 2
        %s461 = scalar_lea.vmem %s0, %s460
        %s462 = smul.u32 2, %s21
        %s463 = smul.u32 32, %s21
        %s464 = smul.u32 2, %s20
        %s465 = smul.u32 2, %s20
        %p466 = scmp.lt.s32.totalorder %s465, 3
        %s467 = scalar_select %p466, %s465, 3
        %s468 = scalar_lea.vmem %s2, %s467
        %s469 = smul.u32 2, %s20
        %s470 = smul.u32 2, %s20
        %p471 = scmp.lt.s32.totalorder %s470, 3
        %s472 = scalar_select %p471, %s470, 3
        %s473 = scalar_lea.vmem %s3, %s472
        %s474 = smul.u32 2, %s20
        %s475 = smul.u32 2, %s20
        %p476 = scmp.lt.s32.totalorder %s475, 3
        %s477 = scalar_select %p476, %s475, 3
        %s478 = smul.addr %s477, 2
        %s479 = scalar_lea.vmem %s4, %s478
        %s480 = smul.u32 2, %s20
        %s481 = smul.u32 2, %s20
        %p482 = scmp.lt.s32.totalorder %s481, 3
        %s483 = scalar_select %p482, %s481, 3
        %s484 = smul.addr %s483, 2
        %s485 = scalar_lea.vmem %s5, %s484
        %s486 = smul.u32 2, %s20
        %p487 = scmp.eq.s32.totalorder %s21, 0
        // Predicated region
        $region79: #{attention_cnn_forward.10} parent=73 // pred_check
          %p488 = pneg %p487
        $region80: #{attention_cnn_forward.10} parent=73 // pred_check_branch
          %490 = sbr.rel (%p488) target = $region82
        $region81: #{attention_cnn_forward.10} parent=73 // pred_region
          %491 = vst [vmem:[#allocation2] sm:$0xf] 0.0
        $region82: #{attention_cnn_forward.10} parent=73 // pred_fallthru
          _
        %v492 = vld [vmem:[#allocation2] sm:$0xf]
        %v493 = vld [vmem:[%s461] sm:$0xf]
        %v496 = vunpack.c.l.s4 1983009808
        %v497 = vunpack.c.0.s8 %v496
        %v498 = vlaneseq
        %v499 = vshrl.u32 %v498, 7
        %v500 = vsub.s32 %v497, %v499
        %v501 = vrot.slane %v493, %v500
        %v502 = vcombine.high %v501, %v501
        %v505 = vpack.c.bf16 %v501, %v501
        %v506 = vpack.c.bf16 %v502, %v502
        %v507 = vld [vmem:[%s414] sm:$0xff]
        %v508 = vld [vmem:[%s414 + $0x8] sm:$0xff]
        %v509 = vld [vmem:[%s414 + $0x10] sm:$0xff]
        %v510 = vld [vmem:[%s414 + $0x18] sm:$0xff]
        %v511 = vld [vmem:[%s414 + $0x20] sm:$0xff]
        %v512 = vld [vmem:[%s414 + $0x28] sm:$0xff]
        %v513 = vld [vmem:[%s414 + $0x30] sm:$0xff]
        %v514 = vld [vmem:[%s414 + $0x38] sm:$0xff]
        %v515 = vld [vmem:[%s414 + $0x40] sm:$0xff]
        %v516 = vld [vmem:[%s414 + $0x48] sm:$0xff]
        %v517 = vld [vmem:[%s414 + $0x50] sm:$0xff]
        %v518 = vld [vmem:[%s414 + $0x58] sm:$0xff]
        %v519 = vld [vmem:[%s414 + $0x60] sm:$0xff]
        %v520 = vld [vmem:[%s414 + $0x68] sm:$0xff]
        %v521 = vld [vmem:[%s414 + $0x70] sm:$0xff]
        %v522 = vld [vmem:[%s414 + $0x78] sm:$0xff]
        %v523 = vld [vmem:[%s414 + $0x80] sm:$0xff]
        %v524 = vld [vmem:[%s414 + $0x88] sm:$0xff]
        %v525 = vld [vmem:[%s414 + $0x90] sm:$0xff]
        %v526 = vld [vmem:[%s414 + $0x98] sm:$0xff]
        %v527 = vld [vmem:[%s414 + $0xa0] sm:$0xff]
        %v528 = vld [vmem:[%s414 + $0xa8] sm:$0xff]
        %v529 = vld [vmem:[%s414 + $0xb0] sm:$0xff]
        %v530 = vld [vmem:[%s414 + $0xb8] sm:$0xff]
        %v531 = vld [vmem:[%s414 + $0xc0] sm:$0xff]
        %v532 = vld [vmem:[%s414 + $0xc8] sm:$0xff]
        %v533 = vld [vmem:[%s414 + $0xd0] sm:$0xff]
        %v534 = vld [vmem:[%s414 + $0xd8] sm:$0xff]
        %v535 = vld [vmem:[%s414 + $0xe0] sm:$0xff]
        %v536 = vld [vmem:[%s414 + $0xe8] sm:$0xff]
        %v537 = vld [vmem:[%s414 + $0xf0] sm:$0xff]
        %v538 = vld [vmem:[%s414 + $0xf8] sm:$0xff]
        %v571 = vunpack.c.l.b16 %v507
        %v572 = vunpack.c.h.b16 %v507
        %v573 = vunpack.c.l.b16 %v508
        %v574 = vunpack.c.h.b16 %v508
        %v575 = vunpack.c.l.b16 %v509
        %v576 = vunpack.c.h.b16 %v509
        %v577 = vunpack.c.l.b16 %v510
        %v578 = vunpack.c.h.b16 %v510
        %v579 = vunpack.c.l.b16 %v511
        %v580 = vunpack.c.h.b16 %v511
        %v581 = vunpack.c.l.b16 %v512
        %v582 = vunpack.c.h.b16 %v512
        %v583 = vunpack.c.l.b16 %v513
        %v584 = vunpack.c.h.b16 %v513
        %v585 = vunpack.c.l.b16 %v514
        %v586 = vunpack.c.h.b16 %v514
        %v587 = vunpack.c.l.b16 %v515
        %v588 = vunpack.c.h.b16 %v515
        %v589 = vunpack.c.l.b16 %v516
        %v590 = vunpack.c.h.b16 %v516
        %v591 = vunpack.c.l.b16 %v517
        %v592 = vunpack.c.h.b16 %v517
        %v593 = vunpack.c.l.b16 %v518
        %v594 = vunpack.c.h.b16 %v518
        %v595 = vunpack.c.l.b16 %v519
        %v596 = vunpack.c.h.b16 %v519
        %v597 = vunpack.c.l.b16 %v520
        %v598 = vunpack.c.h.b16 %v520
        %v599 = vunpack.c.l.b16 %v521
        %v600 = vunpack.c.h.b16 %v521
        %v601 = vunpack.c.l.b16 %v522
        %v602 = vunpack.c.h.b16 %v522
        %v603 = vunpack.c.l.b16 %v523
        %v604 = vunpack.c.h.b16 %v523
        %v605 = vunpack.c.l.b16 %v524
        %v606 = vunpack.c.h.b16 %v524
        %v607 = vunpack.c.l.b16 %v525
        %v608 = vunpack.c.h.b16 %v525
        %v609 = vunpack.c.l.b16 %v526
        %v610 = vunpack.c.h.b16 %v526
        %v611 = vunpack.c.l.b16 %v527
        %v612 = vunpack.c.h.b16 %v527
        %v613 = vunpack.c.l.b16 %v528
        %v614 = vunpack.c.h.b16 %v528
        %v615 = vunpack.c.l.b16 %v529
        %v616 = vunpack.c.h.b16 %v529
        %v617 = vunpack.c.l.b16 %v530
        %v618 = vunpack.c.h.b16 %v530
        %v619 = vunpack.c.l.b16 %v531
        %v620 = vunpack.c.h.b16 %v531
        %v621 = vunpack.c.l.b16 %v532
        %v622 = vunpack.c.h.b16 %v532
        %v623 = vunpack.c.l.b16 %v533
        %v624 = vunpack.c.h.b16 %v533
        %v625 = vunpack.c.l.b16 %v534
        %v626 = vunpack.c.h.b16 %v534
        %v627 = vunpack.c.l.b16 %v535
        %v628 = vunpack.c.h.b16 %v535
        %v629 = vunpack.c.l.b16 %v536
        %v630 = vunpack.c.h.b16 %v536
        %v631 = vunpack.c.l.b16 %v537
        %v632 = vunpack.c.h.b16 %v537
        %v633 = vunpack.c.l.b16 %v538
        %v634 = vunpack.c.h.b16 %v538
        %v635 = vpack.c.b16 %v573, %v571
        %v636 = vpack.c.b16 %v574, %v572
        %v637 = vpack.c.b16 %v577, %v575
        %v638 = vpack.c.b16 %v578, %v576
        %v639 = vpack.c.b16 %v581, %v579
        %v640 = vpack.c.b16 %v582, %v580
        %v641 = vpack.c.b16 %v585, %v583
        %v642 = vpack.c.b16 %v586, %v584
        %v643 = vpack.c.b16 %v589, %v587
        %v644 = vpack.c.b16 %v590, %v588
        %v645 = vpack.c.b16 %v593, %v591
        %v646 = vpack.c.b16 %v594, %v592
        %v647 = vpack.c.b16 %v597, %v595
        %v648 = vpack.c.b16 %v598, %v596
        %v649 = vpack.c.b16 %v601, %v599
        %v650 = vpack.c.b16 %v602, %v600
        %v651 = vpack.c.b16 %v605, %v603
        %v652 = vpack.c.b16 %v606, %v604
        %v653 = vpack.c.b16 %v609, %v607
        %v654 = vpack.c.b16 %v610, %v608
        %v655 = vpack.c.b16 %v613, %v611
        %v656 = vpack.c.b16 %v614, %v612
        %v657 = vpack.c.b16 %v617, %v615
        %v658 = vpack.c.b16 %v618, %v616
        %v659 = vpack.c.b16 %v621, %v619
        %v660 = vpack.c.b16 %v622, %v620
        %v661 = vpack.c.b16 %v625, %v623
        %v662 = vpack.c.b16 %v626, %v624
        %v663 = vpack.c.b16 %v629, %v627
        %v664 = vpack.c.b16 %v630, %v628
        %v665 = vpack.c.b16 %v633, %v631
        %v666 = vpack.c.b16 %v634, %v632
        %699 = vmatprep.subr.bf16.mxu0 %v650
        %700 = vmatpush1.bf16.msra.mxu0 %v649
        %701 = vmatprep.subr.bf16.mxu0 %v648
        %702 = vmatpush1.bf16.msra.mxu0 %v647
        %703 = vmatprep.subr.bf16.mxu0 %v646
        %704 = vmatpush1.bf16.msra.mxu0 %v645
        %705 = vmatprep.subr.bf16.mxu0 %v644
        %706 = vmatpush1.bf16.msra.mxu0 %v643
        %707 = vmatprep.subr.bf16.mxu0 %v642
        %708 = vmatpush1.bf16.msra.mxu0 %v641
        %709 = vmatprep.subr.bf16.mxu0 %v640
        %710 = vmatpush1.bf16.msra.mxu0 %v639
        %711 = vmatprep.subr.bf16.mxu0 %v638
        %712 = vmatpush1.bf16.msra.mxu0 %v637
        %713 = vmatprep.subr.bf16.mxu0 %v636
        %714 = vmatpush1.bf16.msra.mxu0 %v635
        %715 = vmatprep.subr.bf16.mxu0 %v666
        %716 = vmatpush2.bf16.msra.mxu0 %v665
        %717 = vmatprep.subr.bf16.mxu0 %v664
        %718 = vmatpush2.bf16.msra.mxu0 %v663
        %719 = vmatprep.subr.bf16.mxu0 %v662
        %720 = vmatpush2.bf16.msra.mxu0 %v661
        %721 = vmatprep.subr.bf16.mxu0 %v660
        %722 = vmatpush2.bf16.msra.mxu0 %v659
        %723 = vmatprep.subr.bf16.mxu0 %v658
        %724 = vmatpush2.bf16.msra.mxu0 %v657
        %725 = vmatprep.subr.bf16.mxu0 %v656
        %726 = vmatpush2.bf16.msra.mxu0 %v655
        %727 = vmatprep.subr.bf16.mxu0 %v654
        %728 = vmatpush2.bf16.msra.mxu0 %v653
        %729 = vmatprep.subr.bf16.mxu0 %v652
        %730 = vmatpush2.bf16.msra.mxu0 %v651
        %731 = vmatprep.mubr.bf16.mxu0 %v506
        %732 = vmatmul.mubr.bf16.gmra.mxu0 %v505
        %v733 = vpop.f32.mrf.mxu0
        %v734 = vadd.f32 0.0, %v733
        %v735 = vpop.f32.mrf.mxu0
        %v736 = vadd.f32 0.0, %v735
        %v737 = vpop.f32.mrf.mxu0
        %v738 = vpop.f32.mrf.mxu0
        %739 = vdwg.mxu0
        %v742 = vcombine.low %v734, %v736
        %v744 = vunpack.c.l.s4 1983009808
        %v745 = vunpack.c.0.s8 %v744
        %v746 = vlaneseq
        %v747 = vshrl.u32 %v746, 7
        %v748 = vsub.s32 %v745, %v747
        %v749 = vrot.slane %v742, %v748
        %v751 = vadd.f32 %v492, %v749
        %752 = vst [vmem:[#allocation2] sm:$0xf] %v751
        %p753 = scmp.eq.s32.totalorder %s21, 1
        // Predicated region
        $region83: #{attention_cnn_forward.10} parent=73 // pred_check
          %p754 = pneg %p753
        $region84: #{attention_cnn_forward.10} parent=73 // pred_check_branch
          %756 = sbr.rel (%p754) target = $region86
        $region85: #{attention_cnn_forward.10} parent=73 // pred_region
          %v757 = vld [vmem:[#allocation2] sm:$0xf]
          %v758 = vld [vmem:[%s468] sm:$0x3]
          %v760 = vlaneseq
          %v761 = vshrl.u32 %v760, 7
          %v762 = vsub.s32 0, %v761
          %v763 = vrot.slane %v758, %v762
          %v764 = vlaneseq
          %v765 = vshrl.u32 %v764, 7
          %v766 = vsub.s32 1, %v765
          %v767 = vrot.slane %v758, %v766
          %v768 = vcombine.low %v763, %v767
          %v770 = vunpack.c.l.s4 1983009808
          %v771 = vunpack.c.0.s8 %v770
          %v772 = vlaneseq
          %v773 = vshrl.u32 %v772, 7
          %v774 = vsub.s32 %v771, %v773
          %v775 = vrot.slane %v768, %v774
          %v777 = vadd.f32 %v757, %v775
          %v778 = vmax.f32 %v777, 0.0
          %v779 = vld [vmem:[%s473] sm:$0x3]
          %v781 = vlaneseq
          %v782 = vshrl.u32 %v781, 7
          %v783 = vsub.s32 0, %v782
          %v784 = vrot.slane %v779, %v783
          %v785 = vlaneseq
          %v786 = vshrl.u32 %v785, 7
          %v787 = vsub.s32 1, %v786
          %v788 = vrot.slane %v779, %v787
          %v793 = vunpack.c.l.s4 1983009808
          %v794 = vunpack.c.0.s8 %v793
          %v795 = vlaneseq
          %v796 = vshrl.u32 %v795, 7
          %v797 = vsub.s32 %v794, %v796
          %v798 = vrot.slane %v778, %v797
          %v799 = vcombine.high %v798, %v798
          %v802 = vmul.f32 %v784, %v798
          %v803 = vmul.f32 %v788, %v799
          %v804 = vsub.f32 0.0, %v802
          %v805 = vsub.f32 0.0, %v803
          %v806 = vmul.f32 %v804, 1.442695
          %v807 = vpow.pop %v806
          %v808 = vmul.f32 %v805, 1.442695
          %v809 = vpow.pop %v808
          %v810 = vadd.f32 %v807, 1.0
          %v811 = vadd.f32 %v809, 1.0
          %v812 = vrcp.pop %v810
          %v813 = vmul.f32 1.0, %v812
          %v814 = vrcp.pop %v811
          %v815 = vmul.f32 1.0, %v814
          %v816 = vld [vmem:[%s479] sm:$0xf]
          %v819 = vunpack.c.l.s4 1983009808
          %v820 = vunpack.c.0.s8 %v819
          %v821 = vlaneseq
          %v822 = vshrl.u32 %v821, 7
          %v823 = vsub.s32 %v820, %v822
          %v824 = vrot.slane %v816, %v823
          %v825 = vcombine.high %v824, %v824
          %v828 = vmul.f32 %v813, %v824
          %v829 = vmul.f32 %v815, %v825
          %v832 = vcombine.low %v828, %v829
          %v834 = vunpack.c.l.s4 1983009808
          %v835 = vunpack.c.0.s8 %v834
          %v836 = vlaneseq
          %v837 = vshrl.u32 %v836, 7
          %v838 = vsub.s32 %v835, %v837
          %v839 = vrot.slane %v832, %v838
          %841 = vst [vmem:[%s485] sm:$0xf] %v839
        $region86: #{attention_cnn_forward.10} parent=73 // pred_fallthru
          _
        %s842 = smul.u32 2, %s20
        %p843 = scmp.lt.s32.totalorder %s842, 3
        %s844 = scalar_select %p843, %s842, 3
        %s845 = smul.addr %s844, 2
        %s846 = scalar_lea.vmem %s5, %s845
        // Predicated region
        $region87: #{attention_cnn_forward.10} parent=73 // pred_check
          %p847 = pneg %p178
        $region88: #{attention_cnn_forward.10} parent=73 // pred_check_branch
          %849 = sbr.rel (%p847) target = $region90
        $region89: #{attention_cnn_forward.10} parent=73 // pred_region
          %s850 = smul.u32 2, %s20
        $region90: #{attention_cnn_forward.10} parent=73 // pred_fallthru
          _
      $region74: #{attention_cnn_forward.10} parent=5 // pred_fallthru
        _
      %p851 = scmp.le.s32.totalorder 2, %s11
      // Predicated region
      $region91: #{attention_cnn_forward.10} parent=5 // pred_check
        %p852 = pneg %p851
      $region92: #{attention_cnn_forward.10} parent=5 // pred_check_branch
        %854 = sbr.rel (%p852) target = $region94
      $region93: #{attention_cnn_forward.10} parent=5 // pred_region
        %s855 = ssub.s32 %s11, 2
        // Predicated region
        $region95: #{attention_cnn_forward.10} parent=93 // pred_check
          %p856 = pneg %p184
        $region96: #{attention_cnn_forward.10} parent=93 // pred_check_branch
          %858 = sbr.rel (%p856) target = $region98
        $region97: #{attention_cnn_forward.10} parent=93 // pred_region
          %s859 = smul.u32 2, %s22
          %p860 = scmp.lt.s32.totalorder %s859, 3
          %s861 = scalar_select %p860, %s859, 3
          %s862 = smul.addr %s861, 2
          %s863 = scalar_lea.vmem %s5, %s862
        $region98: #{attention_cnn_forward.10} parent=93 // pred_fallthru
          _
      $region94: #{attention_cnn_forward.10} parent=5 // pred_fallthru
        _
    $region6: #{attention_cnn_forward.10} parent=1 // loop_footer
      %s15 = sadd.s32 1, %s11
    $region7: #{attention_cnn_forward.10} parent=1 // loop_footer_branch
      %10 = sbr.rel target = $region3
    $region8: #{attention_cnn_forward.10} parent=1 // loop_exit
      _

// kernel: attention_cnn_forward.11
$region0: #{attention_cnn_forward.11}
  #allocation0 [shape = 'u32[]', space=smem, size = 0x4, offset = 0x4, fixed_abs, tag = 'smem constant byte address 0x4 - core index']
  #allocation1 [shape = 'u32[144,128]{1,0:T(1,128)}', space=vmem, size = 0x12000, scoped, tag = 'internal scratch']
  #allocation2 [shape = 'f32[2,256]{1,0:T(2,128)}', space=vmem, size = 0x800, scoped, tag = 'scratch operand']
  %s0 = inlined_call_operand.vmem [shape: f32[2,512], index: 0, kind: input, shape index: {}]
  %s1 = inlined_call_operand.vmem [shape: bf16[512,256], index: 1, kind: input, shape index: {}]
  %s2 = inlined_call_operand.vmem [shape: f32[1,256], index: 2, kind: input, shape index: {}]
  %s3 = inlined_call_operand.vmem [shape: f32[256,10], index: 3, kind: input, shape index: {}]
  %s4 = inlined_call_operand.vmem [shape: f32[1,10], index: 4, kind: input, shape index: {}]
  %s5 = inlined_call_operand.hbm [shape: f32[2,10], index: 5, kind: output, shape index: {}]
  %s6 = sld [smem:[#allocation0]]
  $region61: #{attention_cnn_forward.11} parent=0
    _
  %s8 = ssub.s32 1, %s6
  %s9 = scalar_select 0, %s8, %s6
  $region1: #{attention_cnn_forward.11} parent=0
    #allocation3 [shape = 'u8[1024]{0}', space=vmem, size = 0x400, scoped, tag = 'output window, operand 0, single buffered']
    #allocation4 [shape = 's32[2]{0}', space=sflag, size = 0x8, scoped, tag = 'scoped memory for attention_cnn_forward.11']
    %10 = vsyncpa [#allocation4], 0
    loop: start=0, step=1, limit=4
    $region2: #{attention_cnn_forward.11} parent=1 // loop_pre_header
      _
    $region3: #{attention_cnn_forward.11} parent=1 // loop_header
      %s12 = sphi 0, %s16
      %p13 = scmp.ge.s32.totalorder %s12, 4
      %s22 = sphi 0, %s24
      %s25 = sphi 0, %s22
      %s26 = sphi 0, %s25
      %s42 = sphi 0, %s26
      %s48 = sphi 0, %s50
      %s51 = sphi 0, %s48
      %s52 = sphi 0, %s51
      %s68 = sphi 0, %s52
      %s72 = sphi 0, %s72
      %s74 = sphi 0, %s72
      %s75 = sphi 0, %s74
      %s89 = sphi 0, %s75
      %s93 = sphi 0, %s93
      %s95 = sphi 0, %s93
      %s96 = sphi 0, %s95
      %s110 = sphi 0, %s96
      %s114 = sphi 0, %s114
      %s116 = sphi 0, %s114
      %s117 = sphi 0, %s116
      %s131 = sphi 0, %s117
      %s135 = sphi 0, %s135
      %s137 = sphi 0, %s135
      %s138 = sphi 0, %s137
      %s152 = sphi 0, %s138
    $region4: #{attention_cnn_forward.11} parent=1 // loop_header_branch
      %15 = sbr.rel (%p13) target = $region8
    $region5: #{attention_cnn_forward.11} parent=1 // loop_body
      %s17 = ssub.s32 %s12, 1
      %s18 = ssub.s32 %s12, 2
      %s19 = sadd.s32 %s12, 1
      %s20 = ssub.s32 %s12, %s19
      %p21 = scmp.eq.s32.totalorder %s20, 0
      %s23 = sadd.s32 %s22, 1
      %s24 = scalar_select %p21, %s22, %s23
      %p27 = pneg %p21
      %p28 = scmp.eq.s32.totalorder %s12, 1
      %p29 = por %p27, %p28
      %p30 = scmp.ne.s32.totalorder %s22, %s25
      %p31 = scmp.eq.s32.totalorder %s12, 0
      %p32 = por %p30, %p31
      %p33 = scmp.ne.s32.totalorder %s22, %s25
      %p34 = scmp.eq.s32.totalorder %s17, 1
      %p35 = por %p33, %p34
      %p36 = scmp.ne.s32.totalorder %s25, %s26
      %p37 = scmp.eq.s32.totalorder %s17, 0
      %p38 = por %p36, %p37
      %p39 = scmp.ne.s32.totalorder %s25, %s26
      %p40 = scmp.eq.s32.totalorder %s18, 1
      %p41 = por %p39, %p40
      %p43 = scmp.ne.s32.totalorder %s26, %s42
      %p44 = scmp.eq.s32.totalorder %s18, 0
      %p45 = por %p43, %p44
      %s46 = ssub.s32 %s12, %s19
      %p47 = scmp.eq.s32.totalorder %s46, 0
      %s49 = sadd.s32 %s48, 1
      %s50 = scalar_select %p47, %s48, %s49
      %p53 = pneg %p47
      %p54 = scmp.eq.s32.totalorder %s12, 1
      %p55 = por %p53, %p54
      %p56 = scmp.ne.s32.totalorder %s48, %s51
      %p57 = scmp.eq.s32.totalorder %s12, 0
      %p58 = por %p56, %p57
      %p59 = scmp.ne.s32.totalorder %s48, %s51
      %p60 = scmp.eq.s32.totalorder %s17, 1
      %p61 = por %p59, %p60
      %p62 = scmp.ne.s32.totalorder %s51, %s52
      %p63 = scmp.eq.s32.totalorder %s17, 0
      %p64 = por %p62, %p63
      %p65 = scmp.ne.s32.totalorder %s51, %s52
      %p66 = scmp.eq.s32.totalorder %s18, 1
      %p67 = por %p65, %p66
      %p69 = scmp.ne.s32.totalorder %s52, %s68
      %p70 = scmp.eq.s32.totalorder %s18, 0
      %p71 = por %p69, %p70
      %s73 = sadd.s32 %s72, 1
      %p76 = scmp.eq.s32.totalorder %s12, 1
      %p77 = scmp.ne.s32.totalorder %s72, %s74
      %p78 = scmp.eq.s32.totalorder %s12, 0
      %p79 = por %p77, %p78
      %p80 = scmp.ne.s32.totalorder %s72, %s74
      %p81 = scmp.eq.s32.totalorder %s17, 1
      %p82 = por %p80, %p81
      %p83 = scmp.ne.s32.totalorder %s74, %s75
      %p84 = scmp.eq.s32.totalorder %s17, 0
      %p85 = por %p83, %p84
      %p86 = scmp.ne.s32.totalorder %s74, %s75
      %p87 = scmp.eq.s32.totalorder %s18, 1
      %p88 = por %p86, %p87
      %p90 = scmp.ne.s32.totalorder %s75, %s89
      %p91 = scmp.eq.s32.totalorder %s18, 0
      %p92 = por %p90, %p91
      %s94 = sadd.s32 %s93, 1
      %p97 = scmp.eq.s32.totalorder %s12, 1
      %p98 = scmp.ne.s32.totalorder %s93, %s95
      %p99 = scmp.eq.s32.totalorder %s12, 0
      %p100 = por %p98, %p99
      %p101 = scmp.ne.s32.totalorder %s93, %s95
      %p102 = scmp.eq.s32.totalorder %s17, 1
      %p103 = por %p101, %p102
      %p104 = scmp.ne.s32.totalorder %s95, %s96
      %p105 = scmp.eq.s32.totalorder %s17, 0
      %p106 = por %p104, %p105
      %p107 = scmp.ne.s32.totalorder %s95, %s96
      %p108 = scmp.eq.s32.totalorder %s18, 1
      %p109 = por %p107, %p108
      %p111 = scmp.ne.s32.totalorder %s96, %s110
      %p112 = scmp.eq.s32.totalorder %s18, 0
      %p113 = por %p111, %p112
      %s115 = sadd.s32 %s114, 1
      %p118 = scmp.eq.s32.totalorder %s12, 1
      %p119 = scmp.ne.s32.totalorder %s114, %s116
      %p120 = scmp.eq.s32.totalorder %s12, 0
      %p121 = por %p119, %p120
      %p122 = scmp.ne.s32.totalorder %s114, %s116
      %p123 = scmp.eq.s32.totalorder %s17, 1
      %p124 = por %p122, %p123
      %p125 = scmp.ne.s32.totalorder %s116, %s117
      %p126 = scmp.eq.s32.totalorder %s17, 0
      %p127 = por %p125, %p126
      %p128 = scmp.ne.s32.totalorder %s116, %s117
      %p129 = scmp.eq.s32.totalorder %s18, 1
      %p130 = por %p128, %p129
      %p132 = scmp.ne.s32.totalorder %s117, %s131
      %p133 = scmp.eq.s32.totalorder %s18, 0
      %p134 = por %p132, %p133
      %s136 = sadd.s32 %s135, 1
      %p139 = scmp.eq.s32.totalorder %s12, 1
      %p140 = scmp.ne.s32.totalorder %s135, %s137
      %p141 = scmp.eq.s32.totalorder %s12, 0
      %p142 = por %p140, %p141
      %p143 = scmp.ne.s32.totalorder %s135, %s137
      %p144 = scmp.eq.s32.totalorder %s17, 1
      %p145 = por %p143, %p144
      %p146 = scmp.ne.s32.totalorder %s137, %s138
      %p147 = scmp.eq.s32.totalorder %s17, 0
      %p148 = por %p146, %p147
      %p149 = scmp.ne.s32.totalorder %s137, %s138
      %p150 = scmp.eq.s32.totalorder %s18, 1
      %p151 = por %p149, %p150
      %p153 = scmp.ne.s32.totalorder %s138, %s152
      %p154 = scmp.eq.s32.totalorder %s18, 0
      %p155 = por %p153, %p154
      %p156 = scmp.le.s32.totalorder 1, %s12
      %p157 = scmp.lt.s32.totalorder %s12, 3
      %p158 = pnand %p156, %p157
      %p159 = pneg %p158
      // Predicated region
      $region9: #{attention_cnn_forward.11} parent=5 // pred_check
        _
      $region10: #{attention_cnn_forward.11} parent=5 // pred_check_branch
        %161 = sbr.rel (%p158) target = $region12
      $region11: #{attention_cnn_forward.11} parent=5 // pred_region
        %s162 = ssub.s32 %s12, 1
        // Predicated region
        $region13: #{attention_cnn_forward.11} parent=11 // pred_check
          %p163 = pneg %p85
        $region14: #{attention_cnn_forward.11} parent=11 // pred_check_branch
          %165 = sbr.rel (%p163) target = $region16
        $region15: #{attention_cnn_forward.11} parent=11 // pred_region
          _
        $region16: #{attention_cnn_forward.11} parent=11 // pred_fallthru
          _
        // Predicated region
        $region17: #{attention_cnn_forward.11} parent=11 // pred_check
          %p166 = pneg %p106
        $region18: #{attention_cnn_forward.11} parent=11 // pred_check_branch
          %168 = sbr.rel (%p166) target = $region20
        $region19: #{attention_cnn_forward.11} parent=11 // pred_region
          _
        $region20: #{attention_cnn_forward.11} parent=11 // pred_fallthru
          _
        // Predicated region
        $region21: #{attention_cnn_forward.11} parent=11 // pred_check
          %p169 = pneg %p127
        $region22: #{attention_cnn_forward.11} parent=11 // pred_check_branch
          %171 = sbr.rel (%p169) target = $region24
        $region23: #{attention_cnn_forward.11} parent=11 // pred_region
          _
        $region24: #{attention_cnn_forward.11} parent=11 // pred_fallthru
          _
      $region12: #{attention_cnn_forward.11} parent=5 // pred_fallthru
        _
      %p172 = scmp.lt.s32.totalorder %s12, 2
      // Predicated region
      $region25: #{attention_cnn_forward.11} parent=5 // pred_check
        %p173 = pneg %p172
      $region26: #{attention_cnn_forward.11} parent=5 // pred_check_branch
        %175 = sbr.rel (%p173) target = $region28
      $region27: #{attention_cnn_forward.11} parent=5 // pred_region
        // Predicated region
        $region29: #{attention_cnn_forward.11} parent=27 // pred_check
          %p176 = pneg %p32
        $region30: #{attention_cnn_forward.11} parent=27 // pred_check_branch
          %178 = sbr.rel (%p176) target = $region32
        $region31: #{attention_cnn_forward.11} parent=27 // pred_region
          %s179 = smul.u32 2, %s12
          %p180 = scmp.lt.s32.totalorder %s179, 3
          %s181 = scalar_select %p180, %s179, 3
          %s182 = smul.addr %s181, 2
          %s183 = scalar_lea.vmem %s0, %s182
          %s184 = smul.u32 2, %s12
        $region32: #{attention_cnn_forward.11} parent=27 // pred_fallthru
          _
        // Predicated region
        $region33: #{attention_cnn_forward.11} parent=27 // pred_check
          %p185 = pneg %p58
        $region34: #{attention_cnn_forward.11} parent=27 // pred_check_branch
          %187 = sbr.rel (%p185) target = $region36
        $region35: #{attention_cnn_forward.11} parent=27 // pred_region
          %s188 = smul.u32 32, %s12
          %p189 = scmp.lt.s32.totalorder %s188, 63
          %s190 = scalar_select %p189, %s188, 63
          %s191 = smul.addr %s190, 2
          %s192 = smul.addr %s191, 4
          %s193 = scalar_lea.vmem %s1, %s192
          %s194 = smul.u32 32, %s12
        $region36: #{attention_cnn_forward.11} parent=27 // pred_fallthru
          _
      $region28: #{attention_cnn_forward.11} parent=5 // pred_fallthru
        _
      %p195 = scmp.le.s32.totalorder 1, %s12
      %p196 = scmp.lt.s32.totalorder %s12, 3
      %p197 = pnand %p195, %p196
      %p198 = pneg %p197
      // Predicated region
      $region37: #{attention_cnn_forward.11} parent=5 // pred_check
        _
      $region38: #{attention_cnn_forward.11} parent=5 // pred_check_branch
        %200 = sbr.rel (%p197) target = $region40
      $region39: #{attention_cnn_forward.11} parent=5 // pred_region
        %s201 = ssub.s32 %s12, 1
        %s202 = smul.u32 2, %s17
        %p203 = scmp.lt.s32.totalorder %s202, 3
        %s204 = scalar_select %p203, %s202, 3
        %s205 = smul.addr %s204, 2
        %s206 = scalar_lea.vmem %s0, %s205
        %p207 = pneg %p38
        %p208 = pneg %p35
        %s209 = smul.u32 32, %s17
        %p210 = scmp.lt.s32.totalorder %s209, 63
        %s211 = scalar_select %p210, %s209, 63
        %s212 = smul.addr %s211, 2
        %s213 = smul.addr %s212, 4
        %s214 = scalar_lea.vmem %s1, %s213
        %p215 = pneg %p64
        %p216 = pneg %p61
        %p217 = pneg %p85
        %p218 = pneg %p82
        %p219 = pneg %p106
        %p220 = pneg %p103
        %p221 = pneg %p127
        %p222 = pneg %p124
        %p223 = pneg %p148
        %p224 = pneg %p145
        %s225 = smul.u32 2, %s17
        %p226 = scmp.lt.s32.totalorder %s225, 3
        %s227 = scalar_select %p226, %s225, 3
        %s228 = smul.addr %s227, 2
        %s229 = scalar_lea.vmem %s0, %s228
        %s230 = smul.u32 2, %s17
        %s231 = smul.u32 32, %s17
        %p232 = scmp.lt.s32.totalorder %s231, 63
        %s233 = scalar_select %p232, %s231, 63
        %s234 = smul.addr %s233, 2
        %s235 = smul.addr %s234, 4
        %s236 = scalar_lea.vmem %s1, %s235
        %s237 = smul.u32 32, %s17
        %p238 = scmp.eq.s32.totalorder %s17, 0
        // Predicated region
        $region41: #{attention_cnn_forward.11} parent=39 // pred_check
          %p239 = pneg %p238
        $region42: #{attention_cnn_forward.11} parent=39 // pred_check_branch
          %241 = sbr.rel (%p239) target = $region44
        $region43: #{attention_cnn_forward.11} parent=39 // pred_region
          %242 = vst [vmem:[#allocation2] sm:$0xf] 0.0
        $region44: #{attention_cnn_forward.11} parent=39 // pred_fallthru
          _
        %v243 = vld [vmem:[#allocation2] sm:$0xf]
        %v244 = vld [vmem:[%s229] sm:$0xf]
        %v247 = vunpack.c.l.s4 1983009808
        %v248 = vunpack.c.0.s8 %v247
        %v249 = vlaneseq
        %v250 = vshrl.u32 %v249, 7
        %v251 = vsub.s32 %v248, %v250
        %v252 = vrot.slane %v244, %v251
        %v253 = vcombine.high %v252, %v252
        %v256 = vpack.c.bf16 %v252, %v252
        %v257 = vpack.c.bf16 %v253, %v253
        %v258 = vld [vmem:[%s236] sm:$0xff]
        %v259 = vld [vmem:[%s236 + $0x8] sm:$0xff]
        %v260 = vld [vmem:[%s236 + $0x10] sm:$0xff]
        %v261 = vld [vmem:[%s236 + $0x18] sm:$0xff]
        %v262 = vld [vmem:[%s236 + $0x20] sm:$0xff]
        %v263 = vld [vmem:[%s236 + $0x28] sm:$0xff]
        %v264 = vld [vmem:[%s236 + $0x30] sm:$0xff]
        %v265 = vld [vmem:[%s236 + $0x38] sm:$0xff]
        %v266 = vld [vmem:[%s236 + $0x40] sm:$0xff]
        %v267 = vld [vmem:[%s236 + $0x48] sm:$0xff]
        %v268 = vld [vmem:[%s236 + $0x50] sm:$0xff]
        %v269 = vld [vmem:[%s236 + $0x58] sm:$0xff]
        %v270 = vld [vmem:[%s236 + $0x60] sm:$0xff]
        %v271 = vld [vmem:[%s236 + $0x68] sm:$0xff]
        %v272 = vld [vmem:[%s236 + $0x70] sm:$0xff]
        %v273 = vld [vmem:[%s236 + $0x78] sm:$0xff]
        %v274 = vld [vmem:[%s236 + $0x80] sm:$0xff]
        %v275 = vld [vmem:[%s236 + $0x88] sm:$0xff]
        %v276 = vld [vmem:[%s236 + $0x90] sm:$0xff]
        %v277 = vld [vmem:[%s236 + $0x98] sm:$0xff]
        %v278 = vld [vmem:[%s236 + $0xa0] sm:$0xff]
        %v279 = vld [vmem:[%s236 + $0xa8] sm:$0xff]
        %v280 = vld [vmem:[%s236 + $0xb0] sm:$0xff]
        %v281 = vld [vmem:[%s236 + $0xb8] sm:$0xff]
        %v282 = vld [vmem:[%s236 + $0xc0] sm:$0xff]
        %v283 = vld [vmem:[%s236 + $0xc8] sm:$0xff]
        %v284 = vld [vmem:[%s236 + $0xd0] sm:$0xff]
        %v285 = vld [vmem:[%s236 + $0xd8] sm:$0xff]
        %v286 = vld [vmem:[%s236 + $0xe0] sm:$0xff]
        %v287 = vld [vmem:[%s236 + $0xe8] sm:$0xff]
        %v288 = vld [vmem:[%s236 + $0xf0] sm:$0xff]
        %v289 = vld [vmem:[%s236 + $0xf8] sm:$0xff]
        %v322 = vunpack.c.l.b16 %v258
        %v323 = vunpack.c.h.b16 %v258
        %v324 = vunpack.c.l.b16 %v259
        %v325 = vunpack.c.h.b16 %v259
        %v326 = vunpack.c.l.b16 %v260
        %v327 = vunpack.c.h.b16 %v260
        %v328 = vunpack.c.l.b16 %v261
        %v329 = vunpack.c.h.b16 %v261
        %v330 = vunpack.c.l.b16 %v262
        %v331 = vunpack.c.h.b16 %v262
        %v332 = vunpack.c.l.b16 %v263
        %v333 = vunpack.c.h.b16 %v263
        %v334 = vunpack.c.l.b16 %v264
        %v335 = vunpack.c.h.b16 %v264
        %v336 = vunpack.c.l.b16 %v265
        %v337 = vunpack.c.h.b16 %v265
        %v338 = vunpack.c.l.b16 %v266
        %v339 = vunpack.c.h.b16 %v266
        %v340 = vunpack.c.l.b16 %v267
        %v341 = vunpack.c.h.b16 %v267
        %v342 = vunpack.c.l.b16 %v268
        %v343 = vunpack.c.h.b16 %v268
        %v344 = vunpack.c.l.b16 %v269
        %v345 = vunpack.c.h.b16 %v269
        %v346 = vunpack.c.l.b16 %v270
        %v347 = vunpack.c.h.b16 %v270
        %v348 = vunpack.c.l.b16 %v271
        %v349 = vunpack.c.h.b16 %v271
        %v350 = vunpack.c.l.b16 %v272
        %v351 = vunpack.c.h.b16 %v272
        %v352 = vunpack.c.l.b16 %v273
        %v353 = vunpack.c.h.b16 %v273
        %v354 = vunpack.c.l.b16 %v274
        %v355 = vunpack.c.h.b16 %v274
        %v356 = vunpack.c.l.b16 %v275
        %v357 = vunpack.c.h.b16 %v275
        %v358 = vunpack.c.l.b16 %v276
        %v359 = vunpack.c.h.b16 %v276
        %v360 = vunpack.c.l.b16 %v277
        %v361 = vunpack.c.h.b16 %v277
        %v362 = vunpack.c.l.b16 %v278
        %v363 = vunpack.c.h.b16 %v278
        %v364 = vunpack.c.l.b16 %v279
        %v365 = vunpack.c.h.b16 %v279
        %v366 = vunpack.c.l.b16 %v280
        %v367 = vunpack.c.h.b16 %v280
        %v368 = vunpack.c.l.b16 %v281
        %v369 = vunpack.c.h.b16 %v281
        %v370 = vunpack.c.l.b16 %v282
        %v371 = vunpack.c.h.b16 %v282
        %v372 = vunpack.c.l.b16 %v283
        %v373 = vunpack.c.h.b16 %v283
        %v374 = vunpack.c.l.b16 %v284
        %v375 = vunpack.c.h.b16 %v284
        %v376 = vunpack.c.l.b16 %v285
        %v377 = vunpack.c.h.b16 %v285
        %v378 = vunpack.c.l.b16 %v286
        %v379 = vunpack.c.h.b16 %v286
        %v380 = vunpack.c.l.b16 %v287
        %v381 = vunpack.c.h.b16 %v287
        %v382 = vunpack.c.l.b16 %v288
        %v383 = vunpack.c.h.b16 %v288
        %v384 = vunpack.c.l.b16 %v289
        %v385 = vunpack.c.h.b16 %v289
        %v386 = vpack.c.b16 %v324, %v322
        %v387 = vpack.c.b16 %v325, %v323
        %v388 = vpack.c.b16 %v328, %v326
        %v389 = vpack.c.b16 %v329, %v327
        %v390 = vpack.c.b16 %v332, %v330
        %v391 = vpack.c.b16 %v333, %v331
        %v392 = vpack.c.b16 %v336, %v334
        %v393 = vpack.c.b16 %v337, %v335
        %v394 = vpack.c.b16 %v340, %v338
        %v395 = vpack.c.b16 %v341, %v339
        %v396 = vpack.c.b16 %v344, %v342
        %v397 = vpack.c.b16 %v345, %v343
        %v398 = vpack.c.b16 %v348, %v346
        %v399 = vpack.c.b16 %v349, %v347
        %v400 = vpack.c.b16 %v352, %v350
        %v401 = vpack.c.b16 %v353, %v351
        %v402 = vpack.c.b16 %v356, %v354
        %v403 = vpack.c.b16 %v357, %v355
        %v404 = vpack.c.b16 %v360, %v358
        %v405 = vpack.c.b16 %v361, %v359
        %v406 = vpack.c.b16 %v364, %v362
        %v407 = vpack.c.b16 %v365, %v363
        %v408 = vpack.c.b16 %v368, %v366
        %v409 = vpack.c.b16 %v369, %v367
        %v410 = vpack.c.b16 %v372, %v370
        %v411 = vpack.c.b16 %v373, %v371
        %v412 = vpack.c.b16 %v376, %v374
        %v413 = vpack.c.b16 %v377, %v375
        %v414 = vpack.c.b16 %v380, %v378
        %v415 = vpack.c.b16 %v381, %v379
        %v416 = vpack.c.b16 %v384, %v382
        %v417 = vpack.c.b16 %v385, %v383
        %450 = vmatprep.subr.bf16.mxu0 %v401
        %451 = vmatpush1.bf16.msra.mxu0 %v400
        %452 = vmatprep.subr.bf16.mxu0 %v399
        %453 = vmatpush1.bf16.msra.mxu0 %v398
        %454 = vmatprep.subr.bf16.mxu0 %v397
        %455 = vmatpush1.bf16.msra.mxu0 %v396
        %456 = vmatprep.subr.bf16.mxu0 %v395
        %457 = vmatpush1.bf16.msra.mxu0 %v394
        %458 = vmatprep.subr.bf16.mxu0 %v393
        %459 = vmatpush1.bf16.msra.mxu0 %v392
        %460 = vmatprep.subr.bf16.mxu0 %v391
        %461 = vmatpush1.bf16.msra.mxu0 %v390
        %462 = vmatprep.subr.bf16.mxu0 %v389
        %463 = vmatpush1.bf16.msra.mxu0 %v388
        %464 = vmatprep.subr.bf16.mxu0 %v387
        %465 = vmatpush1.bf16.msra.mxu0 %v386
        %466 = vmatprep.subr.bf16.mxu0 %v417
        %467 = vmatpush2.bf16.msra.mxu0 %v416
        %468 = vmatprep.subr.bf16.mxu0 %v415
        %469 = vmatpush2.bf16.msra.mxu0 %v414
        %470 = vmatprep.subr.bf16.mxu0 %v413
        %471 = vmatpush2.bf16.msra.mxu0 %v412
        %472 = vmatprep.subr.bf16.mxu0 %v411
        %473 = vmatpush2.bf16.msra.mxu0 %v410
        %474 = vmatprep.subr.bf16.mxu0 %v409
        %475 = vmatpush2.bf16.msra.mxu0 %v408
        %476 = vmatprep.subr.bf16.mxu0 %v407
        %477 = vmatpush2.bf16.msra.mxu0 %v406
        %478 = vmatprep.subr.bf16.mxu0 %v405
        %479 = vmatpush2.bf16.msra.mxu0 %v404
        %480 = vmatprep.subr.bf16.mxu0 %v403
        %481 = vmatpush2.bf16.msra.mxu0 %v402
        %482 = vmatprep.mubr.bf16.mxu0 %v257
        %483 = vmatmul.mubr.bf16.gmra.mxu0 %v256
        %v484 = vpop.f32.mrf.mxu0
        %v485 = vadd.f32 0.0, %v484
        %v486 = vpop.f32.mrf.mxu0
        %v487 = vadd.f32 0.0, %v486
        %v488 = vpop.f32.mrf.mxu0
        %v489 = vpop.f32.mrf.mxu0
        %490 = vdwg.mxu0
        %v493 = vcombine.low %v485, %v487
        %v495 = vunpack.c.l.s4 1983009808
        %v496 = vunpack.c.0.s8 %v495
        %v497 = vlaneseq
        %v498 = vshrl.u32 %v497, 7
        %v499 = vsub.s32 %v496, %v498
        %v500 = vrot.slane %v493, %v499
        %v502 = vadd.f32 %v243, %v500
        %503 = vst [vmem:[#allocation2] sm:$0xf] %v502
        %p504 = scmp.eq.s32.totalorder %s17, 1
        // Predicated region
        $region45: #{attention_cnn_forward.11} parent=39 // pred_check
          %p505 = pneg %p504
        $region46: #{attention_cnn_forward.11} parent=39 // pred_check_branch
          %507 = sbr.rel (%p505) target = $region48
        $region47: #{attention_cnn_forward.11} parent=39 // pred_region
          %v508 = vld [vmem:[#allocation2] sm:$0xf]
          %v509 = vld [vmem:[%s2] sm:$0x3]
          %v511 = vlaneseq
          %v512 = vshrl.u32 %v511, 7
          %v513 = vsub.s32 0, %v512
          %v514 = vrot.slane %v509, %v513
          %v515 = vlaneseq
          %v516 = vshrl.u32 %v515, 7
          %v517 = vsub.s32 1, %v516
          %v518 = vrot.slane %v509, %v517
          %v519 = vcombine.low %v514, %v518
          %v521 = vunpack.c.l.s4 1983009808
          %v522 = vunpack.c.0.s8 %v521
          %v523 = vlaneseq
          %v524 = vshrl.u32 %v523, 7
          %v525 = vsub.s32 %v522, %v524
          %v526 = vrot.slane %v519, %v525
          %v528 = vadd.f32 %v508, %v526
          %v529 = vmax.f32 %v528, 0.0
          %v530 = vld [vmem:[%s3] sm:$0xff]
          %v531 = vld [vmem:[%s3 + $0x8] sm:$0xff]
          %v532 = vld [vmem:[%s3 + $0x10] sm:$0xff]
          %v533 = vld [vmem:[%s3 + $0x18] sm:$0xff]
          %v534 = vld [vmem:[%s3 + $0x20] sm:$0xff]
          %v535 = vld [vmem:[%s3 + $0x28] sm:$0xff]
          %v536 = vld [vmem:[%s3 + $0x30] sm:$0xff]
          %v537 = vld [vmem:[%s3 + $0x38] sm:$0xff]
          %v538 = vld [vmem:[%s3 + $0x40] sm:$0xff]
          %v539 = vld [vmem:[%s3 + $0x48] sm:$0xff]
          %v540 = vld [vmem:[%s3 + $0x50] sm:$0xff]
          %v541 = vld [vmem:[%s3 + $0x58] sm:$0xff]
          %v542 = vld [vmem:[%s3 + $0x60] sm:$0xff]
          %v543 = vld [vmem:[%s3 + $0x68] sm:$0xff]
          %v544 = vld [vmem:[%s3 + $0x70] sm:$0xff]
          %v545 = vld [vmem:[%s3 + $0x78] sm:$0xff]
          %v546 = vld [vmem:[%s3 + $0x80] sm:$0xff]
          %v547 = vld [vmem:[%s3 + $0x88] sm:$0xff]
          %v548 = vld [vmem:[%s3 + $0x90] sm:$0xff]
          %v549 = vld [vmem:[%s3 + $0x98] sm:$0xff]
          %v550 = vld [vmem:[%s3 + $0xa0] sm:$0xff]
          %v551 = vld [vmem:[%s3 + $0xa8] sm:$0xff]
          %v552 = vld [vmem:[%s3 + $0xb0] sm:$0xff]
          %v553 = vld [vmem:[%s3 + $0xb8] sm:$0xff]
          %v554 = vld [vmem:[%s3 + $0xc0] sm:$0xff]
          %v555 = vld [vmem:[%s3 + $0xc8] sm:$0xff]
          %v556 = vld [vmem:[%s3 + $0xd0] sm:$0xff]
          %v557 = vld [vmem:[%s3 + $0xd8] sm:$0xff]
          %v558 = vld [vmem:[%s3 + $0xe0] sm:$0xff]
          %v559 = vld [vmem:[%s3 + $0xe8] sm:$0xff]
          %v560 = vld [vmem:[%s3 + $0xf0] sm:$0xff]
          %v561 = vld [vmem:[%s3 + $0xf8] sm:$0xff]
          %v562 = vld [vmem:[%s4] sm:$0x1]
          %v564 = vlaneseq
          %v565 = vshrl.u32 %v564, 7
          %v566 = vsub.s32 0, %v565
          %v567 = vrot.slane %v562, %v566
          %v571 = vunpack.c.l.s4 1983009808
          %v572 = vunpack.c.0.s8 %v571
          %v573 = vlaneseq
          %v574 = vshrl.u32 %v573, 7
          %v575 = vsub.s32 %v572, %v574
          %v576 = vrot.slane %v529, %v575
          %v577 = vcombine.high %v576, %v576
          %580 = vmatprep.subr.mxu0 0.0
          %581 = vmatpush1.msra.mxu0 %v545
          %582 = vmatprep.subr.mxu0 0.0
          %583 = vmatpush1.msra.mxu0 %v544
          %584 = vmatprep.subr.mxu0 0.0
          %585 = vmatpush1.msra.mxu0 %v543
          %586 = vmatprep.subr.mxu0 0.0
          %587 = vmatpush1.msra.mxu0 %v542
          %588 = vmatprep.subr.mxu0 0.0
          %589 = vmatpush1.msra.mxu0 %v541
          %590 = vmatprep.subr.mxu0 0.0
          %591 = vmatpush1.msra.mxu0 %v540
          %592 = vmatprep.subr.mxu0 0.0
          %593 = vmatpush1.msra.mxu0 %v539
          %594 = vmatprep.subr.mxu0 0.0
          %595 = vmatpush1.msra.mxu0 %v538
          %596 = vmatprep.subr.mxu0 0.0
          %597 = vmatpush1.msra.mxu0 %v537
          %598 = vmatprep.subr.mxu0 0.0
          %599 = vmatpush1.msra.mxu0 %v536
          %600 = vmatprep.subr.mxu0 0.0
          %601 = vmatpush1.msra.mxu0 %v535
          %602 = vmatprep.subr.mxu0 0.0
          %603 = vmatpush1.msra.mxu0 %v534
          %604 = vmatprep.subr.mxu0 0.0
          %605 = vmatpush1.msra.mxu0 %v533
          %606 = vmatprep.subr.mxu0 0.0
          %607 = vmatpush1.msra.mxu0 %v532
          %608 = vmatprep.subr.mxu0 0.0
          %609 = vmatpush1.msra.mxu0 %v531
          %610 = vmatprep.subr.mxu0 0.0
          %611 = vmatpush1.msra.mxu0 %v530
          %612 = vmatprep.subr.mxu0 0.0
          %613 = vmatpush2.msra.mxu0 %v561
          %614 = vmatprep.subr.mxu0 0.0
          %615 = vmatpush2.msra.mxu0 %v560
          %616 = vmatprep.subr.mxu0 0.0
          %617 = vmatpush2.msra.mxu0 %v559
          %618 = vmatprep.subr.mxu0 0.0
          %619 = vmatpush2.msra.mxu0 %v558
          %620 = vmatprep.subr.mxu0 0.0
          %621 = vmatpush2.msra.mxu0 %v557
          %622 = vmatprep.subr.mxu0 0.0
          %623 = vmatpush2.msra.mxu0 %v556
          %624 = vmatprep.subr.mxu0 0.0
          %625 = vmatpush2.msra.mxu0 %v555
          %626 = vmatprep.subr.mxu0 0.0
          %627 = vmatpush2.msra.mxu0 %v554
          %628 = vmatprep.subr.mxu0 0.0
          %629 = vmatpush2.msra.mxu0 %v553
          %630 = vmatprep.subr.mxu0 0.0
          %631 = vmatpush2.msra.mxu0 %v552
          %632 = vmatprep.subr.mxu0 0.0
          %633 = vmatpush2.msra.mxu0 %v551
          %634 = vmatprep.subr.mxu0 0.0
          %635 = vmatpush2.msra.mxu0 %v550
          %636 = vmatprep.subr.mxu0 0.0
          %637 = vmatpush2.msra.mxu0 %v549
          %638 = vmatprep.subr.mxu0 0.0
          %639 = vmatpush2.msra.mxu0 %v548
          %640 = vmatprep.subr.mxu0 0.0
          %641 = vmatpush2.msra.mxu0 %v547
          %642 = vmatprep.subr.mxu0 0.0
          %643 = vmatpush2.msra.mxu0 %v546
          %644 = vmatprep.mubr.f32.mxu0 %v577
          %645 = vmatmul.mubr.f32.gmra.mxu0 %v576
          %v646 = vpop.f32.mrf.mxu0
          %v647 = vadd.f32 %v567, %v646
          %v648 = vpop.f32.mrf.mxu0
          %649 = vdwg.mxu0
          %vm650 = vcmask 74752
          %651 = vst.msk [vmem:[#allocation3] sm:$0x3] %vm650, %v647
        $region48: #{attention_cnn_forward.11} parent=39 // pred_fallthru
          _
        // Predicated region
        $region49: #{attention_cnn_forward.11} parent=39 // pred_check
          %p652 = pneg %p145
        $region50: #{attention_cnn_forward.11} parent=39 // pred_check_branch
          %654 = sbr.rel (%p652) target = $region52
        $region51: #{attention_cnn_forward.11} parent=39 // pred_region
          %s656 = ssub.s32 32, 32
          %657 = vsyncadd [#allocation4], %s656
          %s659 = sshll.u32 [#allocation3], 4
          %s660 = int_to_ptr.vmem [resolvable:$true] %s659
          %662 = dma.vmem_to_hbm [thread:$0]  %s660, 32, %s5, [#allocation4]
        $region52: #{attention_cnn_forward.11} parent=39 // pred_fallthru
          _
        // Predicated region
        $region53: #{attention_cnn_forward.11} parent=39 // pred_check
          %p663 = pneg %p145
        $region54: #{attention_cnn_forward.11} parent=39 // pred_check_branch
          %665 = sbr.rel (%p663) target = $region56
        $region55: #{attention_cnn_forward.11} parent=39 // pred_region
          %666 = dma.done [#allocation4], 32
        $region56: #{attention_cnn_forward.11} parent=39 // pred_fallthru
          _
      $region40: #{attention_cnn_forward.11} parent=5 // pred_fallthru
        _
      %p667 = scmp.le.s32.totalorder 2, %s12
      // Predicated region
      $region57: #{attention_cnn_forward.11} parent=5 // pred_check
        %p668 = pneg %p667
      $region58: #{attention_cnn_forward.11} parent=5 // pred_check_branch
        %670 = sbr.rel (%p668) target = $region60
      $region59: #{attention_cnn_forward.11} parent=5 // pred_region
        %s671 = ssub.s32 %s12, 2
      $region60: #{attention_cnn_forward.11} parent=5 // pred_fallthru
        _
    $region6: #{attention_cnn_forward.11} parent=1 // loop_footer
      %s16 = sadd.s32 1, %s12
    $region7: #{attention_cnn_forward.11} parent=1 // loop_footer_branch
      %11 = sbr.rel target = $region3
    $region8: #{attention_cnn_forward.11} parent=1 // loop_exit
      _
    %672 = vsyncpa [#allocation4], 1
    %s673 = scalar_lea.sflag [#allocation4], 1
    %674 = vsyncpa %s673, 1

</llo_original>
